<compile_context>
chip_gen: v7x
topology: tpu7x:2x2x1
jax: 0.10.0
libtpu: 0.0.40
codegen_flags: <defaults>
</compile_context>

<pallas_src>
import jax
import jax.numpy as jnp
import numpy as np
from jax.experimental import pallas as pl
from jax.experimental.pallas import tpu as pltpu

# Model dimensions (hard-coded in the PyTorch module).
HIDDEN = 768
PROJ = 384
NUM_CONCEPTS = 50
NUM_CLASSES = 2
LN_EPS = 1e-5
NEG_BIG = -1e9


# --------------------------------------------------------------------------- #
# In-kernel helpers (all f32 elementwise math; v5e VPU/EUP have no bf16)
# --------------------------------------------------------------------------- #
def _layernorm(x, g, b):
    mu = jnp.mean(x, axis=-1, keepdims=True)
    var = jnp.mean((x - mu) ** 2, axis=-1, keepdims=True)
    return (x - mu) * jax.lax.rsqrt(var + LN_EPS) * g + b


def _sigmoid(x):
    # clamp so masked (-1e9-ish) logits never produce inf before the reciprocal
    xc = jnp.clip(x, -30.0, 30.0)
    return pl.reciprocal(1.0 + jnp.exp(-xc), approx=True)


# --------------------------------------------------------------------------- #
# Kernel
# --------------------------------------------------------------------------- #
def _kernel(h_ref, bias_ref,
            wqk_ref, bqk_ref,
            ws1_ref, bs1_ref, g1_ref, be1_ref, ws2_ref, bs2_ref,
            wc1_ref, bc1_ref, g2_ref, be2_ref, wc2_ref, bc2_ref,
            wcc_ref, wch_ref, bcls_ref,
            logits_ref, rmask_ref, csc_ref, mp_ref):
    Bt, S, H = h_ref.shape
    h3 = h_ref[...]                                # (Bt, S, H) bf16 (MXU operand)
    h3f = h3.astype(jnp.float32)                   # f32 copy for pooling / reductions
    h2 = h3.reshape(Bt * S, H)                     # flatten for big matmuls
    bias = bias_ref[...]                           # (Bt, S) f32 additive key mask

    # Fused query/key projection (wq pre-scaled by 1/sqrt(PROJ)); bf16 in, f32 acc.
    qk = jnp.dot(h2, wqk_ref[...], preferred_element_type=jnp.float32) + bqk_ref[...]
    q3 = qk[:, :PROJ].reshape(Bt, S, PROJ).astype(jnp.bfloat16)
    k3 = qk[:, PROJ:].reshape(Bt, S, PROJ).astype(jnp.bfloat16)

    # Attention scores (already scaled), masked over keys with additive bias.
    scores = jnp.einsum('bqp,bkp->bqk', q3, k3,
                        preferred_element_type=jnp.float32)
    scores = scores + bias[:, None, :]

    m = jnp.max(scores, axis=-1, keepdims=True)
    e = jnp.exp(scores - m)
    attn = (e * pl.reciprocal(jnp.sum(e, axis=-1, keepdims=True),
                              approx=True)).astype(jnp.bfloat16)   # bf16 MXU operand

    ctx = jnp.einsum('bqk,bkh->bqh', attn, h3,
                     preferred_element_type=jnp.float32)           # (Bt, S, H) f32
    ctx2 = ctx.reshape(Bt * S, H).astype(jnp.bfloat16)

    # score_ffn: Linear(768,384) -> LayerNorm -> ReLU -> (Dropout=id) -> Linear(384,1)
    x = jnp.dot(ctx2, ws1_ref[...], preferred_element_type=jnp.float32) + bs1_ref[...]
    x = jnp.maximum(_layernorm(x, g1_ref[...], be1_ref[...]), 0.0)
    x3 = x.reshape(Bt, S, PROJ)
    # final Linear(384,1) as f32 mul + lane-reduce so rs stays in row layout
    rs = jnp.sum(x3 * ws2_ref[...].reshape(1, 1, PROJ), axis=-1) + bs2_ref[...]
    rs = rs + bias                                 # mask invalid tokens (row layout)
    rmask = _sigmoid(rs)                           # (Bt, S), lane-dense
    rmask_ref[...] = rmask

    # rationale-weighted pooling: VPU multiply + reduce (no M=1 MXU matmul)
    mp_sum = jnp.sum(h3f * rmask[:, :, None], axis=1)              # (Bt, H)
    denom = jnp.sum(rmask, axis=-1, keepdims=True) + 1e-10         # (Bt, 1)
    mp = mp_sum * pl.reciprocal(denom, approx=True)
    mp_ref[...] = mp
    pooled = jnp.mean(h3f, axis=1)                                 # (Bt, H) f32

    # concept_mapper: Linear(768,384) -> LayerNorm -> ReLU -> (Dropout=id) -> Linear(384,K)
    cx = jnp.dot(mp.astype(jnp.bfloat16), wc1_ref[...],
                 preferred_element_type=jnp.float32) + bc1_ref[...]
    cx = jnp.maximum(_layernorm(cx, g2_ref[...], be2_ref[...]), 0.0)
    clog = jnp.dot(cx.astype(jnp.bfloat16), wc2_ref[...],
                   preferred_element_type=jnp.float32) + bc2_ref[...]
    cs = _sigmoid(clog)                            # (Bt, K)
    csc_ref[...] = cs

    # classifier on concat([concept_scores, mean-pooled hidden]) as split matmul
    logits_ref[...] = (
        jnp.dot(cs.astype(jnp.bfloat16), wcc_ref[...],
                preferred_element_type=jnp.float32)
        + jnp.dot(pooled.astype(jnp.bfloat16), wch_ref[...],
                  preferred_element_type=jnp.float32)
        + bcls_ref[...])


# --------------------------------------------------------------------------- #
# Host-side: weight packing (done ONCE), tile selection, pallas_call wrapper
# --------------------------------------------------------------------------- #
def pack_params(params):
    """Pack / cast weights once (hoisted out of the per-call path)."""
    bf = jnp.bfloat16
    inv_scale = 1.0 / (PROJ ** 0.5)
    wqk = jnp.concatenate([params["wq"] * inv_scale, params["wk"]], axis=1).astype(bf)
    bqk = jnp.concatenate([params["bq"] * inv_scale, params["bk"]], axis=1).astype(jnp.float32)
    packed = (
        wqk, bqk,
        params["ws1"].astype(bf), params["bs1"], params["g1"], params["be1"],
        params["ws2"].reshape(1, PROJ).astype(jnp.float32), params["bs2"],
        params["wc1"].astype(bf), params["bc1"], params["g2"], params["be2"],
        params["wc2"].astype(bf), params["bc2"],
        params["wcls_c"].astype(bf), params["wcls_h"].astype(bf), params["bcls"],
    )
    return tuple(jnp.asarray(w) for w in packed)


def _vmem_capacity_bytes():
    try:
        info = pltpu.get_tpu_info()
        return int(getattr(info, "vmem_capacity_bytes", 64 << 20))
    except Exception:
        return 64 << 20          # conservative (v7x per-TensorCore)


def _per_sample_vmem_bytes(S, H):
    P = PROJ
    return int(
        2 * S * H * 2                      # double-buffered bf16 hidden block
        + 2 * S * 4                        # bias block (double-buffered)
        + 2 * S * S * 4                    # scores + exp (f32)
        + S * S * 2                        # attn (bf16)
        + S * H * 4                        # context (f32)
        + S * H * 4                        # f32 copy of hidden for pooling
        + S * H * 2                        # bf16 ctx matmul operand
        + S * 2 * P * 4                    # fused q/k projection (f32)
        + 2 * S * P * 4                    # score-FFN activations (f32)
        + 2 * (S + H + NUM_CONCEPTS + NUM_CLASSES) * 4)   # outputs (dbl-buffered)


def _select_block_b(B, S, vmem_cap, weight_bytes):
    """Generation-aware batch tile: fill VMEM, fill the MXU, allow >=2 grid steps."""
    budget = max(vmem_cap - weight_bytes - (8 << 20), 2 << 20)
    per = _per_sample_vmem_bytes(S, HIDDEN)
    bt_fit = max(1, budget // per)
    bt_target = max(1, -(-2048 // S))      # ~2048 rows per step fills the MXU M dim
    bt = int(min(B, bt_fit, bt_target))
    if bt < B:
        # multi-block grid: second-to-last dims of the 2-D blocks must be 8-aligned
        bt = max(8, (bt // 8) * 8)
        # TODO(synk): for very long S (>=1024) even bt=8 may exceed a v7x TC's VMEM;
        #             a query-axis tile would be required there.
    elif B >= 16:
        # split into >=2 blocks so a multi-TensorCore chip (v7x) can shard the batch
        bt = (((B + 1) // 2 + 7) // 8) * 8
    return bt


def rationale_concept_forward(hidden_states, attention_mask, packed_weights,
                              block_b=None):
    """hidden_states: (B, S, H) f32; attention_mask: (B, S) {0,1}.
    `packed_weights` comes from pack_params() (call it once, reuse)."""
    hs_in = hidden_states
    B, S, H = hidden_states.shape
    assert H == HIDDEN

    vmem_cap = _vmem_capacity_bytes()
    weight_bytes = int(sum(int(np.prod(w.shape)) * w.dtype.itemsize
                           for w in packed_weights))
    bt = int(block_b) if block_b is not None else _select_block_b(B, S, vmem_cap,
                                                                  weight_bytes)
    nb = pl.cdiv(B, bt)
    Bp = nb * bt

    am = attention_mask.astype(jnp.float32)
    hs = hidden_states.astype(jnp.bfloat16)        # bf16 HBM stream (half traffic)
    if Bp != B:
        hs = jnp.pad(hs, ((0, Bp - B), (0, 0), (0, 0)))
        am = jnp.pad(am, ((0, Bp - B), (0, 0)))
    bias = (am - 1.0) * 1e9                        # 0 where valid, -1e9 where padded

    # constant-across-grid weights live untiled in VMEM (no double buffering)
    vmem_spec = pl.BlockSpec(memory_space=pltpu.MemorySpace.VMEM)
    in_specs = [
        pl.BlockSpec((bt, S, H), lambda i: (i, 0, 0)),   # hidden block (bf16)
        pl.BlockSpec((bt, S), lambda i: (i, 0)),         # additive mask bias
    ] + [vmem_spec] * len(packed_weights)

    out_shape = (
        jax.ShapeDtypeStruct((Bp, NUM_CLASSES), jnp.float32),
        jax.ShapeDtypeStruct((Bp, S), jnp.float32),            # lane-dense rmask
        jax.ShapeDtypeStruct((Bp, NUM_CONCEPTS), jnp.float32),
        jax.ShapeDtypeStruct((Bp, H), jnp.float32),
    )
    out_specs = (
        pl.BlockSpec((bt, NUM_CLASSES), lambda i: (i, 0)),
        pl.BlockSpec((bt, S), lambda i: (i, 0)),
        pl.BlockSpec((bt, NUM_CONCEPTS), lambda i: (i, 0)),
        pl.BlockSpec((bt, H), lambda i: (i, 0)),
    )

    # ---- cost estimate + VMEM budget ----------------------------------------
    P, K, C = PROJ, NUM_CONCEPTS, NUM_CLASSES
    flops = int(2 * Bp * S * (H * 2 * P)            # fused q/k
                + 2 * Bp * S * S * P                # scores
                + 2 * Bp * S * S * H                # context
                + 2 * Bp * S * (H * P + P)          # score ffn
                + 2 * Bp * S * H                    # pooling
                + 2 * Bp * (H * P + P * K)          # concept mapper
                + 2 * Bp * (K * C + H * C))         # classifier
    transcendentals = int(Bp * S * S + 2 * Bp * S + Bp * K + Bp)
    bytes_accessed = int(Bp * S * H * 2 + Bp * S * 4 + weight_bytes
                         + Bp * (C + S + K + H) * 4)
    cost = pl.CostEstimate(flops=flops, transcendentals=transcendentals,
                           bytes_accessed=bytes_accessed)

    vmem_est = weight_bytes + bt * _per_sample_vmem_bytes(S, H) + (6 << 20)
    vmem_limit = int(min(max(vmem_est, 32 << 20),
                         max(vmem_cap - (4 << 20), 32 << 20)))

    logits, rmask, csc, mp = pl.pallas_call(
        _kernel,
        out_shape=out_shape,
        grid=(nb,),
        in_specs=in_specs,
        out_specs=out_specs,
        cost_estimate=cost,
        compiler_params=pltpu.CompilerParams(
            dimension_semantics=("parallel",),       # shards batch across TCs (v7x)
            vmem_limit_bytes=vmem_limit),
    )(hs, bias, *packed_weights)

    return {
        "logits": logits[:B],
        "rationale_mask": rmask[:B],
        "concept_scores": csc[:B],
        "hidden_states": hs_in,
        "masked_pooled": mp[:B],
    }


# --------------------------------------------------------------------------- #
# Pure-JAX reference mirroring the PyTorch forward (post-encoder)
# --------------------------------------------------------------------------- #
def ref_forward(hidden_states, attention_mask, params):
    h = hidden_states
    am = attention_mask.astype(jnp.float32)
    q = h @ params["wq"] + params["bq"]
    k = h @ params["wk"] + params["bk"]
    scores = jnp.einsum("bqd,bkd->bqk", q, k) / (PROJ ** 0.5)
    scores = jnp.where(am[:, None, :] > 0, scores, NEG_BIG)
    attn = jax.nn.softmax(scores, axis=-1)
    ctx = jnp.einsum("bqk,bkh->bqh", attn, h)

    def ln(x, g, b):
        mu = x.mean(-1, keepdims=True)
        var = ((x - mu) ** 2).mean(-1, keepdims=True)
        return (x - mu) / jnp.sqrt(var + LN_EPS) * g + b

    x = jax.nn.relu(ln(ctx @ params["ws1"] + params["bs1"], params["g1"], params["be1"]))
    rs = (x @ params["ws2"] + params["bs2"])[..., 0]
    rs = jnp.where(am > 0, rs, NEG_BIG)
    rmask = jax.nn.sigmoid(rs)
    mp = (h * rmask[..., None]).sum(1) / (rmask.sum(1, keepdims=True) + 1e-10)
    cx = jax.nn.relu(ln(mp @ params["wc1"] + params["bc1"], params["g2"], params["be2"]))
    cs = jax.nn.sigmoid(cx @ params["wc2"] + params["bc2"])
    pooled = h.mean(1)
    combined = jnp.concatenate([cs, pooled], axis=1)
    wcls = jnp.concatenate([params["wcls_c"], params["wcls_h"]], axis=0)
    logits = combined @ wcls + params["bcls"]
    return {"logits": logits, "rationale_mask": rmask, "concept_scores": cs,
            "hidden_states": h, "masked_pooled": mp}


def make_params(key):
    ks = jax.random.split(key, 16)
    s = 0.02
    return {
        "wq": jax.random.normal(ks[0], (HIDDEN, PROJ), jnp.float32) * s,
        "bq": jax.random.normal(ks[1], (1, PROJ), jnp.float32) * s,
        "wk": jax.random.normal(ks[2], (HIDDEN, PROJ), jnp.float32) * s,
        "bk": jax.random.normal(ks[3], (1, PROJ), jnp.float32) * s,
        "ws1": jax.random.normal(ks[4], (HIDDEN, PROJ), jnp.float32) * s,
        "bs1": jax.random.normal(ks[5], (1, PROJ), jnp.float32) * s,
        "g1": jnp.ones((1, PROJ), jnp.float32),
        "be1": jnp.zeros((1, PROJ), jnp.float32),
        "ws2": jax.random.normal(ks[6], (PROJ, 1), jnp.float32) * s,
        "bs2": jax.random.normal(ks[7], (1, 1), jnp.float32) * s,
        "wc1": jax.random.normal(ks[8], (HIDDEN, PROJ), jnp.float32) * s,
        "bc1": jax.random.normal(ks[9], (1, PROJ), jnp.float32) * s,
        "g2": jnp.ones((1, PROJ), jnp.float32),
        "be2": jnp.zeros((1, PROJ), jnp.float32),
        "wc2": jax.random.normal(ks[10], (PROJ, NUM_CONCEPTS), jnp.float32) * s,
        "bc2": jax.random.normal(ks[11], (1, NUM_CONCEPTS), jnp.float32) * s,
        # classifier Linear(768+50, 2) split into concept / hidden halves
        "wcls_c": jax.random.normal(ks[12], (NUM_CONCEPTS, NUM_CLASSES), jnp.float32) * s,
        "wcls_h": jax.random.normal(ks[13], (HIDDEN, NUM_CLASSES), jnp.float32) * s,
        "bcls": jax.random.normal(ks[14], (1, NUM_CLASSES), jnp.float32) * s,
    }


if __name__ == "__main__":
    B, S = 2, 8
    VOCAB = 1000

    key = jax.random.PRNGKey(0)
    k_emb, k_ids, k_par = jax.random.split(key, 3)

    # Synthetic encoder stand-in: deterministic embedding table lookup.
    emb_table = jax.random.normal(k_emb, (VOCAB, HIDDEN), jnp.float32) * 0.02
    input_ids = jax.random.randint(k_ids, (B, S), 0, VOCAB)
    attention_mask = (jnp.arange(S)[None, :] < jnp.array([[S], [S - 2]])).astype(jnp.float32)
    hidden_states = emb_table[input_ids]  # (B, S, H)

    params = make_params(k_par)
    packed = pack_params(params)          # weight packing hoisted out of the call path

    out = rationale_concept_forward(hidden_states, attention_mask, packed)
    jax.block_until_ready(out)

    ref = ref_forward(hidden_states, attention_mask, params)
    # bf16 MXU operands (f32 accumulation) vs f32 reference: slightly looser tolerance
    for name in ("logits", "rationale_mask", "concept_scores", "masked_pooled"):
        np.testing.assert_allclose(np.asarray(out[name]), np.asarray(ref[name]),
                                   rtol=1e-2, atol=3e-3)

    print("KERNEL_OK")
</pallas_src>

<mosaic_0001>
module attributes {stable_mosaic.version = 11 : i64} {
  func.func @_kernel(%arg0: i32, %arg1: memref<2x8x768xbf16, #tpu.memory_space<vmem>>, %arg2: memref<2x8xf32, #tpu.memory_space<vmem>>, %arg3: memref<768x768xbf16, #tpu.memory_space<vmem>>, %arg4: memref<1x768xf32, #tpu.memory_space<vmem>>, %arg5: memref<768x384xbf16, #tpu.memory_space<vmem>>, %arg6: memref<1x384xf32, #tpu.memory_space<vmem>>, %arg7: memref<1x384xf32, #tpu.memory_space<vmem>>, %arg8: memref<1x384xf32, #tpu.memory_space<vmem>>, %arg9: memref<1x384xf32, #tpu.memory_space<vmem>>, %arg10: memref<1x1xf32, #tpu.memory_space<vmem>>, %arg11: memref<768x384xbf16, #tpu.memory_space<vmem>>, %arg12: memref<1x384xf32, #tpu.memory_space<vmem>>, %arg13: memref<1x384xf32, #tpu.memory_space<vmem>>, %arg14: memref<1x384xf32, #tpu.memory_space<vmem>>, %arg15: memref<384x50xbf16, #tpu.memory_space<vmem>>, %arg16: memref<1x50xf32, #tpu.memory_space<vmem>>, %arg17: memref<50x2xbf16, #tpu.memory_space<vmem>>, %arg18: memref<768x2xbf16, #tpu.memory_space<vmem>>, %arg19: memref<1x2xf32, #tpu.memory_space<vmem>>, %arg20: memref<2x2xf32, #tpu.memory_space<vmem>>, %arg21: memref<2x8xf32, #tpu.memory_space<vmem>>, %arg22: memref<2x50xf32, #tpu.memory_space<vmem>>, %arg23: memref<2x768xf32, #tpu.memory_space<vmem>>) attributes {dimension_semantics = [#tpu.dimension_semantics<parallel>], iteration_bounds = array<i64: 1>, scalar_prefetch = 0 : i64, scratch_operands = 0 : i64, tpu.core_type = #tpu.core_type<tc>, window_params = [{transform_indices = @transform_0, window_bounds = array<i64: 2, 8, 768>}, {transform_indices = @transform_1, window_bounds = array<i64: 2, 8>}, {pipeline_mode = #tpu.pipeline_mode<synchronous>, transform_indices = @transform_2, window_bounds = array<i64: 768, 768>}, {pipeline_mode = #tpu.pipeline_mode<synchronous>, transform_indices = @transform_3, window_bounds = array<i64: 1, 768>}, {pipeline_mode = #tpu.pipeline_mode<synchronous>, transform_indices = @transform_4, window_bounds = array<i64: 768, 384>}, {pipeline_mode = #tpu.pipeline_mode<synchronous>, transform_indices = @transform_5, window_bounds = array<i64: 1, 384>}, {pipeline_mode = #tpu.pipeline_mode<synchronous>, transform_indices = @transform_6, window_bounds = array<i64: 1, 384>}, {pipeline_mode = #tpu.pipeline_mode<synchronous>, transform_indices = @transform_7, window_bounds = array<i64: 1, 384>}, {pipeline_mode = #tpu.pipeline_mode<synchronous>, transform_indices = @transform_8, window_bounds = array<i64: 1, 384>}, {pipeline_mode = #tpu.pipeline_mode<synchronous>, transform_indices = @transform_9, window_bounds = array<i64: 1, 1>}, {pipeline_mode = #tpu.pipeline_mode<synchronous>, transform_indices = @transform_10, window_bounds = array<i64: 768, 384>}, {pipeline_mode = #tpu.pipeline_mode<synchronous>, transform_indices = @transform_11, window_bounds = array<i64: 1, 384>}, {pipeline_mode = #tpu.pipeline_mode<synchronous>, transform_indices = @transform_12, window_bounds = array<i64: 1, 384>}, {pipeline_mode = #tpu.pipeline_mode<synchronous>, transform_indices = @transform_13, window_bounds = array<i64: 1, 384>}, {pipeline_mode = #tpu.pipeline_mode<synchronous>, transform_indices = @transform_14, window_bounds = array<i64: 384, 50>}, {pipeline_mode = #tpu.pipeline_mode<synchronous>, transform_indices = @transform_15, window_bounds = array<i64: 1, 50>}, {pipeline_mode = #tpu.pipeline_mode<synchronous>, transform_indices = @transform_16, window_bounds = array<i64: 50, 2>}, {pipeline_mode = #tpu.pipeline_mode<synchronous>, transform_indices = @transform_17, window_bounds = array<i64: 768, 2>}, {pipeline_mode = #tpu.pipeline_mode<synchronous>, transform_indices = @transform_18, window_bounds = array<i64: 1, 2>}, {transform_indices = @transform_19, window_bounds = array<i64: 2, 2>}, {transform_indices = @transform_20, window_bounds = array<i64: 2, 8>}, {transform_indices = @transform_21, window_bounds = array<i64: 2, 50>}, {transform_indices = @transform_22, window_bounds = array<i64: 2, 768>}]} {
    %c0 = arith.constant 0 : index
    %c0_0 = arith.constant 0 : index
    %c0_1 = arith.constant 0 : index
    %0 = vector.load %arg1[%c0, %c0_0, %c0_1] : memref<2x8x768xbf16, #tpu.memory_space<vmem>>, vector<2x8x768xbf16>
    %1 = arith.extf %0 : vector<2x8x768xbf16> to vector<2x8x768xf32>
    %2 = vector.shape_cast %0 : vector<2x8x768xbf16> to vector<16x768xbf16>
    %c0_2 = arith.constant 0 : index
    %c0_3 = arith.constant 0 : index
    %3 = vector.load %arg2[%c0_2, %c0_3] : memref<2x8xf32, #tpu.memory_space<vmem>>, vector<2x8xf32>
    %c0_4 = arith.constant 0 : index
    %c0_5 = arith.constant 0 : index
    %4 = vector.load %arg3[%c0_4, %c0_5] : memref<768x768xbf16, #tpu.memory_space<vmem>>, vector<768x768xbf16>
    %cst = arith.constant dense<0.000000e+00> : vector<16x768xf32>
    %5 = tpu.matmul %2, %4, %cst {dimension_numbers = #tpu.dot_dimension_numbers<[1], [0], [0], [1], [0, 0, 1, 1], [], []>} : vector<16x768xbf16>, vector<768x768xbf16>, vector<16x768xf32> -> vector<16x768xf32>
    %c0_6 = arith.constant 0 : index
    %c0_7 = arith.constant 0 : index
    %6 = vector.load %arg4[%c0_6, %c0_7] : memref<1x768xf32, #tpu.memory_space<vmem>>, vector<1x768xf32>
    %7 = vector.broadcast %6 : vector<1x768xf32> to vector<16x768xf32>
    %8 = arith.addf %5, %7 : vector<16x768xf32>
    %9 = vector.extract_strided_slice %8 {offsets = [0, 0], sizes = [16, 384], strides = [1, 1]} : vector<16x768xf32> to vector<16x384xf32>
    %10 = vector.shape_cast %9 : vector<16x384xf32> to vector<2x8x384xf32>
    %11 = arith.truncf %10 : vector<2x8x384xf32> to vector<2x8x384xbf16>
    %12 = vector.extract_strided_slice %8 {offsets = [0, 384], sizes = [16, 384], strides = [1, 1]} : vector<16x768xf32> to vector<16x384xf32>
    %13 = vector.shape_cast %12 : vector<16x384xf32> to vector<2x8x384xf32>
    %14 = arith.truncf %13 : vector<2x8x384xf32> to vector<2x8x384xbf16>
    "tpu.trace_start"() <{level = 10 : i32, message = "bqp,bkp->bqk"}> : () -> ()
    %cst_8 = arith.constant dense<0.000000e+00> : vector<2x8x8xf32>
    %15 = tpu.matmul %11, %14, %cst_8 {dimension_numbers = #tpu.dot_dimension_numbers<[2], [2], [1], [1], [0, 0, 0, 1, 1, 1], [0], [0]>} : vector<2x8x384xbf16>, vector<2x8x384xbf16>, vector<2x8x8xf32> -> vector<2x8x8xf32>
    "tpu.trace_stop"() : () -> ()
    %16 = vector.shape_cast %3 : vector<2x8xf32> to vector<2x1x8xf32>
    %17 = vector.broadcast %16 : vector<2x1x8xf32> to vector<2x8x8xf32>
    %18 = arith.addf %15, %17 : vector<2x8x8xf32>
    %cst_9 = arith.constant dense<0xFF800000> : vector<2x8xf32>
    %19 = vector.multi_reduction <maximumf>, %18, %cst_9 [2] : vector<2x8x8xf32> to vector<2x8xf32>
    %20 = vector.shape_cast %19 : vector<2x8xf32> to vector<2x8x1xf32>
    %21 = vector.broadcast %20 : vector<2x8x1xf32> to vector<2x8x8xf32>
    %22 = arith.subf %18, %21 : vector<2x8x8xf32>
    %23 = math.exp %22 : vector<2x8x8xf32>
    %cst_10 = arith.constant dense<0.000000e+00> : vector<2x8xf32>
    %24 = vector.multi_reduction <add>, %23, %cst_10 [2] : vector<2x8x8xf32> to vector<2x8xf32>
    %25 = vector.shape_cast %24 : vector<2x8xf32> to vector<2x8x1xf32>
    %26 = tpu.reciprocal %25 {approx = true} : vector<2x8x1xf32> -> vector<2x8x1xf32>
    %27 = vector.broadcast %26 : vector<2x8x1xf32> to vector<2x8x8xf32>
    %28 = arith.mulf %23, %27 : vector<2x8x8xf32>
    %29 = arith.truncf %28 : vector<2x8x8xf32> to vector<2x8x8xbf16>
    "tpu.trace_start"() <{level = 10 : i32, message = "bqk,bkh->bqh"}> : () -> ()
    %cst_11 = arith.constant dense<0.000000e+00> : vector<2x8x768xf32>
    %30 = tpu.matmul %29, %0, %cst_11 {dimension_numbers = #tpu.dot_dimension_numbers<[2], [1], [1], [2], [0, 0, 0, 1, 1, 2], [0], [0]>} : vector<2x8x8xbf16>, vector<2x8x768xbf16>, vector<2x8x768xf32> -> vector<2x8x768xf32>
    "tpu.trace_stop"() : () -> ()
    %31 = vector.shape_cast %30 : vector<2x8x768xf32> to vector<16x768xf32>
    %32 = arith.truncf %31 : vector<16x768xf32> to vector<16x768xbf16>
    %c0_12 = arith.constant 0 : index
    %c0_13 = arith.constant 0 : index
    %33 = vector.load %arg5[%c0_12, %c0_13] : memref<768x384xbf16, #tpu.memory_space<vmem>>, vector<768x384xbf16>
    %cst_14 = arith.constant dense<0.000000e+00> : vector<16x384xf32>
    %34 = tpu.matmul %32, %33, %cst_14 {dimension_numbers = #tpu.dot_dimension_numbers<[1], [0], [0], [1], [0, 0, 1, 1], [], []>} : vector<16x768xbf16>, vector<768x384xbf16>, vector<16x384xf32> -> vector<16x384xf32>
    %c0_15 = arith.constant 0 : index
    %c0_16 = arith.constant 0 : index
    %35 = vector.load %arg6[%c0_15, %c0_16] : memref<1x384xf32, #tpu.memory_space<vmem>>, vector<1x384xf32>
    %36 = vector.broadcast %35 : vector<1x384xf32> to vector<16x384xf32>
    %37 = arith.addf %34, %36 : vector<16x384xf32>
    %c0_17 = arith.constant 0 : index
    %c0_18 = arith.constant 0 : index
    %38 = vector.load %arg7[%c0_17, %c0_18] : memref<1x384xf32, #tpu.memory_space<vmem>>, vector<1x384xf32>
    %c0_19 = arith.constant 0 : index
    %c0_20 = arith.constant 0 : index
    %39 = vector.load %arg8[%c0_19, %c0_20] : memref<1x384xf32, #tpu.memory_space<vmem>>, vector<1x384xf32>
    %cst_21 = arith.constant dense<0.000000e+00> : vector<16xf32>
    %40 = vector.multi_reduction <add>, %37, %cst_21 [1] : vector<16x384xf32> to vector<16xf32>
    %41 = vector.shape_cast %40 : vector<16xf32> to vector<16x1xf32>
    %cst_22 = arith.constant 3.840000e+02 : f32
    %42 = vector.broadcast %cst_22 : f32 to vector<16x1xf32>
    %43 = arith.divf %41, %42 : vector<16x1xf32>
    %44 = vector.broadcast %43 : vector<16x1xf32> to vector<16x384xf32>
    %45 = arith.subf %37, %44 : vector<16x384xf32>
    %46 = arith.mulf %45, %45 : vector<16x384xf32>
    %cst_23 = arith.constant dense<0.000000e+00> : vector<16xf32>
    %47 = vector.multi_reduction <add>, %46, %cst_23 [1] : vector<16x384xf32> to vector<16xf32>
    %48 = vector.shape_cast %47 : vector<16xf32> to vector<16x1xf32>
    %cst_24 = arith.constant 3.840000e+02 : f32
    %49 = vector.broadcast %cst_24 : f32 to vector<16x1xf32>
    %50 = arith.divf %48, %49 : vector<16x1xf32>
    %51 = vector.broadcast %43 : vector<16x1xf32> to vector<16x384xf32>
    %52 = arith.subf %37, %51 : vector<16x384xf32>
    %cst_25 = arith.constant 9.99999974E-6 : f32
    %53 = vector.broadcast %cst_25 : f32 to vector<16x1xf32>
    %54 = arith.addf %50, %53 : vector<16x1xf32>
    %55 = math.rsqrt %54 : vector<16x1xf32>
    %56 = vector.broadcast %55 : vector<16x1xf32> to vector<16x384xf32>
    %57 = arith.mulf %52, %56 : vector<16x384xf32>
    %58 = vector.broadcast %38 : vector<1x384xf32> to vector<16x384xf32>
    %59 = arith.mulf %57, %58 : vector<16x384xf32>
    %60 = vector.broadcast %39 : vector<1x384xf32> to vector<16x384xf32>
    %61 = arith.addf %59, %60 : vector<16x384xf32>
    %cst_26 = arith.constant 0.000000e+00 : f32
    %62 = vector.broadcast %cst_26 : f32 to vector<16x384xf32>
    %63 = arith.maximumf %61, %62 : vector<16x384xf32>
    %64 = vector.shape_cast %63 : vector<16x384xf32> to vector<2x8x384xf32>
    %c0_27 = arith.constant 0 : index
    %c0_28 = arith.constant 0 : index
    %65 = vector.load %arg9[%c0_27, %c0_28] : memref<1x384xf32, #tpu.memory_space<vmem>>, vector<1x384xf32>
    %66 = vector.shape_cast %65 : vector<1x384xf32> to vector<1x1x384xf32>
    %67 = vector.broadcast %66 : vector<1x1x384xf32> to vector<2x8x384xf32>
    %68 = arith.mulf %64, %67 : vector<2x8x384xf32>
    %cst_29 = arith.constant dense<0.000000e+00> : vector<2x8xf32>
    %69 = vector.multi_reduction <add>, %68, %cst_29 [2] : vector<2x8x384xf32> to vector<2x8xf32>
    %c0_30 = arith.constant 0 : index
    %c0_31 = arith.constant 0 : index
    %70 = vector.load %arg10[%c0_30, %c0_31] : memref<1x1xf32, #tpu.memory_space<vmem>>, vector<1x1xf32>
    %71 = vector.broadcast %70 : vector<1x1xf32> to vector<2x8xf32>
    %72 = arith.addf %69, %71 : vector<2x8xf32>
    %73 = arith.addf %72, %3 : vector<2x8xf32>
    %cst_32 = arith.constant -3.000000e+01 : f32
    %cst_33 = arith.constant 3.000000e+01 : f32
    %74 = vector.broadcast %cst_32 : f32 to vector<2x8xf32>
    %75 = arith.maximumf %74, %73 : vector<2x8xf32>
    %76 = vector.broadcast %cst_33 : f32 to vector<2x8xf32>
    %77 = arith.minimumf %76, %75 : vector<2x8xf32>
    %cst_34 = arith.constant 0.000000e+00 : f32
    %78 = vector.broadcast %cst_34 : f32 to vector<2x8xf32>
    %79 = arith.subf %78, %77 : vector<2x8xf32>
    %80 = math.exp %79 : vector<2x8xf32>
    %cst_35 = arith.constant 1.000000e+00 : f32
    %81 = vector.broadcast %cst_35 : f32 to vector<2x8xf32>
    %82 = arith.addf %81, %80 : vector<2x8xf32>
    %83 = tpu.reciprocal %82 {approx = true} : vector<2x8xf32> -> vector<2x8xf32>
    %c0_36 = arith.constant 0 : index
    %c0_37 = arith.constant 0 : index
    %84 = vector.load %arg21[%c0_36, %c0_37] : memref<2x8xf32, #tpu.memory_space<vmem>>, vector<2x8xf32>
    tpu.vector_store %arg21[%c0_36, %c0_37], %83 {strides = array<i32>} : memref<2x8xf32, #tpu.memory_space<vmem>>, vector<2x8xf32>,
    %85 = vector.shape_cast %83 : vector<2x8xf32> to vector<2x8x1xf32>
    %86 = vector.broadcast %85 : vector<2x8x1xf32> to vector<2x8x768xf32>
    %87 = arith.mulf %1, %86 : vector<2x8x768xf32>
    %cst_38 = arith.constant dense<0.000000e+00> : vector<2x768xf32>
    %88 = vector.multi_reduction <add>, %87, %cst_38 [1] : vector<2x8x768xf32> to vector<2x768xf32>
    %cst_39 = arith.constant dense<0.000000e+00> : vector<2xf32>
    %89 = vector.multi_reduction <add>, %83, %cst_39 [1] : vector<2x8xf32> to vector<2xf32>
    %90 = vector.shape_cast %89 : vector<2xf32> to vector<2x1xf32>
    %cst_40 = arith.constant 1.000000e-10 : f32
    %91 = vector.broadcast %cst_40 : f32 to vector<2x1xf32>
    %92 = arith.addf %90, %91 : vector<2x1xf32>
    %93 = tpu.reciprocal %92 {approx = true} : vector<2x1xf32> -> vector<2x1xf32>
    %94 = vector.broadcast %93 : vector<2x1xf32> to vector<2x768xf32>
    %95 = arith.mulf %88, %94 : vector<2x768xf32>
    %c0_41 = arith.constant 0 : index
    %c0_42 = arith.constant 0 : index
    %96 = vector.load %arg23[%c0_41, %c0_42] : memref<2x768xf32, #tpu.memory_space<vmem>>, vector<2x768xf32>
    tpu.vector_store %arg23[%c0_41, %c0_42], %95 {strides = array<i32>} : memref<2x768xf32, #tpu.memory_space<vmem>>, vector<2x768xf32>,
    %cst_43 = arith.constant dense<0.000000e+00> : vector<2x768xf32>
    %97 = vector.multi_reduction <add>, %1, %cst_43 [1] : vector<2x8x768xf32> to vector<2x768xf32>
    %cst_44 = arith.constant 8.000000e+00 : f32
    %98 = vector.broadcast %cst_44 : f32 to vector<2x768xf32>
    %99 = arith.divf %97, %98 : vector<2x768xf32>
    %100 = arith.truncf %95 : vector<2x768xf32> to vector<2x768xbf16>
    %c0_45 = arith.constant 0 : index
    %c0_46 = arith.constant 0 : index
    %101 = vector.load %arg11[%c0_45, %c0_46] : memref<768x384xbf16, #tpu.memory_space<vmem>>, vector<768x384xbf16>
    %cst_47 = arith.constant dense<0.000000e+00> : vector<2x384xf32>
    %102 = tpu.matmul %100, %101, %cst_47 {dimension_numbers = #tpu.dot_dimension_numbers<[1], [0], [0], [1], [0, 0, 1, 1], [], []>} : vector<2x768xbf16>, vector<768x384xbf16>, vector<2x384xf32> -> vector<2x384xf32>
    %c0_48 = arith.constant 0 : index
    %c0_49 = arith.constant 0 : index
    %103 = vector.load %arg12[%c0_48, %c0_49] : memref<1x384xf32, #tpu.memory_space<vmem>>, vector<1x384xf32>
    %104 = vector.broadcast %103 : vector<1x384xf32> to vector<2x384xf32>
    %105 = arith.addf %102, %104 : vector<2x384xf32>
    %c0_50 = arith.constant 0 : index
    %c0_51 = arith.constant 0 : index
    %106 = vector.load %arg13[%c0_50, %c0_51] : memref<1x384xf32, #tpu.memory_space<vmem>>, vector<1x384xf32>
    %c0_52 = arith.constant 0 : index
    %c0_53 = arith.constant 0 : index
    %107 = vector.load %arg14[%c0_52, %c0_53] : memref<1x384xf32, #tpu.memory_space<vmem>>, vector<1x384xf32>
    %cst_54 = arith.constant dense<0.000000e+00> : vector<2xf32>
    %108 = vector.multi_reduction <add>, %105, %cst_54 [1] : vector<2x384xf32> to vector<2xf32>
    %109 = vector.shape_cast %108 : vector<2xf32> to vector<2x1xf32>
    %cst_55 = arith.constant 3.840000e+02 : f32
    %110 = vector.broadcast %cst_55 : f32 to vector<2x1xf32>
    %111 = arith.divf %109, %110 : vector<2x1xf32>
    %112 = vector.broadcast %111 : vector<2x1xf32> to vector<2x384xf32>
    %113 = arith.subf %105, %112 : vector<2x384xf32>
    %114 = arith.mulf %113, %113 : vector<2x384xf32>
    %cst_56 = arith.constant dense<0.000000e+00> : vector<2xf32>
    %115 = vector.multi_reduction <add>, %114, %cst_56 [1] : vector<2x384xf32> to vector<2xf32>
    %116 = vector.shape_cast %115 : vector<2xf32> to vector<2x1xf32>
    %cst_57 = arith.constant 3.840000e+02 : f32
    %117 = vector.broadcast %cst_57 : f32 to vector<2x1xf32>
    %118 = arith.divf %116, %117 : vector<2x1xf32>
    %119 = vector.broadcast %111 : vector<2x1xf32> to vector<2x384xf32>
    %120 = arith.subf %105, %119 : vector<2x384xf32>
    %cst_58 = arith.constant 9.99999974E-6 : f32
    %121 = vector.broadcast %cst_58 : f32 to vector<2x1xf32>
    %122 = arith.addf %118, %121 : vector<2x1xf32>
    %123 = math.rsqrt %122 : vector<2x1xf32>
    %124 = vector.broadcast %123 : vector<2x1xf32> to vector<2x384xf32>
    %125 = arith.mulf %120, %124 : vector<2x384xf32>
    %126 = vector.broadcast %106 : vector<1x384xf32> to vector<2x384xf32>
    %127 = arith.mulf %125, %126 : vector<2x384xf32>
    %128 = vector.broadcast %107 : vector<1x384xf32> to vector<2x384xf32>
    %129 = arith.addf %127, %128 : vector<2x384xf32>
    %cst_59 = arith.constant 0.000000e+00 : f32
    %130 = vector.broadcast %cst_59 : f32 to vector<2x384xf32>
    %131 = arith.maximumf %129, %130 : vector<2x384xf32>
    %132 = arith.truncf %131 : vector<2x384xf32> to vector<2x384xbf16>
    %c0_60 = arith.constant 0 : index
    %c0_61 = arith.constant 0 : index
    %133 = vector.load %arg15[%c0_60, %c0_61] : memref<384x50xbf16, #tpu.memory_space<vmem>>, vector<384x50xbf16>
    %cst_62 = arith.constant dense<0.000000e+00> : vector<2x50xf32>
    %134 = tpu.matmul %132, %133, %cst_62 {dimension_numbers = #tpu.dot_dimension_numbers<[1], [0], [0], [1], [0, 0, 1, 1], [], []>} : vector<2x384xbf16>, vector<384x50xbf16>, vector<2x50xf32> -> vector<2x50xf32>
    %c0_63 = arith.constant 0 : index
    %c0_64 = arith.constant 0 : index
    %135 = vector.load %arg16[%c0_63, %c0_64] : memref<1x50xf32, #tpu.memory_space<vmem>>, vector<1x50xf32>
    %136 = vector.broadcast %135 : vector<1x50xf32> to vector<2x50xf32>
    %137 = arith.addf %134, %136 : vector<2x50xf32>
    %cst_65 = arith.constant -3.000000e+01 : f32
    %cst_66 = arith.constant 3.000000e+01 : f32
    %138 = vector.broadcast %cst_65 : f32 to vector<2x50xf32>
    %139 = arith.maximumf %138, %137 : vector<2x50xf32>
    %140 = vector.broadcast %cst_66 : f32 to vector<2x50xf32>
    %141 = arith.minimumf %140, %139 : vector<2x50xf32>
    %cst_67 = arith.constant 0.000000e+00 : f32
    %142 = vector.broadcast %cst_67 : f32 to vector<2x50xf32>
    %143 = arith.subf %142, %141 : vector<2x50xf32>
    %144 = math.exp %143 : vector<2x50xf32>
    %cst_68 = arith.constant 1.000000e+00 : f32
    %145 = vector.broadcast %cst_68 : f32 to vector<2x50xf32>
    %146 = arith.addf %145, %144 : vector<2x50xf32>
    %147 = tpu.reciprocal %146 {approx = true} : vector<2x50xf32> -> vector<2x50xf32>
    %c0_69 = arith.constant 0 : index
    %c0_70 = arith.constant 0 : index
    %148 = vector.load %arg22[%c0_69, %c0_70] : memref<2x50xf32, #tpu.memory_space<vmem>>, vector<2x50xf32>
    tpu.vector_store %arg22[%c0_69, %c0_70], %147 {strides = array<i32>} : memref<2x50xf32, #tpu.memory_space<vmem>>, vector<2x50xf32>,
    %149 = arith.truncf %147 : vector<2x50xf32> to vector<2x50xbf16>
    %c0_71 = arith.constant 0 : index
    %c0_72 = arith.constant 0 : index
    %150 = vector.load %arg17[%c0_71, %c0_72] : memref<50x2xbf16, #tpu.memory_space<vmem>>, vector<50x2xbf16>
    %cst_73 = arith.constant dense<0.000000e+00> : vector<2x2xf32>
    %151 = tpu.matmul %149, %150, %cst_73 {dimension_numbers = #tpu.dot_dimension_numbers<[1], [0], [0], [1], [0, 0, 1, 1], [], []>} : vector<2x50xbf16>, vector<50x2xbf16>, vector<2x2xf32> -> vector<2x2xf32>
    %152 = arith.truncf %99 : vector<2x768xf32> to vector<2x768xbf16>
    %c0_74 = arith.constant 0 : index
    %c0_75 = arith.constant 0 : index
    %153 = vector.load %arg18[%c0_74, %c0_75] : memref<768x2xbf16, #tpu.memory_space<vmem>>, vector<768x2xbf16>
    %cst_76 = arith.constant dense<0.000000e+00> : vector<2x2xf32>
    %154 = tpu.matmul %152, %153, %cst_76 {dimension_numbers = #tpu.dot_dimension_numbers<[1], [0], [0], [1], [0, 0, 1, 1], [], []>} : vector<2x768xbf16>, vector<768x2xbf16>, vector<2x2xf32> -> vector<2x2xf32>
    %155 = arith.addf %151, %154 : vector<2x2xf32>
    %c0_77 = arith.constant 0 : index
    %c0_78 = arith.constant 0 : index
    %156 = vector.load %arg19[%c0_77, %c0_78] : memref<1x2xf32, #tpu.memory_space<vmem>>, vector<1x2xf32>
    %157 = vector.broadcast %156 : vector<1x2xf32> to vector<2x2xf32>
    %158 = arith.addf %155, %157 : vector<2x2xf32>
    %c0_79 = arith.constant 0 : index
    %c0_80 = arith.constant 0 : index
    %159 = vector.load %arg20[%c0_79, %c0_80] : memref<2x2xf32, #tpu.memory_space<vmem>>, vector<2x2xf32>
    tpu.vector_store %arg20[%c0_79, %c0_80], %158 {strides = array<i32>} : memref<2x2xf32, #tpu.memory_space<vmem>>, vector<2x2xf32>,
    return
  }
  func.func @transform_0(%arg0: i32) -> (i32, i32, i32) {
    %c0_i32 = arith.constant 0 : i32
    %c0_i32_0 = arith.constant 0 : i32
    %c0_i32_1 = arith.constant 0 : i32
    return %arg0, %c0_i32, %c0_i32_0 : i32, i32, i32
  }
  func.func @transform_1(%arg0: i32) -> (i32, i32) {
    %c0_i32 = arith.constant 0 : i32
    %c0_i32_0 = arith.constant 0 : i32
    return %arg0, %c0_i32 : i32, i32
  }
  func.func @transform_2(%arg0: i32) -> (i32, i32) {
    %c0_i32 = arith.constant 0 : i32
    %c0_i32_0 = arith.constant 0 : i32
    %c0_i32_1 = arith.constant 0 : i32
    return %c0_i32, %c0_i32_0 : i32, i32
  }
  func.func @transform_3(%arg0: i32) -> (i32, i32) {
    %c0_i32 = arith.constant 0 : i32
    %c0_i32_0 = arith.constant 0 : i32
    %c0_i32_1 = arith.constant 0 : i32
    return %c0_i32, %c0_i32_0 : i32, i32
  }
  func.func @transform_4(%arg0: i32) -> (i32, i32) {
    %c0_i32 = arith.constant 0 : i32
    %c0_i32_0 = arith.constant 0 : i32
    %c0_i32_1 = arith.constant 0 : i32
    return %c0_i32, %c0_i32_0 : i32, i32
  }
  func.func @transform_5(%arg0: i32) -> (i32, i32) {
    %c0_i32 = arith.constant 0 : i32
    %c0_i32_0 = arith.constant 0 : i32
    %c0_i32_1 = arith.constant 0 : i32
    return %c0_i32, %c0_i32_0 : i32, i32
  }
  func.func @transform_6(%arg0: i32) -> (i32, i32) {
    %c0_i32 = arith.constant 0 : i32
    %c0_i32_0 = arith.constant 0 : i32
    %c0_i32_1 = arith.constant 0 : i32
    return %c0_i32, %c0_i32_0 : i32, i32
  }
  func.func @transform_7(%arg0: i32) -> (i32, i32) {
    %c0_i32 = arith.constant 0 : i32
    %c0_i32_0 = arith.constant 0 : i32
    %c0_i32_1 = arith.constant 0 : i32
    return %c0_i32, %c0_i32_0 : i32, i32
  }
  func.func @transform_8(%arg0: i32) -> (i32, i32) {
    %c0_i32 = arith.constant 0 : i32
    %c0_i32_0 = arith.constant 0 : i32
    %c0_i32_1 = arith.constant 0 : i32
    return %c0_i32, %c0_i32_0 : i32, i32
  }
  func.func @transform_9(%arg0: i32) -> (i32, i32) {
    %c0_i32 = arith.constant 0 : i32
    %c0_i32_0 = arith.constant 0 : i32
    %c0_i32_1 = arith.constant 0 : i32
    return %c0_i32, %c0_i32_0 : i32, i32
  }
  func.func @transform_10(%arg0: i32) -> (i32, i32) {
    %c0_i32 = arith.constant 0 : i32
    %c0_i32_0 = arith.constant 0 : i32
    %c0_i32_1 = arith.constant 0 : i32
    return %c0_i32, %c0_i32_0 : i32, i32
  }
  func.func @transform_11(%arg0: i32) -> (i32, i32) {
    %c0_i32 = arith.constant 0 : i32
    %c0_i32_0 = arith.constant 0 : i32
    %c0_i32_1 = arith.constant 0 : i32
    return %c0_i32, %c0_i32_0 : i32, i32
  }
  func.func @transform_12(%arg0: i32) -> (i32, i32) {
    %c0_i32 = arith.constant 0 : i32
    %c0_i32_0 = arith.constant 0 : i32
    %c0_i32_1 = arith.constant 0 : i32
    return %c0_i32, %c0_i32_0 : i32, i32
  }
  func.func @transform_13(%arg0: i32) -> (i32, i32) {
    %c0_i32 = arith.constant 0 : i32
    %c0_i32_0 = arith.constant 0 : i32
    %c0_i32_1 = arith.constant 0 : i32
    return %c0_i32, %c0_i32_0 : i32, i32
  }
  func.func @transform_14(%arg0: i32) -> (i32, i32) {
    %c0_i32 = arith.constant 0 : i32
    %c0_i32_0 = arith.constant 0 : i32
    %c0_i32_1 = arith.constant 0 : i32
    return %c0_i32, %c0_i32_0 : i32, i32
  }
  func.func @transform_15(%arg0: i32) -> (i32, i32) {
    %c0_i32 = arith.constant 0 : i32
    %c0_i32_0 = arith.constant 0 : i32
    %c0_i32_1 = arith.constant 0 : i32
    return %c0_i32, %c0_i32_0 : i32, i32
  }
  func.func @transform_16(%arg0: i32) -> (i32, i32) {
    %c0_i32 = arith.constant 0 : i32
    %c0_i32_0 = arith.constant 0 : i32
    %c0_i32_1 = arith.constant 0 : i32
    return %c0_i32, %c0_i32_0 : i32, i32
  }
  func.func @transform_17(%arg0: i32) -> (i32, i32) {
    %c0_i32 = arith.constant 0 : i32
    %c0_i32_0 = arith.constant 0 : i32
    %c0_i32_1 = arith.constant 0 : i32
    return %c0_i32, %c0_i32_0 : i32, i32
  }
  func.func @transform_18(%arg0: i32) -> (i32, i32) {
    %c0_i32 = arith.constant 0 : i32
    %c0_i32_0 = arith.constant 0 : i32
    %c0_i32_1 = arith.constant 0 : i32
    return %c0_i32, %c0_i32_0 : i32, i32
  }
  func.func @transform_19(%arg0: i32) -> (i32, i32) {
    %c0_i32 = arith.constant 0 : i32
    %c0_i32_0 = arith.constant 0 : i32
    return %arg0, %c0_i32 : i32, i32
  }
  func.func @transform_20(%arg0: i32) -> (i32, i32) {
    %c0_i32 = arith.constant 0 : i32
    %c0_i32_0 = arith.constant 0 : i32
    return %arg0, %c0_i32 : i32, i32
  }
  func.func @transform_21(%arg0: i32) -> (i32, i32) {
    %c0_i32 = arith.constant 0 : i32
    %c0_i32_0 = arith.constant 0 : i32
    return %arg0, %c0_i32 : i32, i32
  }
  func.func @transform_22(%arg0: i32) -> (i32, i32) {
    %c0_i32 = arith.constant 0 : i32
    %c0_i32_0 = arith.constant 0 : i32
    return %arg0, %c0_i32 : i32, i32
  }
}

</mosaic_0001>

<llo_original>
// kernel: tpu_custom_call.1
$region0: #{tpu_custom_call.1}
  #allocation0 [shape = 'u32[]', space=smem, size = 0x4, offset = 0x4, fixed_abs, tag = 'smem constant byte address 0x4 - core index']
  #allocation1 [shape = 'u32[144,128]{1,0:T(1,128)}', space=vmem, size = 0x12000, scoped, tag = 'internal scratch']
  #allocation2 [shape = 'f32[1,1]{1,0:T(1,128)S(1)}', space=vmem, size = 0x200, scoped, tag = 'scoped memory for tpu_custom_call.1']
  %s0 = inlined_call_operand.hbm [shape: bf16[2,8,768], index: 0, kind: input, shape index: {}]
  %s1 = inlined_call_operand.hbm [shape: f32[2,8], index: 1, kind: input, shape index: {}]
  %s2 = inlined_call_operand.hbm [shape: bf16[768,768], index: 2, kind: input, shape index: {}]
  %s3 = inlined_call_operand.hbm [shape: f32[1,768], index: 3, kind: input, shape index: {}]
  %s4 = inlined_call_operand.hbm [shape: bf16[768,384], index: 4, kind: input, shape index: {}]
  %s5 = inlined_call_operand.hbm [shape: f32[1,384], index: 5, kind: input, shape index: {}]
  %s6 = inlined_call_operand.hbm [shape: f32[1,384], index: 6, kind: input, shape index: {}]
  %s7 = inlined_call_operand.hbm [shape: f32[1,384], index: 7, kind: input, shape index: {}]
  %s8 = inlined_call_operand.hbm [shape: f32[1,384], index: 8, kind: input, shape index: {}]
  %s9 = inlined_call_operand.<no memory space> [shape: f32[1,1], index: 9, kind: input, shape index: {}]
  %s10 = inlined_call_operand.hbm [shape: bf16[768,384], index: 10, kind: input, shape index: {}]
  %s11 = inlined_call_operand.hbm [shape: f32[1,384], index: 11, kind: input, shape index: {}]
  %s12 = inlined_call_operand.hbm [shape: f32[1,384], index: 12, kind: input, shape index: {}]
  %s13 = inlined_call_operand.hbm [shape: f32[1,384], index: 13, kind: input, shape index: {}]
  %s14 = inlined_call_operand.vmem [shape: bf16[384,50], index: 14, kind: input, shape index: {}]
  %s15 = inlined_call_operand.hbm [shape: f32[1,50], index: 15, kind: input, shape index: {}]
  %s16 = inlined_call_operand.vmem [shape: bf16[50,2], index: 16, kind: input, shape index: {}]
  %s17 = inlined_call_operand.vmem [shape: bf16[768,2], index: 17, kind: input, shape index: {}]
  %s18 = inlined_call_operand.hbm [shape: f32[1,2], index: 18, kind: input, shape index: {}]
  %s19 = inlined_call_operand.hbm [shape: f32[2,2], index: 19, kind: output, shape index: {0}]
  %s20 = inlined_call_operand.hbm [shape: f32[2,8], index: 20, kind: output, shape index: {1}]
  %s21 = inlined_call_operand.hbm [shape: f32[2,50], index: 21, kind: output, shape index: {2}]
  %s22 = inlined_call_operand.hbm [shape: f32[2,768], index: 22, kind: output, shape index: {3}]
  %23 = xla_tuple %s19, %s20, %s21, %s22
  %s24 = sld [smem:[#allocation0]]
  $region170: #{tpu_custom_call.1} parent=0
    _
  %s26 = ssub.s32 1, %s24
  %s27 = scalar_select 0, %s26, %s24
  %v28 = vstv %s9
  %29 = vst [vmem:[#allocation2] sm:$0x1] %v28
  $region1: #{tpu_custom_call.1} parent=0
    #allocation3 [shape = 'u8[24576]{0}', space=vmem, size = 0x6000, scoped, tag = 'input window, operand 0, single buffered']
    #allocation4 [shape = 's32[1]{0}', space=sflag, size = 0x4, scoped, tag = 'scoped memory for tpu_custom_call.1']
    #allocation5 [shape = 's32[1]{0}', space=sflag, size = 0x4, scoped, tag = 'scoped memory for tpu_custom_call.1']
    #allocation6 [shape = 'u8[1024]{0}', space=vmem, size = 0x400, scoped, tag = 'input window, operand 1, single buffered']
    #allocation7 [shape = 's32[1]{0}', space=sflag, size = 0x4, scoped, tag = 'scoped memory for tpu_custom_call.1']
    #allocation8 [shape = 'u8[1179648]{0}', space=vmem, size = 0x120000, scoped, tag = 'input window, operand 2, single buffered']
    #allocation9 [shape = 'u8[3072]{0}', space=vmem, size = 0xc00, scoped, tag = 'input window, operand 3, single buffered']
    #allocation10 [shape = 's32[1]{0}', space=sflag, size = 0x4, scoped, tag = 'scoped memory for tpu_custom_call.1']
    #allocation11 [shape = 'u8[589824]{0}', space=vmem, size = 0x90000, scoped, tag = 'input window, operand 4, single buffered']
    #allocation12 [shape = 'u8[1536]{0}', space=vmem, size = 0x800, scoped, tag = 'input window, operand 5, single buffered']
    #allocation13 [shape = 's32[1]{0}', space=sflag, size = 0x4, scoped, tag = 'scoped memory for tpu_custom_call.1']
    #allocation14 [shape = 'u8[1536]{0}', space=vmem, size = 0x800, scoped, tag = 'input window, operand 6, single buffered']
    #allocation15 [shape = 'u8[1536]{0}', space=vmem, size = 0x800, scoped, tag = 'input window, operand 7, single buffered']
    #allocation16 [shape = 's32[1]{0}', space=sflag, size = 0x4, scoped, tag = 'scoped memory for tpu_custom_call.1']
    #allocation17 [shape = 'u8[1536]{0}', space=vmem, size = 0x800, scoped, tag = 'input window, operand 8, single buffered']
    #allocation18 [shape = 'u8[589824]{0}', space=vmem, size = 0x90000, scoped, tag = 'input window, operand 10, single buffered']
    #allocation19 [shape = 's32[1]{0}', space=sflag, size = 0x4, scoped, tag = 'scoped memory for tpu_custom_call.1']
    #allocation20 [shape = 'u8[1536]{0}', space=vmem, size = 0x800, scoped, tag = 'input window, operand 11, single buffered']
    #allocation21 [shape = 'u8[1536]{0}', space=vmem, size = 0x800, scoped, tag = 'input window, operand 12, single buffered']
    #allocation22 [shape = 's32[1]{0}', space=sflag, size = 0x4, scoped, tag = 'scoped memory for tpu_custom_call.1']
    #allocation23 [shape = 'u8[1536]{0}', space=vmem, size = 0x800, scoped, tag = 'input window, operand 13, single buffered']
    #allocation24 [shape = 'u8[512]{0}', space=vmem, size = 0x400, scoped, tag = 'input window, operand 15, single buffered']
    #allocation25 [shape = 's32[1]{0}', space=sflag, size = 0x4, scoped, tag = 'scoped memory for tpu_custom_call.1']
    #allocation26 [shape = 'u8[512]{0}', space=vmem, size = 0x400, scoped, tag = 'input window, operand 18, single buffered']
    #allocation27 [shape = 'u8[1024]{0}', space=vmem, size = 0x400, scoped, tag = 'output window, operand 0, single buffered']
    #allocation28 [shape = 'u8[1024]{0}', space=vmem, size = 0x400, scoped, tag = 'output window, operand 1, single buffered']
    #allocation29 [shape = 's32[1]{0}', space=sflag, size = 0x4, scoped, tag = 'scoped memory for tpu_custom_call.1']
    #allocation30 [shape = 'u8[1024]{0}', space=vmem, size = 0x400, scoped, tag = 'output window, operand 2, single buffered']
    #allocation31 [shape = 'u8[6144]{0}', space=vmem, size = 0x1800, scoped, tag = 'output window, operand 3, single buffered']
    #allocation32 [shape = 's32[1]{0}', space=sflag, size = 0x4, scoped, tag = 'scoped memory for tpu_custom_call.1']
    %30 = vsyncpa [#allocation4], 0
    %31 = vsyncpa [#allocation7], 0
    %32 = vsyncpa [#allocation10], 0
    %33 = vsyncpa [#allocation13], 0
    %34 = vsyncpa [#allocation16], 0
    %35 = vsyncpa [#allocation19], 0
    %36 = vsyncpa [#allocation22], 0
    %37 = vsyncpa [#allocation25], 0
    %38 = vsyncpa [#allocation5], 0
    %39 = vsyncpa [#allocation29], 0
    %40 = vsyncpa [#allocation32], 0
    // Predicated region
    $region2: #{tpu_custom_call.1} parent=1 // pred_check
      _
    $region3: #{tpu_custom_call.1} parent=1 // pred_check_branch
      %42 = sbr.rel (0) target = $region5
    $region4: #{tpu_custom_call.1} parent=1 // pred_region
      %s44 = ssub.s32 768, 768
      %45 = vsyncadd [#allocation4], %s44
      %s46 = sshll.u32 [#allocation3], 4
      %s47 = int_to_ptr.vmem [resolvable:$true] %s46
      %52 = dma.hbm_to_vmem [thread:$0]  %s0, 768, %s47, [#allocation4], 384, 384, 24
    $region5: #{tpu_custom_call.1} parent=1 // pred_fallthru
      _
    // Predicated region
    $region6: #{tpu_custom_call.1} parent=1 // pred_check
      _
    $region7: #{tpu_custom_call.1} parent=1 // pred_check_branch
      %54 = sbr.rel (0) target = $region9
    $region8: #{tpu_custom_call.1} parent=1 // pred_region
      %s56 = ssub.s32 32, 32
      %57 = vsyncadd [#allocation7], %s56
      %s59 = sshll.u32 [#allocation6], 4
      %s60 = int_to_ptr.vmem [resolvable:$true] %s59
      %62 = dma.hbm_to_vmem [thread:$0]  %s1, 32, %s60, [#allocation7]
    $region9: #{tpu_custom_call.1} parent=1 // pred_fallthru
      _
    // Predicated region
    $region10: #{tpu_custom_call.1} parent=1 // pred_check
      _
    $region11: #{tpu_custom_call.1} parent=1 // pred_check_branch
      %64 = sbr.rel (0) target = $region13
    $region12: #{tpu_custom_call.1} parent=1 // pred_region
      %s66 = ssub.s32 36864, 36864
      %67 = vsyncadd [#allocation7], %s66
      %s68 = sshll.u32 [#allocation8], 4
      %s69 = int_to_ptr.vmem [resolvable:$true] %s68
      %74 = dma.hbm_to_vmem [thread:$0]  %s2, 36864, %s69, [#allocation7], 384, 384, 24
    $region13: #{tpu_custom_call.1} parent=1 // pred_fallthru
      _
    // Predicated region
    $region14: #{tpu_custom_call.1} parent=1 // pred_check
      _
    $region15: #{tpu_custom_call.1} parent=1 // pred_check_branch
      %76 = sbr.rel (0) target = $region17
    $region16: #{tpu_custom_call.1} parent=1 // pred_region
      %s78 = ssub.s32 96, 96
      %79 = vsyncadd [#allocation10], %s78
      %s81 = sshll.u32 [#allocation9], 4
      %s82 = int_to_ptr.vmem [resolvable:$true] %s81
      %84 = dma.hbm_to_vmem [thread:$0]  %s3, 96, %s82, [#allocation10]
    $region17: #{tpu_custom_call.1} parent=1 // pred_fallthru
      _
    // Predicated region
    $region18: #{tpu_custom_call.1} parent=1 // pred_check
      _
    $region19: #{tpu_custom_call.1} parent=1 // pred_check_branch
      %86 = sbr.rel (0) target = $region21
    $region20: #{tpu_custom_call.1} parent=1 // pred_region
      %s88 = ssub.s32 18432, 18432
      %89 = vsyncadd [#allocation10], %s88
      %s90 = sshll.u32 [#allocation11], 4
      %s91 = int_to_ptr.vmem [resolvable:$true] %s90
      %96 = dma.hbm_to_vmem [thread:$0]  %s4, 18432, %s91, [#allocation10], 192, 192, 12
    $region21: #{tpu_custom_call.1} parent=1 // pred_fallthru
      _
    // Predicated region
    $region22: #{tpu_custom_call.1} parent=1 // pred_check
      _
    $region23: #{tpu_custom_call.1} parent=1 // pred_check_branch
      %98 = sbr.rel (0) target = $region25
    $region24: #{tpu_custom_call.1} parent=1 // pred_region
      %s100 = ssub.s32 48, 48
      %101 = vsyncadd [#allocation13], %s100
      %s103 = sshll.u32 [#allocation12], 4
      %s104 = int_to_ptr.vmem [resolvable:$true] %s103
      %106 = dma.hbm_to_vmem [thread:$0]  %s5, 48, %s104, [#allocation13]
    $region25: #{tpu_custom_call.1} parent=1 // pred_fallthru
      _
    // Predicated region
    $region26: #{tpu_custom_call.1} parent=1 // pred_check
      _
    $region27: #{tpu_custom_call.1} parent=1 // pred_check_branch
      %108 = sbr.rel (0) target = $region29
    $region28: #{tpu_custom_call.1} parent=1 // pred_region
      %s110 = ssub.s32 48, 48
      %111 = vsyncadd [#allocation13], %s110
      %s113 = sshll.u32 [#allocation14], 4
      %s114 = int_to_ptr.vmem [resolvable:$true] %s113
      %116 = dma.hbm_to_vmem [thread:$0]  %s6, 48, %s114, [#allocation13]
    $region29: #{tpu_custom_call.1} parent=1 // pred_fallthru
      _
    // Predicated region
    $region30: #{tpu_custom_call.1} parent=1 // pred_check
      _
    $region31: #{tpu_custom_call.1} parent=1 // pred_check_branch
      %118 = sbr.rel (0) target = $region33
    $region32: #{tpu_custom_call.1} parent=1 // pred_region
      %s120 = ssub.s32 48, 48
      %121 = vsyncadd [#allocation16], %s120
      %s123 = sshll.u32 [#allocation15], 4
      %s124 = int_to_ptr.vmem [resolvable:$true] %s123
      %126 = dma.hbm_to_vmem [thread:$0]  %s7, 48, %s124, [#allocation16]
    $region33: #{tpu_custom_call.1} parent=1 // pred_fallthru
      _
    // Predicated region
    $region34: #{tpu_custom_call.1} parent=1 // pred_check
      _
    $region35: #{tpu_custom_call.1} parent=1 // pred_check_branch
      %128 = sbr.rel (0) target = $region37
    $region36: #{tpu_custom_call.1} parent=1 // pred_region
      %s130 = ssub.s32 48, 48
      %131 = vsyncadd [#allocation16], %s130
      %s133 = sshll.u32 [#allocation17], 4
      %s134 = int_to_ptr.vmem [resolvable:$true] %s133
      %136 = dma.hbm_to_vmem [thread:$0]  %s8, 48, %s134, [#allocation16]
    $region37: #{tpu_custom_call.1} parent=1 // pred_fallthru
      _
    // Predicated region
    $region38: #{tpu_custom_call.1} parent=1 // pred_check
      _
    $region39: #{tpu_custom_call.1} parent=1 // pred_check_branch
      %138 = sbr.rel (0) target = $region41
    $region40: #{tpu_custom_call.1} parent=1 // pred_region
      _
    $region41: #{tpu_custom_call.1} parent=1 // pred_fallthru
      _
    // Predicated region
    $region42: #{tpu_custom_call.1} parent=1 // pred_check
      _
    $region43: #{tpu_custom_call.1} parent=1 // pred_check_branch
      %140 = sbr.rel (0) target = $region45
    $region44: #{tpu_custom_call.1} parent=1 // pred_region
      %s142 = ssub.s32 18432, 18432
      %143 = vsyncadd [#allocation19], %s142
      %s144 = sshll.u32 [#allocation18], 4
      %s145 = int_to_ptr.vmem [resolvable:$true] %s144
      %150 = dma.hbm_to_vmem [thread:$0]  %s10, 18432, %s145, [#allocation19], 192, 192, 12
    $region45: #{tpu_custom_call.1} parent=1 // pred_fallthru
      _
    // Predicated region
    $region46: #{tpu_custom_call.1} parent=1 // pred_check
      _
    $region47: #{tpu_custom_call.1} parent=1 // pred_check_branch
      %152 = sbr.rel (0) target = $region49
    $region48: #{tpu_custom_call.1} parent=1 // pred_region
      %s154 = ssub.s32 48, 48
      %155 = vsyncadd [#allocation19], %s154
      %s157 = sshll.u32 [#allocation20], 4
      %s158 = int_to_ptr.vmem [resolvable:$true] %s157
      %160 = dma.hbm_to_vmem [thread:$0]  %s11, 48, %s158, [#allocation19]
    $region49: #{tpu_custom_call.1} parent=1 // pred_fallthru
      _
    // Predicated region
    $region50: #{tpu_custom_call.1} parent=1 // pred_check
      _
    $region51: #{tpu_custom_call.1} parent=1 // pred_check_branch
      %162 = sbr.rel (0) target = $region53
    $region52: #{tpu_custom_call.1} parent=1 // pred_region
      %s164 = ssub.s32 48, 48
      %165 = vsyncadd [#allocation22], %s164
      %s167 = sshll.u32 [#allocation21], 4
      %s168 = int_to_ptr.vmem [resolvable:$true] %s167
      %170 = dma.hbm_to_vmem [thread:$0]  %s12, 48, %s168, [#allocation22]
    $region53: #{tpu_custom_call.1} parent=1 // pred_fallthru
      _
    // Predicated region
    $region54: #{tpu_custom_call.1} parent=1 // pred_check
      _
    $region55: #{tpu_custom_call.1} parent=1 // pred_check_branch
      %172 = sbr.rel (0) target = $region57
    $region56: #{tpu_custom_call.1} parent=1 // pred_region
      %s174 = ssub.s32 48, 48
      %175 = vsyncadd [#allocation22], %s174
      %s177 = sshll.u32 [#allocation23], 4
      %s178 = int_to_ptr.vmem [resolvable:$true] %s177
      %180 = dma.hbm_to_vmem [thread:$0]  %s13, 48, %s178, [#allocation22]
    $region57: #{tpu_custom_call.1} parent=1 // pred_fallthru
      _
    // Predicated region
    $region58: #{tpu_custom_call.1} parent=1 // pred_check
      _
    $region59: #{tpu_custom_call.1} parent=1 // pred_check_branch
      %182 = sbr.rel (0) target = $region61
    $region60: #{tpu_custom_call.1} parent=1 // pred_region
      _
    $region61: #{tpu_custom_call.1} parent=1 // pred_fallthru
      _
    // Predicated region
    $region62: #{tpu_custom_call.1} parent=1 // pred_check
      _
    $region63: #{tpu_custom_call.1} parent=1 // pred_check_branch
      %184 = sbr.rel (0) target = $region65
    $region64: #{tpu_custom_call.1} parent=1 // pred_region
      %s186 = ssub.s32 16, 16
      %187 = vsyncadd [#allocation25], %s186
      %s189 = sshll.u32 [#allocation24], 4
      %s190 = int_to_ptr.vmem [resolvable:$true] %s189
      %192 = dma.hbm_to_vmem [thread:$0]  %s15, 16, %s190, [#allocation25]
    $region65: #{tpu_custom_call.1} parent=1 // pred_fallthru
      _
    // Predicated region
    $region66: #{tpu_custom_call.1} parent=1 // pred_check
      _
    $region67: #{tpu_custom_call.1} parent=1 // pred_check_branch
      %194 = sbr.rel (0) target = $region69
    $region68: #{tpu_custom_call.1} parent=1 // pred_region
      _
    $region69: #{tpu_custom_call.1} parent=1 // pred_fallthru
      _
    // Predicated region
    $region70: #{tpu_custom_call.1} parent=1 // pred_check
      _
    $region71: #{tpu_custom_call.1} parent=1 // pred_check_branch
      %196 = sbr.rel (0) target = $region73
    $region72: #{tpu_custom_call.1} parent=1 // pred_region
      _
    $region73: #{tpu_custom_call.1} parent=1 // pred_fallthru
      _
    // Predicated region
    $region74: #{tpu_custom_call.1} parent=1 // pred_check
      _
    $region75: #{tpu_custom_call.1} parent=1 // pred_check_branch
      %198 = sbr.rel (0) target = $region77
    $region76: #{tpu_custom_call.1} parent=1 // pred_region
      %s200 = ssub.s32 16, 16
      %201 = vsyncadd [#allocation25], %s200
      %s203 = sshll.u32 [#allocation26], 4
      %s204 = int_to_ptr.vmem [resolvable:$true] %s203
      %206 = dma.hbm_to_vmem [thread:$0]  %s18, 16, %s204, [#allocation25]
    $region77: #{tpu_custom_call.1} parent=1 // pred_fallthru
      _
    // Predicated region
    $region78: #{tpu_custom_call.1} parent=1 // pred_check
      _
    $region79: #{tpu_custom_call.1} parent=1 // pred_check_branch
      %208 = sbr.rel (0) target = $region81
    $region80: #{tpu_custom_call.1} parent=1 // pred_region
      %209 = dma.done [#allocation4], 768
    $region81: #{tpu_custom_call.1} parent=1 // pred_fallthru
      _
    // Predicated region
    $region82: #{tpu_custom_call.1} parent=1 // pred_check
      _
    $region83: #{tpu_custom_call.1} parent=1 // pred_check_branch
      %211 = sbr.rel (0) target = $region85
    $region84: #{tpu_custom_call.1} parent=1 // pred_region
      %212 = dma.done [#allocation7], 32
    $region85: #{tpu_custom_call.1} parent=1 // pred_fallthru
      _
    // Predicated region
    $region86: #{tpu_custom_call.1} parent=1 // pred_check
      _
    $region87: #{tpu_custom_call.1} parent=1 // pred_check_branch
      %214 = sbr.rel (0) target = $region89
    $region88: #{tpu_custom_call.1} parent=1 // pred_region
      %215 = dma.done [#allocation7], 36864
    $region89: #{tpu_custom_call.1} parent=1 // pred_fallthru
      _
    // Predicated region
    $region90: #{tpu_custom_call.1} parent=1 // pred_check
      _
    $region91: #{tpu_custom_call.1} parent=1 // pred_check_branch
      %217 = sbr.rel (0) target = $region93
    $region92: #{tpu_custom_call.1} parent=1 // pred_region
      %218 = dma.done [#allocation10], 96
    $region93: #{tpu_custom_call.1} parent=1 // pred_fallthru
      _
    // Predicated region
    $region94: #{tpu_custom_call.1} parent=1 // pred_check
      _
    $region95: #{tpu_custom_call.1} parent=1 // pred_check_branch
      %220 = sbr.rel (0) target = $region97
    $region96: #{tpu_custom_call.1} parent=1 // pred_region
      %221 = dma.done [#allocation10], 18432
    $region97: #{tpu_custom_call.1} parent=1 // pred_fallthru
      _
    // Predicated region
    $region98: #{tpu_custom_call.1} parent=1 // pred_check
      _
    $region99: #{tpu_custom_call.1} parent=1 // pred_check_branch
      %223 = sbr.rel (0) target = $region101
    $region100: #{tpu_custom_call.1} parent=1 // pred_region
      %224 = dma.done [#allocation13], 48
    $region101: #{tpu_custom_call.1} parent=1 // pred_fallthru
      _
    // Predicated region
    $region102: #{tpu_custom_call.1} parent=1 // pred_check
      _
    $region103: #{tpu_custom_call.1} parent=1 // pred_check_branch
      %226 = sbr.rel (0) target = $region105
    $region104: #{tpu_custom_call.1} parent=1 // pred_region
      %227 = dma.done [#allocation13], 48
    $region105: #{tpu_custom_call.1} parent=1 // pred_fallthru
      _
    // Predicated region
    $region106: #{tpu_custom_call.1} parent=1 // pred_check
      _
    $region107: #{tpu_custom_call.1} parent=1 // pred_check_branch
      %229 = sbr.rel (0) target = $region109
    $region108: #{tpu_custom_call.1} parent=1 // pred_region
      %230 = dma.done [#allocation16], 48
    $region109: #{tpu_custom_call.1} parent=1 // pred_fallthru
      _
    // Predicated region
    $region110: #{tpu_custom_call.1} parent=1 // pred_check
      _
    $region111: #{tpu_custom_call.1} parent=1 // pred_check_branch
      %232 = sbr.rel (0) target = $region113
    $region112: #{tpu_custom_call.1} parent=1 // pred_region
      %233 = dma.done [#allocation16], 48
    $region113: #{tpu_custom_call.1} parent=1 // pred_fallthru
      _
    // Predicated region
    $region114: #{tpu_custom_call.1} parent=1 // pred_check
      _
    $region115: #{tpu_custom_call.1} parent=1 // pred_check_branch
      %235 = sbr.rel (0) target = $region117
    $region116: #{tpu_custom_call.1} parent=1 // pred_region
      %236 = dma.done [#allocation19], 18432
    $region117: #{tpu_custom_call.1} parent=1 // pred_fallthru
      _
    // Predicated region
    $region118: #{tpu_custom_call.1} parent=1 // pred_check
      _
    $region119: #{tpu_custom_call.1} parent=1 // pred_check_branch
      %238 = sbr.rel (0) target = $region121
    $region120: #{tpu_custom_call.1} parent=1 // pred_region
      %239 = dma.done [#allocation19], 48
    $region121: #{tpu_custom_call.1} parent=1 // pred_fallthru
      _
    // Predicated region
    $region122: #{tpu_custom_call.1} parent=1 // pred_check
      _
    $region123: #{tpu_custom_call.1} parent=1 // pred_check_branch
      %241 = sbr.rel (0) target = $region125
    $region124: #{tpu_custom_call.1} parent=1 // pred_region
      %242 = dma.done [#allocation22], 48
    $region125: #{tpu_custom_call.1} parent=1 // pred_fallthru
      _
    // Predicated region
    $region126: #{tpu_custom_call.1} parent=1 // pred_check
      _
    $region127: #{tpu_custom_call.1} parent=1 // pred_check_branch
      %244 = sbr.rel (0) target = $region129
    $region128: #{tpu_custom_call.1} parent=1 // pred_region
      %245 = dma.done [#allocation22], 48
    $region129: #{tpu_custom_call.1} parent=1 // pred_fallthru
      _
    // Predicated region
    $region130: #{tpu_custom_call.1} parent=1 // pred_check
      _
    $region131: #{tpu_custom_call.1} parent=1 // pred_check_branch
      %247 = sbr.rel (0) target = $region133
    $region132: #{tpu_custom_call.1} parent=1 // pred_region
      %248 = dma.done [#allocation25], 16
    $region133: #{tpu_custom_call.1} parent=1 // pred_fallthru
      _
    // Predicated region
    $region134: #{tpu_custom_call.1} parent=1 // pred_check
      _
    $region135: #{tpu_custom_call.1} parent=1 // pred_check_branch
      %250 = sbr.rel (0) target = $region137
    $region136: #{tpu_custom_call.1} parent=1 // pred_region
      %251 = dma.done [#allocation25], 16
    $region137: #{tpu_custom_call.1} parent=1 // pred_fallthru
      _
    %v253 = vld [vmem:[#allocation3] sm:$0xff]
    %v254 = vld [vmem:[#allocation3 + $0x8] sm:$0xff]
    %v255 = vld [vmem:[#allocation3 + $0x10] sm:$0xff]
    %v256 = vld [vmem:[#allocation3 + $0x18] sm:$0xff]
    %v257 = vld [vmem:[#allocation3 + $0x20] sm:$0xff]
    %v258 = vld [vmem:[#allocation3 + $0x28] sm:$0xff]
    %v259 = vunpack.c.l.bf16 %v253
    %v260 = vunpack.c.h.bf16 %v253
    %v261 = vunpack.c.l.bf16 %v254
    %v262 = vunpack.c.h.bf16 %v254
    %v263 = vunpack.c.l.bf16 %v255
    %v264 = vunpack.c.h.bf16 %v255
    %v265 = vunpack.c.l.bf16 %v256
    %v266 = vunpack.c.h.bf16 %v256
    %v267 = vunpack.c.l.bf16 %v257
    %v268 = vunpack.c.h.bf16 %v257
    %v269 = vunpack.c.l.bf16 %v258
    %v270 = vunpack.c.h.bf16 %v258
    %v271 = vld [vmem:[#allocation6] sm:$0x3]
    %v272 = vld [vmem:[#allocation8] sm:$0xff]
    %v273 = vld [vmem:[#allocation8 + $0x8] sm:$0xff]
    %v274 = vld [vmem:[#allocation8 + $0x10] sm:$0xff]
    %v275 = vld [vmem:[#allocation8 + $0x18] sm:$0xff]
    %v276 = vld [vmem:[#allocation8 + $0x20] sm:$0xff]
    %v277 = vld [vmem:[#allocation8 + $0x28] sm:$0xff]
    %v278 = vld [vmem:[#allocation8 + $0x30] sm:$0xff]
    %v279 = vld [vmem:[#allocation8 + $0x38] sm:$0xff]
    %v280 = vld [vmem:[#allocation8 + $0x40] sm:$0xff]
    %v281 = vld [vmem:[#allocation8 + $0x48] sm:$0xff]
    %v282 = vld [vmem:[#allocation8 + $0x50] sm:$0xff]
    %v283 = vld [vmem:[#allocation8 + $0x58] sm:$0xff]
    %v284 = vld [vmem:[#allocation8 + $0x60] sm:$0xff]
    %v285 = vld [vmem:[#allocation8 + $0x68] sm:$0xff]
    %v286 = vld [vmem:[#allocation8 + $0x70] sm:$0xff]
    %v287 = vld [vmem:[#allocation8 + $0x78] sm:$0xff]
    %v288 = vld [vmem:[#allocation8 + $0x80] sm:$0xff]
    %v289 = vld [vmem:[#allocation8 + $0x88] sm:$0xff]
    %v290 = vld [vmem:[#allocation8 + $0x90] sm:$0xff]
    %v291 = vld [vmem:[#allocation8 + $0x98] sm:$0xff]
    %v292 = vld [vmem:[#allocation8 + $0xa0] sm:$0xff]
    %v293 = vld [vmem:[#allocation8 + $0xa8] sm:$0xff]
    %v294 = vld [vmem:[#allocation8 + $0xb0] sm:$0xff]
    %v295 = vld [vmem:[#allocation8 + $0xb8] sm:$0xff]
    %v296 = vld [vmem:[#allocation8 + $0xc0] sm:$0xff]
    %v297 = vld [vmem:[#allocation8 + $0xc8] sm:$0xff]
    %v298 = vld [vmem:[#allocation8 + $0xd0] sm:$0xff]
    %v299 = vld [vmem:[#allocation8 + $0xd8] sm:$0xff]
    %v300 = vld [vmem:[#allocation8 + $0xe0] sm:$0xff]
    %v301 = vld [vmem:[#allocation8 + $0xe8] sm:$0xff]
    %v302 = vld [vmem:[#allocation8 + $0xf0] sm:$0xff]
    %v303 = vld [vmem:[#allocation8 + $0xf8] sm:$0xff]
    %v304 = vld [vmem:[#allocation8 + $0x100] sm:$0xff]
    %v305 = vld [vmem:[#allocation8 + $0x108] sm:$0xff]
    %v306 = vld [vmem:[#allocation8 + $0x110] sm:$0xff]
    %v307 = vld [vmem:[#allocation8 + $0x118] sm:$0xff]
    %v308 = vld [vmem:[#allocation8 + $0x120] sm:$0xff]
    %v309 = vld [vmem:[#allocation8 + $0x128] sm:$0xff]
    %v310 = vld [vmem:[#allocation8 + $0x130] sm:$0xff]
    %v311 = vld [vmem:[#allocation8 + $0x138] sm:$0xff]
    %v312 = vld [vmem:[#allocation8 + $0x140] sm:$0xff]
    %v313 = vld [vmem:[#allocation8 + $0x148] sm:$0xff]
    %v314 = vld [vmem:[#allocation8 + $0x150] sm:$0xff]
    %v315 = vld [vmem:[#allocation8 + $0x158] sm:$0xff]
    %v316 = vld [vmem:[#allocation8 + $0x160] sm:$0xff]
    %v317 = vld [vmem:[#allocation8 + $0x168] sm:$0xff]
    %v318 = vld [vmem:[#allocation8 + $0x170] sm:$0xff]
    %v319 = vld [vmem:[#allocation8 + $0x178] sm:$0xff]
    %v320 = vld [vmem:[#allocation8 + $0x180] sm:$0xff]
    %v321 = vld [vmem:[#allocation8 + $0x188] sm:$0xff]
    %v322 = vld [vmem:[#allocation8 + $0x190] sm:$0xff]
    %v323 = vld [vmem:[#allocation8 + $0x198] sm:$0xff]
    %v324 = vld [vmem:[#allocation8 + $0x1a0] sm:$0xff]
    %v325 = vld [vmem:[#allocation8 + $0x1a8] sm:$0xff]
    %v326 = vld [vmem:[#allocation8 + $0x1b0] sm:$0xff]
    %v327 = vld [vmem:[#allocation8 + $0x1b8] sm:$0xff]
    %v328 = vld [vmem:[#allocation8 + $0x1c0] sm:$0xff]
    %v329 = vld [vmem:[#allocation8 + $0x1c8] sm:$0xff]
    %v330 = vld [vmem:[#allocation8 + $0x1d0] sm:$0xff]
    %v331 = vld [vmem:[#allocation8 + $0x1d8] sm:$0xff]
    %v332 = vld [vmem:[#allocation8 + $0x1e0] sm:$0xff]
    %v333 = vld [vmem:[#allocation8 + $0x1e8] sm:$0xff]
    %v334 = vld [vmem:[#allocation8 + $0x1f0] sm:$0xff]
    %v335 = vld [vmem:[#allocation8 + $0x1f8] sm:$0xff]
    %v336 = vld [vmem:[#allocation8 + $0x200] sm:$0xff]
    %v337 = vld [vmem:[#allocation8 + $0x208] sm:$0xff]
    %v338 = vld [vmem:[#allocation8 + $0x210] sm:$0xff]
    %v339 = vld [vmem:[#allocation8 + $0x218] sm:$0xff]
    %v340 = vld [vmem:[#allocation8 + $0x220] sm:$0xff]
    %v341 = vld [vmem:[#allocation8 + $0x228] sm:$0xff]
    %v342 = vld [vmem:[#allocation8 + $0x230] sm:$0xff]
    %v343 = vld [vmem:[#allocation8 + $0x238] sm:$0xff]
    %v344 = vld [vmem:[#allocation8 + $0x240] sm:$0xff]
    %v345 = vld [vmem:[#allocation8 + $0x248] sm:$0xff]
    %v346 = vld [vmem:[#allocation8 + $0x250] sm:$0xff]
    %v347 = vld [vmem:[#allocation8 + $0x258] sm:$0xff]
    %v348 = vld [vmem:[#allocation8 + $0x260] sm:$0xff]
    %v349 = vld [vmem:[#allocation8 + $0x268] sm:$0xff]
    %v350 = vld [vmem:[#allocation8 + $0x270] sm:$0xff]
    %v351 = vld [vmem:[#allocation8 + $0x278] sm:$0xff]
    %v352 = vld [vmem:[#allocation8 + $0x280] sm:$0xff]
    %v353 = vld [vmem:[#allocation8 + $0x288] sm:$0xff]
    %v354 = vld [vmem:[#allocation8 + $0x290] sm:$0xff]
    %v355 = vld [vmem:[#allocation8 + $0x298] sm:$0xff]
    %v356 = vld [vmem:[#allocation8 + $0x2a0] sm:$0xff]
    %v357 = vld [vmem:[#allocation8 + $0x2a8] sm:$0xff]
    %v358 = vld [vmem:[#allocation8 + $0x2b0] sm:$0xff]
    %v359 = vld [vmem:[#allocation8 + $0x2b8] sm:$0xff]
    %v360 = vld [vmem:[#allocation8 + $0x2c0] sm:$0xff]
    %v361 = vld [vmem:[#allocation8 + $0x2c8] sm:$0xff]
    %v362 = vld [vmem:[#allocation8 + $0x2d0] sm:$0xff]
    %v363 = vld [vmem:[#allocation8 + $0x2d8] sm:$0xff]
    %v364 = vld [vmem:[#allocation8 + $0x2e0] sm:$0xff]
    %v365 = vld [vmem:[#allocation8 + $0x2e8] sm:$0xff]
    %v366 = vld [vmem:[#allocation8 + $0x2f0] sm:$0xff]
    %v367 = vld [vmem:[#allocation8 + $0x2f8] sm:$0xff]
    %v368 = vld [vmem:[#allocation8 + $0x300] sm:$0xff]
    %v369 = vld [vmem:[#allocation8 + $0x308] sm:$0xff]
    %v370 = vld [vmem:[#allocation8 + $0x310] sm:$0xff]
    %v371 = vld [vmem:[#allocation8 + $0x318] sm:$0xff]
    %v372 = vld [vmem:[#allocation8 + $0x320] sm:$0xff]
    %v373 = vld [vmem:[#allocation8 + $0x328] sm:$0xff]
    %v374 = vld [vmem:[#allocation8 + $0x330] sm:$0xff]
    %v375 = vld [vmem:[#allocation8 + $0x338] sm:$0xff]
    %v376 = vld [vmem:[#allocation8 + $0x340] sm:$0xff]
    %v377 = vld [vmem:[#allocation8 + $0x348] sm:$0xff]
    %v378 = vld [vmem:[#allocation8 + $0x350] sm:$0xff]
    %v379 = vld [vmem:[#allocation8 + $0x358] sm:$0xff]
    %v380 = vld [vmem:[#allocation8 + $0x360] sm:$0xff]
    %v381 = vld [vmem:[#allocation8 + $0x368] sm:$0xff]
    %v382 = vld [vmem:[#allocation8 + $0x370] sm:$0xff]
    %v383 = vld [vmem:[#allocation8 + $0x378] sm:$0xff]
    %v384 = vld [vmem:[#allocation8 + $0x380] sm:$0xff]
    %v385 = vld [vmem:[#allocation8 + $0x388] sm:$0xff]
    %v386 = vld [vmem:[#allocation8 + $0x390] sm:$0xff]
    %v387 = vld [vmem:[#allocation8 + $0x398] sm:$0xff]
    %v388 = vld [vmem:[#allocation8 + $0x3a0] sm:$0xff]
    %v389 = vld [vmem:[#allocation8 + $0x3a8] sm:$0xff]
    %v390 = vld [vmem:[#allocation8 + $0x3b0] sm:$0xff]
    %v391 = vld [vmem:[#allocation8 + $0x3b8] sm:$0xff]
    %v392 = vld [vmem:[#allocation8 + $0x3c0] sm:$0xff]
    %v393 = vld [vmem:[#allocation8 + $0x3c8] sm:$0xff]
    %v394 = vld [vmem:[#allocation8 + $0x3d0] sm:$0xff]
    %v395 = vld [vmem:[#allocation8 + $0x3d8] sm:$0xff]
    %v396 = vld [vmem:[#allocation8 + $0x3e0] sm:$0xff]
    %v397 = vld [vmem:[#allocation8 + $0x3e8] sm:$0xff]
    %v398 = vld [vmem:[#allocation8 + $0x3f0] sm:$0xff]
    %v399 = vld [vmem:[#allocation8 + $0x3f8] sm:$0xff]
    %v400 = vld [vmem:[#allocation8 + $0x400] sm:$0xff]
    %v401 = vld [vmem:[#allocation8 + $0x408] sm:$0xff]
    %v402 = vld [vmem:[#allocation8 + $0x410] sm:$0xff]
    %v403 = vld [vmem:[#allocation8 + $0x418] sm:$0xff]
    %v404 = vld [vmem:[#allocation8 + $0x420] sm:$0xff]
    %v405 = vld [vmem:[#allocation8 + $0x428] sm:$0xff]
    %v406 = vld [vmem:[#allocation8 + $0x430] sm:$0xff]
    %v407 = vld [vmem:[#allocation8 + $0x438] sm:$0xff]
    %v408 = vld [vmem:[#allocation8 + $0x440] sm:$0xff]
    %v409 = vld [vmem:[#allocation8 + $0x448] sm:$0xff]
    %v410 = vld [vmem:[#allocation8 + $0x450] sm:$0xff]
    %v411 = vld [vmem:[#allocation8 + $0x458] sm:$0xff]
    %v412 = vld [vmem:[#allocation8 + $0x460] sm:$0xff]
    %v413 = vld [vmem:[#allocation8 + $0x468] sm:$0xff]
    %v414 = vld [vmem:[#allocation8 + $0x470] sm:$0xff]
    %v415 = vld [vmem:[#allocation8 + $0x478] sm:$0xff]
    %v416 = vld [vmem:[#allocation8 + $0x480] sm:$0xff]
    %v417 = vld [vmem:[#allocation8 + $0x488] sm:$0xff]
    %v418 = vld [vmem:[#allocation8 + $0x490] sm:$0xff]
    %v419 = vld [vmem:[#allocation8 + $0x498] sm:$0xff]
    %v420 = vld [vmem:[#allocation8 + $0x4a0] sm:$0xff]
    %v421 = vld [vmem:[#allocation8 + $0x4a8] sm:$0xff]
    %v422 = vld [vmem:[#allocation8 + $0x4b0] sm:$0xff]
    %v423 = vld [vmem:[#allocation8 + $0x4b8] sm:$0xff]
    %v424 = vld [vmem:[#allocation8 + $0x4c0] sm:$0xff]
    %v425 = vld [vmem:[#allocation8 + $0x4c8] sm:$0xff]
    %v426 = vld [vmem:[#allocation8 + $0x4d0] sm:$0xff]
    %v427 = vld [vmem:[#allocation8 + $0x4d8] sm:$0xff]
    %v428 = vld [vmem:[#allocation8 + $0x4e0] sm:$0xff]
    %v429 = vld [vmem:[#allocation8 + $0x4e8] sm:$0xff]
    %v430 = vld [vmem:[#allocation8 + $0x4f0] sm:$0xff]
    %v431 = vld [vmem:[#allocation8 + $0x4f8] sm:$0xff]
    %v432 = vld [vmem:[#allocation8 + $0x500] sm:$0xff]
    %v433 = vld [vmem:[#allocation8 + $0x508] sm:$0xff]
    %v434 = vld [vmem:[#allocation8 + $0x510] sm:$0xff]
    %v435 = vld [vmem:[#allocation8 + $0x518] sm:$0xff]
    %v436 = vld [vmem:[#allocation8 + $0x520] sm:$0xff]
    %v437 = vld [vmem:[#allocation8 + $0x528] sm:$0xff]
    %v438 = vld [vmem:[#allocation8 + $0x530] sm:$0xff]
    %v439 = vld [vmem:[#allocation8 + $0x538] sm:$0xff]
    %v440 = vld [vmem:[#allocation8 + $0x540] sm:$0xff]
    %v441 = vld [vmem:[#allocation8 + $0x548] sm:$0xff]
    %v442 = vld [vmem:[#allocation8 + $0x550] sm:$0xff]
    %v443 = vld [vmem:[#allocation8 + $0x558] sm:$0xff]
    %v444 = vld [vmem:[#allocation8 + $0x560] sm:$0xff]
    %v445 = vld [vmem:[#allocation8 + $0x568] sm:$0xff]
    %v446 = vld [vmem:[#allocation8 + $0x570] sm:$0xff]
    %v447 = vld [vmem:[#allocation8 + $0x578] sm:$0xff]
    %v448 = vld [vmem:[#allocation8 + $0x580] sm:$0xff]
    %v449 = vld [vmem:[#allocation8 + $0x588] sm:$0xff]
    %v450 = vld [vmem:[#allocation8 + $0x590] sm:$0xff]
    %v451 = vld [vmem:[#allocation8 + $0x598] sm:$0xff]
    %v452 = vld [vmem:[#allocation8 + $0x5a0] sm:$0xff]
    %v453 = vld [vmem:[#allocation8 + $0x5a8] sm:$0xff]
    %v454 = vld [vmem:[#allocation8 + $0x5b0] sm:$0xff]
    %v455 = vld [vmem:[#allocation8 + $0x5b8] sm:$0xff]
    %v456 = vld [vmem:[#allocation8 + $0x5c0] sm:$0xff]
    %v457 = vld [vmem:[#allocation8 + $0x5c8] sm:$0xff]
    %v458 = vld [vmem:[#allocation8 + $0x5d0] sm:$0xff]
    %v459 = vld [vmem:[#allocation8 + $0x5d8] sm:$0xff]
    %v460 = vld [vmem:[#allocation8 + $0x5e0] sm:$0xff]
    %v461 = vld [vmem:[#allocation8 + $0x5e8] sm:$0xff]
    %v462 = vld [vmem:[#allocation8 + $0x5f0] sm:$0xff]
    %v463 = vld [vmem:[#allocation8 + $0x5f8] sm:$0xff]
    %v464 = vld [vmem:[#allocation8 + $0x600] sm:$0xff]
    %v465 = vld [vmem:[#allocation8 + $0x608] sm:$0xff]
    %v466 = vld [vmem:[#allocation8 + $0x610] sm:$0xff]
    %v467 = vld [vmem:[#allocation8 + $0x618] sm:$0xff]
    %v468 = vld [vmem:[#allocation8 + $0x620] sm:$0xff]
    %v469 = vld [vmem:[#allocation8 + $0x628] sm:$0xff]
    %v470 = vld [vmem:[#allocation8 + $0x630] sm:$0xff]
    %v471 = vld [vmem:[#allocation8 + $0x638] sm:$0xff]
    %v472 = vld [vmem:[#allocation8 + $0x640] sm:$0xff]
    %v473 = vld [vmem:[#allocation8 + $0x648] sm:$0xff]
    %v474 = vld [vmem:[#allocation8 + $0x650] sm:$0xff]
    %v475 = vld [vmem:[#allocation8 + $0x658] sm:$0xff]
    %v476 = vld [vmem:[#allocation8 + $0x660] sm:$0xff]
    %v477 = vld [vmem:[#allocation8 + $0x668] sm:$0xff]
    %v478 = vld [vmem:[#allocation8 + $0x670] sm:$0xff]
    %v479 = vld [vmem:[#allocation8 + $0x678] sm:$0xff]
    %v480 = vld [vmem:[#allocation8 + $0x680] sm:$0xff]
    %v481 = vld [vmem:[#allocation8 + $0x688] sm:$0xff]
    %v482 = vld [vmem:[#allocation8 + $0x690] sm:$0xff]
    %v483 = vld [vmem:[#allocation8 + $0x698] sm:$0xff]
    %v484 = vld [vmem:[#allocation8 + $0x6a0] sm:$0xff]
    %v485 = vld [vmem:[#allocation8 + $0x6a8] sm:$0xff]
    %v486 = vld [vmem:[#allocation8 + $0x6b0] sm:$0xff]
    %v487 = vld [vmem:[#allocation8 + $0x6b8] sm:$0xff]
    %v488 = vld [vmem:[#allocation8 + $0x6c0] sm:$0xff]
    %v489 = vld [vmem:[#allocation8 + $0x6c8] sm:$0xff]
    %v490 = vld [vmem:[#allocation8 + $0x6d0] sm:$0xff]
    %v491 = vld [vmem:[#allocation8 + $0x6d8] sm:$0xff]
    %v492 = vld [vmem:[#allocation8 + $0x6e0] sm:$0xff]
    %v493 = vld [vmem:[#allocation8 + $0x6e8] sm:$0xff]
    %v494 = vld [vmem:[#allocation8 + $0x6f0] sm:$0xff]
    %v495 = vld [vmem:[#allocation8 + $0x6f8] sm:$0xff]
    %v496 = vld [vmem:[#allocation8 + $0x700] sm:$0xff]
    %v497 = vld [vmem:[#allocation8 + $0x708] sm:$0xff]
    %v498 = vld [vmem:[#allocation8 + $0x710] sm:$0xff]
    %v499 = vld [vmem:[#allocation8 + $0x718] sm:$0xff]
    %v500 = vld [vmem:[#allocation8 + $0x720] sm:$0xff]
    %v501 = vld [vmem:[#allocation8 + $0x728] sm:$0xff]
    %v502 = vld [vmem:[#allocation8 + $0x730] sm:$0xff]
    %v503 = vld [vmem:[#allocation8 + $0x738] sm:$0xff]
    %v504 = vld [vmem:[#allocation8 + $0x740] sm:$0xff]
    %v505 = vld [vmem:[#allocation8 + $0x748] sm:$0xff]
    %v506 = vld [vmem:[#allocation8 + $0x750] sm:$0xff]
    %v507 = vld [vmem:[#allocation8 + $0x758] sm:$0xff]
    %v508 = vld [vmem:[#allocation8 + $0x760] sm:$0xff]
    %v509 = vld [vmem:[#allocation8 + $0x768] sm:$0xff]
    %v510 = vld [vmem:[#allocation8 + $0x770] sm:$0xff]
    %v511 = vld [vmem:[#allocation8 + $0x778] sm:$0xff]
    %v512 = vld [vmem:[#allocation8 + $0x780] sm:$0xff]
    %v513 = vld [vmem:[#allocation8 + $0x788] sm:$0xff]
    %v514 = vld [vmem:[#allocation8 + $0x790] sm:$0xff]
    %v515 = vld [vmem:[#allocation8 + $0x798] sm:$0xff]
    %v516 = vld [vmem:[#allocation8 + $0x7a0] sm:$0xff]
    %v517 = vld [vmem:[#allocation8 + $0x7a8] sm:$0xff]
    %v518 = vld [vmem:[#allocation8 + $0x7b0] sm:$0xff]
    %v519 = vld [vmem:[#allocation8 + $0x7b8] sm:$0xff]
    %v520 = vld [vmem:[#allocation8 + $0x7c0] sm:$0xff]
    %v521 = vld [vmem:[#allocation8 + $0x7c8] sm:$0xff]
    %v522 = vld [vmem:[#allocation8 + $0x7d0] sm:$0xff]
    %v523 = vld [vmem:[#allocation8 + $0x7d8] sm:$0xff]
    %v524 = vld [vmem:[#allocation8 + $0x7e0] sm:$0xff]
    %v525 = vld [vmem:[#allocation8 + $0x7e8] sm:$0xff]
    %v526 = vld [vmem:[#allocation8 + $0x7f0] sm:$0xff]
    %v527 = vld [vmem:[#allocation8 + $0x7f8] sm:$0xff]
    %v528 = vld [vmem:[#allocation8 + $0x800] sm:$0xff]
    %v529 = vld [vmem:[#allocation8 + $0x808] sm:$0xff]
    %v530 = vld [vmem:[#allocation8 + $0x810] sm:$0xff]
    %v531 = vld [vmem:[#allocation8 + $0x818] sm:$0xff]
    %v532 = vld [vmem:[#allocation8 + $0x820] sm:$0xff]
    %v533 = vld [vmem:[#allocation8 + $0x828] sm:$0xff]
    %v534 = vld [vmem:[#allocation8 + $0x830] sm:$0xff]
    %v535 = vld [vmem:[#allocation8 + $0x838] sm:$0xff]
    %v536 = vld [vmem:[#allocation8 + $0x840] sm:$0xff]
    %v537 = vld [vmem:[#allocation8 + $0x848] sm:$0xff]
    %v538 = vld [vmem:[#allocation8 + $0x850] sm:$0xff]
    %v539 = vld [vmem:[#allocation8 + $0x858] sm:$0xff]
    %v540 = vld [vmem:[#allocation8 + $0x860] sm:$0xff]
    %v541 = vld [vmem:[#allocation8 + $0x868] sm:$0xff]
    %v542 = vld [vmem:[#allocation8 + $0x870] sm:$0xff]
    %v543 = vld [vmem:[#allocation8 + $0x878] sm:$0xff]
    %v544 = vld [vmem:[#allocation8 + $0x880] sm:$0xff]
    %v545 = vld [vmem:[#allocation8 + $0x888] sm:$0xff]
    %v546 = vld [vmem:[#allocation8 + $0x890] sm:$0xff]
    %v547 = vld [vmem:[#allocation8 + $0x898] sm:$0xff]
    %v548 = vld [vmem:[#allocation8 + $0x8a0] sm:$0xff]
    %v549 = vld [vmem:[#allocation8 + $0x8a8] sm:$0xff]
    %v550 = vld [vmem:[#allocation8 + $0x8b0] sm:$0xff]
    %v551 = vld [vmem:[#allocation8 + $0x8b8] sm:$0xff]
    %v552 = vld [vmem:[#allocation8 + $0x8c0] sm:$0xff]
    %v553 = vld [vmem:[#allocation8 + $0x8c8] sm:$0xff]
    %v554 = vld [vmem:[#allocation8 + $0x8d0] sm:$0xff]
    %v555 = vld [vmem:[#allocation8 + $0x8d8] sm:$0xff]
    %v556 = vld [vmem:[#allocation8 + $0x8e0] sm:$0xff]
    %v557 = vld [vmem:[#allocation8 + $0x8e8] sm:$0xff]
    %v558 = vld [vmem:[#allocation8 + $0x8f0] sm:$0xff]
    %v559 = vld [vmem:[#allocation8 + $0x8f8] sm:$0xff]
    %v560 = vld [vmem:[#allocation9] sm:$0x3f]
    %v562 = vlaneseq
    %v563 = vshrl.u32 %v562, 7
    %v564 = vsub.s32 0, %v563
    %v565 = vrot.slane %v560, %v564
    %v566 = vlaneseq
    %v567 = vshrl.u32 %v566, 7
    %v568 = vsub.s32 1, %v567
    %v569 = vrot.slane %v560, %v568
    %v570 = vlaneseq
    %v571 = vshrl.u32 %v570, 7
    %v572 = vsub.s32 2, %v571
    %v573 = vrot.slane %v560, %v572
    %v574 = vlaneseq
    %v575 = vshrl.u32 %v574, 7
    %v576 = vsub.s32 3, %v575
    %v577 = vrot.slane %v560, %v576
    %v578 = vlaneseq
    %v579 = vshrl.u32 %v578, 7
    %v580 = vsub.s32 4, %v579
    %v581 = vrot.slane %v560, %v580
    %v582 = vlaneseq
    %v583 = vshrl.u32 %v582, 7
    %v584 = vsub.s32 5, %v583
    %v585 = vrot.slane %v560, %v584
    %v598 = vunpack.c.l.b16 %v253
    %v599 = vunpack.c.h.b16 %v253
    %v600 = vunpack.c.l.b16 %v254
    %v601 = vunpack.c.h.b16 %v254
    %v602 = vunpack.c.l.b16 %v255
    %v603 = vunpack.c.h.b16 %v255
    %v604 = vunpack.c.l.b16 %v256
    %v605 = vunpack.c.h.b16 %v256
    %v606 = vunpack.c.l.b16 %v257
    %v607 = vunpack.c.h.b16 %v257
    %v608 = vunpack.c.l.b16 %v258
    %v609 = vunpack.c.h.b16 %v258
    %v610 = vpack.c.b16 %v604, %v598
    %v611 = vpack.c.b16 %v605, %v599
    %v612 = vpack.c.b16 %v606, %v600
    %v613 = vpack.c.b16 %v607, %v601
    %v614 = vpack.c.b16 %v608, %v602
    %v615 = vpack.c.b16 %v609, %v603
    %v910 = vunpack.c.l.b16 %v272
    %v911 = vunpack.c.h.b16 %v272
    %v912 = vunpack.c.l.b16 %v273
    %v913 = vunpack.c.h.b16 %v273
    %v914 = vunpack.c.l.b16 %v274
    %v915 = vunpack.c.h.b16 %v274
    %v916 = vunpack.c.l.b16 %v275
    %v917 = vunpack.c.h.b16 %v275
    %v918 = vunpack.c.l.b16 %v276
    %v919 = vunpack.c.h.b16 %v276
    %v920 = vunpack.c.l.b16 %v277
    %v921 = vunpack.c.h.b16 %v277
    %v922 = vunpack.c.l.b16 %v278
    %v923 = vunpack.c.h.b16 %v278
    %v924 = vunpack.c.l.b16 %v279
    %v925 = vunpack.c.h.b16 %v279
    %v926 = vunpack.c.l.b16 %v280
    %v927 = vunpack.c.h.b16 %v280
    %v928 = vunpack.c.l.b16 %v281
    %v929 = vunpack.c.h.b16 %v281
    %v930 = vunpack.c.l.b16 %v282
    %v931 = vunpack.c.h.b16 %v282
    %v932 = vunpack.c.l.b16 %v283
    %v933 = vunpack.c.h.b16 %v283
    %v934 = vunpack.c.l.b16 %v284
    %v935 = vunpack.c.h.b16 %v284
    %v936 = vunpack.c.l.b16 %v285
    %v937 = vunpack.c.h.b16 %v285
    %v938 = vunpack.c.l.b16 %v286
    %v939 = vunpack.c.h.b16 %v286
    %v940 = vunpack.c.l.b16 %v287
    %v941 = vunpack.c.h.b16 %v287
    %v942 = vunpack.c.l.b16 %v288
    %v943 = vunpack.c.h.b16 %v288
    %v944 = vunpack.c.l.b16 %v289
    %v945 = vunpack.c.h.b16 %v289
    %v946 = vunpack.c.l.b16 %v290
    %v947 = vunpack.c.h.b16 %v290
    %v948 = vunpack.c.l.b16 %v291
    %v949 = vunpack.c.h.b16 %v291
    %v950 = vunpack.c.l.b16 %v292
    %v951 = vunpack.c.h.b16 %v292
    %v952 = vunpack.c.l.b16 %v293
    %v953 = vunpack.c.h.b16 %v293
    %v954 = vunpack.c.l.b16 %v294
    %v955 = vunpack.c.h.b16 %v294
    %v956 = vunpack.c.l.b16 %v295
    %v957 = vunpack.c.h.b16 %v295
    %v958 = vunpack.c.l.b16 %v296
    %v959 = vunpack.c.h.b16 %v296
    %v960 = vunpack.c.l.b16 %v297
    %v961 = vunpack.c.h.b16 %v297
    %v962 = vunpack.c.l.b16 %v298
    %v963 = vunpack.c.h.b16 %v298
    %v964 = vunpack.c.l.b16 %v299
    %v965 = vunpack.c.h.b16 %v299
    %v966 = vunpack.c.l.b16 %v300
    %v967 = vunpack.c.h.b16 %v300
    %v968 = vunpack.c.l.b16 %v301
    %v969 = vunpack.c.h.b16 %v301
    %v970 = vunpack.c.l.b16 %v302
    %v971 = vunpack.c.h.b16 %v302
    %v972 = vunpack.c.l.b16 %v303
    %v973 = vunpack.c.h.b16 %v303
    %v974 = vunpack.c.l.b16 %v304
    %v975 = vunpack.c.h.b16 %v304
    %v976 = vunpack.c.l.b16 %v305
    %v977 = vunpack.c.h.b16 %v305
    %v978 = vunpack.c.l.b16 %v306
    %v979 = vunpack.c.h.b16 %v306
    %v980 = vunpack.c.l.b16 %v307
    %v981 = vunpack.c.h.b16 %v307
    %v982 = vunpack.c.l.b16 %v308
    %v983 = vunpack.c.h.b16 %v308
    %v984 = vunpack.c.l.b16 %v309
    %v985 = vunpack.c.h.b16 %v309
    %v986 = vunpack.c.l.b16 %v310
    %v987 = vunpack.c.h.b16 %v310
    %v988 = vunpack.c.l.b16 %v311
    %v989 = vunpack.c.h.b16 %v311
    %v990 = vunpack.c.l.b16 %v312
    %v991 = vunpack.c.h.b16 %v312
    %v992 = vunpack.c.l.b16 %v313
    %v993 = vunpack.c.h.b16 %v313
    %v994 = vunpack.c.l.b16 %v314
    %v995 = vunpack.c.h.b16 %v314
    %v996 = vunpack.c.l.b16 %v315
    %v997 = vunpack.c.h.b16 %v315
    %v998 = vunpack.c.l.b16 %v316
    %v999 = vunpack.c.h.b16 %v316
    %v1000 = vunpack.c.l.b16 %v317
    %v1001 = vunpack.c.h.b16 %v317
    %v1002 = vunpack.c.l.b16 %v318
    %v1003 = vunpack.c.h.b16 %v318
    %v1004 = vunpack.c.l.b16 %v319
    %v1005 = vunpack.c.h.b16 %v319
    %v1006 = vunpack.c.l.b16 %v320
    %v1007 = vunpack.c.h.b16 %v320
    %v1008 = vunpack.c.l.b16 %v321
    %v1009 = vunpack.c.h.b16 %v321
    %v1010 = vunpack.c.l.b16 %v322
    %v1011 = vunpack.c.h.b16 %v322
    %v1012 = vunpack.c.l.b16 %v323
    %v1013 = vunpack.c.h.b16 %v323
    %v1014 = vunpack.c.l.b16 %v324
    %v1015 = vunpack.c.h.b16 %v324
    %v1016 = vunpack.c.l.b16 %v325
    %v1017 = vunpack.c.h.b16 %v325
    %v1018 = vunpack.c.l.b16 %v326
    %v1019 = vunpack.c.h.b16 %v326
    %v1020 = vunpack.c.l.b16 %v327
    %v1021 = vunpack.c.h.b16 %v327
    %v1022 = vunpack.c.l.b16 %v328
    %v1023 = vunpack.c.h.b16 %v328
    %v1024 = vunpack.c.l.b16 %v329
    %v1025 = vunpack.c.h.b16 %v329
    %v1026 = vunpack.c.l.b16 %v330
    %v1027 = vunpack.c.h.b16 %v330
    %v1028 = vunpack.c.l.b16 %v331
    %v1029 = vunpack.c.h.b16 %v331
    %v1030 = vunpack.c.l.b16 %v332
    %v1031 = vunpack.c.h.b16 %v332
    %v1032 = vunpack.c.l.b16 %v333
    %v1033 = vunpack.c.h.b16 %v333
    %v1034 = vunpack.c.l.b16 %v334
    %v1035 = vunpack.c.h.b16 %v334
    %v1036 = vunpack.c.l.b16 %v335
    %v1037 = vunpack.c.h.b16 %v335
    %v1038 = vunpack.c.l.b16 %v336
    %v1039 = vunpack.c.h.b16 %v336
    %v1040 = vunpack.c.l.b16 %v337
    %v1041 = vunpack.c.h.b16 %v337
    %v1042 = vunpack.c.l.b16 %v338
    %v1043 = vunpack.c.h.b16 %v338
    %v1044 = vunpack.c.l.b16 %v339
    %v1045 = vunpack.c.h.b16 %v339
    %v1046 = vunpack.c.l.b16 %v340
    %v1047 = vunpack.c.h.b16 %v340
    %v1048 = vunpack.c.l.b16 %v341
    %v1049 = vunpack.c.h.b16 %v341
    %v1050 = vunpack.c.l.b16 %v342
    %v1051 = vunpack.c.h.b16 %v342
    %v1052 = vunpack.c.l.b16 %v343
    %v1053 = vunpack.c.h.b16 %v343
    %v1054 = vunpack.c.l.b16 %v344
    %v1055 = vunpack.c.h.b16 %v344
    %v1056 = vunpack.c.l.b16 %v345
    %v1057 = vunpack.c.h.b16 %v345
    %v1058 = vunpack.c.l.b16 %v346
    %v1059 = vunpack.c.h.b16 %v346
    %v1060 = vunpack.c.l.b16 %v347
    %v1061 = vunpack.c.h.b16 %v347
    %v1062 = vunpack.c.l.b16 %v348
    %v1063 = vunpack.c.h.b16 %v348
    %v1064 = vunpack.c.l.b16 %v349
    %v1065 = vunpack.c.h.b16 %v349
    %v1066 = vunpack.c.l.b16 %v350
    %v1067 = vunpack.c.h.b16 %v350
    %v1068 = vunpack.c.l.b16 %v351
    %v1069 = vunpack.c.h.b16 %v351
    %v1070 = vunpack.c.l.b16 %v352
    %v1071 = vunpack.c.h.b16 %v352
    %v1072 = vunpack.c.l.b16 %v353
    %v1073 = vunpack.c.h.b16 %v353
    %v1074 = vunpack.c.l.b16 %v354
    %v1075 = vunpack.c.h.b16 %v354
    %v1076 = vunpack.c.l.b16 %v355
    %v1077 = vunpack.c.h.b16 %v355
    %v1078 = vunpack.c.l.b16 %v356
    %v1079 = vunpack.c.h.b16 %v356
    %v1080 = vunpack.c.l.b16 %v357
    %v1081 = vunpack.c.h.b16 %v357
    %v1082 = vunpack.c.l.b16 %v358
    %v1083 = vunpack.c.h.b16 %v358
    %v1084 = vunpack.c.l.b16 %v359
    %v1085 = vunpack.c.h.b16 %v359
    %v1086 = vunpack.c.l.b16 %v360
    %v1087 = vunpack.c.h.b16 %v360
    %v1088 = vunpack.c.l.b16 %v361
    %v1089 = vunpack.c.h.b16 %v361
    %v1090 = vunpack.c.l.b16 %v362
    %v1091 = vunpack.c.h.b16 %v362
    %v1092 = vunpack.c.l.b16 %v363
    %v1093 = vunpack.c.h.b16 %v363
    %v1094 = vunpack.c.l.b16 %v364
    %v1095 = vunpack.c.h.b16 %v364
    %v1096 = vunpack.c.l.b16 %v365
    %v1097 = vunpack.c.h.b16 %v365
    %v1098 = vunpack.c.l.b16 %v366
    %v1099 = vunpack.c.h.b16 %v366
    %v1100 = vunpack.c.l.b16 %v367
    %v1101 = vunpack.c.h.b16 %v367
    %v1102 = vunpack.c.l.b16 %v368
    %v1103 = vunpack.c.h.b16 %v368
    %v1104 = vunpack.c.l.b16 %v369
    %v1105 = vunpack.c.h.b16 %v369
    %v1106 = vunpack.c.l.b16 %v370
    %v1107 = vunpack.c.h.b16 %v370
    %v1108 = vunpack.c.l.b16 %v371
    %v1109 = vunpack.c.h.b16 %v371
    %v1110 = vunpack.c.l.b16 %v372
    %v1111 = vunpack.c.h.b16 %v372
    %v1112 = vunpack.c.l.b16 %v373
    %v1113 = vunpack.c.h.b16 %v373
    %v1114 = vunpack.c.l.b16 %v374
    %v1115 = vunpack.c.h.b16 %v374
    %v1116 = vunpack.c.l.b16 %v375
    %v1117 = vunpack.c.h.b16 %v375
    %v1118 = vunpack.c.l.b16 %v376
    %v1119 = vunpack.c.h.b16 %v376
    %v1120 = vunpack.c.l.b16 %v377
    %v1121 = vunpack.c.h.b16 %v377
    %v1122 = vunpack.c.l.b16 %v378
    %v1123 = vunpack.c.h.b16 %v378
    %v1124 = vunpack.c.l.b16 %v379
    %v1125 = vunpack.c.h.b16 %v379
    %v1126 = vunpack.c.l.b16 %v380
    %v1127 = vunpack.c.h.b16 %v380
    %v1128 = vunpack.c.l.b16 %v381
    %v1129 = vunpack.c.h.b16 %v381
    %v1130 = vunpack.c.l.b16 %v382
    %v1131 = vunpack.c.h.b16 %v382
    %v1132 = vunpack.c.l.b16 %v383
    %v1133 = vunpack.c.h.b16 %v383
    %v1134 = vunpack.c.l.b16 %v384
    %v1135 = vunpack.c.h.b16 %v384
    %v1136 = vunpack.c.l.b16 %v385
    %v1137 = vunpack.c.h.b16 %v385
    %v1138 = vunpack.c.l.b16 %v386
    %v1139 = vunpack.c.h.b16 %v386
    %v1140 = vunpack.c.l.b16 %v387
    %v1141 = vunpack.c.h.b16 %v387
    %v1142 = vunpack.c.l.b16 %v388
    %v1143 = vunpack.c.h.b16 %v388
    %v1144 = vunpack.c.l.b16 %v389
    %v1145 = vunpack.c.h.b16 %v389
    %v1146 = vunpack.c.l.b16 %v390
    %v1147 = vunpack.c.h.b16 %v390
    %v1148 = vunpack.c.l.b16 %v391
    %v1149 = vunpack.c.h.b16 %v391
    %v1150 = vunpack.c.l.b16 %v392
    %v1151 = vunpack.c.h.b16 %v392
    %v1152 = vunpack.c.l.b16 %v393
    %v1153 = vunpack.c.h.b16 %v393
    %v1154 = vunpack.c.l.b16 %v394
    %v1155 = vunpack.c.h.b16 %v394
    %v1156 = vunpack.c.l.b16 %v395
    %v1157 = vunpack.c.h.b16 %v395
    %v1158 = vunpack.c.l.b16 %v396
    %v1159 = vunpack.c.h.b16 %v396
    %v1160 = vunpack.c.l.b16 %v397
    %v1161 = vunpack.c.h.b16 %v397
    %v1162 = vunpack.c.l.b16 %v398
    %v1163 = vunpack.c.h.b16 %v398
    %v1164 = vunpack.c.l.b16 %v399
    %v1165 = vunpack.c.h.b16 %v399
    %v1166 = vunpack.c.l.b16 %v400
    %v1167 = vunpack.c.h.b16 %v400
    %v1168 = vunpack.c.l.b16 %v401
    %v1169 = vunpack.c.h.b16 %v401
    %v1170 = vunpack.c.l.b16 %v402
    %v1171 = vunpack.c.h.b16 %v402
    %v1172 = vunpack.c.l.b16 %v403
    %v1173 = vunpack.c.h.b16 %v403
    %v1174 = vunpack.c.l.b16 %v404
    %v1175 = vunpack.c.h.b16 %v404
    %v1176 = vunpack.c.l.b16 %v405
    %v1177 = vunpack.c.h.b16 %v405
    %v1178 = vunpack.c.l.b16 %v406
    %v1179 = vunpack.c.h.b16 %v406
    %v1180 = vunpack.c.l.b16 %v407
    %v1181 = vunpack.c.h.b16 %v407
    %v1182 = vunpack.c.l.b16 %v408
    %v1183 = vunpack.c.h.b16 %v408
    %v1184 = vunpack.c.l.b16 %v409
    %v1185 = vunpack.c.h.b16 %v409
    %v1186 = vunpack.c.l.b16 %v410
    %v1187 = vunpack.c.h.b16 %v410
    %v1188 = vunpack.c.l.b16 %v411
    %v1189 = vunpack.c.h.b16 %v411
    %v1190 = vunpack.c.l.b16 %v412
    %v1191 = vunpack.c.h.b16 %v412
    %v1192 = vunpack.c.l.b16 %v413
    %v1193 = vunpack.c.h.b16 %v413
    %v1194 = vunpack.c.l.b16 %v414
    %v1195 = vunpack.c.h.b16 %v414
    %v1196 = vunpack.c.l.b16 %v415
    %v1197 = vunpack.c.h.b16 %v415
    %v1198 = vunpack.c.l.b16 %v416
    %v1199 = vunpack.c.h.b16 %v416
    %v1200 = vunpack.c.l.b16 %v417
    %v1201 = vunpack.c.h.b16 %v417
    %v1202 = vunpack.c.l.b16 %v418
    %v1203 = vunpack.c.h.b16 %v418
    %v1204 = vunpack.c.l.b16 %v419
    %v1205 = vunpack.c.h.b16 %v419
    %v1206 = vunpack.c.l.b16 %v420
    %v1207 = vunpack.c.h.b16 %v420
    %v1208 = vunpack.c.l.b16 %v421
    %v1209 = vunpack.c.h.b16 %v421
    %v1210 = vunpack.c.l.b16 %v422
    %v1211 = vunpack.c.h.b16 %v422
    %v1212 = vunpack.c.l.b16 %v423
    %v1213 = vunpack.c.h.b16 %v423
    %v1214 = vunpack.c.l.b16 %v424
    %v1215 = vunpack.c.h.b16 %v424
    %v1216 = vunpack.c.l.b16 %v425
    %v1217 = vunpack.c.h.b16 %v425
    %v1218 = vunpack.c.l.b16 %v426
    %v1219 = vunpack.c.h.b16 %v426
    %v1220 = vunpack.c.l.b16 %v427
    %v1221 = vunpack.c.h.b16 %v427
    %v1222 = vunpack.c.l.b16 %v428
    %v1223 = vunpack.c.h.b16 %v428
    %v1224 = vunpack.c.l.b16 %v429
    %v1225 = vunpack.c.h.b16 %v429
    %v1226 = vunpack.c.l.b16 %v430
    %v1227 = vunpack.c.h.b16 %v430
    %v1228 = vunpack.c.l.b16 %v431
    %v1229 = vunpack.c.h.b16 %v431
    %v1230 = vunpack.c.l.b16 %v432
    %v1231 = vunpack.c.h.b16 %v432
    %v1232 = vunpack.c.l.b16 %v433
    %v1233 = vunpack.c.h.b16 %v433
    %v1234 = vunpack.c.l.b16 %v434
    %v1235 = vunpack.c.h.b16 %v434
    %v1236 = vunpack.c.l.b16 %v435
    %v1237 = vunpack.c.h.b16 %v435
    %v1238 = vunpack.c.l.b16 %v436
    %v1239 = vunpack.c.h.b16 %v436
    %v1240 = vunpack.c.l.b16 %v437
    %v1241 = vunpack.c.h.b16 %v437
    %v1242 = vunpack.c.l.b16 %v438
    %v1243 = vunpack.c.h.b16 %v438
    %v1244 = vunpack.c.l.b16 %v439
    %v1245 = vunpack.c.h.b16 %v439
    %v1246 = vunpack.c.l.b16 %v440
    %v1247 = vunpack.c.h.b16 %v440
    %v1248 = vunpack.c.l.b16 %v441
    %v1249 = vunpack.c.h.b16 %v441
    %v1250 = vunpack.c.l.b16 %v442
    %v1251 = vunpack.c.h.b16 %v442
    %v1252 = vunpack.c.l.b16 %v443
    %v1253 = vunpack.c.h.b16 %v443
    %v1254 = vunpack.c.l.b16 %v444
    %v1255 = vunpack.c.h.b16 %v444
    %v1256 = vunpack.c.l.b16 %v445
    %v1257 = vunpack.c.h.b16 %v445
    %v1258 = vunpack.c.l.b16 %v446
    %v1259 = vunpack.c.h.b16 %v446
    %v1260 = vunpack.c.l.b16 %v447
    %v1261 = vunpack.c.h.b16 %v447
    %v1262 = vunpack.c.l.b16 %v448
    %v1263 = vunpack.c.h.b16 %v448
    %v1264 = vunpack.c.l.b16 %v449
    %v1265 = vunpack.c.h.b16 %v449
    %v1266 = vunpack.c.l.b16 %v450
    %v1267 = vunpack.c.h.b16 %v450
    %v1268 = vunpack.c.l.b16 %v451
    %v1269 = vunpack.c.h.b16 %v451
    %v1270 = vunpack.c.l.b16 %v452
    %v1271 = vunpack.c.h.b16 %v452
    %v1272 = vunpack.c.l.b16 %v453
    %v1273 = vunpack.c.h.b16 %v453
    %v1274 = vunpack.c.l.b16 %v454
    %v1275 = vunpack.c.h.b16 %v454
    %v1276 = vunpack.c.l.b16 %v455
    %v1277 = vunpack.c.h.b16 %v455
    %v1278 = vunpack.c.l.b16 %v456
    %v1279 = vunpack.c.h.b16 %v456
    %v1280 = vunpack.c.l.b16 %v457
    %v1281 = vunpack.c.h.b16 %v457
    %v1282 = vunpack.c.l.b16 %v458
    %v1283 = vunpack.c.h.b16 %v458
    %v1284 = vunpack.c.l.b16 %v459
    %v1285 = vunpack.c.h.b16 %v459
    %v1286 = vunpack.c.l.b16 %v460
    %v1287 = vunpack.c.h.b16 %v460
    %v1288 = vunpack.c.l.b16 %v461
    %v1289 = vunpack.c.h.b16 %v461
    %v1290 = vunpack.c.l.b16 %v462
    %v1291 = vunpack.c.h.b16 %v462
    %v1292 = vunpack.c.l.b16 %v463
    %v1293 = vunpack.c.h.b16 %v463
    %v1294 = vunpack.c.l.b16 %v464
    %v1295 = vunpack.c.h.b16 %v464
    %v1296 = vunpack.c.l.b16 %v465
    %v1297 = vunpack.c.h.b16 %v465
    %v1298 = vunpack.c.l.b16 %v466
    %v1299 = vunpack.c.h.b16 %v466
    %v1300 = vunpack.c.l.b16 %v467
    %v1301 = vunpack.c.h.b16 %v467
    %v1302 = vunpack.c.l.b16 %v468
    %v1303 = vunpack.c.h.b16 %v468
    %v1304 = vunpack.c.l.b16 %v469
    %v1305 = vunpack.c.h.b16 %v469
    %v1306 = vunpack.c.l.b16 %v470
    %v1307 = vunpack.c.h.b16 %v470
    %v1308 = vunpack.c.l.b16 %v471
    %v1309 = vunpack.c.h.b16 %v471
    %v1310 = vunpack.c.l.b16 %v472
    %v1311 = vunpack.c.h.b16 %v472
    %v1312 = vunpack.c.l.b16 %v473
    %v1313 = vunpack.c.h.b16 %v473
    %v1314 = vunpack.c.l.b16 %v474
    %v1315 = vunpack.c.h.b16 %v474
    %v1316 = vunpack.c.l.b16 %v475
    %v1317 = vunpack.c.h.b16 %v475
    %v1318 = vunpack.c.l.b16 %v476
    %v1319 = vunpack.c.h.b16 %v476
    %v1320 = vunpack.c.l.b16 %v477
    %v1321 = vunpack.c.h.b16 %v477
    %v1322 = vunpack.c.l.b16 %v478
    %v1323 = vunpack.c.h.b16 %v478
    %v1324 = vunpack.c.l.b16 %v479
    %v1325 = vunpack.c.h.b16 %v479
    %v1326 = vunpack.c.l.b16 %v480
    %v1327 = vunpack.c.h.b16 %v480
    %v1328 = vunpack.c.l.b16 %v481
    %v1329 = vunpack.c.h.b16 %v481
    %v1330 = vunpack.c.l.b16 %v482
    %v1331 = vunpack.c.h.b16 %v482
    %v1332 = vunpack.c.l.b16 %v483
    %v1333 = vunpack.c.h.b16 %v483
    %v1334 = vunpack.c.l.b16 %v484
    %v1335 = vunpack.c.h.b16 %v484
    %v1336 = vunpack.c.l.b16 %v485
    %v1337 = vunpack.c.h.b16 %v485
    %v1338 = vunpack.c.l.b16 %v486
    %v1339 = vunpack.c.h.b16 %v486
    %v1340 = vunpack.c.l.b16 %v487
    %v1341 = vunpack.c.h.b16 %v487
    %v1342 = vunpack.c.l.b16 %v488
    %v1343 = vunpack.c.h.b16 %v488
    %v1344 = vunpack.c.l.b16 %v489
    %v1345 = vunpack.c.h.b16 %v489
    %v1346 = vunpack.c.l.b16 %v490
    %v1347 = vunpack.c.h.b16 %v490
    %v1348 = vunpack.c.l.b16 %v491
    %v1349 = vunpack.c.h.b16 %v491
    %v1350 = vunpack.c.l.b16 %v492
    %v1351 = vunpack.c.h.b16 %v492
    %v1352 = vunpack.c.l.b16 %v493
    %v1353 = vunpack.c.h.b16 %v493
    %v1354 = vunpack.c.l.b16 %v494
    %v1355 = vunpack.c.h.b16 %v494
    %v1356 = vunpack.c.l.b16 %v495
    %v1357 = vunpack.c.h.b16 %v495
    %v1358 = vunpack.c.l.b16 %v496
    %v1359 = vunpack.c.h.b16 %v496
    %v1360 = vunpack.c.l.b16 %v497
    %v1361 = vunpack.c.h.b16 %v497
    %v1362 = vunpack.c.l.b16 %v498
    %v1363 = vunpack.c.h.b16 %v498
    %v1364 = vunpack.c.l.b16 %v499
    %v1365 = vunpack.c.h.b16 %v499
    %v1366 = vunpack.c.l.b16 %v500
    %v1367 = vunpack.c.h.b16 %v500
    %v1368 = vunpack.c.l.b16 %v501
    %v1369 = vunpack.c.h.b16 %v501
    %v1370 = vunpack.c.l.b16 %v502
    %v1371 = vunpack.c.h.b16 %v502
    %v1372 = vunpack.c.l.b16 %v503
    %v1373 = vunpack.c.h.b16 %v503
    %v1374 = vunpack.c.l.b16 %v504
    %v1375 = vunpack.c.h.b16 %v504
    %v1376 = vunpack.c.l.b16 %v505
    %v1377 = vunpack.c.h.b16 %v505
    %v1378 = vunpack.c.l.b16 %v506
    %v1379 = vunpack.c.h.b16 %v506
    %v1380 = vunpack.c.l.b16 %v507
    %v1381 = vunpack.c.h.b16 %v507
    %v1382 = vunpack.c.l.b16 %v508
    %v1383 = vunpack.c.h.b16 %v508
    %v1384 = vunpack.c.l.b16 %v509
    %v1385 = vunpack.c.h.b16 %v509
    %v1386 = vunpack.c.l.b16 %v510
    %v1387 = vunpack.c.h.b16 %v510
    %v1388 = vunpack.c.l.b16 %v511
    %v1389 = vunpack.c.h.b16 %v511
    %v1390 = vunpack.c.l.b16 %v512
    %v1391 = vunpack.c.h.b16 %v512
    %v1392 = vunpack.c.l.b16 %v513
    %v1393 = vunpack.c.h.b16 %v513
    %v1394 = vunpack.c.l.b16 %v514
    %v1395 = vunpack.c.h.b16 %v514
    %v1396 = vunpack.c.l.b16 %v515
    %v1397 = vunpack.c.h.b16 %v515
    %v1398 = vunpack.c.l.b16 %v516
    %v1399 = vunpack.c.h.b16 %v516
    %v1400 = vunpack.c.l.b16 %v517
    %v1401 = vunpack.c.h.b16 %v517
    %v1402 = vunpack.c.l.b16 %v518
    %v1403 = vunpack.c.h.b16 %v518
    %v1404 = vunpack.c.l.b16 %v519
    %v1405 = vunpack.c.h.b16 %v519
    %v1406 = vunpack.c.l.b16 %v520
    %v1407 = vunpack.c.h.b16 %v520
    %v1408 = vunpack.c.l.b16 %v521
    %v1409 = vunpack.c.h.b16 %v521
    %v1410 = vunpack.c.l.b16 %v522
    %v1411 = vunpack.c.h.b16 %v522
    %v1412 = vunpack.c.l.b16 %v523
    %v1413 = vunpack.c.h.b16 %v523
    %v1414 = vunpack.c.l.b16 %v524
    %v1415 = vunpack.c.h.b16 %v524
    %v1416 = vunpack.c.l.b16 %v525
    %v1417 = vunpack.c.h.b16 %v525
    %v1418 = vunpack.c.l.b16 %v526
    %v1419 = vunpack.c.h.b16 %v526
    %v1420 = vunpack.c.l.b16 %v527
    %v1421 = vunpack.c.h.b16 %v527
    %v1422 = vunpack.c.l.b16 %v528
    %v1423 = vunpack.c.h.b16 %v528
    %v1424 = vunpack.c.l.b16 %v529
    %v1425 = vunpack.c.h.b16 %v529
    %v1426 = vunpack.c.l.b16 %v530
    %v1427 = vunpack.c.h.b16 %v530
    %v1428 = vunpack.c.l.b16 %v531
    %v1429 = vunpack.c.h.b16 %v531
    %v1430 = vunpack.c.l.b16 %v532
    %v1431 = vunpack.c.h.b16 %v532
    %v1432 = vunpack.c.l.b16 %v533
    %v1433 = vunpack.c.h.b16 %v533
    %v1434 = vunpack.c.l.b16 %v534
    %v1435 = vunpack.c.h.b16 %v534
    %v1436 = vunpack.c.l.b16 %v535
    %v1437 = vunpack.c.h.b16 %v535
    %v1438 = vunpack.c.l.b16 %v536
    %v1439 = vunpack.c.h.b16 %v536
    %v1440 = vunpack.c.l.b16 %v537
    %v1441 = vunpack.c.h.b16 %v537
    %v1442 = vunpack.c.l.b16 %v538
    %v1443 = vunpack.c.h.b16 %v538
    %v1444 = vunpack.c.l.b16 %v539
    %v1445 = vunpack.c.h.b16 %v539
    %v1446 = vunpack.c.l.b16 %v540
    %v1447 = vunpack.c.h.b16 %v540
    %v1448 = vunpack.c.l.b16 %v541
    %v1449 = vunpack.c.h.b16 %v541
    %v1450 = vunpack.c.l.b16 %v542
    %v1451 = vunpack.c.h.b16 %v542
    %v1452 = vunpack.c.l.b16 %v543
    %v1453 = vunpack.c.h.b16 %v543
    %v1454 = vunpack.c.l.b16 %v544
    %v1455 = vunpack.c.h.b16 %v544
    %v1456 = vunpack.c.l.b16 %v545
    %v1457 = vunpack.c.h.b16 %v545
    %v1458 = vunpack.c.l.b16 %v546
    %v1459 = vunpack.c.h.b16 %v546
    %v1460 = vunpack.c.l.b16 %v547
    %v1461 = vunpack.c.h.b16 %v547
    %v1462 = vunpack.c.l.b16 %v548
    %v1463 = vunpack.c.h.b16 %v548
    %v1464 = vunpack.c.l.b16 %v549
    %v1465 = vunpack.c.h.b16 %v549
    %v1466 = vunpack.c.l.b16 %v550
    %v1467 = vunpack.c.h.b16 %v550
    %v1468 = vunpack.c.l.b16 %v551
    %v1469 = vunpack.c.h.b16 %v551
    %v1470 = vunpack.c.l.b16 %v552
    %v1471 = vunpack.c.h.b16 %v552
    %v1472 = vunpack.c.l.b16 %v553
    %v1473 = vunpack.c.h.b16 %v553
    %v1474 = vunpack.c.l.b16 %v554
    %v1475 = vunpack.c.h.b16 %v554
    %v1476 = vunpack.c.l.b16 %v555
    %v1477 = vunpack.c.h.b16 %v555
    %v1478 = vunpack.c.l.b16 %v556
    %v1479 = vunpack.c.h.b16 %v556
    %v1480 = vunpack.c.l.b16 %v557
    %v1481 = vunpack.c.h.b16 %v557
    %v1482 = vunpack.c.l.b16 %v558
    %v1483 = vunpack.c.h.b16 %v558
    %v1484 = vunpack.c.l.b16 %v559
    %v1485 = vunpack.c.h.b16 %v559
    %v1486 = vpack.c.b16 %v916, %v910
    %v1487 = vpack.c.b16 %v917, %v911
    %v1488 = vpack.c.b16 %v918, %v912
    %v1489 = vpack.c.b16 %v919, %v913
    %v1490 = vpack.c.b16 %v920, %v914
    %v1491 = vpack.c.b16 %v921, %v915
    %v1492 = vpack.c.b16 %v928, %v922
    %v1493 = vpack.c.b16 %v929, %v923
    %v1494 = vpack.c.b16 %v930, %v924
    %v1495 = vpack.c.b16 %v931, %v925
    %v1496 = vpack.c.b16 %v932, %v926
    %v1497 = vpack.c.b16 %v933, %v927
    %v1498 = vpack.c.b16 %v940, %v934
    %v1499 = vpack.c.b16 %v941, %v935
    %v1500 = vpack.c.b16 %v942, %v936
    %v1501 = vpack.c.b16 %v943, %v937
    %v1502 = vpack.c.b16 %v944, %v938
    %v1503 = vpack.c.b16 %v945, %v939
    %v1504 = vpack.c.b16 %v952, %v946
    %v1505 = vpack.c.b16 %v953, %v947
    %v1506 = vpack.c.b16 %v954, %v948
    %v1507 = vpack.c.b16 %v955, %v949
    %v1508 = vpack.c.b16 %v956, %v950
    %v1509 = vpack.c.b16 %v957, %v951
    %v1510 = vpack.c.b16 %v964, %v958
    %v1511 = vpack.c.b16 %v965, %v959
    %v1512 = vpack.c.b16 %v966, %v960
    %v1513 = vpack.c.b16 %v967, %v961
    %v1514 = vpack.c.b16 %v968, %v962
    %v1515 = vpack.c.b16 %v969, %v963
    %v1516 = vpack.c.b16 %v976, %v970
    %v1517 = vpack.c.b16 %v977, %v971
    %v1518 = vpack.c.b16 %v978, %v972
    %v1519 = vpack.c.b16 %v979, %v973
    %v1520 = vpack.c.b16 %v980, %v974
    %v1521 = vpack.c.b16 %v981, %v975
    %v1522 = vpack.c.b16 %v988, %v982
    %v1523 = vpack.c.b16 %v989, %v983
    %v1524 = vpack.c.b16 %v990, %v984
    %v1525 = vpack.c.b16 %v991, %v985
    %v1526 = vpack.c.b16 %v992, %v986
    %v1527 = vpack.c.b16 %v993, %v987
    %v1528 = vpack.c.b16 %v1000, %v994
    %v1529 = vpack.c.b16 %v1001, %v995
    %v1530 = vpack.c.b16 %v1002, %v996
    %v1531 = vpack.c.b16 %v1003, %v997
    %v1532 = vpack.c.b16 %v1004, %v998
    %v1533 = vpack.c.b16 %v1005, %v999
    %v1534 = vpack.c.b16 %v1012, %v1006
    %v1535 = vpack.c.b16 %v1013, %v1007
    %v1536 = vpack.c.b16 %v1014, %v1008
    %v1537 = vpack.c.b16 %v1015, %v1009
    %v1538 = vpack.c.b16 %v1016, %v1010
    %v1539 = vpack.c.b16 %v1017, %v1011
    %v1540 = vpack.c.b16 %v1024, %v1018
    %v1541 = vpack.c.b16 %v1025, %v1019
    %v1542 = vpack.c.b16 %v1026, %v1020
    %v1543 = vpack.c.b16 %v1027, %v1021
    %v1544 = vpack.c.b16 %v1028, %v1022
    %v1545 = vpack.c.b16 %v1029, %v1023
    %v1546 = vpack.c.b16 %v1036, %v1030
    %v1547 = vpack.c.b16 %v1037, %v1031
    %v1548 = vpack.c.b16 %v1038, %v1032
    %v1549 = vpack.c.b16 %v1039, %v1033
    %v1550 = vpack.c.b16 %v1040, %v1034
    %v1551 = vpack.c.b16 %v1041, %v1035
    %v1552 = vpack.c.b16 %v1048, %v1042
    %v1553 = vpack.c.b16 %v1049, %v1043
    %v1554 = vpack.c.b16 %v1050, %v1044
    %v1555 = vpack.c.b16 %v1051, %v1045
    %v1556 = vpack.c.b16 %v1052, %v1046
    %v1557 = vpack.c.b16 %v1053, %v1047
    %v1558 = vpack.c.b16 %v1060, %v1054
    %v1559 = vpack.c.b16 %v1061, %v1055
    %v1560 = vpack.c.b16 %v1062, %v1056
    %v1561 = vpack.c.b16 %v1063, %v1057
    %v1562 = vpack.c.b16 %v1064, %v1058
    %v1563 = vpack.c.b16 %v1065, %v1059
    %v1564 = vpack.c.b16 %v1072, %v1066
    %v1565 = vpack.c.b16 %v1073, %v1067
    %v1566 = vpack.c.b16 %v1074, %v1068
    %v1567 = vpack.c.b16 %v1075, %v1069
    %v1568 = vpack.c.b16 %v1076, %v1070
    %v1569 = vpack.c.b16 %v1077, %v1071
    %v1570 = vpack.c.b16 %v1084, %v1078
    %v1571 = vpack.c.b16 %v1085, %v1079
    %v1572 = vpack.c.b16 %v1086, %v1080
    %v1573 = vpack.c.b16 %v1087, %v1081
    %v1574 = vpack.c.b16 %v1088, %v1082
    %v1575 = vpack.c.b16 %v1089, %v1083
    %v1576 = vpack.c.b16 %v1096, %v1090
    %v1577 = vpack.c.b16 %v1097, %v1091
    %v1578 = vpack.c.b16 %v1098, %v1092
    %v1579 = vpack.c.b16 %v1099, %v1093
    %v1580 = vpack.c.b16 %v1100, %v1094
    %v1581 = vpack.c.b16 %v1101, %v1095
    %v1582 = vpack.c.b16 %v1108, %v1102
    %v1583 = vpack.c.b16 %v1109, %v1103
    %v1584 = vpack.c.b16 %v1110, %v1104
    %v1585 = vpack.c.b16 %v1111, %v1105
    %v1586 = vpack.c.b16 %v1112, %v1106
    %v1587 = vpack.c.b16 %v1113, %v1107
    %v1588 = vpack.c.b16 %v1120, %v1114
    %v1589 = vpack.c.b16 %v1121, %v1115
    %v1590 = vpack.c.b16 %v1122, %v1116
    %v1591 = vpack.c.b16 %v1123, %v1117
    %v1592 = vpack.c.b16 %v1124, %v1118
    %v1593 = vpack.c.b16 %v1125, %v1119
    %v1594 = vpack.c.b16 %v1132, %v1126
    %v1595 = vpack.c.b16 %v1133, %v1127
    %v1596 = vpack.c.b16 %v1134, %v1128
    %v1597 = vpack.c.b16 %v1135, %v1129
    %v1598 = vpack.c.b16 %v1136, %v1130
    %v1599 = vpack.c.b16 %v1137, %v1131
    %v1600 = vpack.c.b16 %v1144, %v1138
    %v1601 = vpack.c.b16 %v1145, %v1139
    %v1602 = vpack.c.b16 %v1146, %v1140
    %v1603 = vpack.c.b16 %v1147, %v1141
    %v1604 = vpack.c.b16 %v1148, %v1142
    %v1605 = vpack.c.b16 %v1149, %v1143
    %v1606 = vpack.c.b16 %v1156, %v1150
    %v1607 = vpack.c.b16 %v1157, %v1151
    %v1608 = vpack.c.b16 %v1158, %v1152
    %v1609 = vpack.c.b16 %v1159, %v1153
    %v1610 = vpack.c.b16 %v1160, %v1154
    %v1611 = vpack.c.b16 %v1161, %v1155
    %v1612 = vpack.c.b16 %v1168, %v1162
    %v1613 = vpack.c.b16 %v1169, %v1163
    %v1614 = vpack.c.b16 %v1170, %v1164
    %v1615 = vpack.c.b16 %v1171, %v1165
    %v1616 = vpack.c.b16 %v1172, %v1166
    %v1617 = vpack.c.b16 %v1173, %v1167
    %v1618 = vpack.c.b16 %v1180, %v1174
    %v1619 = vpack.c.b16 %v1181, %v1175
    %v1620 = vpack.c.b16 %v1182, %v1176
    %v1621 = vpack.c.b16 %v1183, %v1177
    %v1622 = vpack.c.b16 %v1184, %v1178
    %v1623 = vpack.c.b16 %v1185, %v1179
    %v1624 = vpack.c.b16 %v1192, %v1186
    %v1625 = vpack.c.b16 %v1193, %v1187
    %v1626 = vpack.c.b16 %v1194, %v1188
    %v1627 = vpack.c.b16 %v1195, %v1189
    %v1628 = vpack.c.b16 %v1196, %v1190
    %v1629 = vpack.c.b16 %v1197, %v1191
    %v1630 = vpack.c.b16 %v1204, %v1198
    %v1631 = vpack.c.b16 %v1205, %v1199
    %v1632 = vpack.c.b16 %v1206, %v1200
    %v1633 = vpack.c.b16 %v1207, %v1201
    %v1634 = vpack.c.b16 %v1208, %v1202
    %v1635 = vpack.c.b16 %v1209, %v1203
    %v1636 = vpack.c.b16 %v1216, %v1210
    %v1637 = vpack.c.b16 %v1217, %v1211
    %v1638 = vpack.c.b16 %v1218, %v1212
    %v1639 = vpack.c.b16 %v1219, %v1213
    %v1640 = vpack.c.b16 %v1220, %v1214
    %v1641 = vpack.c.b16 %v1221, %v1215
    %v1642 = vpack.c.b16 %v1228, %v1222
    %v1643 = vpack.c.b16 %v1229, %v1223
    %v1644 = vpack.c.b16 %v1230, %v1224
    %v1645 = vpack.c.b16 %v1231, %v1225
    %v1646 = vpack.c.b16 %v1232, %v1226
    %v1647 = vpack.c.b16 %v1233, %v1227
    %v1648 = vpack.c.b16 %v1240, %v1234
    %v1649 = vpack.c.b16 %v1241, %v1235
    %v1650 = vpack.c.b16 %v1242, %v1236
    %v1651 = vpack.c.b16 %v1243, %v1237
    %v1652 = vpack.c.b16 %v1244, %v1238
    %v1653 = vpack.c.b16 %v1245, %v1239
    %v1654 = vpack.c.b16 %v1252, %v1246
    %v1655 = vpack.c.b16 %v1253, %v1247
    %v1656 = vpack.c.b16 %v1254, %v1248
    %v1657 = vpack.c.b16 %v1255, %v1249
    %v1658 = vpack.c.b16 %v1256, %v1250
    %v1659 = vpack.c.b16 %v1257, %v1251
    %v1660 = vpack.c.b16 %v1264, %v1258
    %v1661 = vpack.c.b16 %v1265, %v1259
    %v1662 = vpack.c.b16 %v1266, %v1260
    %v1663 = vpack.c.b16 %v1267, %v1261
    %v1664 = vpack.c.b16 %v1268, %v1262
    %v1665 = vpack.c.b16 %v1269, %v1263
    %v1666 = vpack.c.b16 %v1276, %v1270
    %v1667 = vpack.c.b16 %v1277, %v1271
    %v1668 = vpack.c.b16 %v1278, %v1272
    %v1669 = vpack.c.b16 %v1279, %v1273
    %v1670 = vpack.c.b16 %v1280, %v1274
    %v1671 = vpack.c.b16 %v1281, %v1275
    %v1672 = vpack.c.b16 %v1288, %v1282
    %v1673 = vpack.c.b16 %v1289, %v1283
    %v1674 = vpack.c.b16 %v1290, %v1284
    %v1675 = vpack.c.b16 %v1291, %v1285
    %v1676 = vpack.c.b16 %v1292, %v1286
    %v1677 = vpack.c.b16 %v1293, %v1287
    %v1678 = vpack.c.b16 %v1300, %v1294
    %v1679 = vpack.c.b16 %v1301, %v1295
    %v1680 = vpack.c.b16 %v1302, %v1296
    %v1681 = vpack.c.b16 %v1303, %v1297
    %v1682 = vpack.c.b16 %v1304, %v1298
    %v1683 = vpack.c.b16 %v1305, %v1299
    %v1684 = vpack.c.b16 %v1312, %v1306
    %v1685 = vpack.c.b16 %v1313, %v1307
    %v1686 = vpack.c.b16 %v1314, %v1308
    %v1687 = vpack.c.b16 %v1315, %v1309
    %v1688 = vpack.c.b16 %v1316, %v1310
    %v1689 = vpack.c.b16 %v1317, %v1311
    %v1690 = vpack.c.b16 %v1324, %v1318
    %v1691 = vpack.c.b16 %v1325, %v1319
    %v1692 = vpack.c.b16 %v1326, %v1320
    %v1693 = vpack.c.b16 %v1327, %v1321
    %v1694 = vpack.c.b16 %v1328, %v1322
    %v1695 = vpack.c.b16 %v1329, %v1323
    %v1696 = vpack.c.b16 %v1336, %v1330
    %v1697 = vpack.c.b16 %v1337, %v1331
    %v1698 = vpack.c.b16 %v1338, %v1332
    %v1699 = vpack.c.b16 %v1339, %v1333
    %v1700 = vpack.c.b16 %v1340, %v1334
    %v1701 = vpack.c.b16 %v1341, %v1335
    %v1702 = vpack.c.b16 %v1348, %v1342
    %v1703 = vpack.c.b16 %v1349, %v1343
    %v1704 = vpack.c.b16 %v1350, %v1344
    %v1705 = vpack.c.b16 %v1351, %v1345
    %v1706 = vpack.c.b16 %v1352, %v1346
    %v1707 = vpack.c.b16 %v1353, %v1347
    %v1708 = vpack.c.b16 %v1360, %v1354
    %v1709 = vpack.c.b16 %v1361, %v1355
    %v1710 = vpack.c.b16 %v1362, %v1356
    %v1711 = vpack.c.b16 %v1363, %v1357
    %v1712 = vpack.c.b16 %v1364, %v1358
    %v1713 = vpack.c.b16 %v1365, %v1359
    %v1714 = vpack.c.b16 %v1372, %v1366
    %v1715 = vpack.c.b16 %v1373, %v1367
    %v1716 = vpack.c.b16 %v1374, %v1368
    %v1717 = vpack.c.b16 %v1375, %v1369
    %v1718 = vpack.c.b16 %v1376, %v1370
    %v1719 = vpack.c.b16 %v1377, %v1371
    %v1720 = vpack.c.b16 %v1384, %v1378
    %v1721 = vpack.c.b16 %v1385, %v1379
    %v1722 = vpack.c.b16 %v1386, %v1380
    %v1723 = vpack.c.b16 %v1387, %v1381
    %v1724 = vpack.c.b16 %v1388, %v1382
    %v1725 = vpack.c.b16 %v1389, %v1383
    %v1726 = vpack.c.b16 %v1396, %v1390
    %v1727 = vpack.c.b16 %v1397, %v1391
    %v1728 = vpack.c.b16 %v1398, %v1392
    %v1729 = vpack.c.b16 %v1399, %v1393
    %v1730 = vpack.c.b16 %v1400, %v1394
    %v1731 = vpack.c.b16 %v1401, %v1395
    %v1732 = vpack.c.b16 %v1408, %v1402
    %v1733 = vpack.c.b16 %v1409, %v1403
    %v1734 = vpack.c.b16 %v1410, %v1404
    %v1735 = vpack.c.b16 %v1411, %v1405
    %v1736 = vpack.c.b16 %v1412, %v1406
    %v1737 = vpack.c.b16 %v1413, %v1407
    %v1738 = vpack.c.b16 %v1420, %v1414
    %v1739 = vpack.c.b16 %v1421, %v1415
    %v1740 = vpack.c.b16 %v1422, %v1416
    %v1741 = vpack.c.b16 %v1423, %v1417
    %v1742 = vpack.c.b16 %v1424, %v1418
    %v1743 = vpack.c.b16 %v1425, %v1419
    %v1744 = vpack.c.b16 %v1432, %v1426
    %v1745 = vpack.c.b16 %v1433, %v1427
    %v1746 = vpack.c.b16 %v1434, %v1428
    %v1747 = vpack.c.b16 %v1435, %v1429
    %v1748 = vpack.c.b16 %v1436, %v1430
    %v1749 = vpack.c.b16 %v1437, %v1431
    %v1750 = vpack.c.b16 %v1444, %v1438
    %v1751 = vpack.c.b16 %v1445, %v1439
    %v1752 = vpack.c.b16 %v1446, %v1440
    %v1753 = vpack.c.b16 %v1447, %v1441
    %v1754 = vpack.c.b16 %v1448, %v1442
    %v1755 = vpack.c.b16 %v1449, %v1443
    %v1756 = vpack.c.b16 %v1456, %v1450
    %v1757 = vpack.c.b16 %v1457, %v1451
    %v1758 = vpack.c.b16 %v1458, %v1452
    %v1759 = vpack.c.b16 %v1459, %v1453
    %v1760 = vpack.c.b16 %v1460, %v1454
    %v1761 = vpack.c.b16 %v1461, %v1455
    %v1762 = vpack.c.b16 %v1468, %v1462
    %v1763 = vpack.c.b16 %v1469, %v1463
    %v1764 = vpack.c.b16 %v1470, %v1464
    %v1765 = vpack.c.b16 %v1471, %v1465
    %v1766 = vpack.c.b16 %v1472, %v1466
    %v1767 = vpack.c.b16 %v1473, %v1467
    %v1768 = vpack.c.b16 %v1480, %v1474
    %v1769 = vpack.c.b16 %v1481, %v1475
    %v1770 = vpack.c.b16 %v1482, %v1476
    %v1771 = vpack.c.b16 %v1483, %v1477
    %v1772 = vpack.c.b16 %v1484, %v1478
    %v1773 = vpack.c.b16 %v1485, %v1479
    %2062 = vmatprep.subr.bf16.mxu0 %v1487
    %2063 = vmatpush1.bf16.msra.mxu0 %v1486
    %2064 = vmatprep.subr.bf16.mxu0 %v1493
    %2065 = vmatpush1.bf16.msra.mxu0 %v1492
    %2066 = vmatprep.subr.bf16.mxu0 %v1499
    %2067 = vmatpush1.bf16.msra.mxu0 %v1498
    %2068 = vmatprep.subr.bf16.mxu0 %v1505
    %2069 = vmatpush1.bf16.msra.mxu0 %v1504
    %2070 = vmatprep.subr.bf16.mxu0 %v1511
    %2071 = vmatpush1.bf16.msra.mxu0 %v1510
    %2072 = vmatprep.subr.bf16.mxu0 %v1517
    %2073 = vmatpush1.bf16.msra.mxu0 %v1516
    %2074 = vmatprep.subr.bf16.mxu0 %v1523
    %2075 = vmatpush1.bf16.msra.mxu0 %v1522
    %2076 = vmatprep.subr.bf16.mxu0 %v1529
    %2077 = vmatpush1.bf16.msra.mxu0 %v1528
    %2078 = vmatprep.subr.bf16.mxu0 %v1535
    %2079 = vmatpush1.bf16.msra.mxu0 %v1534
    %2080 = vmatprep.subr.bf16.mxu0 %v1541
    %2081 = vmatpush1.bf16.msra.mxu0 %v1540
    %2082 = vmatprep.subr.bf16.mxu0 %v1547
    %2083 = vmatpush1.bf16.msra.mxu0 %v1546
    %2084 = vmatprep.subr.bf16.mxu0 %v1553
    %2085 = vmatpush1.bf16.msra.mxu0 %v1552
    %2086 = vmatprep.subr.bf16.mxu0 %v1559
    %2087 = vmatpush1.bf16.msra.mxu0 %v1558
    %2088 = vmatprep.subr.bf16.mxu0 %v1565
    %2089 = vmatpush1.bf16.msra.mxu0 %v1564
    %2090 = vmatprep.subr.bf16.mxu0 %v1571
    %2091 = vmatpush1.bf16.msra.mxu0 %v1570
    %2092 = vmatprep.subr.bf16.mxu0 %v1577
    %2093 = vmatpush1.bf16.msra.mxu0 %v1576
    %2094 = vmatprep.mubr.bf16.mxu0 %v611
    %2095 = vmatmul.mubr.bf16.gmra.mrb[0].mxu0 %v610
    %v2096 = vpop.f32.mrb[0].mxu0
    %v2097 = vadd.f32 %v565, %v2096
    %v2098 = vpop.f32.mrb[0].mxu0
    %v2099 = vadd.f32 %v569, %v2098
    %v2100 = vpop.f32.mrb[0].mxu0
    %v2101 = vadd.f32 %v565, %v2100
    %v2102 = vpop.f32.mrb[0].mxu0
    %v2103 = vadd.f32 %v569, %v2102
    %2104 = vdwg.mxu0
    %2105 = vmatprep.subr.bf16.mxu0 %v1583
    %2106 = vmatpush1.bf16.msra.mxu0 %v1582
    %2107 = vmatprep.subr.bf16.mxu0 %v1589
    %2108 = vmatpush1.bf16.msra.mxu0 %v1588
    %2109 = vmatprep.subr.bf16.mxu0 %v1595
    %2110 = vmatpush1.bf16.msra.mxu0 %v1594
    %2111 = vmatprep.subr.bf16.mxu0 %v1601
    %2112 = vmatpush1.bf16.msra.mxu0 %v1600
    %2113 = vmatprep.subr.bf16.mxu0 %v1607
    %2114 = vmatpush1.bf16.msra.mxu0 %v1606
    %2115 = vmatprep.subr.bf16.mxu0 %v1613
    %2116 = vmatpush1.bf16.msra.mxu0 %v1612
    %2117 = vmatprep.subr.bf16.mxu0 %v1619
    %2118 = vmatpush1.bf16.msra.mxu0 %v1618
    %2119 = vmatprep.subr.bf16.mxu0 %v1625
    %2120 = vmatpush1.bf16.msra.mxu0 %v1624
    %2121 = vmatprep.subr.bf16.mxu0 %v1631
    %2122 = vmatpush1.bf16.msra.mxu0 %v1630
    %2123 = vmatprep.subr.bf16.mxu0 %v1637
    %2124 = vmatpush1.bf16.msra.mxu0 %v1636
    %2125 = vmatprep.subr.bf16.mxu0 %v1643
    %2126 = vmatpush1.bf16.msra.mxu0 %v1642
    %2127 = vmatprep.subr.bf16.mxu0 %v1649
    %2128 = vmatpush1.bf16.msra.mxu0 %v1648
    %2129 = vmatprep.subr.bf16.mxu0 %v1655
    %2130 = vmatpush1.bf16.msra.mxu0 %v1654
    %2131 = vmatprep.subr.bf16.mxu0 %v1661
    %2132 = vmatpush1.bf16.msra.mxu0 %v1660
    %2133 = vmatprep.subr.bf16.mxu0 %v1667
    %2134 = vmatpush1.bf16.msra.mxu0 %v1666
    %2135 = vmatprep.subr.bf16.mxu0 %v1673
    %2136 = vmatpush1.bf16.msra.mxu0 %v1672
    %2137 = vmatprep.mubr.bf16.mxu0 %v613
    %2138 = vmatmul.mubr.bf16.gmra.mrb[0].mxu0 %v612
    %v2139 = vpop.f32.mrb[0].mxu0
    %v2140 = vadd.f32 %v2097, %v2139
    %v2141 = vpop.f32.mrb[0].mxu0
    %v2142 = vadd.f32 %v2099, %v2141
    %v2143 = vpop.f32.mrb[0].mxu0
    %v2144 = vadd.f32 %v2101, %v2143
    %v2145 = vpop.f32.mrb[0].mxu0
    %v2146 = vadd.f32 %v2103, %v2145
    %2147 = vdwg.mxu0
    %2148 = vmatprep.subr.bf16.mxu0 %v1679
    %2149 = vmatpush1.bf16.msra.mxu0 %v1678
    %2150 = vmatprep.subr.bf16.mxu0 %v1685
    %2151 = vmatpush1.bf16.msra.mxu0 %v1684
    %2152 = vmatprep.subr.bf16.mxu0 %v1691
    %2153 = vmatpush1.bf16.msra.mxu0 %v1690
    %2154 = vmatprep.subr.bf16.mxu0 %v1697
    %2155 = vmatpush1.bf16.msra.mxu0 %v1696
    %2156 = vmatprep.subr.bf16.mxu0 %v1703
    %2157 = vmatpush1.bf16.msra.mxu0 %v1702
    %2158 = vmatprep.subr.bf16.mxu0 %v1709
    %2159 = vmatpush1.bf16.msra.mxu0 %v1708
    %2160 = vmatprep.subr.bf16.mxu0 %v1715
    %2161 = vmatpush1.bf16.msra.mxu0 %v1714
    %2162 = vmatprep.subr.bf16.mxu0 %v1721
    %2163 = vmatpush1.bf16.msra.mxu0 %v1720
    %2164 = vmatprep.subr.bf16.mxu0 %v1727
    %2165 = vmatpush1.bf16.msra.mxu0 %v1726
    %2166 = vmatprep.subr.bf16.mxu0 %v1733
    %2167 = vmatpush1.bf16.msra.mxu0 %v1732
    %2168 = vmatprep.subr.bf16.mxu0 %v1739
    %2169 = vmatpush1.bf16.msra.mxu0 %v1738
    %2170 = vmatprep.subr.bf16.mxu0 %v1745
    %2171 = vmatpush1.bf16.msra.mxu0 %v1744
    %2172 = vmatprep.subr.bf16.mxu0 %v1751
    %2173 = vmatpush1.bf16.msra.mxu0 %v1750
    %2174 = vmatprep.subr.bf16.mxu0 %v1757
    %2175 = vmatpush1.bf16.msra.mxu0 %v1756
    %2176 = vmatprep.subr.bf16.mxu0 %v1763
    %2177 = vmatpush1.bf16.msra.mxu0 %v1762
    %2178 = vmatprep.subr.bf16.mxu0 %v1769
    %2179 = vmatpush1.bf16.msra.mxu0 %v1768
    %2180 = vmatprep.mubr.bf16.mxu0 %v615
    %2181 = vmatmul.mubr.bf16.gmra.mrb[0].mxu0 %v614
    %v2182 = vpop.f32.mrb[0].mxu0
    %v2183 = vadd.f32 %v2140, %v2182
    %v2184 = vpop.f32.mrb[0].mxu0
    %v2185 = vadd.f32 %v2142, %v2184
    %v2186 = vpop.f32.mrb[0].mxu0
    %v2187 = vadd.f32 %v2144, %v2186
    %v2188 = vpop.f32.mrb[0].mxu0
    %v2189 = vadd.f32 %v2146, %v2188
    %2190 = vdwg.mxu0
    %2191 = vmatprep.subr.bf16.mxu0 %v1489
    %2192 = vmatpush1.bf16.msra.mxu0 %v1488
    %2193 = vmatprep.subr.bf16.mxu0 %v1495
    %2194 = vmatpush1.bf16.msra.mxu0 %v1494
    %2195 = vmatprep.subr.bf16.mxu0 %v1501
    %2196 = vmatpush1.bf16.msra.mxu0 %v1500
    %2197 = vmatprep.subr.bf16.mxu0 %v1507
    %2198 = vmatpush1.bf16.msra.mxu0 %v1506
    %2199 = vmatprep.subr.bf16.mxu0 %v1513
    %2200 = vmatpush1.bf16.msra.mxu0 %v1512
    %2201 = vmatprep.subr.bf16.mxu0 %v1519
    %2202 = vmatpush1.bf16.msra.mxu0 %v1518
    %2203 = vmatprep.subr.bf16.mxu0 %v1525
    %2204 = vmatpush1.bf16.msra.mxu0 %v1524
    %2205 = vmatprep.subr.bf16.mxu0 %v1531
    %2206 = vmatpush1.bf16.msra.mxu0 %v1530
    %2207 = vmatprep.subr.bf16.mxu0 %v1537
    %2208 = vmatpush1.bf16.msra.mxu0 %v1536
    %2209 = vmatprep.subr.bf16.mxu0 %v1543
    %2210 = vmatpush1.bf16.msra.mxu0 %v1542
    %2211 = vmatprep.subr.bf16.mxu0 %v1549
    %2212 = vmatpush1.bf16.msra.mxu0 %v1548
    %2213 = vmatprep.subr.bf16.mxu0 %v1555
    %2214 = vmatpush1.bf16.msra.mxu0 %v1554
    %2215 = vmatprep.subr.bf16.mxu0 %v1561
    %2216 = vmatpush1.bf16.msra.mxu0 %v1560
    %2217 = vmatprep.subr.bf16.mxu0 %v1567
    %2218 = vmatpush1.bf16.msra.mxu0 %v1566
    %2219 = vmatprep.subr.bf16.mxu0 %v1573
    %2220 = vmatpush1.bf16.msra.mxu0 %v1572
    %2221 = vmatprep.subr.bf16.mxu0 %v1579
    %2222 = vmatpush1.bf16.msra.mxu0 %v1578
    %2223 = vmatprep.mubr.bf16.mxu0 %v611
    %2224 = vmatmul.mubr.bf16.gmra.mrb[0].mxu0 %v610
    %v2225 = vpop.f32.mrb[0].mxu0
    %v2226 = vadd.f32 %v573, %v2225
    %v2227 = vpop.f32.mrb[0].mxu0
    %v2228 = vadd.f32 %v577, %v2227
    %v2229 = vpop.f32.mrb[0].mxu0
    %v2230 = vadd.f32 %v573, %v2229
    %v2231 = vpop.f32.mrb[0].mxu0
    %v2232 = vadd.f32 %v577, %v2231
    %2233 = vdwg.mxu0
    %2234 = vmatprep.subr.bf16.mxu0 %v1585
    %2235 = vmatpush1.bf16.msra.mxu0 %v1584
    %2236 = vmatprep.subr.bf16.mxu0 %v1591
    %2237 = vmatpush1.bf16.msra.mxu0 %v1590
    %2238 = vmatprep.subr.bf16.mxu0 %v1597
    %2239 = vmatpush1.bf16.msra.mxu0 %v1596
    %2240 = vmatprep.subr.bf16.mxu0 %v1603
    %2241 = vmatpush1.bf16.msra.mxu0 %v1602
    %2242 = vmatprep.subr.bf16.mxu0 %v1609
    %2243 = vmatpush1.bf16.msra.mxu0 %v1608
    %2244 = vmatprep.subr.bf16.mxu0 %v1615
    %2245 = vmatpush1.bf16.msra.mxu0 %v1614
    %2246 = vmatprep.subr.bf16.mxu0 %v1621
    %2247 = vmatpush1.bf16.msra.mxu0 %v1620
    %2248 = vmatprep.subr.bf16.mxu0 %v1627
    %2249 = vmatpush1.bf16.msra.mxu0 %v1626
    %2250 = vmatprep.subr.bf16.mxu0 %v1633
    %2251 = vmatpush1.bf16.msra.mxu0 %v1632
    %2252 = vmatprep.subr.bf16.mxu0 %v1639
    %2253 = vmatpush1.bf16.msra.mxu0 %v1638
    %2254 = vmatprep.subr.bf16.mxu0 %v1645
    %2255 = vmatpush1.bf16.msra.mxu0 %v1644
    %2256 = vmatprep.subr.bf16.mxu0 %v1651
    %2257 = vmatpush1.bf16.msra.mxu0 %v1650
    %2258 = vmatprep.subr.bf16.mxu0 %v1657
    %2259 = vmatpush1.bf16.msra.mxu0 %v1656
    %2260 = vmatprep.subr.bf16.mxu0 %v1663
    %2261 = vmatpush1.bf16.msra.mxu0 %v1662
    %2262 = vmatprep.subr.bf16.mxu0 %v1669
    %2263 = vmatpush1.bf16.msra.mxu0 %v1668
    %2264 = vmatprep.subr.bf16.mxu0 %v1675
    %2265 = vmatpush1.bf16.msra.mxu0 %v1674
    %2266 = vmatprep.mubr.bf16.mxu0 %v613
    %2267 = vmatmul.mubr.bf16.gmra.mrb[0].mxu0 %v612
    %v2268 = vpop.f32.mrb[0].mxu0
    %v2269 = vadd.f32 %v2226, %v2268
    %v2270 = vpop.f32.mrb[0].mxu0
    %v2271 = vadd.f32 %v2228, %v2270
    %v2272 = vpop.f32.mrb[0].mxu0
    %v2273 = vadd.f32 %v2230, %v2272
    %v2274 = vpop.f32.mrb[0].mxu0
    %v2275 = vadd.f32 %v2232, %v2274
    %2276 = vdwg.mxu0
    %2277 = vmatprep.subr.bf16.mxu0 %v1681
    %2278 = vmatpush1.bf16.msra.mxu0 %v1680
    %2279 = vmatprep.subr.bf16.mxu0 %v1687
    %2280 = vmatpush1.bf16.msra.mxu0 %v1686
    %2281 = vmatprep.subr.bf16.mxu0 %v1693
    %2282 = vmatpush1.bf16.msra.mxu0 %v1692
    %2283 = vmatprep.subr.bf16.mxu0 %v1699
    %2284 = vmatpush1.bf16.msra.mxu0 %v1698
    %2285 = vmatprep.subr.bf16.mxu0 %v1705
    %2286 = vmatpush1.bf16.msra.mxu0 %v1704
    %2287 = vmatprep.subr.bf16.mxu0 %v1711
    %2288 = vmatpush1.bf16.msra.mxu0 %v1710
    %2289 = vmatprep.subr.bf16.mxu0 %v1717
    %2290 = vmatpush1.bf16.msra.mxu0 %v1716
    %2291 = vmatprep.subr.bf16.mxu0 %v1723
    %2292 = vmatpush1.bf16.msra.mxu0 %v1722
    %2293 = vmatprep.subr.bf16.mxu0 %v1729
    %2294 = vmatpush1.bf16.msra.mxu0 %v1728
    %2295 = vmatprep.subr.bf16.mxu0 %v1735
    %2296 = vmatpush1.bf16.msra.mxu0 %v1734
    %2297 = vmatprep.subr.bf16.mxu0 %v1741
    %2298 = vmatpush1.bf16.msra.mxu0 %v1740
    %2299 = vmatprep.subr.bf16.mxu0 %v1747
    %2300 = vmatpush1.bf16.msra.mxu0 %v1746
    %2301 = vmatprep.subr.bf16.mxu0 %v1753
    %2302 = vmatpush1.bf16.msra.mxu0 %v1752
    %2303 = vmatprep.subr.bf16.mxu0 %v1759
    %2304 = vmatpush1.bf16.msra.mxu0 %v1758
    %2305 = vmatprep.subr.bf16.mxu0 %v1765
    %2306 = vmatpush1.bf16.msra.mxu0 %v1764
    %2307 = vmatprep.subr.bf16.mxu0 %v1771
    %2308 = vmatpush1.bf16.msra.mxu0 %v1770
    %2309 = vmatprep.mubr.bf16.mxu0 %v615
    %2310 = vmatmul.mubr.bf16.gmra.mrb[0].mxu0 %v614
    %v2311 = vpop.f32.mrb[0].mxu0
    %v2312 = vadd.f32 %v2269, %v2311
    %v2313 = vpop.f32.mrb[0].mxu0
    %v2314 = vadd.f32 %v2271, %v2313
    %v2315 = vpop.f32.mrb[0].mxu0
    %v2316 = vadd.f32 %v2273, %v2315
    %v2317 = vpop.f32.mrb[0].mxu0
    %v2318 = vadd.f32 %v2275, %v2317
    %2319 = vdwg.mxu0
    %2320 = vmatprep.subr.bf16.mxu0 %v1491
    %2321 = vmatpush1.bf16.msra.mxu0 %v1490
    %2322 = vmatprep.subr.bf16.mxu0 %v1497
    %2323 = vmatpush1.bf16.msra.mxu0 %v1496
    %2324 = vmatprep.subr.bf16.mxu0 %v1503
    %2325 = vmatpush1.bf16.msra.mxu0 %v1502
    %2326 = vmatprep.subr.bf16.mxu0 %v1509
    %2327 = vmatpush1.bf16.msra.mxu0 %v1508
    %2328 = vmatprep.subr.bf16.mxu0 %v1515
    %2329 = vmatpush1.bf16.msra.mxu0 %v1514
    %2330 = vmatprep.subr.bf16.mxu0 %v1521
    %2331 = vmatpush1.bf16.msra.mxu0 %v1520
    %2332 = vmatprep.subr.bf16.mxu0 %v1527
    %2333 = vmatpush1.bf16.msra.mxu0 %v1526
    %2334 = vmatprep.subr.bf16.mxu0 %v1533
    %2335 = vmatpush1.bf16.msra.mxu0 %v1532
    %2336 = vmatprep.subr.bf16.mxu0 %v1539
    %2337 = vmatpush1.bf16.msra.mxu0 %v1538
    %2338 = vmatprep.subr.bf16.mxu0 %v1545
    %2339 = vmatpush1.bf16.msra.mxu0 %v1544
    %2340 = vmatprep.subr.bf16.mxu0 %v1551
    %2341 = vmatpush1.bf16.msra.mxu0 %v1550
    %2342 = vmatprep.subr.bf16.mxu0 %v1557
    %2343 = vmatpush1.bf16.msra.mxu0 %v1556
    %2344 = vmatprep.subr.bf16.mxu0 %v1563
    %2345 = vmatpush1.bf16.msra.mxu0 %v1562
    %2346 = vmatprep.subr.bf16.mxu0 %v1569
    %2347 = vmatpush1.bf16.msra.mxu0 %v1568
    %2348 = vmatprep.subr.bf16.mxu0 %v1575
    %2349 = vmatpush1.bf16.msra.mxu0 %v1574
    %2350 = vmatprep.subr.bf16.mxu0 %v1581
    %2351 = vmatpush1.bf16.msra.mxu0 %v1580
    %2352 = vmatprep.mubr.bf16.mxu0 %v611
    %2353 = vmatmul.mubr.bf16.gmra.mrb[0].mxu0 %v610
    %v2354 = vpop.f32.mrb[0].mxu0
    %v2355 = vadd.f32 %v581, %v2354
    %v2356 = vpop.f32.mrb[0].mxu0
    %v2357 = vadd.f32 %v585, %v2356
    %v2358 = vpop.f32.mrb[0].mxu0
    %v2359 = vadd.f32 %v581, %v2358
    %v2360 = vpop.f32.mrb[0].mxu0
    %v2361 = vadd.f32 %v585, %v2360
    %2362 = vdwg.mxu0
    %2363 = vmatprep.subr.bf16.mxu0 %v1587
    %2364 = vmatpush1.bf16.msra.mxu0 %v1586
    %2365 = vmatprep.subr.bf16.mxu0 %v1593
    %2366 = vmatpush1.bf16.msra.mxu0 %v1592
    %2367 = vmatprep.subr.bf16.mxu0 %v1599
    %2368 = vmatpush1.bf16.msra.mxu0 %v1598
    %2369 = vmatprep.subr.bf16.mxu0 %v1605
    %2370 = vmatpush1.bf16.msra.mxu0 %v1604
    %2371 = vmatprep.subr.bf16.mxu0 %v1611
    %2372 = vmatpush1.bf16.msra.mxu0 %v1610
    %2373 = vmatprep.subr.bf16.mxu0 %v1617
    %2374 = vmatpush1.bf16.msra.mxu0 %v1616
    %2375 = vmatprep.subr.bf16.mxu0 %v1623
    %2376 = vmatpush1.bf16.msra.mxu0 %v1622
    %2377 = vmatprep.subr.bf16.mxu0 %v1629
    %2378 = vmatpush1.bf16.msra.mxu0 %v1628
    %2379 = vmatprep.subr.bf16.mxu0 %v1635
    %2380 = vmatpush1.bf16.msra.mxu0 %v1634
    %2381 = vmatprep.subr.bf16.mxu0 %v1641
    %2382 = vmatpush1.bf16.msra.mxu0 %v1640
    %2383 = vmatprep.subr.bf16.mxu0 %v1647
    %2384 = vmatpush1.bf16.msra.mxu0 %v1646
    %2385 = vmatprep.subr.bf16.mxu0 %v1653
    %2386 = vmatpush1.bf16.msra.mxu0 %v1652
    %2387 = vmatprep.subr.bf16.mxu0 %v1659
    %2388 = vmatpush1.bf16.msra.mxu0 %v1658
    %2389 = vmatprep.subr.bf16.mxu0 %v1665
    %2390 = vmatpush1.bf16.msra.mxu0 %v1664
    %2391 = vmatprep.subr.bf16.mxu0 %v1671
    %2392 = vmatpush1.bf16.msra.mxu0 %v1670
    %2393 = vmatprep.subr.bf16.mxu0 %v1677
    %2394 = vmatpush1.bf16.msra.mxu0 %v1676
    %2395 = vmatprep.mubr.bf16.mxu0 %v613
    %2396 = vmatmul.mubr.bf16.gmra.mrb[0].mxu0 %v612
    %v2397 = vpop.f32.mrb[0].mxu0
    %v2398 = vadd.f32 %v2355, %v2397
    %v2399 = vpop.f32.mrb[0].mxu0
    %v2400 = vadd.f32 %v2357, %v2399
    %v2401 = vpop.f32.mrb[0].mxu0
    %v2402 = vadd.f32 %v2359, %v2401
    %v2403 = vpop.f32.mrb[0].mxu0
    %v2404 = vadd.f32 %v2361, %v2403
    %2405 = vdwg.mxu0
    %2406 = vmatprep.subr.bf16.mxu0 %v1683
    %2407 = vmatpush1.bf16.msra.mxu0 %v1682
    %2408 = vmatprep.subr.bf16.mxu0 %v1689
    %2409 = vmatpush1.bf16.msra.mxu0 %v1688
    %2410 = vmatprep.subr.bf16.mxu0 %v1695
    %2411 = vmatpush1.bf16.msra.mxu0 %v1694
    %2412 = vmatprep.subr.bf16.mxu0 %v1701
    %2413 = vmatpush1.bf16.msra.mxu0 %v1700
    %2414 = vmatprep.subr.bf16.mxu0 %v1707
    %2415 = vmatpush1.bf16.msra.mxu0 %v1706
    %2416 = vmatprep.subr.bf16.mxu0 %v1713
    %2417 = vmatpush1.bf16.msra.mxu0 %v1712
    %2418 = vmatprep.subr.bf16.mxu0 %v1719
    %2419 = vmatpush1.bf16.msra.mxu0 %v1718
    %2420 = vmatprep.subr.bf16.mxu0 %v1725
    %2421 = vmatpush1.bf16.msra.mxu0 %v1724
    %2422 = vmatprep.subr.bf16.mxu0 %v1731
    %2423 = vmatpush1.bf16.msra.mxu0 %v1730
    %2424 = vmatprep.subr.bf16.mxu0 %v1737
    %2425 = vmatpush1.bf16.msra.mxu0 %v1736
    %2426 = vmatprep.subr.bf16.mxu0 %v1743
    %2427 = vmatpush1.bf16.msra.mxu0 %v1742
    %2428 = vmatprep.subr.bf16.mxu0 %v1749
    %2429 = vmatpush1.bf16.msra.mxu0 %v1748
    %2430 = vmatprep.subr.bf16.mxu0 %v1755
    %2431 = vmatpush1.bf16.msra.mxu0 %v1754
    %2432 = vmatprep.subr.bf16.mxu0 %v1761
    %2433 = vmatpush1.bf16.msra.mxu0 %v1760
    %2434 = vmatprep.subr.bf16.mxu0 %v1767
    %2435 = vmatpush1.bf16.msra.mxu0 %v1766
    %2436 = vmatprep.subr.bf16.mxu0 %v1773
    %2437 = vmatpush1.bf16.msra.mxu0 %v1772
    %2438 = vmatprep.mubr.bf16.mxu0 %v615
    %2439 = vmatmul.mubr.bf16.gmra.mrb[0].mxu0 %v614
    %v2440 = vpop.f32.mrb[0].mxu0
    %v2441 = vadd.f32 %v2398, %v2440
    %v2442 = vpop.f32.mrb[0].mxu0
    %v2443 = vadd.f32 %v2400, %v2442
    %v2444 = vpop.f32.mrb[0].mxu0
    %v2445 = vadd.f32 %v2402, %v2444
    %v2446 = vpop.f32.mrb[0].mxu0
    %v2447 = vadd.f32 %v2404, %v2446
    %2448 = vdwg.mxu0
    %v2449 = vpack.c.bf16 %v2183, %v2183
    %v2450 = vpack.c.bf16 %v2185, %v2185
    %v2451 = vpack.c.bf16 %v2312, %v2312
    %v2452 = vpack.c.bf16 %v2187, %v2187
    %v2453 = vpack.c.bf16 %v2189, %v2189
    %v2454 = vpack.c.bf16 %v2316, %v2316
    %v2455 = vpack.c.bf16 %v2314, %v2314
    %v2456 = vpack.c.bf16 %v2441, %v2441
    %v2457 = vpack.c.bf16 %v2443, %v2443
    %v2458 = vpack.c.bf16 %v2318, %v2318
    %v2459 = vpack.c.bf16 %v2445, %v2445
    %v2460 = vpack.c.bf16 %v2447, %v2447
    %v2463 = vunpack.c.l.s4 1966171168
    %v2464 = vunpack.c.0.s8 %v2463
    %v2465 = vlaneseq
    %v2466 = vshrl.u32 %v2465, 7
    %v2467 = vsub.s32 %v2464, %v2466
    %v2468 = vrot.slane %v271, %v2467
    %v2469 = vcombine.high %v2468, %v2468
    %v2471 = vunpack.c.l.s4 1966171168
    %v2472 = vunpack.c.0.s8 %v2471
    %v2473 = vlaneseq
    %v2474 = vshrl.u32 %v2473, 7
    %v2475 = vsub.s32 %v2472, %v2474
    %v2476 = vrot.slane %v2468, %v2475
    %v2478 = vunpack.c.l.s4 1966171168
    %v2479 = vunpack.c.0.s8 %v2478
    %v2480 = vlaneseq
    %v2481 = vshrl.u32 %v2480, 7
    %v2482 = vsub.s32 %v2479, %v2481
    %v2483 = vrot.slane %v2469, %v2482
    %v2484 = vlaneseq
    %v2485 = vshrl.u32 %v2484, 7
    %v2486 = vsub.s32 0, %v2485
    %v2487 = vrot.slane %v2476, %v2486
    %v2488 = vlaneseq
    %v2489 = vshrl.u32 %v2488, 7
    %v2490 = vsub.s32 0, %v2489
    %v2491 = vrot.slane %v2483, %v2490
    %2494 = vmatprep.subr.bf16.mxu0 %v2456
    %2495 = vmatpush1.bf16.xpose.msra.mxu0 %v2455
    %2496 = vmatprep.subr.bf16.mxu0 0
    %2497 = vmatpush1.bf16.xpose.msra.mxu0 0
    %2498 = vmatprep.subr.bf16.mxu0 0
    %2499 = vmatpush1.bf16.xpose.msra.mxu0 0
    %2500 = vmatprep.subr.bf16.mxu0 0
    %2501 = vmatpush1.bf16.xpose.msra.mxu0 0
    %2502 = vmatprep.subr.bf16.mxu0 0
    %2503 = vmatpush1.bf16.xpose.msra.mxu0 0
    %2504 = vmatprep.subr.bf16.mxu0 0
    %2505 = vmatpush1.bf16.xpose.msra.mxu0 0
    %2506 = vmatprep.subr.bf16.mxu0 0
    %2507 = vmatpush1.bf16.xpose.msra.mxu0 0
    %2508 = vmatprep.subr.bf16.mxu0 0
    %2509 = vmatpush1.bf16.xpose.msra.mxu0 0
    %2510 = vmatprep.subr.bf16.mxu0 0
    %2511 = vmatpush1.bf16.xpose.msra.mxu0 0
    %2512 = vmatprep.subr.bf16.mxu0 0
    %2513 = vmatpush1.bf16.xpose.msra.mxu0 0
    %2514 = vmatprep.subr.bf16.mxu0 0
    %2515 = vmatpush1.bf16.xpose.msra.mxu0 0
    %2516 = vmatprep.subr.bf16.mxu0 0
    %2517 = vmatpush1.bf16.xpose.msra.mxu0 0
    %2518 = vmatprep.subr.bf16.mxu0 0
    %2519 = vmatpush1.bf16.xpose.msra.mxu0 0
    %2520 = vmatprep.subr.bf16.mxu0 0
    %2521 = vmatpush1.bf16.xpose.msra.mxu0 0
    %2522 = vmatprep.subr.bf16.mxu0 0
    %2523 = vmatpush1.bf16.xpose.msra.mxu0 0
    %2524 = vmatprep.subr.bf16.mxu0 0
    %2525 = vmatpush1.bf16.xpose.msra.mxu0 0
    %2526 = vmatprep.mubr.bf16.mxu0 %v2450
    %2527 = vmatmul.mubr.bf16.gmra.mrb[0].mxu0 %v2449
    %v2528 = vpop.f32.mrb[0].mxu0
    %v2529 = vadd.f32 %v2487, %v2528
    %v2530 = vpop.f32.mrb[0].mxu0
    %v2531 = vpop.f32.mrb[0].mxu0
    %v2532 = vpop.f32.mrb[0].mxu0
    %2533 = vdwg.mxu0
    %2534 = vmatprep.subr.bf16.mxu0 0
    %2535 = vmatpush1.bf16.xpose.msra.mxu0 %v2457
    %2536 = vmatprep.subr.bf16.mxu0 0
    %2537 = vmatpush1.bf16.xpose.msra.mxu0 0
    %2538 = vmatprep.subr.bf16.mxu0 0
    %2539 = vmatpush1.bf16.xpose.msra.mxu0 0
    %2540 = vmatprep.subr.bf16.mxu0 0
    %2541 = vmatpush1.bf16.xpose.msra.mxu0 0
    %2542 = vmatprep.subr.bf16.mxu0 0
    %2543 = vmatpush1.bf16.xpose.msra.mxu0 0
    %2544 = vmatprep.subr.bf16.mxu0 0
    %2545 = vmatpush1.bf16.xpose.msra.mxu0 0
    %2546 = vmatprep.subr.bf16.mxu0 0
    %2547 = vmatpush1.bf16.xpose.msra.mxu0 0
    %2548 = vmatprep.subr.bf16.mxu0 0
    %2549 = vmatpush1.bf16.xpose.msra.mxu0 0
    %2550 = vmatprep.subr.bf16.mxu0 0
    %2551 = vmatpush1.bf16.xpose.msra.mxu0 0
    %2552 = vmatprep.subr.bf16.mxu0 0
    %2553 = vmatpush1.bf16.xpose.msra.mxu0 0
    %2554 = vmatprep.subr.bf16.mxu0 0
    %2555 = vmatpush1.bf16.xpose.msra.mxu0 0
    %2556 = vmatprep.subr.bf16.mxu0 0
    %2557 = vmatpush1.bf16.xpose.msra.mxu0 0
    %2558 = vmatprep.subr.bf16.mxu0 0
    %2559 = vmatpush1.bf16.xpose.msra.mxu0 0
    %2560 = vmatprep.subr.bf16.mxu0 0
    %2561 = vmatpush1.bf16.xpose.msra.mxu0 0
    %2562 = vmatprep.subr.bf16.mxu0 0
    %2563 = vmatpush1.bf16.xpose.msra.mxu0 0
    %2564 = vmatprep.subr.bf16.mxu0 0
    %2565 = vmatpush1.bf16.xpose.msra.mxu0 0
    %2566 = vmatprep.mubr.bf16.mxu0 0
    %2567 = vmatmul.mubr.bf16.gmra.mrb[0].mxu0 %v2451
    %v2568 = vpop.f32.mrb[0].mxu0
    %v2569 = vadd.f32 %v2529, %v2568
    %v2570 = vpop.f32.mrb[0].mxu0
    %v2571 = vpop.f32.mrb[0].mxu0
    %v2572 = vpop.f32.mrb[0].mxu0
    %2573 = vdwg.mxu0
    %2574 = vmatprep.subr.bf16.mxu0 %v2459
    %2575 = vmatpush1.bf16.xpose.msra.mxu0 %v2458
    %2576 = vmatprep.subr.bf16.mxu0 0
    %2577 = vmatpush1.bf16.xpose.msra.mxu0 0
    %2578 = vmatprep.subr.bf16.mxu0 0
    %2579 = vmatpush1.bf16.xpose.msra.mxu0 0
    %2580 = vmatprep.subr.bf16.mxu0 0
    %2581 = vmatpush1.bf16.xpose.msra.mxu0 0
    %2582 = vmatprep.subr.bf16.mxu0 0
    %2583 = vmatpush1.bf16.xpose.msra.mxu0 0
    %2584 = vmatprep.subr.bf16.mxu0 0
    %2585 = vmatpush1.bf16.xpose.msra.mxu0 0
    %2586 = vmatprep.subr.bf16.mxu0 0
    %2587 = vmatpush1.bf16.xpose.msra.mxu0 0
    %2588 = vmatprep.subr.bf16.mxu0 0
    %2589 = vmatpush1.bf16.xpose.msra.mxu0 0
    %2590 = vmatprep.subr.bf16.mxu0 0
    %2591 = vmatpush1.bf16.xpose.msra.mxu0 0
    %2592 = vmatprep.subr.bf16.mxu0 0
    %2593 = vmatpush1.bf16.xpose.msra.mxu0 0
    %2594 = vmatprep.subr.bf16.mxu0 0
    %2595 = vmatpush1.bf16.xpose.msra.mxu0 0
    %2596 = vmatprep.subr.bf16.mxu0 0
    %2597 = vmatpush1.bf16.xpose.msra.mxu0 0
    %2598 = vmatprep.subr.bf16.mxu0 0
    %2599 = vmatpush1.bf16.xpose.msra.mxu0 0
    %2600 = vmatprep.subr.bf16.mxu0 0
    %2601 = vmatpush1.bf16.xpose.msra.mxu0 0
    %2602 = vmatprep.subr.bf16.mxu0 0
    %2603 = vmatpush1.bf16.xpose.msra.mxu0 0
    %2604 = vmatprep.subr.bf16.mxu0 0
    %2605 = vmatpush1.bf16.xpose.msra.mxu0 0
    %2606 = vmatprep.mubr.bf16.mxu0 %v2453
    %2607 = vmatmul.mubr.bf16.gmra.mrb[0].mxu0 %v2452
    %v2608 = vpop.f32.mrb[0].mxu0
    %v2609 = vadd.f32 %v2491, %v2608
    %v2610 = vpop.f32.mrb[0].mxu0
    %v2611 = vpop.f32.mrb[0].mxu0
    %v2612 = vpop.f32.mrb[0].mxu0
    %2613 = vdwg.mxu0
    %2614 = vmatprep.subr.bf16.mxu0 0
    %2615 = vmatpush1.bf16.xpose.msra.mxu0 %v2460
    %2616 = vmatprep.subr.bf16.mxu0 0
    %2617 = vmatpush1.bf16.xpose.msra.mxu0 0
    %2618 = vmatprep.subr.bf16.mxu0 0
    %2619 = vmatpush1.bf16.xpose.msra.mxu0 0
    %2620 = vmatprep.subr.bf16.mxu0 0
    %2621 = vmatpush1.bf16.xpose.msra.mxu0 0
    %2622 = vmatprep.subr.bf16.mxu0 0
    %2623 = vmatpush1.bf16.xpose.msra.mxu0 0
    %2624 = vmatprep.subr.bf16.mxu0 0
    %2625 = vmatpush1.bf16.xpose.msra.mxu0 0
    %2626 = vmatprep.subr.bf16.mxu0 0
    %2627 = vmatpush1.bf16.xpose.msra.mxu0 0
    %2628 = vmatprep.subr.bf16.mxu0 0
    %2629 = vmatpush1.bf16.xpose.msra.mxu0 0
    %2630 = vmatprep.subr.bf16.mxu0 0
    %2631 = vmatpush1.bf16.xpose.msra.mxu0 0
    %2632 = vmatprep.subr.bf16.mxu0 0
    %2633 = vmatpush1.bf16.xpose.msra.mxu0 0
    %2634 = vmatprep.subr.bf16.mxu0 0
    %2635 = vmatpush1.bf16.xpose.msra.mxu0 0
    %2636 = vmatprep.subr.bf16.mxu0 0
    %2637 = vmatpush1.bf16.xpose.msra.mxu0 0
    %2638 = vmatprep.subr.bf16.mxu0 0
    %2639 = vmatpush1.bf16.xpose.msra.mxu0 0
    %2640 = vmatprep.subr.bf16.mxu0 0
    %2641 = vmatpush1.bf16.xpose.msra.mxu0 0
    %2642 = vmatprep.subr.bf16.mxu0 0
    %2643 = vmatpush1.bf16.xpose.msra.mxu0 0
    %2644 = vmatprep.subr.bf16.mxu0 0
    %2645 = vmatpush1.bf16.xpose.msra.mxu0 0
    %2646 = vmatprep.mubr.bf16.mxu0 0
    %2647 = vmatmul.mubr.bf16.gmra.mrb[0].mxu0 %v2454
    %v2648 = vpop.f32.mrb[0].mxu0
    %v2649 = vadd.f32 %v2609, %v2648
    %v2650 = vpop.f32.mrb[0].mxu0
    %v2651 = vpop.f32.mrb[0].mxu0
    %v2652 = vpop.f32.mrb[0].mxu0
    %2653 = vdwg.mxu0
    %vm2654 = vcmask 64512
    %v2655 = vsel %vm2654, %v2569, -inf
    %2656 = vmax.xlane.f32.xlu0 %v2655
    %v2657 = vpop.xlane.xlu0 %2656
    %v2658 = vsel %vm2654, %v2649, -inf
    %2659 = vmax.xlane.f32.xlu0 %v2658
    %v2660 = vpop.xlane.xlu0 %2659
    %v2661 = vsub.f32 %v2569, %v2657
    %v2662 = vsub.f32 %v2649, %v2660
    %v2663 = vmul.f32 %v2661, 1.442695
    %v2664 = vpow.pop %v2663
    %v2665 = vmul.f32 %v2662, 1.442695
    %v2666 = vpow.pop %v2665
    %v2667 = vsel %vm2654, %v2664, 0.0
    %2668 = vadd.xlane.f32.xlu0 %v2667
    %v2669 = vpop.xlane.xlu0 %2668
    %v2670 = vsel %vm2654, %v2666, 0.0
    %2671 = vadd.xlane.f32.xlu0 %v2670
    %v2672 = vpop.xlane.xlu0 %2671
    %v2673 = vrcp.pop %v2669
    %v2674 = vrcp.pop %v2672
    %v2675 = vmul.f32 %v2664, %v2673
    %v2676 = vmul.f32 %v2666, %v2674
    %v2677 = vpack.c.bf16 %v2675, %v2675
    %v2678 = vpack.c.bf16 %v2676, %v2676
    %v2679 = vpack.c.b16 %v598, %v598
    %v2680 = vpack.c.b16 %v599, %v599
    %v2681 = vpack.c.b16 %v600, %v600
    %v2682 = vpack.c.b16 %v601, %v601
    %v2683 = vpack.c.b16 %v602, %v602
    %v2684 = vpack.c.b16 %v603, %v603
    %v2686 = vsel %vm2654, %v2677, 0
    %vm2688 = vcmask 1043456
    %v2690 = vsel %vm2688, %v2679, 0
    %v2693 = vsel %vm2688, %v2680, 0
    %v2696 = vsel %vm2688, %v2681, 0
    %v2699 = vsel %vm2688, %v2682, 0
    %v2702 = vsel %vm2688, %v2683, 0
    %v2705 = vsel %vm2688, %v2684, 0
    %2707 = vmatprep.subr.bf16.mxu0 %v2693
    %2708 = vmatpush1.bf16.msra.mxu0 %v2690
    %2709 = vmatprep.subr.bf16.mxu0 0
    %2710 = vmatpush1.bf16.msra.mxu0 0
    %2711 = vmatprep.subr.bf16.mxu0 0
    %2712 = vmatpush1.bf16.msra.mxu0 0
    %2713 = vmatprep.subr.bf16.mxu0 0
    %2714 = vmatpush1.bf16.msra.mxu0 0
    %2715 = vmatprep.subr.bf16.mxu0 0
    %2716 = vmatpush1.bf16.msra.mxu0 0
    %2717 = vmatprep.subr.bf16.mxu0 0
    %2718 = vmatpush1.bf16.msra.mxu0 0
    %2719 = vmatprep.subr.bf16.mxu0 0
    %2720 = vmatpush1.bf16.msra.mxu0 0
    %2721 = vmatprep.subr.bf16.mxu0 0
    %2722 = vmatpush1.bf16.msra.mxu0 0
    %2723 = vmatprep.subr.bf16.mxu0 0
    %2724 = vmatpush1.bf16.msra.mxu0 0
    %2725 = vmatprep.subr.bf16.mxu0 0
    %2726 = vmatpush1.bf16.msra.mxu0 0
    %2727 = vmatprep.subr.bf16.mxu0 0
    %2728 = vmatpush1.bf16.msra.mxu0 0
    %2729 = vmatprep.subr.bf16.mxu0 0
    %2730 = vmatpush1.bf16.msra.mxu0 0
    %2731 = vmatprep.subr.bf16.mxu0 0
    %2732 = vmatpush1.bf16.msra.mxu0 0
    %2733 = vmatprep.subr.bf16.mxu0 0
    %2734 = vmatpush1.bf16.msra.mxu0 0
    %2735 = vmatprep.subr.bf16.mxu0 0
    %2736 = vmatpush1.bf16.msra.mxu0 0
    %2737 = vmatprep.subr.bf16.mxu0 0
    %2738 = vmatpush1.bf16.msra.mxu0 0
    %2739 = vmatprep.mubr.bf16.mxu0 0
    %2740 = vmatmul.mubr.bf16.gmra.mrb[0].mxu0 %v2686
    %v2741 = vpop.f32.mrb[0].mxu0
    %v2742 = vadd.f32 0.0, %v2741
    %v2743 = vpop.f32.mrb[0].mxu0
    %v2744 = vadd.f32 0.0, %v2743
    %v2745 = vpop.f32.mrb[0].mxu0
    %v2746 = vpop.f32.mrb[0].mxu0
    %2747 = vdwg.mxu0
    %2748 = vmatprep.subr.bf16.mxu0 %v2699
    %2749 = vmatpush1.bf16.msra.mxu0 %v2696
    %2750 = vmatprep.subr.bf16.mxu0 0
    %2751 = vmatpush1.bf16.msra.mxu0 0
    %2752 = vmatprep.subr.bf16.mxu0 0
    %2753 = vmatpush1.bf16.msra.mxu0 0
    %2754 = vmatprep.subr.bf16.mxu0 0
    %2755 = vmatpush1.bf16.msra.mxu0 0
    %2756 = vmatprep.subr.bf16.mxu0 0
    %2757 = vmatpush1.bf16.msra.mxu0 0
    %2758 = vmatprep.subr.bf16.mxu0 0
    %2759 = vmatpush1.bf16.msra.mxu0 0
    %2760 = vmatprep.subr.bf16.mxu0 0
    %2761 = vmatpush1.bf16.msra.mxu0 0
    %2762 = vmatprep.subr.bf16.mxu0 0
    %2763 = vmatpush1.bf16.msra.mxu0 0
    %2764 = vmatprep.subr.bf16.mxu0 0
    %2765 = vmatpush1.bf16.msra.mxu0 0
    %2766 = vmatprep.subr.bf16.mxu0 0
    %2767 = vmatpush1.bf16.msra.mxu0 0
    %2768 = vmatprep.subr.bf16.mxu0 0
    %2769 = vmatpush1.bf16.msra.mxu0 0
    %2770 = vmatprep.subr.bf16.mxu0 0
    %2771 = vmatpush1.bf16.msra.mxu0 0
    %2772 = vmatprep.subr.bf16.mxu0 0
    %2773 = vmatpush1.bf16.msra.mxu0 0
    %2774 = vmatprep.subr.bf16.mxu0 0
    %2775 = vmatpush1.bf16.msra.mxu0 0
    %2776 = vmatprep.subr.bf16.mxu0 0
    %2777 = vmatpush1.bf16.msra.mxu0 0
    %2778 = vmatprep.subr.bf16.mxu0 0
    %2779 = vmatpush1.bf16.msra.mxu0 0
    %2780 = vmatprep.mubr.bf16.mxu0 0
    %2781 = vmatmul.mubr.bf16.gmra.mrb[0].mxu0 %v2686
    %v2782 = vpop.f32.mrb[0].mxu0
    %v2783 = vadd.f32 0.0, %v2782
    %v2784 = vpop.f32.mrb[0].mxu0
    %v2785 = vadd.f32 0.0, %v2784
    %v2786 = vpop.f32.mrb[0].mxu0
    %v2787 = vpop.f32.mrb[0].mxu0
    %2788 = vdwg.mxu0
    %2789 = vmatprep.subr.bf16.mxu0 %v2705
    %2790 = vmatpush1.bf16.msra.mxu0 %v2702
    %2791 = vmatprep.subr.bf16.mxu0 0
    %2792 = vmatpush1.bf16.msra.mxu0 0
    %2793 = vmatprep.subr.bf16.mxu0 0
    %2794 = vmatpush1.bf16.msra.mxu0 0
    %2795 = vmatprep.subr.bf16.mxu0 0
    %2796 = vmatpush1.bf16.msra.mxu0 0
    %2797 = vmatprep.subr.bf16.mxu0 0
    %2798 = vmatpush1.bf16.msra.mxu0 0
    %2799 = vmatprep.subr.bf16.mxu0 0
    %2800 = vmatpush1.bf16.msra.mxu0 0
    %2801 = vmatprep.subr.bf16.mxu0 0
    %2802 = vmatpush1.bf16.msra.mxu0 0
    %2803 = vmatprep.subr.bf16.mxu0 0
    %2804 = vmatpush1.bf16.msra.mxu0 0
    %2805 = vmatprep.subr.bf16.mxu0 0
    %2806 = vmatpush1.bf16.msra.mxu0 0
    %2807 = vmatprep.subr.bf16.mxu0 0
    %2808 = vmatpush1.bf16.msra.mxu0 0
    %2809 = vmatprep.subr.bf16.mxu0 0
    %2810 = vmatpush1.bf16.msra.mxu0 0
    %2811 = vmatprep.subr.bf16.mxu0 0
    %2812 = vmatpush1.bf16.msra.mxu0 0
    %2813 = vmatprep.subr.bf16.mxu0 0
    %2814 = vmatpush1.bf16.msra.mxu0 0
    %2815 = vmatprep.subr.bf16.mxu0 0
    %2816 = vmatpush1.bf16.msra.mxu0 0
    %2817 = vmatprep.subr.bf16.mxu0 0
    %2818 = vmatpush1.bf16.msra.mxu0 0
    %2819 = vmatprep.subr.bf16.mxu0 0
    %2820 = vmatpush1.bf16.msra.mxu0 0
    %2821 = vmatprep.mubr.bf16.mxu0 0
    %2822 = vmatmul.mubr.bf16.gmra.mrb[0].mxu0 %v2686
    %v2823 = vpop.f32.mrb[0].mxu0
    %v2824 = vadd.f32 0.0, %v2823
    %v2825 = vpop.f32.mrb[0].mxu0
    %v2826 = vadd.f32 0.0, %v2825
    %v2827 = vpop.f32.mrb[0].mxu0
    %v2828 = vpop.f32.mrb[0].mxu0
    %2829 = vdwg.mxu0
    %v2830 = vpack.c.b16 %v604, %v604
    %v2831 = vpack.c.b16 %v605, %v605
    %v2832 = vpack.c.b16 %v606, %v606
    %v2833 = vpack.c.b16 %v607, %v607
    %v2834 = vpack.c.b16 %v608, %v608
    %v2835 = vpack.c.b16 %v609, %v609
    %v2837 = vsel %vm2654, %v2678, 0
    %v2840 = vsel %vm2688, %v2830, 0
    %v2843 = vsel %vm2688, %v2831, 0
    %v2846 = vsel %vm2688, %v2832, 0
    %v2849 = vsel %vm2688, %v2833, 0
    %v2852 = vsel %vm2688, %v2834, 0
    %v2855 = vsel %vm2688, %v2835, 0
    %2857 = vmatprep.subr.bf16.mxu0 %v2843
    %2858 = vmatpush1.bf16.msra.mxu0 %v2840
    %2859 = vmatprep.subr.bf16.mxu0 0
    %2860 = vmatpush1.bf16.msra.mxu0 0
    %2861 = vmatprep.subr.bf16.mxu0 0
    %2862 = vmatpush1.bf16.msra.mxu0 0
    %2863 = vmatprep.subr.bf16.mxu0 0
    %2864 = vmatpush1.bf16.msra.mxu0 0
    %2865 = vmatprep.subr.bf16.mxu0 0
    %2866 = vmatpush1.bf16.msra.mxu0 0
    %2867 = vmatprep.subr.bf16.mxu0 0
    %2868 = vmatpush1.bf16.msra.mxu0 0
    %2869 = vmatprep.subr.bf16.mxu0 0
    %2870 = vmatpush1.bf16.msra.mxu0 0
    %2871 = vmatprep.subr.bf16.mxu0 0
    %2872 = vmatpush1.bf16.msra.mxu0 0
    %2873 = vmatprep.subr.bf16.mxu0 0
    %2874 = vmatpush1.bf16.msra.mxu0 0
    %2875 = vmatprep.subr.bf16.mxu0 0
    %2876 = vmatpush1.bf16.msra.mxu0 0
    %2877 = vmatprep.subr.bf16.mxu0 0
    %2878 = vmatpush1.bf16.msra.mxu0 0
    %2879 = vmatprep.subr.bf16.mxu0 0
    %2880 = vmatpush1.bf16.msra.mxu0 0
    %2881 = vmatprep.subr.bf16.mxu0 0
    %2882 = vmatpush1.bf16.msra.mxu0 0
    %2883 = vmatprep.subr.bf16.mxu0 0
    %2884 = vmatpush1.bf16.msra.mxu0 0
    %2885 = vmatprep.subr.bf16.mxu0 0
    %2886 = vmatpush1.bf16.msra.mxu0 0
    %2887 = vmatprep.subr.bf16.mxu0 0
    %2888 = vmatpush1.bf16.msra.mxu0 0
    %2889 = vmatprep.mubr.bf16.mxu0 0
    %2890 = vmatmul.mubr.bf16.gmra.mrb[0].mxu0 %v2837
    %v2891 = vpop.f32.mrb[0].mxu0
    %v2892 = vadd.f32 0.0, %v2891
    %v2893 = vpop.f32.mrb[0].mxu0
    %v2894 = vadd.f32 0.0, %v2893
    %v2895 = vpop.f32.mrb[0].mxu0
    %v2896 = vpop.f32.mrb[0].mxu0
    %2897 = vdwg.mxu0
    %2898 = vmatprep.subr.bf16.mxu0 %v2849
    %2899 = vmatpush1.bf16.msra.mxu0 %v2846
    %2900 = vmatprep.subr.bf16.mxu0 0
    %2901 = vmatpush1.bf16.msra.mxu0 0
    %2902 = vmatprep.subr.bf16.mxu0 0
    %2903 = vmatpush1.bf16.msra.mxu0 0
    %2904 = vmatprep.subr.bf16.mxu0 0
    %2905 = vmatpush1.bf16.msra.mxu0 0
    %2906 = vmatprep.subr.bf16.mxu0 0
    %2907 = vmatpush1.bf16.msra.mxu0 0
    %2908 = vmatprep.subr.bf16.mxu0 0
    %2909 = vmatpush1.bf16.msra.mxu0 0
    %2910 = vmatprep.subr.bf16.mxu0 0
    %2911 = vmatpush1.bf16.msra.mxu0 0
    %2912 = vmatprep.subr.bf16.mxu0 0
    %2913 = vmatpush1.bf16.msra.mxu0 0
    %2914 = vmatprep.subr.bf16.mxu0 0
    %2915 = vmatpush1.bf16.msra.mxu0 0
    %2916 = vmatprep.subr.bf16.mxu0 0
    %2917 = vmatpush1.bf16.msra.mxu0 0
    %2918 = vmatprep.subr.bf16.mxu0 0
    %2919 = vmatpush1.bf16.msra.mxu0 0
    %2920 = vmatprep.subr.bf16.mxu0 0
    %2921 = vmatpush1.bf16.msra.mxu0 0
    %2922 = vmatprep.subr.bf16.mxu0 0
    %2923 = vmatpush1.bf16.msra.mxu0 0
    %2924 = vmatprep.subr.bf16.mxu0 0
    %2925 = vmatpush1.bf16.msra.mxu0 0
    %2926 = vmatprep.subr.bf16.mxu0 0
    %2927 = vmatpush1.bf16.msra.mxu0 0
    %2928 = vmatprep.subr.bf16.mxu0 0
    %2929 = vmatpush1.bf16.msra.mxu0 0
    %2930 = vmatprep.mubr.bf16.mxu0 0
    %2931 = vmatmul.mubr.bf16.gmra.mrb[0].mxu0 %v2837
    %v2932 = vpop.f32.mrb[0].mxu0
    %v2933 = vadd.f32 0.0, %v2932
    %v2934 = vpop.f32.mrb[0].mxu0
    %v2935 = vadd.f32 0.0, %v2934
    %v2936 = vpop.f32.mrb[0].mxu0
    %v2937 = vpop.f32.mrb[0].mxu0
    %2938 = vdwg.mxu0
    %2939 = vmatprep.subr.bf16.mxu0 %v2855
    %2940 = vmatpush1.bf16.msra.mxu0 %v2852
    %2941 = vmatprep.subr.bf16.mxu0 0
    %2942 = vmatpush1.bf16.msra.mxu0 0
    %2943 = vmatprep.subr.bf16.mxu0 0
    %2944 = vmatpush1.bf16.msra.mxu0 0
    %2945 = vmatprep.subr.bf16.mxu0 0
    %2946 = vmatpush1.bf16.msra.mxu0 0
    %2947 = vmatprep.subr.bf16.mxu0 0
    %2948 = vmatpush1.bf16.msra.mxu0 0
    %2949 = vmatprep.subr.bf16.mxu0 0
    %2950 = vmatpush1.bf16.msra.mxu0 0
    %2951 = vmatprep.subr.bf16.mxu0 0
    %2952 = vmatpush1.bf16.msra.mxu0 0
    %2953 = vmatprep.subr.bf16.mxu0 0
    %2954 = vmatpush1.bf16.msra.mxu0 0
    %2955 = vmatprep.subr.bf16.mxu0 0
    %2956 = vmatpush1.bf16.msra.mxu0 0
    %2957 = vmatprep.subr.bf16.mxu0 0
    %2958 = vmatpush1.bf16.msra.mxu0 0
    %2959 = vmatprep.subr.bf16.mxu0 0
    %2960 = vmatpush1.bf16.msra.mxu0 0
    %2961 = vmatprep.subr.bf16.mxu0 0
    %2962 = vmatpush1.bf16.msra.mxu0 0
    %2963 = vmatprep.subr.bf16.mxu0 0
    %2964 = vmatpush1.bf16.msra.mxu0 0
    %2965 = vmatprep.subr.bf16.mxu0 0
    %2966 = vmatpush1.bf16.msra.mxu0 0
    %2967 = vmatprep.subr.bf16.mxu0 0
    %2968 = vmatpush1.bf16.msra.mxu0 0
    %2969 = vmatprep.subr.bf16.mxu0 0
    %2970 = vmatpush1.bf16.msra.mxu0 0
    %2971 = vmatprep.mubr.bf16.mxu0 0
    %2972 = vmatmul.mubr.bf16.gmra.mrb[0].mxu0 %v2837
    %v2973 = vpop.f32.mrb[0].mxu0
    %v2974 = vadd.f32 0.0, %v2973
    %v2975 = vpop.f32.mrb[0].mxu0
    %v2976 = vadd.f32 0.0, %v2975
    %v2977 = vpop.f32.mrb[0].mxu0
    %v2978 = vpop.f32.mrb[0].mxu0
    %2979 = vdwg.mxu0
    %v2980 = vpack.c.bf16 %v2892, %v2742
    %v2981 = vpack.c.bf16 %v2894, %v2744
    %v2982 = vpack.c.bf16 %v2933, %v2783
    %v2983 = vpack.c.bf16 %v2935, %v2785
    %v2984 = vpack.c.bf16 %v2974, %v2824
    %v2985 = vpack.c.bf16 %v2976, %v2826
    %v2986 = vld [vmem:[#allocation11] sm:$0xff]
    %v2987 = vld [vmem:[#allocation11 + $0x8] sm:$0xf]
    %v2988 = vld [vmem:[#allocation11 + $0xc] sm:$0xff]
    %v2989 = vld [vmem:[#allocation11 + $0x14] sm:$0xf]
    %v2990 = vld [vmem:[#allocation11 + $0x18] sm:$0xff]
    %v2991 = vld [vmem:[#allocation11 + $0x20] sm:$0xf]
    %v2992 = vld [vmem:[#allocation11 + $0x24] sm:$0xff]
    %v2993 = vld [vmem:[#allocation11 + $0x2c] sm:$0xf]
    %v2994 = vld [vmem:[#allocation11 + $0x30] sm:$0xff]
    %v2995 = vld [vmem:[#allocation11 + $0x38] sm:$0xf]
    %v2996 = vld [vmem:[#allocation11 + $0x3c] sm:$0xff]
    %v2997 = vld [vmem:[#allocation11 + $0x44] sm:$0xf]
    %v2998 = vld [vmem:[#allocation11 + $0x48] sm:$0xff]
    %v2999 = vld [vmem:[#allocation11 + $0x50] sm:$0xf]
    %v3000 = vld [vmem:[#allocation11 + $0x54] sm:$0xff]
    %v3001 = vld [vmem:[#allocation11 + $0x5c] sm:$0xf]
    %v3002 = vld [vmem:[#allocation11 + $0x60] sm:$0xff]
    %v3003 = vld [vmem:[#allocation11 + $0x68] sm:$0xf]
    %v3004 = vld [vmem:[#allocation11 + $0x6c] sm:$0xff]
    %v3005 = vld [vmem:[#allocation11 + $0x74] sm:$0xf]
    %v3006 = vld [vmem:[#allocation11 + $0x78] sm:$0xff]
    %v3007 = vld [vmem:[#allocation11 + $0x80] sm:$0xf]
    %v3008 = vld [vmem:[#allocation11 + $0x84] sm:$0xff]
    %v3009 = vld [vmem:[#allocation11 + $0x8c] sm:$0xf]
    %v3010 = vld [vmem:[#allocation11 + $0x90] sm:$0xff]
    %v3011 = vld [vmem:[#allocation11 + $0x98] sm:$0xf]
    %v3012 = vld [vmem:[#allocation11 + $0x9c] sm:$0xff]
    %v3013 = vld [vmem:[#allocation11 + $0xa4] sm:$0xf]
    %v3014 = vld [vmem:[#allocation11 + $0xa8] sm:$0xff]
    %v3015 = vld [vmem:[#allocation11 + $0xb0] sm:$0xf]
    %v3016 = vld [vmem:[#allocation11 + $0xb4] sm:$0xff]
    %v3017 = vld [vmem:[#allocation11 + $0xbc] sm:$0xf]
    %v3018 = vld [vmem:[#allocation11 + $0xc0] sm:$0xff]
    %v3019 = vld [vmem:[#allocation11 + $0xc8] sm:$0xf]
    %v3020 = vld [vmem:[#allocation11 + $0xcc] sm:$0xff]
    %v3021 = vld [vmem:[#allocation11 + $0xd4] sm:$0xf]
    %v3022 = vld [vmem:[#allocation11 + $0xd8] sm:$0xff]
    %v3023 = vld [vmem:[#allocation11 + $0xe0] sm:$0xf]
    %v3024 = vld [vmem:[#allocation11 + $0xe4] sm:$0xff]
    %v3025 = vld [vmem:[#allocation11 + $0xec] sm:$0xf]
    %v3026 = vld [vmem:[#allocation11 + $0xf0] sm:$0xff]
    %v3027 = vld [vmem:[#allocation11 + $0xf8] sm:$0xf]
    %v3028 = vld [vmem:[#allocation11 + $0xfc] sm:$0xff]
    %v3029 = vld [vmem:[#allocation11 + $0x104] sm:$0xf]
    %v3030 = vld [vmem:[#allocation11 + $0x108] sm:$0xff]
    %v3031 = vld [vmem:[#allocation11 + $0x110] sm:$0xf]
    %v3032 = vld [vmem:[#allocation11 + $0x114] sm:$0xff]
    %v3033 = vld [vmem:[#allocation11 + $0x11c] sm:$0xf]
    %v3034 = vld [vmem:[#allocation11 + $0x120] sm:$0xff]
    %v3035 = vld [vmem:[#allocation11 + $0x128] sm:$0xf]
    %v3036 = vld [vmem:[#allocation11 + $0x12c] sm:$0xff]
    %v3037 = vld [vmem:[#allocation11 + $0x134] sm:$0xf]
    %v3038 = vld [vmem:[#allocation11 + $0x138] sm:$0xff]
    %v3039 = vld [vmem:[#allocation11 + $0x140] sm:$0xf]
    %v3040 = vld [vmem:[#allocation11 + $0x144] sm:$0xff]
    %v3041 = vld [vmem:[#allocation11 + $0x14c] sm:$0xf]
    %v3042 = vld [vmem:[#allocation11 + $0x150] sm:$0xff]
    %v3043 = vld [vmem:[#allocation11 + $0x158] sm:$0xf]
    %v3044 = vld [vmem:[#allocation11 + $0x15c] sm:$0xff]
    %v3045 = vld [vmem:[#allocation11 + $0x164] sm:$0xf]
    %v3046 = vld [vmem:[#allocation11 + $0x168] sm:$0xff]
    %v3047 = vld [vmem:[#allocation11 + $0x170] sm:$0xf]
    %v3048 = vld [vmem:[#allocation11 + $0x174] sm:$0xff]
    %v3049 = vld [vmem:[#allocation11 + $0x17c] sm:$0xf]
    %v3050 = vld [vmem:[#allocation11 + $0x180] sm:$0xff]
    %v3051 = vld [vmem:[#allocation11 + $0x188] sm:$0xf]
    %v3052 = vld [vmem:[#allocation11 + $0x18c] sm:$0xff]
    %v3053 = vld [vmem:[#allocation11 + $0x194] sm:$0xf]
    %v3054 = vld [vmem:[#allocation11 + $0x198] sm:$0xff]
    %v3055 = vld [vmem:[#allocation11 + $0x1a0] sm:$0xf]
    %v3056 = vld [vmem:[#allocation11 + $0x1a4] sm:$0xff]
    %v3057 = vld [vmem:[#allocation11 + $0x1ac] sm:$0xf]
    %v3058 = vld [vmem:[#allocation11 + $0x1b0] sm:$0xff]
    %v3059 = vld [vmem:[#allocation11 + $0x1b8] sm:$0xf]
    %v3060 = vld [vmem:[#allocation11 + $0x1bc] sm:$0xff]
    %v3061 = vld [vmem:[#allocation11 + $0x1c4] sm:$0xf]
    %v3062 = vld [vmem:[#allocation11 + $0x1c8] sm:$0xff]
    %v3063 = vld [vmem:[#allocation11 + $0x1d0] sm:$0xf]
    %v3064 = vld [vmem:[#allocation11 + $0x1d4] sm:$0xff]
    %v3065 = vld [vmem:[#allocation11 + $0x1dc] sm:$0xf]
    %v3066 = vld [vmem:[#allocation11 + $0x1e0] sm:$0xff]
    %v3067 = vld [vmem:[#allocation11 + $0x1e8] sm:$0xf]
    %v3068 = vld [vmem:[#allocation11 + $0x1ec] sm:$0xff]
    %v3069 = vld [vmem:[#allocation11 + $0x1f4] sm:$0xf]
    %v3070 = vld [vmem:[#allocation11 + $0x1f8] sm:$0xff]
    %v3071 = vld [vmem:[#allocation11 + $0x200] sm:$0xf]
    %v3072 = vld [vmem:[#allocation11 + $0x204] sm:$0xff]
    %v3073 = vld [vmem:[#allocation11 + $0x20c] sm:$0xf]
    %v3074 = vld [vmem:[#allocation11 + $0x210] sm:$0xff]
    %v3075 = vld [vmem:[#allocation11 + $0x218] sm:$0xf]
    %v3076 = vld [vmem:[#allocation11 + $0x21c] sm:$0xff]
    %v3077 = vld [vmem:[#allocation11 + $0x224] sm:$0xf]
    %v3078 = vld [vmem:[#allocation11 + $0x228] sm:$0xff]
    %v3079 = vld [vmem:[#allocation11 + $0x230] sm:$0xf]
    %v3080 = vld [vmem:[#allocation11 + $0x234] sm:$0xff]
    %v3081 = vld [vmem:[#allocation11 + $0x23c] sm:$0xf]
    %v3082 = vld [vmem:[#allocation11 + $0x240] sm:$0xff]
    %v3083 = vld [vmem:[#allocation11 + $0x248] sm:$0xf]
    %v3084 = vld [vmem:[#allocation11 + $0x24c] sm:$0xff]
    %v3085 = vld [vmem:[#allocation11 + $0x254] sm:$0xf]
    %v3086 = vld [vmem:[#allocation11 + $0x258] sm:$0xff]
    %v3087 = vld [vmem:[#allocation11 + $0x260] sm:$0xf]
    %v3088 = vld [vmem:[#allocation11 + $0x264] sm:$0xff]
    %v3089 = vld [vmem:[#allocation11 + $0x26c] sm:$0xf]
    %v3090 = vld [vmem:[#allocation11 + $0x270] sm:$0xff]
    %v3091 = vld [vmem:[#allocation11 + $0x278] sm:$0xf]
    %v3092 = vld [vmem:[#allocation11 + $0x27c] sm:$0xff]
    %v3093 = vld [vmem:[#allocation11 + $0x284] sm:$0xf]
    %v3094 = vld [vmem:[#allocation11 + $0x288] sm:$0xff]
    %v3095 = vld [vmem:[#allocation11 + $0x290] sm:$0xf]
    %v3096 = vld [vmem:[#allocation11 + $0x294] sm:$0xff]
    %v3097 = vld [vmem:[#allocation11 + $0x29c] sm:$0xf]
    %v3098 = vld [vmem:[#allocation11 + $0x2a0] sm:$0xff]
    %v3099 = vld [vmem:[#allocation11 + $0x2a8] sm:$0xf]
    %v3100 = vld [vmem:[#allocation11 + $0x2ac] sm:$0xff]
    %v3101 = vld [vmem:[#allocation11 + $0x2b4] sm:$0xf]
    %v3102 = vld [vmem:[#allocation11 + $0x2b8] sm:$0xff]
    %v3103 = vld [vmem:[#allocation11 + $0x2c0] sm:$0xf]
    %v3104 = vld [vmem:[#allocation11 + $0x2c4] sm:$0xff]
    %v3105 = vld [vmem:[#allocation11 + $0x2cc] sm:$0xf]
    %v3106 = vld [vmem:[#allocation11 + $0x2d0] sm:$0xff]
    %v3107 = vld [vmem:[#allocation11 + $0x2d8] sm:$0xf]
    %v3108 = vld [vmem:[#allocation11 + $0x2dc] sm:$0xff]
    %v3109 = vld [vmem:[#allocation11 + $0x2e4] sm:$0xf]
    %v3110 = vld [vmem:[#allocation11 + $0x2e8] sm:$0xff]
    %v3111 = vld [vmem:[#allocation11 + $0x2f0] sm:$0xf]
    %v3112 = vld [vmem:[#allocation11 + $0x2f4] sm:$0xff]
    %v3113 = vld [vmem:[#allocation11 + $0x2fc] sm:$0xf]
    %v3114 = vld [vmem:[#allocation11 + $0x300] sm:$0xff]
    %v3115 = vld [vmem:[#allocation11 + $0x308] sm:$0xf]
    %v3116 = vld [vmem:[#allocation11 + $0x30c] sm:$0xff]
    %v3117 = vld [vmem:[#allocation11 + $0x314] sm:$0xf]
    %v3118 = vld [vmem:[#allocation11 + $0x318] sm:$0xff]
    %v3119 = vld [vmem:[#allocation11 + $0x320] sm:$0xf]
    %v3120 = vld [vmem:[#allocation11 + $0x324] sm:$0xff]
    %v3121 = vld [vmem:[#allocation11 + $0x32c] sm:$0xf]
    %v3122 = vld [vmem:[#allocation11 + $0x330] sm:$0xff]
    %v3123 = vld [vmem:[#allocation11 + $0x338] sm:$0xf]
    %v3124 = vld [vmem:[#allocation11 + $0x33c] sm:$0xff]
    %v3125 = vld [vmem:[#allocation11 + $0x344] sm:$0xf]
    %v3126 = vld [vmem:[#allocation11 + $0x348] sm:$0xff]
    %v3127 = vld [vmem:[#allocation11 + $0x350] sm:$0xf]
    %v3128 = vld [vmem:[#allocation11 + $0x354] sm:$0xff]
    %v3129 = vld [vmem:[#allocation11 + $0x35c] sm:$0xf]
    %v3130 = vld [vmem:[#allocation11 + $0x360] sm:$0xff]
    %v3131 = vld [vmem:[#allocation11 + $0x368] sm:$0xf]
    %v3132 = vld [vmem:[#allocation11 + $0x36c] sm:$0xff]
    %v3133 = vld [vmem:[#allocation11 + $0x374] sm:$0xf]
    %v3134 = vld [vmem:[#allocation11 + $0x378] sm:$0xff]
    %v3135 = vld [vmem:[#allocation11 + $0x380] sm:$0xf]
    %v3136 = vld [vmem:[#allocation11 + $0x384] sm:$0xff]
    %v3137 = vld [vmem:[#allocation11 + $0x38c] sm:$0xf]
    %v3138 = vld [vmem:[#allocation11 + $0x390] sm:$0xff]
    %v3139 = vld [vmem:[#allocation11 + $0x398] sm:$0xf]
    %v3140 = vld [vmem:[#allocation11 + $0x39c] sm:$0xff]
    %v3141 = vld [vmem:[#allocation11 + $0x3a4] sm:$0xf]
    %v3142 = vld [vmem:[#allocation11 + $0x3a8] sm:$0xff]
    %v3143 = vld [vmem:[#allocation11 + $0x3b0] sm:$0xf]
    %v3144 = vld [vmem:[#allocation11 + $0x3b4] sm:$0xff]
    %v3145 = vld [vmem:[#allocation11 + $0x3bc] sm:$0xf]
    %v3146 = vld [vmem:[#allocation11 + $0x3c0] sm:$0xff]
    %v3147 = vld [vmem:[#allocation11 + $0x3c8] sm:$0xf]
    %v3148 = vld [vmem:[#allocation11 + $0x3cc] sm:$0xff]
    %v3149 = vld [vmem:[#allocation11 + $0x3d4] sm:$0xf]
    %v3150 = vld [vmem:[#allocation11 + $0x3d8] sm:$0xff]
    %v3151 = vld [vmem:[#allocation11 + $0x3e0] sm:$0xf]
    %v3152 = vld [vmem:[#allocation11 + $0x3e4] sm:$0xff]
    %v3153 = vld [vmem:[#allocation11 + $0x3ec] sm:$0xf]
    %v3154 = vld [vmem:[#allocation11 + $0x3f0] sm:$0xff]
    %v3155 = vld [vmem:[#allocation11 + $0x3f8] sm:$0xf]
    %v3156 = vld [vmem:[#allocation11 + $0x3fc] sm:$0xff]
    %v3157 = vld [vmem:[#allocation11 + $0x404] sm:$0xf]
    %v3158 = vld [vmem:[#allocation11 + $0x408] sm:$0xff]
    %v3159 = vld [vmem:[#allocation11 + $0x410] sm:$0xf]
    %v3160 = vld [vmem:[#allocation11 + $0x414] sm:$0xff]
    %v3161 = vld [vmem:[#allocation11 + $0x41c] sm:$0xf]
    %v3162 = vld [vmem:[#allocation11 + $0x420] sm:$0xff]
    %v3163 = vld [vmem:[#allocation11 + $0x428] sm:$0xf]
    %v3164 = vld [vmem:[#allocation11 + $0x42c] sm:$0xff]
    %v3165 = vld [vmem:[#allocation11 + $0x434] sm:$0xf]
    %v3166 = vld [vmem:[#allocation11 + $0x438] sm:$0xff]
    %v3167 = vld [vmem:[#allocation11 + $0x440] sm:$0xf]
    %v3168 = vld [vmem:[#allocation11 + $0x444] sm:$0xff]
    %v3169 = vld [vmem:[#allocation11 + $0x44c] sm:$0xf]
    %v3170 = vld [vmem:[#allocation11 + $0x450] sm:$0xff]
    %v3171 = vld [vmem:[#allocation11 + $0x458] sm:$0xf]
    %v3172 = vld [vmem:[#allocation11 + $0x45c] sm:$0xff]
    %v3173 = vld [vmem:[#allocation11 + $0x464] sm:$0xf]
    %v3174 = vld [vmem:[#allocation11 + $0x468] sm:$0xff]
    %v3175 = vld [vmem:[#allocation11 + $0x470] sm:$0xf]
    %v3176 = vld [vmem:[#allocation11 + $0x474] sm:$0xff]
    %v3177 = vld [vmem:[#allocation11 + $0x47c] sm:$0xf]
    %v3178 = vld [vmem:[#allocation12] sm:$0x7]
    %v3180 = vlaneseq
    %v3181 = vshrl.u32 %v3180, 7
    %v3182 = vsub.s32 0, %v3181
    %v3183 = vrot.slane %v3178, %v3182
    %v3184 = vlaneseq
    %v3185 = vshrl.u32 %v3184, 7
    %v3186 = vsub.s32 1, %v3185
    %v3187 = vrot.slane %v3178, %v3186
    %v3188 = vlaneseq
    %v3189 = vshrl.u32 %v3188, 7
    %v3190 = vsub.s32 2, %v3189
    %v3191 = vrot.slane %v3178, %v3190
    %v3387 = vunpack.c.l.b16 %v2986
    %v3388 = vunpack.c.h.b16 %v2986
    %v3389 = vunpack.c.l.b16 %v2987
    %v3390 = vunpack.c.l.b16 %v2988
    %v3391 = vunpack.c.h.b16 %v2988
    %v3392 = vunpack.c.l.b16 %v2989
    %v3393 = vunpack.c.l.b16 %v2990
    %v3394 = vunpack.c.h.b16 %v2990
    %v3395 = vunpack.c.l.b16 %v2991
    %v3396 = vunpack.c.l.b16 %v2992
    %v3397 = vunpack.c.h.b16 %v2992
    %v3398 = vunpack.c.l.b16 %v2993
    %v3399 = vunpack.c.l.b16 %v2994
    %v3400 = vunpack.c.h.b16 %v2994
    %v3401 = vunpack.c.l.b16 %v2995
    %v3402 = vunpack.c.l.b16 %v2996
    %v3403 = vunpack.c.h.b16 %v2996
    %v3404 = vunpack.c.l.b16 %v2997
    %v3405 = vunpack.c.l.b16 %v2998
    %v3406 = vunpack.c.h.b16 %v2998
    %v3407 = vunpack.c.l.b16 %v2999
    %v3408 = vunpack.c.l.b16 %v3000
    %v3409 = vunpack.c.h.b16 %v3000
    %v3410 = vunpack.c.l.b16 %v3001
    %v3411 = vunpack.c.l.b16 %v3002
    %v3412 = vunpack.c.h.b16 %v3002
    %v3413 = vunpack.c.l.b16 %v3003
    %v3414 = vunpack.c.l.b16 %v3004
    %v3415 = vunpack.c.h.b16 %v3004
    %v3416 = vunpack.c.l.b16 %v3005
    %v3417 = vunpack.c.l.b16 %v3006
    %v3418 = vunpack.c.h.b16 %v3006
    %v3419 = vunpack.c.l.b16 %v3007
    %v3420 = vunpack.c.l.b16 %v3008
    %v3421 = vunpack.c.h.b16 %v3008
    %v3422 = vunpack.c.l.b16 %v3009
    %v3423 = vunpack.c.l.b16 %v3010
    %v3424 = vunpack.c.h.b16 %v3010
    %v3425 = vunpack.c.l.b16 %v3011
    %v3426 = vunpack.c.l.b16 %v3012
    %v3427 = vunpack.c.h.b16 %v3012
    %v3428 = vunpack.c.l.b16 %v3013
    %v3429 = vunpack.c.l.b16 %v3014
    %v3430 = vunpack.c.h.b16 %v3014
    %v3431 = vunpack.c.l.b16 %v3015
    %v3432 = vunpack.c.l.b16 %v3016
    %v3433 = vunpack.c.h.b16 %v3016
    %v3434 = vunpack.c.l.b16 %v3017
    %v3435 = vunpack.c.l.b16 %v3018
    %v3436 = vunpack.c.h.b16 %v3018
    %v3437 = vunpack.c.l.b16 %v3019
    %v3438 = vunpack.c.l.b16 %v3020
    %v3439 = vunpack.c.h.b16 %v3020
    %v3440 = vunpack.c.l.b16 %v3021
    %v3441 = vunpack.c.l.b16 %v3022
    %v3442 = vunpack.c.h.b16 %v3022
    %v3443 = vunpack.c.l.b16 %v3023
    %v3444 = vunpack.c.l.b16 %v3024
    %v3445 = vunpack.c.h.b16 %v3024
    %v3446 = vunpack.c.l.b16 %v3025
    %v3447 = vunpack.c.l.b16 %v3026
    %v3448 = vunpack.c.h.b16 %v3026
    %v3449 = vunpack.c.l.b16 %v3027
    %v3450 = vunpack.c.l.b16 %v3028
    %v3451 = vunpack.c.h.b16 %v3028
    %v3452 = vunpack.c.l.b16 %v3029
    %v3453 = vunpack.c.l.b16 %v3030
    %v3454 = vunpack.c.h.b16 %v3030
    %v3455 = vunpack.c.l.b16 %v3031
    %v3456 = vunpack.c.l.b16 %v3032
    %v3457 = vunpack.c.h.b16 %v3032
    %v3458 = vunpack.c.l.b16 %v3033
    %v3459 = vunpack.c.l.b16 %v3034
    %v3460 = vunpack.c.h.b16 %v3034
    %v3461 = vunpack.c.l.b16 %v3035
    %v3462 = vunpack.c.l.b16 %v3036
    %v3463 = vunpack.c.h.b16 %v3036
    %v3464 = vunpack.c.l.b16 %v3037
    %v3465 = vunpack.c.l.b16 %v3038
    %v3466 = vunpack.c.h.b16 %v3038
    %v3467 = vunpack.c.l.b16 %v3039
    %v3468 = vunpack.c.l.b16 %v3040
    %v3469 = vunpack.c.h.b16 %v3040
    %v3470 = vunpack.c.l.b16 %v3041
    %v3471 = vunpack.c.l.b16 %v3042
    %v3472 = vunpack.c.h.b16 %v3042
    %v3473 = vunpack.c.l.b16 %v3043
    %v3474 = vunpack.c.l.b16 %v3044
    %v3475 = vunpack.c.h.b16 %v3044
    %v3476 = vunpack.c.l.b16 %v3045
    %v3477 = vunpack.c.l.b16 %v3046
    %v3478 = vunpack.c.h.b16 %v3046
    %v3479 = vunpack.c.l.b16 %v3047
    %v3480 = vunpack.c.l.b16 %v3048
    %v3481 = vunpack.c.h.b16 %v3048
    %v3482 = vunpack.c.l.b16 %v3049
    %v3483 = vunpack.c.l.b16 %v3050
    %v3484 = vunpack.c.h.b16 %v3050
    %v3485 = vunpack.c.l.b16 %v3051
    %v3486 = vunpack.c.l.b16 %v3052
    %v3487 = vunpack.c.h.b16 %v3052
    %v3488 = vunpack.c.l.b16 %v3053
    %v3489 = vunpack.c.l.b16 %v3054
    %v3490 = vunpack.c.h.b16 %v3054
    %v3491 = vunpack.c.l.b16 %v3055
    %v3492 = vunpack.c.l.b16 %v3056
    %v3493 = vunpack.c.h.b16 %v3056
    %v3494 = vunpack.c.l.b16 %v3057
    %v3495 = vunpack.c.l.b16 %v3058
    %v3496 = vunpack.c.h.b16 %v3058
    %v3497 = vunpack.c.l.b16 %v3059
    %v3498 = vunpack.c.l.b16 %v3060
    %v3499 = vunpack.c.h.b16 %v3060
    %v3500 = vunpack.c.l.b16 %v3061
    %v3501 = vunpack.c.l.b16 %v3062
    %v3502 = vunpack.c.h.b16 %v3062
    %v3503 = vunpack.c.l.b16 %v3063
    %v3504 = vunpack.c.l.b16 %v3064
    %v3505 = vunpack.c.h.b16 %v3064
    %v3506 = vunpack.c.l.b16 %v3065
    %v3507 = vunpack.c.l.b16 %v3066
    %v3508 = vunpack.c.h.b16 %v3066
    %v3509 = vunpack.c.l.b16 %v3067
    %v3510 = vunpack.c.l.b16 %v3068
    %v3511 = vunpack.c.h.b16 %v3068
    %v3512 = vunpack.c.l.b16 %v3069
    %v3513 = vunpack.c.l.b16 %v3070
    %v3514 = vunpack.c.h.b16 %v3070
    %v3515 = vunpack.c.l.b16 %v3071
    %v3516 = vunpack.c.l.b16 %v3072
    %v3517 = vunpack.c.h.b16 %v3072
    %v3518 = vunpack.c.l.b16 %v3073
    %v3519 = vunpack.c.l.b16 %v3074
    %v3520 = vunpack.c.h.b16 %v3074
    %v3521 = vunpack.c.l.b16 %v3075
    %v3522 = vunpack.c.l.b16 %v3076
    %v3523 = vunpack.c.h.b16 %v3076
    %v3524 = vunpack.c.l.b16 %v3077
    %v3525 = vunpack.c.l.b16 %v3078
    %v3526 = vunpack.c.h.b16 %v3078
    %v3527 = vunpack.c.l.b16 %v3079
    %v3528 = vunpack.c.l.b16 %v3080
    %v3529 = vunpack.c.h.b16 %v3080
    %v3530 = vunpack.c.l.b16 %v3081
    %v3531 = vunpack.c.l.b16 %v3082
    %v3532 = vunpack.c.h.b16 %v3082
    %v3533 = vunpack.c.l.b16 %v3083
    %v3534 = vunpack.c.l.b16 %v3084
    %v3535 = vunpack.c.h.b16 %v3084
    %v3536 = vunpack.c.l.b16 %v3085
    %v3537 = vunpack.c.l.b16 %v3086
    %v3538 = vunpack.c.h.b16 %v3086
    %v3539 = vunpack.c.l.b16 %v3087
    %v3540 = vunpack.c.l.b16 %v3088
    %v3541 = vunpack.c.h.b16 %v3088
    %v3542 = vunpack.c.l.b16 %v3089
    %v3543 = vunpack.c.l.b16 %v3090
    %v3544 = vunpack.c.h.b16 %v3090
    %v3545 = vunpack.c.l.b16 %v3091
    %v3546 = vunpack.c.l.b16 %v3092
    %v3547 = vunpack.c.h.b16 %v3092
    %v3548 = vunpack.c.l.b16 %v3093
    %v3549 = vunpack.c.l.b16 %v3094
    %v3550 = vunpack.c.h.b16 %v3094
    %v3551 = vunpack.c.l.b16 %v3095
    %v3552 = vunpack.c.l.b16 %v3096
    %v3553 = vunpack.c.h.b16 %v3096
    %v3554 = vunpack.c.l.b16 %v3097
    %v3555 = vunpack.c.l.b16 %v3098
    %v3556 = vunpack.c.h.b16 %v3098
    %v3557 = vunpack.c.l.b16 %v3099
    %v3558 = vunpack.c.l.b16 %v3100
    %v3559 = vunpack.c.h.b16 %v3100
    %v3560 = vunpack.c.l.b16 %v3101
    %v3561 = vunpack.c.l.b16 %v3102
    %v3562 = vunpack.c.h.b16 %v3102
    %v3563 = vunpack.c.l.b16 %v3103
    %v3564 = vunpack.c.l.b16 %v3104
    %v3565 = vunpack.c.h.b16 %v3104
    %v3566 = vunpack.c.l.b16 %v3105
    %v3567 = vunpack.c.l.b16 %v3106
    %v3568 = vunpack.c.h.b16 %v3106
    %v3569 = vunpack.c.l.b16 %v3107
    %v3570 = vunpack.c.l.b16 %v3108
    %v3571 = vunpack.c.h.b16 %v3108
    %v3572 = vunpack.c.l.b16 %v3109
    %v3573 = vunpack.c.l.b16 %v3110
    %v3574 = vunpack.c.h.b16 %v3110
    %v3575 = vunpack.c.l.b16 %v3111
    %v3576 = vunpack.c.l.b16 %v3112
    %v3577 = vunpack.c.h.b16 %v3112
    %v3578 = vunpack.c.l.b16 %v3113
    %v3579 = vunpack.c.l.b16 %v3114
    %v3580 = vunpack.c.h.b16 %v3114
    %v3581 = vunpack.c.l.b16 %v3115
    %v3582 = vunpack.c.l.b16 %v3116
    %v3583 = vunpack.c.h.b16 %v3116
    %v3584 = vunpack.c.l.b16 %v3117
    %v3585 = vunpack.c.l.b16 %v3118
    %v3586 = vunpack.c.h.b16 %v3118
    %v3587 = vunpack.c.l.b16 %v3119
    %v3588 = vunpack.c.l.b16 %v3120
    %v3589 = vunpack.c.h.b16 %v3120
    %v3590 = vunpack.c.l.b16 %v3121
    %v3591 = vunpack.c.l.b16 %v3122
    %v3592 = vunpack.c.h.b16 %v3122
    %v3593 = vunpack.c.l.b16 %v3123
    %v3594 = vunpack.c.l.b16 %v3124
    %v3595 = vunpack.c.h.b16 %v3124
    %v3596 = vunpack.c.l.b16 %v3125
    %v3597 = vunpack.c.l.b16 %v3126
    %v3598 = vunpack.c.h.b16 %v3126
    %v3599 = vunpack.c.l.b16 %v3127
    %v3600 = vunpack.c.l.b16 %v3128
    %v3601 = vunpack.c.h.b16 %v3128
    %v3602 = vunpack.c.l.b16 %v3129
    %v3603 = vunpack.c.l.b16 %v3130
    %v3604 = vunpack.c.h.b16 %v3130
    %v3605 = vunpack.c.l.b16 %v3131
    %v3606 = vunpack.c.l.b16 %v3132
    %v3607 = vunpack.c.h.b16 %v3132
    %v3608 = vunpack.c.l.b16 %v3133
    %v3609 = vunpack.c.l.b16 %v3134
    %v3610 = vunpack.c.h.b16 %v3134
    %v3611 = vunpack.c.l.b16 %v3135
    %v3612 = vunpack.c.l.b16 %v3136
    %v3613 = vunpack.c.h.b16 %v3136
    %v3614 = vunpack.c.l.b16 %v3137
    %v3615 = vunpack.c.l.b16 %v3138
    %v3616 = vunpack.c.h.b16 %v3138
    %v3617 = vunpack.c.l.b16 %v3139
    %v3618 = vunpack.c.l.b16 %v3140
    %v3619 = vunpack.c.h.b16 %v3140
    %v3620 = vunpack.c.l.b16 %v3141
    %v3621 = vunpack.c.l.b16 %v3142
    %v3622 = vunpack.c.h.b16 %v3142
    %v3623 = vunpack.c.l.b16 %v3143
    %v3624 = vunpack.c.l.b16 %v3144
    %v3625 = vunpack.c.h.b16 %v3144
    %v3626 = vunpack.c.l.b16 %v3145
    %v3627 = vunpack.c.l.b16 %v3146
    %v3628 = vunpack.c.h.b16 %v3146
    %v3629 = vunpack.c.l.b16 %v3147
    %v3630 = vunpack.c.l.b16 %v3148
    %v3631 = vunpack.c.h.b16 %v3148
    %v3632 = vunpack.c.l.b16 %v3149
    %v3633 = vunpack.c.l.b16 %v3150
    %v3634 = vunpack.c.h.b16 %v3150
    %v3635 = vunpack.c.l.b16 %v3151
    %v3636 = vunpack.c.l.b16 %v3152
    %v3637 = vunpack.c.h.b16 %v3152
    %v3638 = vunpack.c.l.b16 %v3153
    %v3639 = vunpack.c.l.b16 %v3154
    %v3640 = vunpack.c.h.b16 %v3154
    %v3641 = vunpack.c.l.b16 %v3155
    %v3642 = vunpack.c.l.b16 %v3156
    %v3643 = vunpack.c.h.b16 %v3156
    %v3644 = vunpack.c.l.b16 %v3157
    %v3645 = vunpack.c.l.b16 %v3158
    %v3646 = vunpack.c.h.b16 %v3158
    %v3647 = vunpack.c.l.b16 %v3159
    %v3648 = vunpack.c.l.b16 %v3160
    %v3649 = vunpack.c.h.b16 %v3160
    %v3650 = vunpack.c.l.b16 %v3161
    %v3651 = vunpack.c.l.b16 %v3162
    %v3652 = vunpack.c.h.b16 %v3162
    %v3653 = vunpack.c.l.b16 %v3163
    %v3654 = vunpack.c.l.b16 %v3164
    %v3655 = vunpack.c.h.b16 %v3164
    %v3656 = vunpack.c.l.b16 %v3165
    %v3657 = vunpack.c.l.b16 %v3166
    %v3658 = vunpack.c.h.b16 %v3166
    %v3659 = vunpack.c.l.b16 %v3167
    %v3660 = vunpack.c.l.b16 %v3168
    %v3661 = vunpack.c.h.b16 %v3168
    %v3662 = vunpack.c.l.b16 %v3169
    %v3663 = vunpack.c.l.b16 %v3170
    %v3664 = vunpack.c.h.b16 %v3170
    %v3665 = vunpack.c.l.b16 %v3171
    %v3666 = vunpack.c.l.b16 %v3172
    %v3667 = vunpack.c.h.b16 %v3172
    %v3668 = vunpack.c.l.b16 %v3173
    %v3669 = vunpack.c.l.b16 %v3174
    %v3670 = vunpack.c.h.b16 %v3174
    %v3671 = vunpack.c.l.b16 %v3175
    %v3672 = vunpack.c.l.b16 %v3176
    %v3673 = vunpack.c.h.b16 %v3176
    %v3674 = vunpack.c.l.b16 %v3177
    %v3675 = vpack.c.b16 %v3390, %v3387
    %v3676 = vpack.c.b16 %v3391, %v3388
    %v3677 = vpack.c.b16 %v3392, %v3389
    %v3678 = vpack.c.b16 %v3396, %v3393
    %v3679 = vpack.c.b16 %v3397, %v3394
    %v3680 = vpack.c.b16 %v3398, %v3395
    %v3681 = vpack.c.b16 %v3402, %v3399
    %v3682 = vpack.c.b16 %v3403, %v3400
    %v3683 = vpack.c.b16 %v3404, %v3401
    %v3684 = vpack.c.b16 %v3408, %v3405
    %v3685 = vpack.c.b16 %v3409, %v3406
    %v3686 = vpack.c.b16 %v3410, %v3407
    %v3687 = vpack.c.b16 %v3414, %v3411
    %v3688 = vpack.c.b16 %v3415, %v3412
    %v3689 = vpack.c.b16 %v3416, %v3413
    %v3690 = vpack.c.b16 %v3420, %v3417
    %v3691 = vpack.c.b16 %v3421, %v3418
    %v3692 = vpack.c.b16 %v3422, %v3419
    %v3693 = vpack.c.b16 %v3426, %v3423
    %v3694 = vpack.c.b16 %v3427, %v3424
    %v3695 = vpack.c.b16 %v3428, %v3425
    %v3696 = vpack.c.b16 %v3432, %v3429
    %v3697 = vpack.c.b16 %v3433, %v3430
    %v3698 = vpack.c.b16 %v3434, %v3431
    %v3699 = vpack.c.b16 %v3438, %v3435
    %v3700 = vpack.c.b16 %v3439, %v3436
    %v3701 = vpack.c.b16 %v3440, %v3437
    %v3702 = vpack.c.b16 %v3444, %v3441
    %v3703 = vpack.c.b16 %v3445, %v3442
    %v3704 = vpack.c.b16 %v3446, %v3443
    %v3705 = vpack.c.b16 %v3450, %v3447
    %v3706 = vpack.c.b16 %v3451, %v3448
    %v3707 = vpack.c.b16 %v3452, %v3449
    %v3708 = vpack.c.b16 %v3456, %v3453
    %v3709 = vpack.c.b16 %v3457, %v3454
    %v3710 = vpack.c.b16 %v3458, %v3455
    %v3711 = vpack.c.b16 %v3462, %v3459
    %v3712 = vpack.c.b16 %v3463, %v3460
    %v3713 = vpack.c.b16 %v3464, %v3461
    %v3714 = vpack.c.b16 %v3468, %v3465
    %v3715 = vpack.c.b16 %v3469, %v3466
    %v3716 = vpack.c.b16 %v3470, %v3467
    %v3717 = vpack.c.b16 %v3474, %v3471
    %v3718 = vpack.c.b16 %v3475, %v3472
    %v3719 = vpack.c.b16 %v3476, %v3473
    %v3720 = vpack.c.b16 %v3480, %v3477
    %v3721 = vpack.c.b16 %v3481, %v3478
    %v3722 = vpack.c.b16 %v3482, %v3479
    %v3723 = vpack.c.b16 %v3486, %v3483
    %v3724 = vpack.c.b16 %v3487, %v3484
    %v3725 = vpack.c.b16 %v3488, %v3485
    %v3726 = vpack.c.b16 %v3492, %v3489
    %v3727 = vpack.c.b16 %v3493, %v3490
    %v3728 = vpack.c.b16 %v3494, %v3491
    %v3729 = vpack.c.b16 %v3498, %v3495
    %v3730 = vpack.c.b16 %v3499, %v3496
    %v3731 = vpack.c.b16 %v3500, %v3497
    %v3732 = vpack.c.b16 %v3504, %v3501
    %v3733 = vpack.c.b16 %v3505, %v3502
    %v3734 = vpack.c.b16 %v3506, %v3503
    %v3735 = vpack.c.b16 %v3510, %v3507
    %v3736 = vpack.c.b16 %v3511, %v3508
    %v3737 = vpack.c.b16 %v3512, %v3509
    %v3738 = vpack.c.b16 %v3516, %v3513
    %v3739 = vpack.c.b16 %v3517, %v3514
    %v3740 = vpack.c.b16 %v3518, %v3515
    %v3741 = vpack.c.b16 %v3522, %v3519
    %v3742 = vpack.c.b16 %v3523, %v3520
    %v3743 = vpack.c.b16 %v3524, %v3521
    %v3744 = vpack.c.b16 %v3528, %v3525
    %v3745 = vpack.c.b16 %v3529, %v3526
    %v3746 = vpack.c.b16 %v3530, %v3527
    %v3747 = vpack.c.b16 %v3534, %v3531
    %v3748 = vpack.c.b16 %v3535, %v3532
    %v3749 = vpack.c.b16 %v3536, %v3533
    %v3750 = vpack.c.b16 %v3540, %v3537
    %v3751 = vpack.c.b16 %v3541, %v3538
    %v3752 = vpack.c.b16 %v3542, %v3539
    %v3753 = vpack.c.b16 %v3546, %v3543
    %v3754 = vpack.c.b16 %v3547, %v3544
    %v3755 = vpack.c.b16 %v3548, %v3545
    %v3756 = vpack.c.b16 %v3552, %v3549
    %v3757 = vpack.c.b16 %v3553, %v3550
    %v3758 = vpack.c.b16 %v3554, %v3551
    %v3759 = vpack.c.b16 %v3558, %v3555
    %v3760 = vpack.c.b16 %v3559, %v3556
    %v3761 = vpack.c.b16 %v3560, %v3557
    %v3762 = vpack.c.b16 %v3564, %v3561
    %v3763 = vpack.c.b16 %v3565, %v3562
    %v3764 = vpack.c.b16 %v3566, %v3563
    %v3765 = vpack.c.b16 %v3570, %v3567
    %v3766 = vpack.c.b16 %v3571, %v3568
    %v3767 = vpack.c.b16 %v3572, %v3569
    %v3768 = vpack.c.b16 %v3576, %v3573
    %v3769 = vpack.c.b16 %v3577, %v3574
    %v3770 = vpack.c.b16 %v3578, %v3575
    %v3771 = vpack.c.b16 %v3582, %v3579
    %v3772 = vpack.c.b16 %v3583, %v3580
    %v3773 = vpack.c.b16 %v3584, %v3581
    %v3774 = vpack.c.b16 %v3588, %v3585
    %v3775 = vpack.c.b16 %v3589, %v3586
    %v3776 = vpack.c.b16 %v3590, %v3587
    %v3777 = vpack.c.b16 %v3594, %v3591
    %v3778 = vpack.c.b16 %v3595, %v3592
    %v3779 = vpack.c.b16 %v3596, %v3593
    %v3780 = vpack.c.b16 %v3600, %v3597
    %v3781 = vpack.c.b16 %v3601, %v3598
    %v3782 = vpack.c.b16 %v3602, %v3599
    %v3783 = vpack.c.b16 %v3606, %v3603
    %v3784 = vpack.c.b16 %v3607, %v3604
    %v3785 = vpack.c.b16 %v3608, %v3605
    %v3786 = vpack.c.b16 %v3612, %v3609
    %v3787 = vpack.c.b16 %v3613, %v3610
    %v3788 = vpack.c.b16 %v3614, %v3611
    %v3789 = vpack.c.b16 %v3618, %v3615
    %v3790 = vpack.c.b16 %v3619, %v3616
    %v3791 = vpack.c.b16 %v3620, %v3617
    %v3792 = vpack.c.b16 %v3624, %v3621
    %v3793 = vpack.c.b16 %v3625, %v3622
    %v3794 = vpack.c.b16 %v3626, %v3623
    %v3795 = vpack.c.b16 %v3630, %v3627
    %v3796 = vpack.c.b16 %v3631, %v3628
    %v3797 = vpack.c.b16 %v3632, %v3629
    %v3798 = vpack.c.b16 %v3636, %v3633
    %v3799 = vpack.c.b16 %v3637, %v3634
    %v3800 = vpack.c.b16 %v3638, %v3635
    %v3801 = vpack.c.b16 %v3642, %v3639
    %v3802 = vpack.c.b16 %v3643, %v3640
    %v3803 = vpack.c.b16 %v3644, %v3641
    %v3804 = vpack.c.b16 %v3648, %v3645
    %v3805 = vpack.c.b16 %v3649, %v3646
    %v3806 = vpack.c.b16 %v3650, %v3647
    %v3807 = vpack.c.b16 %v3654, %v3651
    %v3808 = vpack.c.b16 %v3655, %v3652
    %v3809 = vpack.c.b16 %v3656, %v3653
    %v3810 = vpack.c.b16 %v3660, %v3657
    %v3811 = vpack.c.b16 %v3661, %v3658
    %v3812 = vpack.c.b16 %v3662, %v3659
    %v3813 = vpack.c.b16 %v3666, %v3663
    %v3814 = vpack.c.b16 %v3667, %v3664
    %v3815 = vpack.c.b16 %v3668, %v3665
    %v3816 = vpack.c.b16 %v3672, %v3669
    %v3817 = vpack.c.b16 %v3673, %v3670
    %v3818 = vpack.c.b16 %v3674, %v3671
    %3963 = vmatprep.subr.bf16.mxu0 %v3676
    %3964 = vmatpush1.bf16.msra.mxu0 %v3675
    %3965 = vmatprep.subr.bf16.mxu0 %v3679
    %3966 = vmatpush1.bf16.msra.mxu0 %v3678
    %3967 = vmatprep.subr.bf16.mxu0 %v3682
    %3968 = vmatpush1.bf16.msra.mxu0 %v3681
    %3969 = vmatprep.subr.bf16.mxu0 %v3685
    %3970 = vmatpush1.bf16.msra.mxu0 %v3684
    %3971 = vmatprep.subr.bf16.mxu0 %v3688
    %3972 = vmatpush1.bf16.msra.mxu0 %v3687
    %3973 = vmatprep.subr.bf16.mxu0 %v3691
    %3974 = vmatpush1.bf16.msra.mxu0 %v3690
    %3975 = vmatprep.subr.bf16.mxu0 %v3694
    %3976 = vmatpush1.bf16.msra.mxu0 %v3693
    %3977 = vmatprep.subr.bf16.mxu0 %v3697
    %3978 = vmatpush1.bf16.msra.mxu0 %v3696
    %3979 = vmatprep.subr.bf16.mxu0 %v3700
    %3980 = vmatpush1.bf16.msra.mxu0 %v3699
    %3981 = vmatprep.subr.bf16.mxu0 %v3703
    %3982 = vmatpush1.bf16.msra.mxu0 %v3702
    %3983 = vmatprep.subr.bf16.mxu0 %v3706
    %3984 = vmatpush1.bf16.msra.mxu0 %v3705
    %3985 = vmatprep.subr.bf16.mxu0 %v3709
    %3986 = vmatpush1.bf16.msra.mxu0 %v3708
    %3987 = vmatprep.subr.bf16.mxu0 %v3712
    %3988 = vmatpush1.bf16.msra.mxu0 %v3711
    %3989 = vmatprep.subr.bf16.mxu0 %v3715
    %3990 = vmatpush1.bf16.msra.mxu0 %v3714
    %3991 = vmatprep.subr.bf16.mxu0 %v3718
    %3992 = vmatpush1.bf16.msra.mxu0 %v3717
    %3993 = vmatprep.subr.bf16.mxu0 %v3721
    %3994 = vmatpush1.bf16.msra.mxu0 %v3720
    %3995 = vmatprep.mubr.bf16.mxu0 %v2981
    %3996 = vmatmul.mubr.bf16.gmra.mrb[0].mxu0 %v2980
    %v3997 = vpop.f32.mrb[0].mxu0
    %v3998 = vadd.f32 %v3183, %v3997
    %v3999 = vpop.f32.mrb[0].mxu0
    %v4000 = vadd.f32 %v3187, %v3999
    %v4001 = vpop.f32.mrb[0].mxu0
    %v4002 = vadd.f32 %v3183, %v4001
    %v4003 = vpop.f32.mrb[0].mxu0
    %v4004 = vadd.f32 %v3187, %v4003
    %4005 = vdwg.mxu0
    %4006 = vmatprep.subr.bf16.mxu0 %v3724
    %4007 = vmatpush1.bf16.msra.mxu0 %v3723
    %4008 = vmatprep.subr.bf16.mxu0 %v3727
    %4009 = vmatpush1.bf16.msra.mxu0 %v3726
    %4010 = vmatprep.subr.bf16.mxu0 %v3730
    %4011 = vmatpush1.bf16.msra.mxu0 %v3729
    %4012 = vmatprep.subr.bf16.mxu0 %v3733
    %4013 = vmatpush1.bf16.msra.mxu0 %v3732
    %4014 = vmatprep.subr.bf16.mxu0 %v3736
    %4015 = vmatpush1.bf16.msra.mxu0 %v3735
    %4016 = vmatprep.subr.bf16.mxu0 %v3739
    %4017 = vmatpush1.bf16.msra.mxu0 %v3738
    %4018 = vmatprep.subr.bf16.mxu0 %v3742
    %4019 = vmatpush1.bf16.msra.mxu0 %v3741
    %4020 = vmatprep.subr.bf16.mxu0 %v3745
    %4021 = vmatpush1.bf16.msra.mxu0 %v3744
    %4022 = vmatprep.subr.bf16.mxu0 %v3748
    %4023 = vmatpush1.bf16.msra.mxu0 %v3747
    %4024 = vmatprep.subr.bf16.mxu0 %v3751
    %4025 = vmatpush1.bf16.msra.mxu0 %v3750
    %4026 = vmatprep.subr.bf16.mxu0 %v3754
    %4027 = vmatpush1.bf16.msra.mxu0 %v3753
    %4028 = vmatprep.subr.bf16.mxu0 %v3757
    %4029 = vmatpush1.bf16.msra.mxu0 %v3756
    %4030 = vmatprep.subr.bf16.mxu0 %v3760
    %4031 = vmatpush1.bf16.msra.mxu0 %v3759
    %4032 = vmatprep.subr.bf16.mxu0 %v3763
    %4033 = vmatpush1.bf16.msra.mxu0 %v3762
    %4034 = vmatprep.subr.bf16.mxu0 %v3766
    %4035 = vmatpush1.bf16.msra.mxu0 %v3765
    %4036 = vmatprep.subr.bf16.mxu0 %v3769
    %4037 = vmatpush1.bf16.msra.mxu0 %v3768
    %4038 = vmatprep.mubr.bf16.mxu0 %v2983
    %4039 = vmatmul.mubr.bf16.gmra.mrb[0].mxu0 %v2982
    %v4040 = vpop.f32.mrb[0].mxu0
    %v4041 = vadd.f32 %v3998, %v4040
    %v4042 = vpop.f32.mrb[0].mxu0
    %v4043 = vadd.f32 %v4000, %v4042
    %v4044 = vpop.f32.mrb[0].mxu0
    %v4045 = vadd.f32 %v4002, %v4044
    %v4046 = vpop.f32.mrb[0].mxu0
    %v4047 = vadd.f32 %v4004, %v4046
    %4048 = vdwg.mxu0
    %4049 = vmatprep.subr.bf16.mxu0 %v3772
    %4050 = vmatpush1.bf16.msra.mxu0 %v3771
    %4051 = vmatprep.subr.bf16.mxu0 %v3775
    %4052 = vmatpush1.bf16.msra.mxu0 %v3774
    %4053 = vmatprep.subr.bf16.mxu0 %v3778
    %4054 = vmatpush1.bf16.msra.mxu0 %v3777
    %4055 = vmatprep.subr.bf16.mxu0 %v3781
    %4056 = vmatpush1.bf16.msra.mxu0 %v3780
    %4057 = vmatprep.subr.bf16.mxu0 %v3784
    %4058 = vmatpush1.bf16.msra.mxu0 %v3783
    %4059 = vmatprep.subr.bf16.mxu0 %v3787
    %4060 = vmatpush1.bf16.msra.mxu0 %v3786
    %4061 = vmatprep.subr.bf16.mxu0 %v3790
    %4062 = vmatpush1.bf16.msra.mxu0 %v3789
    %4063 = vmatprep.subr.bf16.mxu0 %v3793
    %4064 = vmatpush1.bf16.msra.mxu0 %v3792
    %4065 = vmatprep.subr.bf16.mxu0 %v3796
    %4066 = vmatpush1.bf16.msra.mxu0 %v3795
    %4067 = vmatprep.subr.bf16.mxu0 %v3799
    %4068 = vmatpush1.bf16.msra.mxu0 %v3798
    %4069 = vmatprep.subr.bf16.mxu0 %v3802
    %4070 = vmatpush1.bf16.msra.mxu0 %v3801
    %4071 = vmatprep.subr.bf16.mxu0 %v3805
    %4072 = vmatpush1.bf16.msra.mxu0 %v3804
    %4073 = vmatprep.subr.bf16.mxu0 %v3808
    %4074 = vmatpush1.bf16.msra.mxu0 %v3807
    %4075 = vmatprep.subr.bf16.mxu0 %v3811
    %4076 = vmatpush1.bf16.msra.mxu0 %v3810
    %4077 = vmatprep.subr.bf16.mxu0 %v3814
    %4078 = vmatpush1.bf16.msra.mxu0 %v3813
    %4079 = vmatprep.subr.bf16.mxu0 %v3817
    %4080 = vmatpush1.bf16.msra.mxu0 %v3816
    %4081 = vmatprep.mubr.bf16.mxu0 %v2985
    %4082 = vmatmul.mubr.bf16.gmra.mrb[0].mxu0 %v2984
    %v4083 = vpop.f32.mrb[0].mxu0
    %v4084 = vadd.f32 %v4041, %v4083
    %v4085 = vpop.f32.mrb[0].mxu0
    %v4086 = vadd.f32 %v4043, %v4085
    %v4087 = vpop.f32.mrb[0].mxu0
    %v4088 = vadd.f32 %v4045, %v4087
    %v4089 = vpop.f32.mrb[0].mxu0
    %v4090 = vadd.f32 %v4047, %v4089
    %4091 = vdwg.mxu0
    %4092 = vmatprep.subr.bf16.mxu0 0
    %4093 = vmatpush1.bf16.msra.mxu0 %v3677
    %4094 = vmatprep.subr.bf16.mxu0 0
    %4095 = vmatpush1.bf16.msra.mxu0 %v3680
    %4096 = vmatprep.subr.bf16.mxu0 0
    %4097 = vmatpush1.bf16.msra.mxu0 %v3683
    %4098 = vmatprep.subr.bf16.mxu0 0
    %4099 = vmatpush1.bf16.msra.mxu0 %v3686
    %4100 = vmatprep.subr.bf16.mxu0 0
    %4101 = vmatpush1.bf16.msra.mxu0 %v3689
    %4102 = vmatprep.subr.bf16.mxu0 0
    %4103 = vmatpush1.bf16.msra.mxu0 %v3692
    %4104 = vmatprep.subr.bf16.mxu0 0
    %4105 = vmatpush1.bf16.msra.mxu0 %v3695
    %4106 = vmatprep.subr.bf16.mxu0 0
    %4107 = vmatpush1.bf16.msra.mxu0 %v3698
    %4108 = vmatprep.subr.bf16.mxu0 0
    %4109 = vmatpush1.bf16.msra.mxu0 %v3701
    %4110 = vmatprep.subr.bf16.mxu0 0
    %4111 = vmatpush1.bf16.msra.mxu0 %v3704
    %4112 = vmatprep.subr.bf16.mxu0 0
    %4113 = vmatpush1.bf16.msra.mxu0 %v3707
    %4114 = vmatprep.subr.bf16.mxu0 0
    %4115 = vmatpush1.bf16.msra.mxu0 %v3710
    %4116 = vmatprep.subr.bf16.mxu0 0
    %4117 = vmatpush1.bf16.msra.mxu0 %v3713
    %4118 = vmatprep.subr.bf16.mxu0 0
    %4119 = vmatpush1.bf16.msra.mxu0 %v3716
    %4120 = vmatprep.subr.bf16.mxu0 0
    %4121 = vmatpush1.bf16.msra.mxu0 %v3719
    %4122 = vmatprep.subr.bf16.mxu0 0
    %4123 = vmatpush1.bf16.msra.mxu0 %v3722
    %4124 = vmatprep.mubr.bf16.mxu0 %v2981
    %4125 = vmatmul.mubr.bf16.gmra.mrb[0].mxu0 %v2980
    %v4126 = vpop.f32.mrb[0].mxu0
    %v4127 = vadd.f32 %v3191, %v4126
    %v4128 = vpop.f32.mrb[0].mxu0
    %v4129 = vpop.f32.mrb[0].mxu0
    %v4130 = vadd.f32 %v3191, %v4129
    %v4131 = vpop.f32.mrb[0].mxu0
    %4132 = vdwg.mxu0
    %4133 = vmatprep.subr.bf16.mxu0 0
    %4134 = vmatpush1.bf16.msra.mxu0 %v3725
    %4135 = vmatprep.subr.bf16.mxu0 0
    %4136 = vmatpush1.bf16.msra.mxu0 %v3728
    %4137 = vmatprep.subr.bf16.mxu0 0
    %4138 = vmatpush1.bf16.msra.mxu0 %v3731
    %4139 = vmatprep.subr.bf16.mxu0 0
    %4140 = vmatpush1.bf16.msra.mxu0 %v3734
    %4141 = vmatprep.subr.bf16.mxu0 0
    %4142 = vmatpush1.bf16.msra.mxu0 %v3737
    %4143 = vmatprep.subr.bf16.mxu0 0
    %4144 = vmatpush1.bf16.msra.mxu0 %v3740
    %4145 = vmatprep.subr.bf16.mxu0 0
    %4146 = vmatpush1.bf16.msra.mxu0 %v3743
    %4147 = vmatprep.subr.bf16.mxu0 0
    %4148 = vmatpush1.bf16.msra.mxu0 %v3746
    %4149 = vmatprep.subr.bf16.mxu0 0
    %4150 = vmatpush1.bf16.msra.mxu0 %v3749
    %4151 = vmatprep.subr.bf16.mxu0 0
    %4152 = vmatpush1.bf16.msra.mxu0 %v3752
    %4153 = vmatprep.subr.bf16.mxu0 0
    %4154 = vmatpush1.bf16.msra.mxu0 %v3755
    %4155 = vmatprep.subr.bf16.mxu0 0
    %4156 = vmatpush1.bf16.msra.mxu0 %v3758
    %4157 = vmatprep.subr.bf16.mxu0 0
    %4158 = vmatpush1.bf16.msra.mxu0 %v3761
    %4159 = vmatprep.subr.bf16.mxu0 0
    %4160 = vmatpush1.bf16.msra.mxu0 %v3764
    %4161 = vmatprep.subr.bf16.mxu0 0
    %4162 = vmatpush1.bf16.msra.mxu0 %v3767
    %4163 = vmatprep.subr.bf16.mxu0 0
    %4164 = vmatpush1.bf16.msra.mxu0 %v3770
    %4165 = vmatprep.mubr.bf16.mxu0 %v2983
    %4166 = vmatmul.mubr.bf16.gmra.mrb[0].mxu0 %v2982
    %v4167 = vpop.f32.mrb[0].mxu0
    %v4168 = vadd.f32 %v4127, %v4167
    %v4169 = vpop.f32.mrb[0].mxu0
    %v4170 = vpop.f32.mrb[0].mxu0
    %v4171 = vadd.f32 %v4130, %v4170
    %v4172 = vpop.f32.mrb[0].mxu0
    %4173 = vdwg.mxu0
    %4174 = vmatprep.subr.bf16.mxu0 0
    %4175 = vmatpush1.bf16.msra.mxu0 %v3773
    %4176 = vmatprep.subr.bf16.mxu0 0
    %4177 = vmatpush1.bf16.msra.mxu0 %v3776
    %4178 = vmatprep.subr.bf16.mxu0 0
    %4179 = vmatpush1.bf16.msra.mxu0 %v3779
    %4180 = vmatprep.subr.bf16.mxu0 0
    %4181 = vmatpush1.bf16.msra.mxu0 %v3782
    %4182 = vmatprep.subr.bf16.mxu0 0
    %4183 = vmatpush1.bf16.msra.mxu0 %v3785
    %4184 = vmatprep.subr.bf16.mxu0 0
    %4185 = vmatpush1.bf16.msra.mxu0 %v3788
    %4186 = vmatprep.subr.bf16.mxu0 0
    %4187 = vmatpush1.bf16.msra.mxu0 %v3791
    %4188 = vmatprep.subr.bf16.mxu0 0
    %4189 = vmatpush1.bf16.msra.mxu0 %v3794
    %4190 = vmatprep.subr.bf16.mxu0 0
    %4191 = vmatpush1.bf16.msra.mxu0 %v3797
    %4192 = vmatprep.subr.bf16.mxu0 0
    %4193 = vmatpush1.bf16.msra.mxu0 %v3800
    %4194 = vmatprep.subr.bf16.mxu0 0
    %4195 = vmatpush1.bf16.msra.mxu0 %v3803
    %4196 = vmatprep.subr.bf16.mxu0 0
    %4197 = vmatpush1.bf16.msra.mxu0 %v3806
    %4198 = vmatprep.subr.bf16.mxu0 0
    %4199 = vmatpush1.bf16.msra.mxu0 %v3809
    %4200 = vmatprep.subr.bf16.mxu0 0
    %4201 = vmatpush1.bf16.msra.mxu0 %v3812
    %4202 = vmatprep.subr.bf16.mxu0 0
    %4203 = vmatpush1.bf16.msra.mxu0 %v3815
    %4204 = vmatprep.subr.bf16.mxu0 0
    %4205 = vmatpush1.bf16.msra.mxu0 %v3818
    %4206 = vmatprep.mubr.bf16.mxu0 %v2985
    %4207 = vmatmul.mubr.bf16.gmra.mrb[0].mxu0 %v2984
    %v4208 = vpop.f32.mrb[0].mxu0
    %v4209 = vadd.f32 %v4168, %v4208
    %v4210 = vpop.f32.mrb[0].mxu0
    %v4211 = vpop.f32.mrb[0].mxu0
    %v4212 = vadd.f32 %v4171, %v4211
    %v4213 = vpop.f32.mrb[0].mxu0
    %4214 = vdwg.mxu0
    %v4215 = vld [vmem:[#allocation14] sm:$0x7]
    %v4216 = vld [vmem:[#allocation15] sm:$0x7]
    %v4217 = vadd.f32 %v4084, %v4086
    %v4218 = vadd.f32 %v4217, %v4209
    %4219 = vadd.xlane.f32.xlu0 %v4218
    %v4220 = vpop.xlane.xlu0 %4219
    %v4221 = vadd.f32 %v4088, %v4090
    %v4222 = vadd.f32 %v4221, %v4212
    %4223 = vadd.xlane.f32.xlu0 %v4222
    %v4224 = vpop.xlane.xlu0 %4223
    %v4225 = vrcp.pop 384.0
    %v4226 = vmul.f32 %v4220, %v4225
    %v4227 = vmul.f32 %v4224, %v4225
    %v4228 = vsub.f32 %v4084, %v4226
    %v4229 = vsub.f32 %v4086, %v4226
    %v4230 = vsub.f32 %v4209, %v4226
    %v4231 = vsub.f32 %v4088, %v4227
    %v4232 = vsub.f32 %v4090, %v4227
    %v4233 = vsub.f32 %v4212, %v4227
    %v4234 = vmul.f32 %v4228, %v4228
    %v4235 = vmul.f32 %v4229, %v4229
    %v4236 = vmul.f32 %v4230, %v4230
    %v4237 = vmul.f32 %v4231, %v4231
    %v4238 = vmul.f32 %v4232, %v4232
    %v4239 = vmul.f32 %v4233, %v4233
    %v4240 = vadd.f32 %v4234, %v4235
    %v4241 = vadd.f32 %v4240, %v4236
    %4242 = vadd.xlane.f32.xlu0 %v4241
    %v4243 = vpop.xlane.xlu0 %4242
    %v4244 = vadd.f32 %v4237, %v4238
    %v4245 = vadd.f32 %v4244, %v4239
    %4246 = vadd.xlane.f32.xlu0 %v4245
    %v4247 = vpop.xlane.xlu0 %4246
    %v4248 = vmul.f32 %v4243, %v4225
    %v4249 = vmul.f32 %v4247, %v4225
    %v4250 = vadd.f32 %v4248, 1e-05
    %v4251 = vadd.f32 %v4249, 1e-05
    %v4252 = vrsqrt.pop %v4250
    %v4253 = vrsqrt.pop %v4251
    %v4254 = vmul.f32 %v4228, %v4252
    %v4255 = vmul.f32 %v4229, %v4252
    %v4256 = vmul.f32 %v4230, %v4252
    %v4257 = vmul.f32 %v4231, %v4253
    %v4258 = vmul.f32 %v4232, %v4253
    %v4259 = vmul.f32 %v4233, %v4253
    %v4261 = vlaneseq
    %v4262 = vshrl.u32 %v4261, 7
    %v4263 = vsub.s32 0, %v4262
    %v4264 = vrot.slane %v4215, %v4263
    %v4265 = vlaneseq
    %v4266 = vshrl.u32 %v4265, 7
    %v4267 = vsub.s32 1, %v4266
    %v4268 = vrot.slane %v4215, %v4267
    %v4269 = vlaneseq
    %v4270 = vshrl.u32 %v4269, 7
    %v4271 = vsub.s32 2, %v4270
    %v4272 = vrot.slane %v4215, %v4271
    %v4276 = vmul.f32 %v4254, %v4264
    %v4277 = vmul.f32 %v4255, %v4268
    %v4278 = vmul.f32 %v4256, %v4272
    %v4279 = vmul.f32 %v4257, %v4264
    %v4280 = vmul.f32 %v4258, %v4268
    %v4281 = vmul.f32 %v4259, %v4272
    %v4283 = vlaneseq
    %v4284 = vshrl.u32 %v4283, 7
    %v4285 = vsub.s32 0, %v4284
    %v4286 = vrot.slane %v4216, %v4285
    %v4287 = vlaneseq
    %v4288 = vshrl.u32 %v4287, 7
    %v4289 = vsub.s32 1, %v4288
    %v4290 = vrot.slane %v4216, %v4289
    %v4291 = vlaneseq
    %v4292 = vshrl.u32 %v4291, 7
    %v4293 = vsub.s32 2, %v4292
    %v4294 = vrot.slane %v4216, %v4293
    %v4298 = vadd.f32 %v4276, %v4286
    %v4299 = vadd.f32 %v4277, %v4290
    %v4300 = vadd.f32 %v4278, %v4294
    %v4301 = vadd.f32 %v4279, %v4286
    %v4302 = vadd.f32 %v4280, %v4290
    %v4303 = vadd.f32 %v4281, %v4294
    %v4304 = vmax.f32 %v4298, 0.0
    %v4305 = vmax.f32 %v4299, 0.0
    %v4306 = vmax.f32 %v4300, 0.0
    %v4307 = vmax.f32 %v4301, 0.0
    %v4308 = vmax.f32 %v4302, 0.0
    %v4309 = vmax.f32 %v4303, 0.0
    %v4310 = vld [vmem:[#allocation17] sm:$0x7]
    %v4312 = vlaneseq
    %v4313 = vshrl.u32 %v4312, 7
    %v4314 = vsub.s32 0, %v4313
    %v4315 = vrot.slane %v4310, %v4314
    %v4316 = vlaneseq
    %v4317 = vshrl.u32 %v4316, 7
    %v4318 = vsub.s32 1, %v4317
    %v4319 = vrot.slane %v4310, %v4318
    %v4320 = vlaneseq
    %v4321 = vshrl.u32 %v4320, 7
    %v4322 = vsub.s32 2, %v4321
    %v4323 = vrot.slane %v4310, %v4322
    %v4327 = vmul.f32 %v4304, %v4315
    %v4328 = vmul.f32 %v4305, %v4319
    %v4329 = vmul.f32 %v4306, %v4323
    %v4330 = vmul.f32 %v4307, %v4315
    %v4331 = vmul.f32 %v4308, %v4319
    %v4332 = vmul.f32 %v4309, %v4323
    %v4333 = vadd.f32 %v4327, %v4328
    %v4334 = vadd.f32 %v4333, %v4329
    %4335 = vadd.xlane.f32.xlu0 %v4334
    %v4336 = vpop.xlane.xlu0 %4335
    %v4337 = vadd.f32 %v4330, %v4331
    %v4338 = vadd.f32 %v4337, %v4332
    %4339 = vadd.xlane.f32.xlu0 %v4338
    %v4340 = vpop.xlane.xlu0 %4339
    %v4341 = vld [vmem:[#allocation2] sm:$0x1]
    %v4343 = vlaneseq
    %v4344 = vshrl.u32 %v4343, 7
    %v4345 = vsub.s32 0, %v4344
    %v4346 = vrot.slane %v4341, %v4345
    %4347 = vset.pattern.permute.xlu0 0
    %4348 = vperm.xlu0 %4347, %v4346
    %v4349 = vpop.permute.xlu0 %4348
    %v4351 = vadd.f32 %v4336, %v4349
    %v4352 = vadd.f32 %v4340, %v4349
    %v4353 = vlaneseq
    %v4354 = vshrl.u32 %v4353, 7
    %v4355 = vsub.s32 0, %v4354
    %v4356 = vrot.slane %v271, %v4355
    %4358 = vbcast.lane.b32.xlu0 %v4356, 256
    %v4359 = vpop.permute.xlu0 %4358
    %v4360 = vlaneseq
    %v4361 = vshrl.u32 %v4360, 7
    %v4362 = vsub.s32 1, %v4361
    %v4363 = vrot.slane %v271, %v4362
    %4365 = vbcast.lane.b32.xlu0 %v4363, 256
    %v4366 = vpop.permute.xlu0 %4365
    %v4369 = vadd.f32 %v4351, %v4359
    %v4370 = vadd.f32 %v4352, %v4366
    %v4371 = vmax.f32 %v4369, -30.0
    %v4372 = vmax.f32 %v4370, -30.0
    %v4373 = vmin.f32 %v4371, 30.0
    %v4374 = vmin.f32 %v4372, 30.0
    %v4375 = vsub.f32 0.0, %v4373
    %v4376 = vsub.f32 0.0, %v4374
    %v4377 = vmul.f32 %v4375, 1.442695
    %v4378 = vpow.pop %v4377
    %v4379 = vmul.f32 %v4376, 1.442695
    %v4380 = vpow.pop %v4379
    %v4381 = vadd.f32 %v4378, 1.0
    %v4382 = vadd.f32 %v4380, 1.0
    %v4383 = vrcp.pop %v4381
    %v4384 = vrcp.pop %v4382
    %4387 = vset.pattern.permute.xlu0 0
    %4388 = vperm.xlu0 %4387, %v4383
    %v4389 = vpop.permute.xlu0 %4388
    %4390 = vset.pattern.permute.xlu0 0
    %4391 = vperm.xlu0 %4390, %v4384
    %v4392 = vpop.permute.xlu0 %4391
    %v4393 = vlaneseq
    %v4394 = vand.u32 %v4393, 127
    %v4395 = vlaneseq
    %v4396 = vshrl.u32 %v4395, 7
    %v4397 = vsub.s32 %v4394, %v4396
    %v4398 = vrot.slane %v4389, %v4397
    %v4399 = vlaneseq
    %v4400 = vshrl.u32 %v4399, 7
    %v4401 = vsub.s32 %v4394, %v4400
    %v4402 = vrot.slane %v4392, %v4401
    %vm4403 = vcmask 1041409
    %v4404 = vsel %vm4403, %v4402, %v4398
    %vm4406 = vcmask 58368
    %4407 = vst.msk [vmem:[#allocation28] sm:$0x3] %vm4406, %v4404
    %v4410 = vmul.f32 %v259, %v4389
    %v4411 = vmul.f32 %v260, %v4389
    %v4412 = vmul.f32 %v261, %v4389
    %v4413 = vmul.f32 %v262, %v4389
    %v4414 = vmul.f32 %v263, %v4389
    %v4415 = vmul.f32 %v264, %v4389
    %v4416 = vmul.f32 %v265, %v4392
    %v4417 = vmul.f32 %v266, %v4392
    %v4418 = vmul.f32 %v267, %v4392
    %v4419 = vmul.f32 %v268, %v4392
    %v4420 = vmul.f32 %v269, %v4392
    %v4421 = vmul.f32 %v270, %v4392
    %v4422 = vrot.slane %v4410, 4
    %v4423 = vadd.f32 %v4410, %v4422
    %v4424 = vrot.slane %v4423, 2
    %v4425 = vadd.f32 %v4423, %v4424
    %v4426 = vrot.slane %v4425, 1
    %v4427 = vadd.f32 %v4425, %v4426
    %v4428 = vrot.slane %v4411, 4
    %v4429 = vadd.f32 %v4411, %v4428
    %v4430 = vrot.slane %v4429, 2
    %v4431 = vadd.f32 %v4429, %v4430
    %v4432 = vrot.slane %v4431, 1
    %v4433 = vadd.f32 %v4431, %v4432
    %v4434 = vrot.slane %v4412, 4
    %v4435 = vadd.f32 %v4412, %v4434
    %v4436 = vrot.slane %v4435, 2
    %v4437 = vadd.f32 %v4435, %v4436
    %v4438 = vrot.slane %v4437, 1
    %v4439 = vadd.f32 %v4437, %v4438
    %v4440 = vrot.slane %v4413, 4
    %v4441 = vadd.f32 %v4413, %v4440
    %v4442 = vrot.slane %v4441, 2
    %v4443 = vadd.f32 %v4441, %v4442
    %v4444 = vrot.slane %v4443, 1
    %v4445 = vadd.f32 %v4443, %v4444
    %v4446 = vrot.slane %v4414, 4
    %v4447 = vadd.f32 %v4414, %v4446
    %v4448 = vrot.slane %v4447, 2
    %v4449 = vadd.f32 %v4447, %v4448
    %v4450 = vrot.slane %v4449, 1
    %v4451 = vadd.f32 %v4449, %v4450
    %v4452 = vrot.slane %v4415, 4
    %v4453 = vadd.f32 %v4415, %v4452
    %v4454 = vrot.slane %v4453, 2
    %v4455 = vadd.f32 %v4453, %v4454
    %v4456 = vrot.slane %v4455, 1
    %v4457 = vadd.f32 %v4455, %v4456
    %v4458 = vrot.slane %v4416, 4
    %v4459 = vadd.f32 %v4416, %v4458
    %v4460 = vrot.slane %v4459, 2
    %v4461 = vadd.f32 %v4459, %v4460
    %v4462 = vrot.slane %v4461, 1
    %v4463 = vadd.f32 %v4461, %v4462
    %v4464 = vrot.slane %v4417, 4
    %v4465 = vadd.f32 %v4417, %v4464
    %v4466 = vrot.slane %v4465, 2
    %v4467 = vadd.f32 %v4465, %v4466
    %v4468 = vrot.slane %v4467, 1
    %v4469 = vadd.f32 %v4467, %v4468
    %v4470 = vrot.slane %v4418, 4
    %v4471 = vadd.f32 %v4418, %v4470
    %v4472 = vrot.slane %v4471, 2
    %v4473 = vadd.f32 %v4471, %v4472
    %v4474 = vrot.slane %v4473, 1
    %v4475 = vadd.f32 %v4473, %v4474
    %v4476 = vrot.slane %v4419, 4
    %v4477 = vadd.f32 %v4419, %v4476
    %v4478 = vrot.slane %v4477, 2
    %v4479 = vadd.f32 %v4477, %v4478
    %v4480 = vrot.slane %v4479, 1
    %v4481 = vadd.f32 %v4479, %v4480
    %v4482 = vrot.slane %v4420, 4
    %v4483 = vadd.f32 %v4420, %v4482
    %v4484 = vrot.slane %v4483, 2
    %v4485 = vadd.f32 %v4483, %v4484
    %v4486 = vrot.slane %v4485, 1
    %v4487 = vadd.f32 %v4485, %v4486
    %v4488 = vrot.slane %v4421, 4
    %v4489 = vadd.f32 %v4421, %v4488
    %v4490 = vrot.slane %v4489, 2
    %v4491 = vadd.f32 %v4489, %v4490
    %v4492 = vrot.slane %v4491, 1
    %v4493 = vadd.f32 %v4491, %v4492
    %v4494 = vsel %vm4406, %v4404, 0.0
    %4495 = vadd.xlane.f32.xlu0 %v4494
    %v4496 = vpop.xlane.xlu0 %4495
    %v4497 = vadd.f32 %v4496, 1e-10
    %v4498 = vrcp.pop %v4497
    %v4500 = vrot.slane %v4498, 1
    %v4503 = vmul.f32 %v4427, %v4498
    %v4504 = vmul.f32 %v4433, %v4498
    %v4505 = vmul.f32 %v4439, %v4498
    %v4506 = vmul.f32 %v4445, %v4498
    %v4507 = vmul.f32 %v4451, %v4498
    %v4508 = vmul.f32 %v4457, %v4498
    %v4509 = vmul.f32 %v4463, %v4500
    %v4510 = vmul.f32 %v4469, %v4500
    %v4511 = vmul.f32 %v4475, %v4500
    %v4512 = vmul.f32 %v4481, %v4500
    %v4513 = vmul.f32 %v4487, %v4500
    %v4514 = vmul.f32 %v4493, %v4500
    %v4527 = vcombine.low %v4503, %v4504
    %v4528 = vcombine.low %v4505, %v4506
    %v4530 = vunpack.c.l.s4 1983009808
    %v4531 = vunpack.c.0.s8 %v4530
    %v4532 = vlaneseq
    %v4533 = vshrl.u32 %v4532, 7
    %v4534 = vsub.s32 %v4531, %v4533
    %v4535 = vrot.slane %v4527, %v4534
    %v4537 = vunpack.c.l.s4 1983009808
    %v4538 = vunpack.c.0.s8 %v4537
    %v4539 = vlaneseq
    %v4540 = vshrl.u32 %v4539, 7
    %v4541 = vsub.s32 %v4538, %v4540
    %v4542 = vrot.slane %v4528, %v4541
    %v4543 = vcombine.low %v4535, %v4542
    %v4544 = vcombine.low %v4507, %v4508
    %v4546 = vunpack.c.l.s4 1983009808
    %v4547 = vunpack.c.0.s8 %v4546
    %v4548 = vlaneseq
    %v4549 = vshrl.u32 %v4548, 7
    %v4550 = vsub.s32 %v4547, %v4549
    %v4551 = vrot.slane %v4544, %v4550
    %v4552 = vcombine.low %v4509, %v4510
    %v4553 = vcombine.low %v4511, %v4512
    %v4555 = vunpack.c.l.s4 1983009808
    %v4556 = vunpack.c.0.s8 %v4555
    %v4557 = vlaneseq
    %v4558 = vshrl.u32 %v4557, 7
    %v4559 = vsub.s32 %v4556, %v4558
    %v4560 = vrot.slane %v4552, %v4559
    %v4562 = vunpack.c.l.s4 1983009808
    %v4563 = vunpack.c.0.s8 %v4562
    %v4564 = vlaneseq
    %v4565 = vshrl.u32 %v4564, 7
    %v4566 = vsub.s32 %v4563, %v4565
    %v4567 = vrot.slane %v4553, %v4566
    %v4568 = vcombine.low %v4560, %v4567
    %v4569 = vcombine.low %v4513, %v4514
    %v4571 = vunpack.c.l.s4 1983009808
    %v4572 = vunpack.c.0.s8 %v4571
    %v4573 = vlaneseq
    %v4574 = vshrl.u32 %v4573, 7
    %v4575 = vsub.s32 %v4572, %v4574
    %v4576 = vrot.slane %v4569, %v4575
    %vm4577 = vcmask 1044484
    %v4578 = vsel %vm4577, %v4543, %v4543
    %vm4579 = vcmask 1046534
    %v4580 = vsel %vm4579, %v4543, %v4578
    %v4581 = vrot.slane %v4568, 7
    %v4582 = vsel %vm4403, %v4581, %v4580
    %vm4583 = vcmask 1043459
    %v4584 = vsel %vm4583, %v4581, %v4582
    %vm4585 = vcmask 1045509
    %v4586 = vsel %vm4585, %v4581, %v4584
    %vm4587 = vcmask 1047559
    %v4588 = vsel %vm4587, %v4581, %v4586
    %v4589 = vsel %vm4577, %v4551, %v4551
    %v4590 = vsel %vm4579, %v4551, %v4589
    %v4591 = vrot.slane %v4576, 7
    %v4592 = vsel %vm4403, %v4591, %v4590
    %v4593 = vsel %vm4583, %v4591, %v4592
    %v4594 = vsel %vm4585, %v4591, %v4593
    %v4595 = vsel %vm4587, %v4591, %v4594
    %4598 = vst [vmem:[#allocation31] sm:$0xff] %v4588
    %4599 = vst [vmem:[#allocation31 + $0x8] sm:$0xf] %v4595
    %v4600 = vrot.slane %v259, 4
    %v4601 = vadd.f32 %v259, %v4600
    %v4602 = vrot.slane %v4601, 2
    %v4603 = vadd.f32 %v4601, %v4602
    %v4604 = vrot.slane %v4603, 1
    %v4605 = vadd.f32 %v4603, %v4604
    %v4606 = vrot.slane %v260, 4
    %v4607 = vadd.f32 %v260, %v4606
    %v4608 = vrot.slane %v4607, 2
    %v4609 = vadd.f32 %v4607, %v4608
    %v4610 = vrot.slane %v4609, 1
    %v4611 = vadd.f32 %v4609, %v4610
    %v4612 = vrot.slane %v261, 4
    %v4613 = vadd.f32 %v261, %v4612
    %v4614 = vrot.slane %v4613, 2
    %v4615 = vadd.f32 %v4613, %v4614
    %v4616 = vrot.slane %v4615, 1
    %v4617 = vadd.f32 %v4615, %v4616
    %v4618 = vrot.slane %v262, 4
    %v4619 = vadd.f32 %v262, %v4618
    %v4620 = vrot.slane %v4619, 2
    %v4621 = vadd.f32 %v4619, %v4620
    %v4622 = vrot.slane %v4621, 1
    %v4623 = vadd.f32 %v4621, %v4622
    %v4624 = vrot.slane %v263, 4
    %v4625 = vadd.f32 %v263, %v4624
    %v4626 = vrot.slane %v4625, 2
    %v4627 = vadd.f32 %v4625, %v4626
    %v4628 = vrot.slane %v4627, 1
    %v4629 = vadd.f32 %v4627, %v4628
    %v4630 = vrot.slane %v264, 4
    %v4631 = vadd.f32 %v264, %v4630
    %v4632 = vrot.slane %v4631, 2
    %v4633 = vadd.f32 %v4631, %v4632
    %v4634 = vrot.slane %v4633, 1
    %v4635 = vadd.f32 %v4633, %v4634
    %v4636 = vrot.slane %v265, 4
    %v4637 = vadd.f32 %v265, %v4636
    %v4638 = vrot.slane %v4637, 2
    %v4639 = vadd.f32 %v4637, %v4638
    %v4640 = vrot.slane %v4639, 1
    %v4641 = vadd.f32 %v4639, %v4640
    %v4642 = vrot.slane %v266, 4
    %v4643 = vadd.f32 %v266, %v4642
    %v4644 = vrot.slane %v4643, 2
    %v4645 = vadd.f32 %v4643, %v4644
    %v4646 = vrot.slane %v4645, 1
    %v4647 = vadd.f32 %v4645, %v4646
    %v4648 = vrot.slane %v267, 4
    %v4649 = vadd.f32 %v267, %v4648
    %v4650 = vrot.slane %v4649, 2
    %v4651 = vadd.f32 %v4649, %v4650
    %v4652 = vrot.slane %v4651, 1
    %v4653 = vadd.f32 %v4651, %v4652
    %v4654 = vrot.slane %v268, 4
    %v4655 = vadd.f32 %v268, %v4654
    %v4656 = vrot.slane %v4655, 2
    %v4657 = vadd.f32 %v4655, %v4656
    %v4658 = vrot.slane %v4657, 1
    %v4659 = vadd.f32 %v4657, %v4658
    %v4660 = vrot.slane %v269, 4
    %v4661 = vadd.f32 %v269, %v4660
    %v4662 = vrot.slane %v4661, 2
    %v4663 = vadd.f32 %v4661, %v4662
    %v4664 = vrot.slane %v4663, 1
    %v4665 = vadd.f32 %v4663, %v4664
    %v4666 = vrot.slane %v270, 4
    %v4667 = vadd.f32 %v270, %v4666
    %v4668 = vrot.slane %v4667, 2
    %v4669 = vadd.f32 %v4667, %v4668
    %v4670 = vrot.slane %v4669, 1
    %v4671 = vadd.f32 %v4669, %v4670
    %v4672 = vrcp.pop 8.0
    %v4673 = vmul.f32 %v4605, %v4672
    %v4674 = vmul.f32 %v4611, %v4672
    %v4675 = vmul.f32 %v4617, %v4672
    %v4676 = vmul.f32 %v4623, %v4672
    %v4677 = vmul.f32 %v4629, %v4672
    %v4678 = vmul.f32 %v4635, %v4672
    %v4679 = vmul.f32 %v4641, %v4672
    %v4680 = vmul.f32 %v4647, %v4672
    %v4681 = vmul.f32 %v4653, %v4672
    %v4682 = vmul.f32 %v4659, %v4672
    %v4683 = vmul.f32 %v4665, %v4672
    %v4684 = vmul.f32 %v4671, %v4672
    %v4685 = vpack.c.bf16 %v4503, %v4503
    %v4686 = vpack.c.bf16 %v4504, %v4504
    %v4687 = vpack.c.bf16 %v4505, %v4505
    %v4688 = vpack.c.bf16 %v4506, %v4506
    %v4689 = vpack.c.bf16 %v4507, %v4507
    %v4690 = vpack.c.bf16 %v4508, %v4508
    %v4691 = vpack.c.bf16 %v4509, %v4509
    %v4692 = vpack.c.bf16 %v4510, %v4510
    %v4693 = vpack.c.bf16 %v4511, %v4511
    %v4694 = vpack.c.bf16 %v4512, %v4512
    %v4695 = vpack.c.bf16 %v4513, %v4513
    %v4696 = vpack.c.bf16 %v4514, %v4514
    %v4697 = vld [vmem:[#allocation18] sm:$0xff]
    %v4698 = vld [vmem:[#allocation18 + $0x8] sm:$0xf]
    %v4699 = vld [vmem:[#allocation18 + $0xc] sm:$0xff]
    %v4700 = vld [vmem:[#allocation18 + $0x14] sm:$0xf]
    %v4701 = vld [vmem:[#allocation18 + $0x18] sm:$0xff]
    %v4702 = vld [vmem:[#allocation18 + $0x20] sm:$0xf]
    %v4703 = vld [vmem:[#allocation18 + $0x24] sm:$0xff]
    %v4704 = vld [vmem:[#allocation18 + $0x2c] sm:$0xf]
    %v4705 = vld [vmem:[#allocation18 + $0x30] sm:$0xff]
    %v4706 = vld [vmem:[#allocation18 + $0x38] sm:$0xf]
    %v4707 = vld [vmem:[#allocation18 + $0x3c] sm:$0xff]
    %v4708 = vld [vmem:[#allocation18 + $0x44] sm:$0xf]
    %v4709 = vld [vmem:[#allocation18 + $0x48] sm:$0xff]
    %v4710 = vld [vmem:[#allocation18 + $0x50] sm:$0xf]
    %v4711 = vld [vmem:[#allocation18 + $0x54] sm:$0xff]
    %v4712 = vld [vmem:[#allocation18 + $0x5c] sm:$0xf]
    %v4713 = vld [vmem:[#allocation18 + $0x60] sm:$0xff]
    %v4714 = vld [vmem:[#allocation18 + $0x68] sm:$0xf]
    %v4715 = vld [vmem:[#allocation18 + $0x6c] sm:$0xff]
    %v4716 = vld [vmem:[#allocation18 + $0x74] sm:$0xf]
    %v4717 = vld [vmem:[#allocation18 + $0x78] sm:$0xff]
    %v4718 = vld [vmem:[#allocation18 + $0x80] sm:$0xf]
    %v4719 = vld [vmem:[#allocation18 + $0x84] sm:$0xff]
    %v4720 = vld [vmem:[#allocation18 + $0x8c] sm:$0xf]
    %v4721 = vld [vmem:[#allocation18 + $0x90] sm:$0xff]
    %v4722 = vld [vmem:[#allocation18 + $0x98] sm:$0xf]
    %v4723 = vld [vmem:[#allocation18 + $0x9c] sm:$0xff]
    %v4724 = vld [vmem:[#allocation18 + $0xa4] sm:$0xf]
    %v4725 = vld [vmem:[#allocation18 + $0xa8] sm:$0xff]
    %v4726 = vld [vmem:[#allocation18 + $0xb0] sm:$0xf]
    %v4727 = vld [vmem:[#allocation18 + $0xb4] sm:$0xff]
    %v4728 = vld [vmem:[#allocation18 + $0xbc] sm:$0xf]
    %v4729 = vld [vmem:[#allocation18 + $0xc0] sm:$0xff]
    %v4730 = vld [vmem:[#allocation18 + $0xc8] sm:$0xf]
    %v4731 = vld [vmem:[#allocation18 + $0xcc] sm:$0xff]
    %v4732 = vld [vmem:[#allocation18 + $0xd4] sm:$0xf]
    %v4733 = vld [vmem:[#allocation18 + $0xd8] sm:$0xff]
    %v4734 = vld [vmem:[#allocation18 + $0xe0] sm:$0xf]
    %v4735 = vld [vmem:[#allocation18 + $0xe4] sm:$0xff]
    %v4736 = vld [vmem:[#allocation18 + $0xec] sm:$0xf]
    %v4737 = vld [vmem:[#allocation18 + $0xf0] sm:$0xff]
    %v4738 = vld [vmem:[#allocation18 + $0xf8] sm:$0xf]
    %v4739 = vld [vmem:[#allocation18 + $0xfc] sm:$0xff]
    %v4740 = vld [vmem:[#allocation18 + $0x104] sm:$0xf]
    %v4741 = vld [vmem:[#allocation18 + $0x108] sm:$0xff]
    %v4742 = vld [vmem:[#allocation18 + $0x110] sm:$0xf]
    %v4743 = vld [vmem:[#allocation18 + $0x114] sm:$0xff]
    %v4744 = vld [vmem:[#allocation18 + $0x11c] sm:$0xf]
    %v4745 = vld [vmem:[#allocation18 + $0x120] sm:$0xff]
    %v4746 = vld [vmem:[#allocation18 + $0x128] sm:$0xf]
    %v4747 = vld [vmem:[#allocation18 + $0x12c] sm:$0xff]
    %v4748 = vld [vmem:[#allocation18 + $0x134] sm:$0xf]
    %v4749 = vld [vmem:[#allocation18 + $0x138] sm:$0xff]
    %v4750 = vld [vmem:[#allocation18 + $0x140] sm:$0xf]
    %v4751 = vld [vmem:[#allocation18 + $0x144] sm:$0xff]
    %v4752 = vld [vmem:[#allocation18 + $0x14c] sm:$0xf]
    %v4753 = vld [vmem:[#allocation18 + $0x150] sm:$0xff]
    %v4754 = vld [vmem:[#allocation18 + $0x158] sm:$0xf]
    %v4755 = vld [vmem:[#allocation18 + $0x15c] sm:$0xff]
    %v4756 = vld [vmem:[#allocation18 + $0x164] sm:$0xf]
    %v4757 = vld [vmem:[#allocation18 + $0x168] sm:$0xff]
    %v4758 = vld [vmem:[#allocation18 + $0x170] sm:$0xf]
    %v4759 = vld [vmem:[#allocation18 + $0x174] sm:$0xff]
    %v4760 = vld [vmem:[#allocation18 + $0x17c] sm:$0xf]
    %v4761 = vld [vmem:[#allocation18 + $0x180] sm:$0xff]
    %v4762 = vld [vmem:[#allocation18 + $0x188] sm:$0xf]
    %v4763 = vld [vmem:[#allocation18 + $0x18c] sm:$0xff]
    %v4764 = vld [vmem:[#allocation18 + $0x194] sm:$0xf]
    %v4765 = vld [vmem:[#allocation18 + $0x198] sm:$0xff]
    %v4766 = vld [vmem:[#allocation18 + $0x1a0] sm:$0xf]
    %v4767 = vld [vmem:[#allocation18 + $0x1a4] sm:$0xff]
    %v4768 = vld [vmem:[#allocation18 + $0x1ac] sm:$0xf]
    %v4769 = vld [vmem:[#allocation18 + $0x1b0] sm:$0xff]
    %v4770 = vld [vmem:[#allocation18 + $0x1b8] sm:$0xf]
    %v4771 = vld [vmem:[#allocation18 + $0x1bc] sm:$0xff]
    %v4772 = vld [vmem:[#allocation18 + $0x1c4] sm:$0xf]
    %v4773 = vld [vmem:[#allocation18 + $0x1c8] sm:$0xff]
    %v4774 = vld [vmem:[#allocation18 + $0x1d0] sm:$0xf]
    %v4775 = vld [vmem:[#allocation18 + $0x1d4] sm:$0xff]
    %v4776 = vld [vmem:[#allocation18 + $0x1dc] sm:$0xf]
    %v4777 = vld [vmem:[#allocation18 + $0x1e0] sm:$0xff]
    %v4778 = vld [vmem:[#allocation18 + $0x1e8] sm:$0xf]
    %v4779 = vld [vmem:[#allocation18 + $0x1ec] sm:$0xff]
    %v4780 = vld [vmem:[#allocation18 + $0x1f4] sm:$0xf]
    %v4781 = vld [vmem:[#allocation18 + $0x1f8] sm:$0xff]
    %v4782 = vld [vmem:[#allocation18 + $0x200] sm:$0xf]
    %v4783 = vld [vmem:[#allocation18 + $0x204] sm:$0xff]
    %v4784 = vld [vmem:[#allocation18 + $0x20c] sm:$0xf]
    %v4785 = vld [vmem:[#allocation18 + $0x210] sm:$0xff]
    %v4786 = vld [vmem:[#allocation18 + $0x218] sm:$0xf]
    %v4787 = vld [vmem:[#allocation18 + $0x21c] sm:$0xff]
    %v4788 = vld [vmem:[#allocation18 + $0x224] sm:$0xf]
    %v4789 = vld [vmem:[#allocation18 + $0x228] sm:$0xff]
    %v4790 = vld [vmem:[#allocation18 + $0x230] sm:$0xf]
    %v4791 = vld [vmem:[#allocation18 + $0x234] sm:$0xff]
    %v4792 = vld [vmem:[#allocation18 + $0x23c] sm:$0xf]
    %v4793 = vld [vmem:[#allocation18 + $0x240] sm:$0xff]
    %v4794 = vld [vmem:[#allocation18 + $0x248] sm:$0xf]
    %v4795 = vld [vmem:[#allocation18 + $0x24c] sm:$0xff]
    %v4796 = vld [vmem:[#allocation18 + $0x254] sm:$0xf]
    %v4797 = vld [vmem:[#allocation18 + $0x258] sm:$0xff]
    %v4798 = vld [vmem:[#allocation18 + $0x260] sm:$0xf]
    %v4799 = vld [vmem:[#allocation18 + $0x264] sm:$0xff]
    %v4800 = vld [vmem:[#allocation18 + $0x26c] sm:$0xf]
    %v4801 = vld [vmem:[#allocation18 + $0x270] sm:$0xff]
    %v4802 = vld [vmem:[#allocation18 + $0x278] sm:$0xf]
    %v4803 = vld [vmem:[#allocation18 + $0x27c] sm:$0xff]
    %v4804 = vld [vmem:[#allocation18 + $0x284] sm:$0xf]
    %v4805 = vld [vmem:[#allocation18 + $0x288] sm:$0xff]
    %v4806 = vld [vmem:[#allocation18 + $0x290] sm:$0xf]
    %v4807 = vld [vmem:[#allocation18 + $0x294] sm:$0xff]
    %v4808 = vld [vmem:[#allocation18 + $0x29c] sm:$0xf]
    %v4809 = vld [vmem:[#allocation18 + $0x2a0] sm:$0xff]
    %v4810 = vld [vmem:[#allocation18 + $0x2a8] sm:$0xf]
    %v4811 = vld [vmem:[#allocation18 + $0x2ac] sm:$0xff]
    %v4812 = vld [vmem:[#allocation18 + $0x2b4] sm:$0xf]
    %v4813 = vld [vmem:[#allocation18 + $0x2b8] sm:$0xff]
    %v4814 = vld [vmem:[#allocation18 + $0x2c0] sm:$0xf]
    %v4815 = vld [vmem:[#allocation18 + $0x2c4] sm:$0xff]
    %v4816 = vld [vmem:[#allocation18 + $0x2cc] sm:$0xf]
    %v4817 = vld [vmem:[#allocation18 + $0x2d0] sm:$0xff]
    %v4818 = vld [vmem:[#allocation18 + $0x2d8] sm:$0xf]
    %v4819 = vld [vmem:[#allocation18 + $0x2dc] sm:$0xff]
    %v4820 = vld [vmem:[#allocation18 + $0x2e4] sm:$0xf]
    %v4821 = vld [vmem:[#allocation18 + $0x2e8] sm:$0xff]
    %v4822 = vld [vmem:[#allocation18 + $0x2f0] sm:$0xf]
    %v4823 = vld [vmem:[#allocation18 + $0x2f4] sm:$0xff]
    %v4824 = vld [vmem:[#allocation18 + $0x2fc] sm:$0xf]
    %v4825 = vld [vmem:[#allocation18 + $0x300] sm:$0xff]
    %v4826 = vld [vmem:[#allocation18 + $0x308] sm:$0xf]
    %v4827 = vld [vmem:[#allocation18 + $0x30c] sm:$0xff]
    %v4828 = vld [vmem:[#allocation18 + $0x314] sm:$0xf]
    %v4829 = vld [vmem:[#allocation18 + $0x318] sm:$0xff]
    %v4830 = vld [vmem:[#allocation18 + $0x320] sm:$0xf]
    %v4831 = vld [vmem:[#allocation18 + $0x324] sm:$0xff]
    %v4832 = vld [vmem:[#allocation18 + $0x32c] sm:$0xf]
    %v4833 = vld [vmem:[#allocation18 + $0x330] sm:$0xff]
    %v4834 = vld [vmem:[#allocation18 + $0x338] sm:$0xf]
    %v4835 = vld [vmem:[#allocation18 + $0x33c] sm:$0xff]
    %v4836 = vld [vmem:[#allocation18 + $0x344] sm:$0xf]
    %v4837 = vld [vmem:[#allocation18 + $0x348] sm:$0xff]
    %v4838 = vld [vmem:[#allocation18 + $0x350] sm:$0xf]
    %v4839 = vld [vmem:[#allocation18 + $0x354] sm:$0xff]
    %v4840 = vld [vmem:[#allocation18 + $0x35c] sm:$0xf]
    %v4841 = vld [vmem:[#allocation18 + $0x360] sm:$0xff]
    %v4842 = vld [vmem:[#allocation18 + $0x368] sm:$0xf]
    %v4843 = vld [vmem:[#allocation18 + $0x36c] sm:$0xff]
    %v4844 = vld [vmem:[#allocation18 + $0x374] sm:$0xf]
    %v4845 = vld [vmem:[#allocation18 + $0x378] sm:$0xff]
    %v4846 = vld [vmem:[#allocation18 + $0x380] sm:$0xf]
    %v4847 = vld [vmem:[#allocation18 + $0x384] sm:$0xff]
    %v4848 = vld [vmem:[#allocation18 + $0x38c] sm:$0xf]
    %v4849 = vld [vmem:[#allocation18 + $0x390] sm:$0xff]
    %v4850 = vld [vmem:[#allocation18 + $0x398] sm:$0xf]
    %v4851 = vld [vmem:[#allocation18 + $0x39c] sm:$0xff]
    %v4852 = vld [vmem:[#allocation18 + $0x3a4] sm:$0xf]
    %v4853 = vld [vmem:[#allocation18 + $0x3a8] sm:$0xff]
    %v4854 = vld [vmem:[#allocation18 + $0x3b0] sm:$0xf]
    %v4855 = vld [vmem:[#allocation18 + $0x3b4] sm:$0xff]
    %v4856 = vld [vmem:[#allocation18 + $0x3bc] sm:$0xf]
    %v4857 = vld [vmem:[#allocation18 + $0x3c0] sm:$0xff]
    %v4858 = vld [vmem:[#allocation18 + $0x3c8] sm:$0xf]
    %v4859 = vld [vmem:[#allocation18 + $0x3cc] sm:$0xff]
    %v4860 = vld [vmem:[#allocation18 + $0x3d4] sm:$0xf]
    %v4861 = vld [vmem:[#allocation18 + $0x3d8] sm:$0xff]
    %v4862 = vld [vmem:[#allocation18 + $0x3e0] sm:$0xf]
    %v4863 = vld [vmem:[#allocation18 + $0x3e4] sm:$0xff]
    %v4864 = vld [vmem:[#allocation18 + $0x3ec] sm:$0xf]
    %v4865 = vld [vmem:[#allocation18 + $0x3f0] sm:$0xff]
    %v4866 = vld [vmem:[#allocation18 + $0x3f8] sm:$0xf]
    %v4867 = vld [vmem:[#allocation18 + $0x3fc] sm:$0xff]
    %v4868 = vld [vmem:[#allocation18 + $0x404] sm:$0xf]
    %v4869 = vld [vmem:[#allocation18 + $0x408] sm:$0xff]
    %v4870 = vld [vmem:[#allocation18 + $0x410] sm:$0xf]
    %v4871 = vld [vmem:[#allocation18 + $0x414] sm:$0xff]
    %v4872 = vld [vmem:[#allocation18 + $0x41c] sm:$0xf]
    %v4873 = vld [vmem:[#allocation18 + $0x420] sm:$0xff]
    %v4874 = vld [vmem:[#allocation18 + $0x428] sm:$0xf]
    %v4875 = vld [vmem:[#allocation18 + $0x42c] sm:$0xff]
    %v4876 = vld [vmem:[#allocation18 + $0x434] sm:$0xf]
    %v4877 = vld [vmem:[#allocation18 + $0x438] sm:$0xff]
    %v4878 = vld [vmem:[#allocation18 + $0x440] sm:$0xf]
    %v4879 = vld [vmem:[#allocation18 + $0x444] sm:$0xff]
    %v4880 = vld [vmem:[#allocation18 + $0x44c] sm:$0xf]
    %v4881 = vld [vmem:[#allocation18 + $0x450] sm:$0xff]
    %v4882 = vld [vmem:[#allocation18 + $0x458] sm:$0xf]
    %v4883 = vld [vmem:[#allocation18 + $0x45c] sm:$0xff]
    %v4884 = vld [vmem:[#allocation18 + $0x464] sm:$0xf]
    %v4885 = vld [vmem:[#allocation18 + $0x468] sm:$0xff]
    %v4886 = vld [vmem:[#allocation18 + $0x470] sm:$0xf]
    %v4887 = vld [vmem:[#allocation18 + $0x474] sm:$0xff]
    %v4888 = vld [vmem:[#allocation18 + $0x47c] sm:$0xf]
    %v4889 = vld [vmem:[#allocation20] sm:$0x7]
    %v4891 = vlaneseq
    %v4892 = vshrl.u32 %v4891, 7
    %v4893 = vsub.s32 0, %v4892
    %v4894 = vrot.slane %v4889, %v4893
    %v4895 = vlaneseq
    %v4896 = vshrl.u32 %v4895, 7
    %v4897 = vsub.s32 1, %v4896
    %v4898 = vrot.slane %v4889, %v4897
    %v4899 = vlaneseq
    %v4900 = vshrl.u32 %v4899, 7
    %v4901 = vsub.s32 2, %v4900
    %v4902 = vrot.slane %v4889, %v4901
    %v4918 = vunpack.c.l.b16 %v4685
    %v4919 = vunpack.c.l.b16 %v4686
    %v4920 = vunpack.c.l.b16 %v4687
    %v4921 = vunpack.c.l.b16 %v4688
    %v4922 = vunpack.c.l.b16 %v4689
    %v4923 = vunpack.c.l.b16 %v4690
    %v4924 = vunpack.c.l.b16 %v4691
    %v4925 = vunpack.c.l.b16 %v4692
    %v4926 = vunpack.c.l.b16 %v4693
    %v4927 = vunpack.c.l.b16 %v4694
    %v4928 = vunpack.c.l.b16 %v4695
    %v4929 = vunpack.c.l.b16 %v4696
    %v4930 = vrot.slane %v4924, 7
    %v4931 = vsel %vm4403, %v4930, %v4918
    %v4932 = vrot.slane %v4925, 7
    %v4933 = vsel %vm4403, %v4932, %v4919
    %v4934 = vrot.slane %v4926, 7
    %v4935 = vsel %vm4403, %v4934, %v4920
    %v4936 = vrot.slane %v4927, 7
    %v4937 = vsel %vm4403, %v4936, %v4921
    %v4938 = vrot.slane %v4928, 7
    %v4939 = vsel %vm4403, %v4938, %v4922
    %v4940 = vrot.slane %v4929, 7
    %v4941 = vsel %vm4403, %v4940, %v4923
    %v4942 = vpack.c.b16 %v4931, %v4931
    %v4943 = vpack.c.b16 %v4933, %v4933
    %v4944 = vpack.c.b16 %v4935, %v4935
    %v4945 = vpack.c.b16 %v4937, %v4937
    %v4946 = vpack.c.b16 %v4939, %v4939
    %v4947 = vpack.c.b16 %v4941, %v4941
    %v5146 = vunpack.c.l.b16 %v4697
    %v5147 = vunpack.c.h.b16 %v4697
    %v5148 = vunpack.c.l.b16 %v4698
    %v5149 = vunpack.c.l.b16 %v4699
    %v5150 = vunpack.c.h.b16 %v4699
    %v5151 = vunpack.c.l.b16 %v4700
    %v5152 = vunpack.c.l.b16 %v4701
    %v5153 = vunpack.c.h.b16 %v4701
    %v5154 = vunpack.c.l.b16 %v4702
    %v5155 = vunpack.c.l.b16 %v4703
    %v5156 = vunpack.c.h.b16 %v4703
    %v5157 = vunpack.c.l.b16 %v4704
    %v5158 = vunpack.c.l.b16 %v4705
    %v5159 = vunpack.c.h.b16 %v4705
    %v5160 = vunpack.c.l.b16 %v4706
    %v5161 = vunpack.c.l.b16 %v4707
    %v5162 = vunpack.c.h.b16 %v4707
    %v5163 = vunpack.c.l.b16 %v4708
    %v5164 = vunpack.c.l.b16 %v4709
    %v5165 = vunpack.c.h.b16 %v4709
    %v5166 = vunpack.c.l.b16 %v4710
    %v5167 = vunpack.c.l.b16 %v4711
    %v5168 = vunpack.c.h.b16 %v4711
    %v5169 = vunpack.c.l.b16 %v4712
    %v5170 = vunpack.c.l.b16 %v4713
    %v5171 = vunpack.c.h.b16 %v4713
    %v5172 = vunpack.c.l.b16 %v4714
    %v5173 = vunpack.c.l.b16 %v4715
    %v5174 = vunpack.c.h.b16 %v4715
    %v5175 = vunpack.c.l.b16 %v4716
    %v5176 = vunpack.c.l.b16 %v4717
    %v5177 = vunpack.c.h.b16 %v4717
    %v5178 = vunpack.c.l.b16 %v4718
    %v5179 = vunpack.c.l.b16 %v4719
    %v5180 = vunpack.c.h.b16 %v4719
    %v5181 = vunpack.c.l.b16 %v4720
    %v5182 = vunpack.c.l.b16 %v4721
    %v5183 = vunpack.c.h.b16 %v4721
    %v5184 = vunpack.c.l.b16 %v4722
    %v5185 = vunpack.c.l.b16 %v4723
    %v5186 = vunpack.c.h.b16 %v4723
    %v5187 = vunpack.c.l.b16 %v4724
    %v5188 = vunpack.c.l.b16 %v4725
    %v5189 = vunpack.c.h.b16 %v4725
    %v5190 = vunpack.c.l.b16 %v4726
    %v5191 = vunpack.c.l.b16 %v4727
    %v5192 = vunpack.c.h.b16 %v4727
    %v5193 = vunpack.c.l.b16 %v4728
    %v5194 = vunpack.c.l.b16 %v4729
    %v5195 = vunpack.c.h.b16 %v4729
    %v5196 = vunpack.c.l.b16 %v4730
    %v5197 = vunpack.c.l.b16 %v4731
    %v5198 = vunpack.c.h.b16 %v4731
    %v5199 = vunpack.c.l.b16 %v4732
    %v5200 = vunpack.c.l.b16 %v4733
    %v5201 = vunpack.c.h.b16 %v4733
    %v5202 = vunpack.c.l.b16 %v4734
    %v5203 = vunpack.c.l.b16 %v4735
    %v5204 = vunpack.c.h.b16 %v4735
    %v5205 = vunpack.c.l.b16 %v4736
    %v5206 = vunpack.c.l.b16 %v4737
    %v5207 = vunpack.c.h.b16 %v4737
    %v5208 = vunpack.c.l.b16 %v4738
    %v5209 = vunpack.c.l.b16 %v4739
    %v5210 = vunpack.c.h.b16 %v4739
    %v5211 = vunpack.c.l.b16 %v4740
    %v5212 = vunpack.c.l.b16 %v4741
    %v5213 = vunpack.c.h.b16 %v4741
    %v5214 = vunpack.c.l.b16 %v4742
    %v5215 = vunpack.c.l.b16 %v4743
    %v5216 = vunpack.c.h.b16 %v4743
    %v5217 = vunpack.c.l.b16 %v4744
    %v5218 = vunpack.c.l.b16 %v4745
    %v5219 = vunpack.c.h.b16 %v4745
    %v5220 = vunpack.c.l.b16 %v4746
    %v5221 = vunpack.c.l.b16 %v4747
    %v5222 = vunpack.c.h.b16 %v4747
    %v5223 = vunpack.c.l.b16 %v4748
    %v5224 = vunpack.c.l.b16 %v4749
    %v5225 = vunpack.c.h.b16 %v4749
    %v5226 = vunpack.c.l.b16 %v4750
    %v5227 = vunpack.c.l.b16 %v4751
    %v5228 = vunpack.c.h.b16 %v4751
    %v5229 = vunpack.c.l.b16 %v4752
    %v5230 = vunpack.c.l.b16 %v4753
    %v5231 = vunpack.c.h.b16 %v4753
    %v5232 = vunpack.c.l.b16 %v4754
    %v5233 = vunpack.c.l.b16 %v4755
    %v5234 = vunpack.c.h.b16 %v4755
    %v5235 = vunpack.c.l.b16 %v4756
    %v5236 = vunpack.c.l.b16 %v4757
    %v5237 = vunpack.c.h.b16 %v4757
    %v5238 = vunpack.c.l.b16 %v4758
    %v5239 = vunpack.c.l.b16 %v4759
    %v5240 = vunpack.c.h.b16 %v4759
    %v5241 = vunpack.c.l.b16 %v4760
    %v5242 = vunpack.c.l.b16 %v4761
    %v5243 = vunpack.c.h.b16 %v4761
    %v5244 = vunpack.c.l.b16 %v4762
    %v5245 = vunpack.c.l.b16 %v4763
    %v5246 = vunpack.c.h.b16 %v4763
    %v5247 = vunpack.c.l.b16 %v4764
    %v5248 = vunpack.c.l.b16 %v4765
    %v5249 = vunpack.c.h.b16 %v4765
    %v5250 = vunpack.c.l.b16 %v4766
    %v5251 = vunpack.c.l.b16 %v4767
    %v5252 = vunpack.c.h.b16 %v4767
    %v5253 = vunpack.c.l.b16 %v4768
    %v5254 = vunpack.c.l.b16 %v4769
    %v5255 = vunpack.c.h.b16 %v4769
    %v5256 = vunpack.c.l.b16 %v4770
    %v5257 = vunpack.c.l.b16 %v4771
    %v5258 = vunpack.c.h.b16 %v4771
    %v5259 = vunpack.c.l.b16 %v4772
    %v5260 = vunpack.c.l.b16 %v4773
    %v5261 = vunpack.c.h.b16 %v4773
    %v5262 = vunpack.c.l.b16 %v4774
    %v5263 = vunpack.c.l.b16 %v4775
    %v5264 = vunpack.c.h.b16 %v4775
    %v5265 = vunpack.c.l.b16 %v4776
    %v5266 = vunpack.c.l.b16 %v4777
    %v5267 = vunpack.c.h.b16 %v4777
    %v5268 = vunpack.c.l.b16 %v4778
    %v5269 = vunpack.c.l.b16 %v4779
    %v5270 = vunpack.c.h.b16 %v4779
    %v5271 = vunpack.c.l.b16 %v4780
    %v5272 = vunpack.c.l.b16 %v4781
    %v5273 = vunpack.c.h.b16 %v4781
    %v5274 = vunpack.c.l.b16 %v4782
    %v5275 = vunpack.c.l.b16 %v4783
    %v5276 = vunpack.c.h.b16 %v4783
    %v5277 = vunpack.c.l.b16 %v4784
    %v5278 = vunpack.c.l.b16 %v4785
    %v5279 = vunpack.c.h.b16 %v4785
    %v5280 = vunpack.c.l.b16 %v4786
    %v5281 = vunpack.c.l.b16 %v4787
    %v5282 = vunpack.c.h.b16 %v4787
    %v5283 = vunpack.c.l.b16 %v4788
    %v5284 = vunpack.c.l.b16 %v4789
    %v5285 = vunpack.c.h.b16 %v4789
    %v5286 = vunpack.c.l.b16 %v4790
    %v5287 = vunpack.c.l.b16 %v4791
    %v5288 = vunpack.c.h.b16 %v4791
    %v5289 = vunpack.c.l.b16 %v4792
    %v5290 = vunpack.c.l.b16 %v4793
    %v5291 = vunpack.c.h.b16 %v4793
    %v5292 = vunpack.c.l.b16 %v4794
    %v5293 = vunpack.c.l.b16 %v4795
    %v5294 = vunpack.c.h.b16 %v4795
    %v5295 = vunpack.c.l.b16 %v4796
    %v5296 = vunpack.c.l.b16 %v4797
    %v5297 = vunpack.c.h.b16 %v4797
    %v5298 = vunpack.c.l.b16 %v4798
    %v5299 = vunpack.c.l.b16 %v4799
    %v5300 = vunpack.c.h.b16 %v4799
    %v5301 = vunpack.c.l.b16 %v4800
    %v5302 = vunpack.c.l.b16 %v4801
    %v5303 = vunpack.c.h.b16 %v4801
    %v5304 = vunpack.c.l.b16 %v4802
    %v5305 = vunpack.c.l.b16 %v4803
    %v5306 = vunpack.c.h.b16 %v4803
    %v5307 = vunpack.c.l.b16 %v4804
    %v5308 = vunpack.c.l.b16 %v4805
    %v5309 = vunpack.c.h.b16 %v4805
    %v5310 = vunpack.c.l.b16 %v4806
    %v5311 = vunpack.c.l.b16 %v4807
    %v5312 = vunpack.c.h.b16 %v4807
    %v5313 = vunpack.c.l.b16 %v4808
    %v5314 = vunpack.c.l.b16 %v4809
    %v5315 = vunpack.c.h.b16 %v4809
    %v5316 = vunpack.c.l.b16 %v4810
    %v5317 = vunpack.c.l.b16 %v4811
    %v5318 = vunpack.c.h.b16 %v4811
    %v5319 = vunpack.c.l.b16 %v4812
    %v5320 = vunpack.c.l.b16 %v4813
    %v5321 = vunpack.c.h.b16 %v4813
    %v5322 = vunpack.c.l.b16 %v4814
    %v5323 = vunpack.c.l.b16 %v4815
    %v5324 = vunpack.c.h.b16 %v4815
    %v5325 = vunpack.c.l.b16 %v4816
    %v5326 = vunpack.c.l.b16 %v4817
    %v5327 = vunpack.c.h.b16 %v4817
    %v5328 = vunpack.c.l.b16 %v4818
    %v5329 = vunpack.c.l.b16 %v4819
    %v5330 = vunpack.c.h.b16 %v4819
    %v5331 = vunpack.c.l.b16 %v4820
    %v5332 = vunpack.c.l.b16 %v4821
    %v5333 = vunpack.c.h.b16 %v4821
    %v5334 = vunpack.c.l.b16 %v4822
    %v5335 = vunpack.c.l.b16 %v4823
    %v5336 = vunpack.c.h.b16 %v4823
    %v5337 = vunpack.c.l.b16 %v4824
    %v5338 = vunpack.c.l.b16 %v4825
    %v5339 = vunpack.c.h.b16 %v4825
    %v5340 = vunpack.c.l.b16 %v4826
    %v5341 = vunpack.c.l.b16 %v4827
    %v5342 = vunpack.c.h.b16 %v4827
    %v5343 = vunpack.c.l.b16 %v4828
    %v5344 = vunpack.c.l.b16 %v4829
    %v5345 = vunpack.c.h.b16 %v4829
    %v5346 = vunpack.c.l.b16 %v4830
    %v5347 = vunpack.c.l.b16 %v4831
    %v5348 = vunpack.c.h.b16 %v4831
    %v5349 = vunpack.c.l.b16 %v4832
    %v5350 = vunpack.c.l.b16 %v4833
    %v5351 = vunpack.c.h.b16 %v4833
    %v5352 = vunpack.c.l.b16 %v4834
    %v5353 = vunpack.c.l.b16 %v4835
    %v5354 = vunpack.c.h.b16 %v4835
    %v5355 = vunpack.c.l.b16 %v4836
    %v5356 = vunpack.c.l.b16 %v4837
    %v5357 = vunpack.c.h.b16 %v4837
    %v5358 = vunpack.c.l.b16 %v4838
    %v5359 = vunpack.c.l.b16 %v4839
    %v5360 = vunpack.c.h.b16 %v4839
    %v5361 = vunpack.c.l.b16 %v4840
    %v5362 = vunpack.c.l.b16 %v4841
    %v5363 = vunpack.c.h.b16 %v4841
    %v5364 = vunpack.c.l.b16 %v4842
    %v5365 = vunpack.c.l.b16 %v4843
    %v5366 = vunpack.c.h.b16 %v4843
    %v5367 = vunpack.c.l.b16 %v4844
    %v5368 = vunpack.c.l.b16 %v4845
    %v5369 = vunpack.c.h.b16 %v4845
    %v5370 = vunpack.c.l.b16 %v4846
    %v5371 = vunpack.c.l.b16 %v4847
    %v5372 = vunpack.c.h.b16 %v4847
    %v5373 = vunpack.c.l.b16 %v4848
    %v5374 = vunpack.c.l.b16 %v4849
    %v5375 = vunpack.c.h.b16 %v4849
    %v5376 = vunpack.c.l.b16 %v4850
    %v5377 = vunpack.c.l.b16 %v4851
    %v5378 = vunpack.c.h.b16 %v4851
    %v5379 = vunpack.c.l.b16 %v4852
    %v5380 = vunpack.c.l.b16 %v4853
    %v5381 = vunpack.c.h.b16 %v4853
    %v5382 = vunpack.c.l.b16 %v4854
    %v5383 = vunpack.c.l.b16 %v4855
    %v5384 = vunpack.c.h.b16 %v4855
    %v5385 = vunpack.c.l.b16 %v4856
    %v5386 = vunpack.c.l.b16 %v4857
    %v5387 = vunpack.c.h.b16 %v4857
    %v5388 = vunpack.c.l.b16 %v4858
    %v5389 = vunpack.c.l.b16 %v4859
    %v5390 = vunpack.c.h.b16 %v4859
    %v5391 = vunpack.c.l.b16 %v4860
    %v5392 = vunpack.c.l.b16 %v4861
    %v5393 = vunpack.c.h.b16 %v4861
    %v5394 = vunpack.c.l.b16 %v4862
    %v5395 = vunpack.c.l.b16 %v4863
    %v5396 = vunpack.c.h.b16 %v4863
    %v5397 = vunpack.c.l.b16 %v4864
    %v5398 = vunpack.c.l.b16 %v4865
    %v5399 = vunpack.c.h.b16 %v4865
    %v5400 = vunpack.c.l.b16 %v4866
    %v5401 = vunpack.c.l.b16 %v4867
    %v5402 = vunpack.c.h.b16 %v4867
    %v5403 = vunpack.c.l.b16 %v4868
    %v5404 = vunpack.c.l.b16 %v4869
    %v5405 = vunpack.c.h.b16 %v4869
    %v5406 = vunpack.c.l.b16 %v4870
    %v5407 = vunpack.c.l.b16 %v4871
    %v5408 = vunpack.c.h.b16 %v4871
    %v5409 = vunpack.c.l.b16 %v4872
    %v5410 = vunpack.c.l.b16 %v4873
    %v5411 = vunpack.c.h.b16 %v4873
    %v5412 = vunpack.c.l.b16 %v4874
    %v5413 = vunpack.c.l.b16 %v4875
    %v5414 = vunpack.c.h.b16 %v4875
    %v5415 = vunpack.c.l.b16 %v4876
    %v5416 = vunpack.c.l.b16 %v4877
    %v5417 = vunpack.c.h.b16 %v4877
    %v5418 = vunpack.c.l.b16 %v4878
    %v5419 = vunpack.c.l.b16 %v4879
    %v5420 = vunpack.c.h.b16 %v4879
    %v5421 = vunpack.c.l.b16 %v4880
    %v5422 = vunpack.c.l.b16 %v4881
    %v5423 = vunpack.c.h.b16 %v4881
    %v5424 = vunpack.c.l.b16 %v4882
    %v5425 = vunpack.c.l.b16 %v4883
    %v5426 = vunpack.c.h.b16 %v4883
    %v5427 = vunpack.c.l.b16 %v4884
    %v5428 = vunpack.c.l.b16 %v4885
    %v5429 = vunpack.c.h.b16 %v4885
    %v5430 = vunpack.c.l.b16 %v4886
    %v5431 = vunpack.c.l.b16 %v4887
    %v5432 = vunpack.c.h.b16 %v4887
    %v5433 = vunpack.c.l.b16 %v4888
    %v5434 = vpack.c.b16 %v5149, %v5146
    %v5435 = vpack.c.b16 %v5150, %v5147
    %v5436 = vpack.c.b16 %v5151, %v5148
    %v5437 = vpack.c.b16 %v5155, %v5152
    %v5438 = vpack.c.b16 %v5156, %v5153
    %v5439 = vpack.c.b16 %v5157, %v5154
    %v5440 = vpack.c.b16 %v5161, %v5158
    %v5441 = vpack.c.b16 %v5162, %v5159
    %v5442 = vpack.c.b16 %v5163, %v5160
    %v5443 = vpack.c.b16 %v5167, %v5164
    %v5444 = vpack.c.b16 %v5168, %v5165
    %v5445 = vpack.c.b16 %v5169, %v5166
    %v5446 = vpack.c.b16 %v5173, %v5170
    %v5447 = vpack.c.b16 %v5174, %v5171
    %v5448 = vpack.c.b16 %v5175, %v5172
    %v5449 = vpack.c.b16 %v5179, %v5176
    %v5450 = vpack.c.b16 %v5180, %v5177
    %v5451 = vpack.c.b16 %v5181, %v5178
    %v5452 = vpack.c.b16 %v5185, %v5182
    %v5453 = vpack.c.b16 %v5186, %v5183
    %v5454 = vpack.c.b16 %v5187, %v5184
    %v5455 = vpack.c.b16 %v5191, %v5188
    %v5456 = vpack.c.b16 %v5192, %v5189
    %v5457 = vpack.c.b16 %v5193, %v5190
    %v5458 = vpack.c.b16 %v5197, %v5194
    %v5459 = vpack.c.b16 %v5198, %v5195
    %v5460 = vpack.c.b16 %v5199, %v5196
    %v5461 = vpack.c.b16 %v5203, %v5200
    %v5462 = vpack.c.b16 %v5204, %v5201
    %v5463 = vpack.c.b16 %v5205, %v5202
    %v5464 = vpack.c.b16 %v5209, %v5206
    %v5465 = vpack.c.b16 %v5210, %v5207
    %v5466 = vpack.c.b16 %v5211, %v5208
    %v5467 = vpack.c.b16 %v5215, %v5212
    %v5468 = vpack.c.b16 %v5216, %v5213
    %v5469 = vpack.c.b16 %v5217, %v5214
    %v5470 = vpack.c.b16 %v5221, %v5218
    %v5471 = vpack.c.b16 %v5222, %v5219
    %v5472 = vpack.c.b16 %v5223, %v5220
    %v5473 = vpack.c.b16 %v5227, %v5224
    %v5474 = vpack.c.b16 %v5228, %v5225
    %v5475 = vpack.c.b16 %v5229, %v5226
    %v5476 = vpack.c.b16 %v5233, %v5230
    %v5477 = vpack.c.b16 %v5234, %v5231
    %v5478 = vpack.c.b16 %v5235, %v5232
    %v5479 = vpack.c.b16 %v5239, %v5236
    %v5480 = vpack.c.b16 %v5240, %v5237
    %v5481 = vpack.c.b16 %v5241, %v5238
    %v5482 = vpack.c.b16 %v5245, %v5242
    %v5483 = vpack.c.b16 %v5246, %v5243
    %v5484 = vpack.c.b16 %v5247, %v5244
    %v5485 = vpack.c.b16 %v5251, %v5248
    %v5486 = vpack.c.b16 %v5252, %v5249
    %v5487 = vpack.c.b16 %v5253, %v5250
    %v5488 = vpack.c.b16 %v5257, %v5254
    %v5489 = vpack.c.b16 %v5258, %v5255
    %v5490 = vpack.c.b16 %v5259, %v5256
    %v5491 = vpack.c.b16 %v5263, %v5260
    %v5492 = vpack.c.b16 %v5264, %v5261
    %v5493 = vpack.c.b16 %v5265, %v5262
    %v5494 = vpack.c.b16 %v5269, %v5266
    %v5495 = vpack.c.b16 %v5270, %v5267
    %v5496 = vpack.c.b16 %v5271, %v5268
    %v5497 = vpack.c.b16 %v5275, %v5272
    %v5498 = vpack.c.b16 %v5276, %v5273
    %v5499 = vpack.c.b16 %v5277, %v5274
    %v5500 = vpack.c.b16 %v5281, %v5278
    %v5501 = vpack.c.b16 %v5282, %v5279
    %v5502 = vpack.c.b16 %v5283, %v5280
    %v5503 = vpack.c.b16 %v5287, %v5284
    %v5504 = vpack.c.b16 %v5288, %v5285
    %v5505 = vpack.c.b16 %v5289, %v5286
    %v5506 = vpack.c.b16 %v5293, %v5290
    %v5507 = vpack.c.b16 %v5294, %v5291
    %v5508 = vpack.c.b16 %v5295, %v5292
    %v5509 = vpack.c.b16 %v5299, %v5296
    %v5510 = vpack.c.b16 %v5300, %v5297
    %v5511 = vpack.c.b16 %v5301, %v5298
    %v5512 = vpack.c.b16 %v5305, %v5302
    %v5513 = vpack.c.b16 %v5306, %v5303
    %v5514 = vpack.c.b16 %v5307, %v5304
    %v5515 = vpack.c.b16 %v5311, %v5308
    %v5516 = vpack.c.b16 %v5312, %v5309
    %v5517 = vpack.c.b16 %v5313, %v5310
    %v5518 = vpack.c.b16 %v5317, %v5314
    %v5519 = vpack.c.b16 %v5318, %v5315
    %v5520 = vpack.c.b16 %v5319, %v5316
    %v5521 = vpack.c.b16 %v5323, %v5320
    %v5522 = vpack.c.b16 %v5324, %v5321
    %v5523 = vpack.c.b16 %v5325, %v5322
    %v5524 = vpack.c.b16 %v5329, %v5326
    %v5525 = vpack.c.b16 %v5330, %v5327
    %v5526 = vpack.c.b16 %v5331, %v5328
    %v5527 = vpack.c.b16 %v5335, %v5332
    %v5528 = vpack.c.b16 %v5336, %v5333
    %v5529 = vpack.c.b16 %v5337, %v5334
    %v5530 = vpack.c.b16 %v5341, %v5338
    %v5531 = vpack.c.b16 %v5342, %v5339
    %v5532 = vpack.c.b16 %v5343, %v5340
    %v5533 = vpack.c.b16 %v5347, %v5344
    %v5534 = vpack.c.b16 %v5348, %v5345
    %v5535 = vpack.c.b16 %v5349, %v5346
    %v5536 = vpack.c.b16 %v5353, %v5350
    %v5537 = vpack.c.b16 %v5354, %v5351
    %v5538 = vpack.c.b16 %v5355, %v5352
    %v5539 = vpack.c.b16 %v5359, %v5356
    %v5540 = vpack.c.b16 %v5360, %v5357
    %v5541 = vpack.c.b16 %v5361, %v5358
    %v5542 = vpack.c.b16 %v5365, %v5362
    %v5543 = vpack.c.b16 %v5366, %v5363
    %v5544 = vpack.c.b16 %v5367, %v5364
    %v5545 = vpack.c.b16 %v5371, %v5368
    %v5546 = vpack.c.b16 %v5372, %v5369
    %v5547 = vpack.c.b16 %v5373, %v5370
    %v5548 = vpack.c.b16 %v5377, %v5374
    %v5549 = vpack.c.b16 %v5378, %v5375
    %v5550 = vpack.c.b16 %v5379, %v5376
    %v5551 = vpack.c.b16 %v5383, %v5380
    %v5552 = vpack.c.b16 %v5384, %v5381
    %v5553 = vpack.c.b16 %v5385, %v5382
    %v5554 = vpack.c.b16 %v5389, %v5386
    %v5555 = vpack.c.b16 %v5390, %v5387
    %v5556 = vpack.c.b16 %v5391, %v5388
    %v5557 = vpack.c.b16 %v5395, %v5392
    %v5558 = vpack.c.b16 %v5396, %v5393
    %v5559 = vpack.c.b16 %v5397, %v5394
    %v5560 = vpack.c.b16 %v5401, %v5398
    %v5561 = vpack.c.b16 %v5402, %v5399
    %v5562 = vpack.c.b16 %v5403, %v5400
    %v5563 = vpack.c.b16 %v5407, %v5404
    %v5564 = vpack.c.b16 %v5408, %v5405
    %v5565 = vpack.c.b16 %v5409, %v5406
    %v5566 = vpack.c.b16 %v5413, %v5410
    %v5567 = vpack.c.b16 %v5414, %v5411
    %v5568 = vpack.c.b16 %v5415, %v5412
    %v5569 = vpack.c.b16 %v5419, %v5416
    %v5570 = vpack.c.b16 %v5420, %v5417
    %v5571 = vpack.c.b16 %v5421, %v5418
    %v5572 = vpack.c.b16 %v5425, %v5422
    %v5573 = vpack.c.b16 %v5426, %v5423
    %v5574 = vpack.c.b16 %v5427, %v5424
    %v5575 = vpack.c.b16 %v5431, %v5428
    %v5576 = vpack.c.b16 %v5432, %v5429
    %v5577 = vpack.c.b16 %v5433, %v5430
    %5722 = vmatprep.subr.bf16.mxu0 %v5435
    %5723 = vmatpush1.bf16.msra.mxu0 %v5434
    %5724 = vmatprep.subr.bf16.mxu0 %v5438
    %5725 = vmatpush1.bf16.msra.mxu0 %v5437
    %5726 = vmatprep.subr.bf16.mxu0 %v5441
    %5727 = vmatpush1.bf16.msra.mxu0 %v5440
    %5728 = vmatprep.subr.bf16.mxu0 %v5444
    %5729 = vmatpush1.bf16.msra.mxu0 %v5443
    %5730 = vmatprep.subr.bf16.mxu0 %v5447
    %5731 = vmatpush1.bf16.msra.mxu0 %v5446
    %5732 = vmatprep.subr.bf16.mxu0 %v5450
    %5733 = vmatpush1.bf16.msra.mxu0 %v5449
    %5734 = vmatprep.subr.bf16.mxu0 %v5453
    %5735 = vmatpush1.bf16.msra.mxu0 %v5452
    %5736 = vmatprep.subr.bf16.mxu0 %v5456
    %5737 = vmatpush1.bf16.msra.mxu0 %v5455
    %5738 = vmatprep.subr.bf16.mxu0 %v5459
    %5739 = vmatpush1.bf16.msra.mxu0 %v5458
    %5740 = vmatprep.subr.bf16.mxu0 %v5462
    %5741 = vmatpush1.bf16.msra.mxu0 %v5461
    %5742 = vmatprep.subr.bf16.mxu0 %v5465
    %5743 = vmatpush1.bf16.msra.mxu0 %v5464
    %5744 = vmatprep.subr.bf16.mxu0 %v5468
    %5745 = vmatpush1.bf16.msra.mxu0 %v5467
    %5746 = vmatprep.subr.bf16.mxu0 %v5471
    %5747 = vmatpush1.bf16.msra.mxu0 %v5470
    %5748 = vmatprep.subr.bf16.mxu0 %v5474
    %5749 = vmatpush1.bf16.msra.mxu0 %v5473
    %5750 = vmatprep.subr.bf16.mxu0 %v5477
    %5751 = vmatpush1.bf16.msra.mxu0 %v5476
    %5752 = vmatprep.subr.bf16.mxu0 %v5480
    %5753 = vmatpush1.bf16.msra.mxu0 %v5479
    %5754 = vmatprep.mubr.bf16.mxu0 %v4943
    %5755 = vmatmul.mubr.bf16.gmra.mrb[0].mxu0 %v4942
    %v5756 = vpop.f32.mrb[0].mxu0
    %v5757 = vadd.f32 %v4894, %v5756
    %v5758 = vpop.f32.mrb[0].mxu0
    %v5759 = vadd.f32 %v4898, %v5758
    %v5760 = vpop.f32.mrb[0].mxu0
    %v5761 = vpop.f32.mrb[0].mxu0
    %5762 = vdwg.mxu0
    %5763 = vmatprep.subr.bf16.mxu0 %v5483
    %5764 = vmatpush1.bf16.msra.mxu0 %v5482
    %5765 = vmatprep.subr.bf16.mxu0 %v5486
    %5766 = vmatpush1.bf16.msra.mxu0 %v5485
    %5767 = vmatprep.subr.bf16.mxu0 %v5489
    %5768 = vmatpush1.bf16.msra.mxu0 %v5488
    %5769 = vmatprep.subr.bf16.mxu0 %v5492
    %5770 = vmatpush1.bf16.msra.mxu0 %v5491
    %5771 = vmatprep.subr.bf16.mxu0 %v5495
    %5772 = vmatpush1.bf16.msra.mxu0 %v5494
    %5773 = vmatprep.subr.bf16.mxu0 %v5498
    %5774 = vmatpush1.bf16.msra.mxu0 %v5497
    %5775 = vmatprep.subr.bf16.mxu0 %v5501
    %5776 = vmatpush1.bf16.msra.mxu0 %v5500
    %5777 = vmatprep.subr.bf16.mxu0 %v5504
    %5778 = vmatpush1.bf16.msra.mxu0 %v5503
    %5779 = vmatprep.subr.bf16.mxu0 %v5507
    %5780 = vmatpush1.bf16.msra.mxu0 %v5506
    %5781 = vmatprep.subr.bf16.mxu0 %v5510
    %5782 = vmatpush1.bf16.msra.mxu0 %v5509
    %5783 = vmatprep.subr.bf16.mxu0 %v5513
    %5784 = vmatpush1.bf16.msra.mxu0 %v5512
    %5785 = vmatprep.subr.bf16.mxu0 %v5516
    %5786 = vmatpush1.bf16.msra.mxu0 %v5515
    %5787 = vmatprep.subr.bf16.mxu0 %v5519
    %5788 = vmatpush1.bf16.msra.mxu0 %v5518
    %5789 = vmatprep.subr.bf16.mxu0 %v5522
    %5790 = vmatpush1.bf16.msra.mxu0 %v5521
    %5791 = vmatprep.subr.bf16.mxu0 %v5525
    %5792 = vmatpush1.bf16.msra.mxu0 %v5524
    %5793 = vmatprep.subr.bf16.mxu0 %v5528
    %5794 = vmatpush1.bf16.msra.mxu0 %v5527
    %5795 = vmatprep.mubr.bf16.mxu0 %v4945
    %5796 = vmatmul.mubr.bf16.gmra.mrb[0].mxu0 %v4944
    %v5797 = vpop.f32.mrb[0].mxu0
    %v5798 = vadd.f32 %v5757, %v5797
    %v5799 = vpop.f32.mrb[0].mxu0
    %v5800 = vadd.f32 %v5759, %v5799
    %v5801 = vpop.f32.mrb[0].mxu0
    %v5802 = vpop.f32.mrb[0].mxu0
    %5803 = vdwg.mxu0
    %5804 = vmatprep.subr.bf16.mxu0 %v5531
    %5805 = vmatpush1.bf16.msra.mxu0 %v5530
    %5806 = vmatprep.subr.bf16.mxu0 %v5534
    %5807 = vmatpush1.bf16.msra.mxu0 %v5533
    %5808 = vmatprep.subr.bf16.mxu0 %v5537
    %5809 = vmatpush1.bf16.msra.mxu0 %v5536
    %5810 = vmatprep.subr.bf16.mxu0 %v5540
    %5811 = vmatpush1.bf16.msra.mxu0 %v5539
    %5812 = vmatprep.subr.bf16.mxu0 %v5543
    %5813 = vmatpush1.bf16.msra.mxu0 %v5542
    %5814 = vmatprep.subr.bf16.mxu0 %v5546
    %5815 = vmatpush1.bf16.msra.mxu0 %v5545
    %5816 = vmatprep.subr.bf16.mxu0 %v5549
    %5817 = vmatpush1.bf16.msra.mxu0 %v5548
    %5818 = vmatprep.subr.bf16.mxu0 %v5552
    %5819 = vmatpush1.bf16.msra.mxu0 %v5551
    %5820 = vmatprep.subr.bf16.mxu0 %v5555
    %5821 = vmatpush1.bf16.msra.mxu0 %v5554
    %5822 = vmatprep.subr.bf16.mxu0 %v5558
    %5823 = vmatpush1.bf16.msra.mxu0 %v5557
    %5824 = vmatprep.subr.bf16.mxu0 %v5561
    %5825 = vmatpush1.bf16.msra.mxu0 %v5560
    %5826 = vmatprep.subr.bf16.mxu0 %v5564
    %5827 = vmatpush1.bf16.msra.mxu0 %v5563
    %5828 = vmatprep.subr.bf16.mxu0 %v5567
    %5829 = vmatpush1.bf16.msra.mxu0 %v5566
    %5830 = vmatprep.subr.bf16.mxu0 %v5570
    %5831 = vmatpush1.bf16.msra.mxu0 %v5569
    %5832 = vmatprep.subr.bf16.mxu0 %v5573
    %5833 = vmatpush1.bf16.msra.mxu0 %v5572
    %5834 = vmatprep.subr.bf16.mxu0 %v5576
    %5835 = vmatpush1.bf16.msra.mxu0 %v5575
    %5836 = vmatprep.mubr.bf16.mxu0 %v4947
    %5837 = vmatmul.mubr.bf16.gmra.mrb[0].mxu0 %v4946
    %v5838 = vpop.f32.mrb[0].mxu0
    %v5839 = vadd.f32 %v5798, %v5838
    %v5840 = vpop.f32.mrb[0].mxu0
    %v5841 = vadd.f32 %v5800, %v5840
    %v5842 = vpop.f32.mrb[0].mxu0
    %v5843 = vpop.f32.mrb[0].mxu0
    %5844 = vdwg.mxu0
    %5845 = vmatprep.subr.bf16.mxu0 0
    %5846 = vmatpush1.bf16.msra.mxu0 %v5436
    %5847 = vmatprep.subr.bf16.mxu0 0
    %5848 = vmatpush1.bf16.msra.mxu0 %v5439
    %5849 = vmatprep.subr.bf16.mxu0 0
    %5850 = vmatpush1.bf16.msra.mxu0 %v5442
    %5851 = vmatprep.subr.bf16.mxu0 0
    %5852 = vmatpush1.bf16.msra.mxu0 %v5445
    %5853 = vmatprep.subr.bf16.mxu0 0
    %5854 = vmatpush1.bf16.msra.mxu0 %v5448
    %5855 = vmatprep.subr.bf16.mxu0 0
    %5856 = vmatpush1.bf16.msra.mxu0 %v5451
    %5857 = vmatprep.subr.bf16.mxu0 0
    %5858 = vmatpush1.bf16.msra.mxu0 %v5454
    %5859 = vmatprep.subr.bf16.mxu0 0
    %5860 = vmatpush1.bf16.msra.mxu0 %v5457
    %5861 = vmatprep.subr.bf16.mxu0 0
    %5862 = vmatpush1.bf16.msra.mxu0 %v5460
    %5863 = vmatprep.subr.bf16.mxu0 0
    %5864 = vmatpush1.bf16.msra.mxu0 %v5463
    %5865 = vmatprep.subr.bf16.mxu0 0
    %5866 = vmatpush1.bf16.msra.mxu0 %v5466
    %5867 = vmatprep.subr.bf16.mxu0 0
    %5868 = vmatpush1.bf16.msra.mxu0 %v5469
    %5869 = vmatprep.subr.bf16.mxu0 0
    %5870 = vmatpush1.bf16.msra.mxu0 %v5472
    %5871 = vmatprep.subr.bf16.mxu0 0
    %5872 = vmatpush1.bf16.msra.mxu0 %v5475
    %5873 = vmatprep.subr.bf16.mxu0 0
    %5874 = vmatpush1.bf16.msra.mxu0 %v5478
    %5875 = vmatprep.subr.bf16.mxu0 0
    %5876 = vmatpush1.bf16.msra.mxu0 %v5481
    %5877 = vmatprep.mubr.bf16.mxu0 %v4943
    %5878 = vmatmul.mubr.bf16.gmra.mrb[0].mxu0 %v4942
    %v5879 = vpop.f32.mrb[0].mxu0
    %v5880 = vadd.f32 %v4902, %v5879
    %v5881 = vpop.f32.mrb[0].mxu0
    %v5882 = vpop.f32.mrb[0].mxu0
    %v5883 = vpop.f32.mrb[0].mxu0
    %5884 = vdwg.mxu0
    %5885 = vmatprep.subr.bf16.mxu0 0
    %5886 = vmatpush1.bf16.msra.mxu0 %v5484
    %5887 = vmatprep.subr.bf16.mxu0 0
    %5888 = vmatpush1.bf16.msra.mxu0 %v5487
    %5889 = vmatprep.subr.bf16.mxu0 0
    %5890 = vmatpush1.bf16.msra.mxu0 %v5490
    %5891 = vmatprep.subr.bf16.mxu0 0
    %5892 = vmatpush1.bf16.msra.mxu0 %v5493
    %5893 = vmatprep.subr.bf16.mxu0 0
    %5894 = vmatpush1.bf16.msra.mxu0 %v5496
    %5895 = vmatprep.subr.bf16.mxu0 0
    %5896 = vmatpush1.bf16.msra.mxu0 %v5499
    %5897 = vmatprep.subr.bf16.mxu0 0
    %5898 = vmatpush1.bf16.msra.mxu0 %v5502
    %5899 = vmatprep.subr.bf16.mxu0 0
    %5900 = vmatpush1.bf16.msra.mxu0 %v5505
    %5901 = vmatprep.subr.bf16.mxu0 0
    %5902 = vmatpush1.bf16.msra.mxu0 %v5508
    %5903 = vmatprep.subr.bf16.mxu0 0
    %5904 = vmatpush1.bf16.msra.mxu0 %v5511
    %5905 = vmatprep.subr.bf16.mxu0 0
    %5906 = vmatpush1.bf16.msra.mxu0 %v5514
    %5907 = vmatprep.subr.bf16.mxu0 0
    %5908 = vmatpush1.bf16.msra.mxu0 %v5517
    %5909 = vmatprep.subr.bf16.mxu0 0
    %5910 = vmatpush1.bf16.msra.mxu0 %v5520
    %5911 = vmatprep.subr.bf16.mxu0 0
    %5912 = vmatpush1.bf16.msra.mxu0 %v5523
    %5913 = vmatprep.subr.bf16.mxu0 0
    %5914 = vmatpush1.bf16.msra.mxu0 %v5526
    %5915 = vmatprep.subr.bf16.mxu0 0
    %5916 = vmatpush1.bf16.msra.mxu0 %v5529
    %5917 = vmatprep.mubr.bf16.mxu0 %v4945
    %5918 = vmatmul.mubr.bf16.gmra.mrb[0].mxu0 %v4944
    %v5919 = vpop.f32.mrb[0].mxu0
    %v5920 = vadd.f32 %v5880, %v5919
    %v5921 = vpop.f32.mrb[0].mxu0
    %v5922 = vpop.f32.mrb[0].mxu0
    %v5923 = vpop.f32.mrb[0].mxu0
    %5924 = vdwg.mxu0
    %5925 = vmatprep.subr.bf16.mxu0 0
    %5926 = vmatpush1.bf16.msra.mxu0 %v5532
    %5927 = vmatprep.subr.bf16.mxu0 0
    %5928 = vmatpush1.bf16.msra.mxu0 %v5535
    %5929 = vmatprep.subr.bf16.mxu0 0
    %5930 = vmatpush1.bf16.msra.mxu0 %v5538
    %5931 = vmatprep.subr.bf16.mxu0 0
    %5932 = vmatpush1.bf16.msra.mxu0 %v5541
    %5933 = vmatprep.subr.bf16.mxu0 0
    %5934 = vmatpush1.bf16.msra.mxu0 %v5544
    %5935 = vmatprep.subr.bf16.mxu0 0
    %5936 = vmatpush1.bf16.msra.mxu0 %v5547
    %5937 = vmatprep.subr.bf16.mxu0 0
    %5938 = vmatpush1.bf16.msra.mxu0 %v5550
    %5939 = vmatprep.subr.bf16.mxu0 0
    %5940 = vmatpush1.bf16.msra.mxu0 %v5553
    %5941 = vmatprep.subr.bf16.mxu0 0
    %5942 = vmatpush1.bf16.msra.mxu0 %v5556
    %5943 = vmatprep.subr.bf16.mxu0 0
    %5944 = vmatpush1.bf16.msra.mxu0 %v5559
    %5945 = vmatprep.subr.bf16.mxu0 0
    %5946 = vmatpush1.bf16.msra.mxu0 %v5562
    %5947 = vmatprep.subr.bf16.mxu0 0
    %5948 = vmatpush1.bf16.msra.mxu0 %v5565
    %5949 = vmatprep.subr.bf16.mxu0 0
    %5950 = vmatpush1.bf16.msra.mxu0 %v5568
    %5951 = vmatprep.subr.bf16.mxu0 0
    %5952 = vmatpush1.bf16.msra.mxu0 %v5571
    %5953 = vmatprep.subr.bf16.mxu0 0
    %5954 = vmatpush1.bf16.msra.mxu0 %v5574
    %5955 = vmatprep.subr.bf16.mxu0 0
    %5956 = vmatpush1.bf16.msra.mxu0 %v5577
    %5957 = vmatprep.mubr.bf16.mxu0 %v4947
    %5958 = vmatmul.mubr.bf16.gmra.mrb[0].mxu0 %v4946
    %v5959 = vpop.f32.mrb[0].mxu0
    %v5960 = vadd.f32 %v5920, %v5959
    %v5961 = vpop.f32.mrb[0].mxu0
    %v5962 = vpop.f32.mrb[0].mxu0
    %v5963 = vpop.f32.mrb[0].mxu0
    %5964 = vdwg.mxu0
    %v5965 = vld [vmem:[#allocation21] sm:$0x7]
    %v5966 = vld [vmem:[#allocation23] sm:$0x7]
    %vm5967 = vcmask 1041408
    %v5968 = vsel %vm5967, %v5839, 0.0
    %v5969 = vsel %vm5967, %v5841, 0.0
    %v5970 = vadd.f32 %v5968, %v5969
    %v5971 = vsel %vm5967, %v5960, 0.0
    %v5972 = vadd.f32 %v5970, %v5971
    %5973 = vadd.xlane.f32.xlu0 %v5972
    %v5974 = vpop.xlane.xlu0 %5973
    %v5975 = vmul.f32 %v5974, %v4225
    %v5976 = vsub.f32 %v5839, %v5975
    %v5977 = vsub.f32 %v5841, %v5975
    %v5978 = vsub.f32 %v5960, %v5975
    %v5979 = vmul.f32 %v5976, %v5976
    %v5980 = vmul.f32 %v5977, %v5977
    %v5981 = vmul.f32 %v5978, %v5978
    %v5982 = vsel %vm5967, %v5979, 0.0
    %v5983 = vsel %vm5967, %v5980, 0.0
    %v5984 = vadd.f32 %v5982, %v5983
    %v5985 = vsel %vm5967, %v5981, 0.0
    %v5986 = vadd.f32 %v5984, %v5985
    %5987 = vadd.xlane.f32.xlu0 %v5986
    %v5988 = vpop.xlane.xlu0 %5987
    %v5989 = vmul.f32 %v5988, %v4225
    %v5990 = vadd.f32 %v5989, 1e-05
    %v5991 = vrsqrt.pop %v5990
    %v5992 = vmul.f32 %v5976, %v5991
    %v5993 = vmul.f32 %v5977, %v5991
    %v5994 = vmul.f32 %v5978, %v5991
    %v5996 = vlaneseq
    %v5997 = vshrl.u32 %v5996, 7
    %v5998 = vsub.s32 0, %v5997
    %v5999 = vrot.slane %v5965, %v5998
    %v6000 = vlaneseq
    %v6001 = vshrl.u32 %v6000, 7
    %v6002 = vsub.s32 1, %v6001
    %v6003 = vrot.slane %v5965, %v6002
    %v6004 = vlaneseq
    %v6005 = vshrl.u32 %v6004, 7
    %v6006 = vsub.s32 2, %v6005
    %v6007 = vrot.slane %v5965, %v6006
    %v6011 = vmul.f32 %v5992, %v5999
    %v6012 = vmul.f32 %v5993, %v6003
    %v6013 = vmul.f32 %v5994, %v6007
    %v6015 = vlaneseq
    %v6016 = vshrl.u32 %v6015, 7
    %v6017 = vsub.s32 0, %v6016
    %v6018 = vrot.slane %v5966, %v6017
    %v6019 = vlaneseq
    %v6020 = vshrl.u32 %v6019, 7
    %v6021 = vsub.s32 1, %v6020
    %v6022 = vrot.slane %v5966, %v6021
    %v6023 = vlaneseq
    %v6024 = vshrl.u32 %v6023, 7
    %v6025 = vsub.s32 2, %v6024
    %v6026 = vrot.slane %v5966, %v6025
    %v6030 = vadd.f32 %v6011, %v6018
    %v6031 = vadd.f32 %v6012, %v6022
    %v6032 = vadd.f32 %v6013, %v6026
    %v6033 = vmax.f32 %v6030, 0.0
    %v6034 = vmax.f32 %v6031, 0.0
    %v6035 = vmax.f32 %v6032, 0.0
    %v6036 = vpack.c.bf16 %v6033, %v6033
    %v6037 = vpack.c.bf16 %v6034, %v6034
    %v6038 = vpack.c.bf16 %v6035, %v6035
    %v6039 = vld [vmem:[%s14] sm:$0xf]
    %v6040 = vld [vmem:[%s14 + $0x4] sm:$0xf]
    %v6041 = vld [vmem:[%s14 + $0x8] sm:$0xf]
    %v6042 = vld [vmem:[%s14 + $0xc] sm:$0xf]
    %v6043 = vld [vmem:[%s14 + $0x10] sm:$0xf]
    %v6044 = vld [vmem:[%s14 + $0x14] sm:$0xf]
    %v6045 = vld [vmem:[%s14 + $0x18] sm:$0xf]
    %v6046 = vld [vmem:[%s14 + $0x1c] sm:$0xf]
    %v6047 = vld [vmem:[%s14 + $0x20] sm:$0xf]
    %v6048 = vld [vmem:[%s14 + $0x24] sm:$0xf]
    %v6049 = vld [vmem:[%s14 + $0x28] sm:$0xf]
    %v6050 = vld [vmem:[%s14 + $0x2c] sm:$0xf]
    %v6051 = vld [vmem:[%s14 + $0x30] sm:$0xf]
    %v6052 = vld [vmem:[%s14 + $0x34] sm:$0xf]
    %v6053 = vld [vmem:[%s14 + $0x38] sm:$0xf]
    %v6054 = vld [vmem:[%s14 + $0x3c] sm:$0xf]
    %v6055 = vld [vmem:[%s14 + $0x40] sm:$0xf]
    %v6056 = vld [vmem:[%s14 + $0x44] sm:$0xf]
    %v6057 = vld [vmem:[%s14 + $0x48] sm:$0xf]
    %v6058 = vld [vmem:[%s14 + $0x4c] sm:$0xf]
    %v6059 = vld [vmem:[%s14 + $0x50] sm:$0xf]
    %v6060 = vld [vmem:[%s14 + $0x54] sm:$0xf]
    %v6061 = vld [vmem:[%s14 + $0x58] sm:$0xf]
    %v6062 = vld [vmem:[%s14 + $0x5c] sm:$0xf]
    %v6063 = vld [vmem:[%s14 + $0x60] sm:$0xf]
    %v6064 = vld [vmem:[%s14 + $0x64] sm:$0xf]
    %v6065 = vld [vmem:[%s14 + $0x68] sm:$0xf]
    %v6066 = vld [vmem:[%s14 + $0x6c] sm:$0xf]
    %v6067 = vld [vmem:[%s14 + $0x70] sm:$0xf]
    %v6068 = vld [vmem:[%s14 + $0x74] sm:$0xf]
    %v6069 = vld [vmem:[%s14 + $0x78] sm:$0xf]
    %v6070 = vld [vmem:[%s14 + $0x7c] sm:$0xf]
    %v6071 = vld [vmem:[%s14 + $0x80] sm:$0xf]
    %v6072 = vld [vmem:[%s14 + $0x84] sm:$0xf]
    %v6073 = vld [vmem:[%s14 + $0x88] sm:$0xf]
    %v6074 = vld [vmem:[%s14 + $0x8c] sm:$0xf]
    %v6075 = vld [vmem:[%s14 + $0x90] sm:$0xf]
    %v6076 = vld [vmem:[%s14 + $0x94] sm:$0xf]
    %v6077 = vld [vmem:[%s14 + $0x98] sm:$0xf]
    %v6078 = vld [vmem:[%s14 + $0x9c] sm:$0xf]
    %v6079 = vld [vmem:[%s14 + $0xa0] sm:$0xf]
    %v6080 = vld [vmem:[%s14 + $0xa4] sm:$0xf]
    %v6081 = vld [vmem:[%s14 + $0xa8] sm:$0xf]
    %v6082 = vld [vmem:[%s14 + $0xac] sm:$0xf]
    %v6083 = vld [vmem:[%s14 + $0xb0] sm:$0xf]
    %v6084 = vld [vmem:[%s14 + $0xb4] sm:$0xf]
    %v6085 = vld [vmem:[%s14 + $0xb8] sm:$0xf]
    %v6086 = vld [vmem:[%s14 + $0xbc] sm:$0xf]
    %v6087 = vld [vmem:[#allocation24] sm:$0x1]
    %v6089 = vlaneseq
    %v6090 = vshrl.u32 %v6089, 7
    %v6091 = vsub.s32 0, %v6090
    %v6092 = vrot.slane %v6087, %v6091
    %v6142 = vunpack.c.l.b16 %v6039
    %v6143 = vunpack.c.l.b16 %v6040
    %v6144 = vunpack.c.l.b16 %v6041
    %v6145 = vunpack.c.l.b16 %v6042
    %v6146 = vunpack.c.l.b16 %v6043
    %v6147 = vunpack.c.l.b16 %v6044
    %v6148 = vunpack.c.l.b16 %v6045
    %v6149 = vunpack.c.l.b16 %v6046
    %v6150 = vunpack.c.l.b16 %v6047
    %v6151 = vunpack.c.l.b16 %v6048
    %v6152 = vunpack.c.l.b16 %v6049
    %v6153 = vunpack.c.l.b16 %v6050
    %v6154 = vunpack.c.l.b16 %v6051
    %v6155 = vunpack.c.l.b16 %v6052
    %v6156 = vunpack.c.l.b16 %v6053
    %v6157 = vunpack.c.l.b16 %v6054
    %v6158 = vunpack.c.l.b16 %v6055
    %v6159 = vunpack.c.l.b16 %v6056
    %v6160 = vunpack.c.l.b16 %v6057
    %v6161 = vunpack.c.l.b16 %v6058
    %v6162 = vunpack.c.l.b16 %v6059
    %v6163 = vunpack.c.l.b16 %v6060
    %v6164 = vunpack.c.l.b16 %v6061
    %v6165 = vunpack.c.l.b16 %v6062
    %v6166 = vunpack.c.l.b16 %v6063
    %v6167 = vunpack.c.l.b16 %v6064
    %v6168 = vunpack.c.l.b16 %v6065
    %v6169 = vunpack.c.l.b16 %v6066
    %v6170 = vunpack.c.l.b16 %v6067
    %v6171 = vunpack.c.l.b16 %v6068
    %v6172 = vunpack.c.l.b16 %v6069
    %v6173 = vunpack.c.l.b16 %v6070
    %v6174 = vunpack.c.l.b16 %v6071
    %v6175 = vunpack.c.l.b16 %v6072
    %v6176 = vunpack.c.l.b16 %v6073
    %v6177 = vunpack.c.l.b16 %v6074
    %v6178 = vunpack.c.l.b16 %v6075
    %v6179 = vunpack.c.l.b16 %v6076
    %v6180 = vunpack.c.l.b16 %v6077
    %v6181 = vunpack.c.l.b16 %v6078
    %v6182 = vunpack.c.l.b16 %v6079
    %v6183 = vunpack.c.l.b16 %v6080
    %v6184 = vunpack.c.l.b16 %v6081
    %v6185 = vunpack.c.l.b16 %v6082
    %v6186 = vunpack.c.l.b16 %v6083
    %v6187 = vunpack.c.l.b16 %v6084
    %v6188 = vunpack.c.l.b16 %v6085
    %v6189 = vunpack.c.l.b16 %v6086
    %v6190 = vpack.c.b16 %v6143, %v6142
    %v6191 = vpack.c.b16 %v6145, %v6144
    %v6192 = vpack.c.b16 %v6147, %v6146
    %v6193 = vpack.c.b16 %v6149, %v6148
    %v6194 = vpack.c.b16 %v6151, %v6150
    %v6195 = vpack.c.b16 %v6153, %v6152
    %v6196 = vpack.c.b16 %v6155, %v6154
    %v6197 = vpack.c.b16 %v6157, %v6156
    %v6198 = vpack.c.b16 %v6159, %v6158
    %v6199 = vpack.c.b16 %v6161, %v6160
    %v6200 = vpack.c.b16 %v6163, %v6162
    %v6201 = vpack.c.b16 %v6165, %v6164
    %v6202 = vpack.c.b16 %v6167, %v6166
    %v6203 = vpack.c.b16 %v6169, %v6168
    %v6204 = vpack.c.b16 %v6171, %v6170
    %v6205 = vpack.c.b16 %v6173, %v6172
    %v6206 = vpack.c.b16 %v6175, %v6174
    %v6207 = vpack.c.b16 %v6177, %v6176
    %v6208 = vpack.c.b16 %v6179, %v6178
    %v6209 = vpack.c.b16 %v6181, %v6180
    %v6210 = vpack.c.b16 %v6183, %v6182
    %v6211 = vpack.c.b16 %v6185, %v6184
    %v6212 = vpack.c.b16 %v6187, %v6186
    %v6213 = vpack.c.b16 %v6189, %v6188
    %6238 = vmatprep.subr.bf16.mxu0 0
    %6239 = vmatpush1.bf16.msra.mxu0 %v6190
    %6240 = vmatprep.subr.bf16.mxu0 0
    %6241 = vmatpush1.bf16.msra.mxu0 %v6191
    %6242 = vmatprep.subr.bf16.mxu0 0
    %6243 = vmatpush1.bf16.msra.mxu0 %v6192
    %6244 = vmatprep.subr.bf16.mxu0 0
    %6245 = vmatpush1.bf16.msra.mxu0 %v6193
    %6246 = vmatprep.subr.bf16.mxu0 0
    %6247 = vmatpush1.bf16.msra.mxu0 %v6194
    %6248 = vmatprep.subr.bf16.mxu0 0
    %6249 = vmatpush1.bf16.msra.mxu0 %v6195
    %6250 = vmatprep.subr.bf16.mxu0 0
    %6251 = vmatpush1.bf16.msra.mxu0 %v6196
    %6252 = vmatprep.subr.bf16.mxu0 0
    %6253 = vmatpush1.bf16.msra.mxu0 %v6197
    %6254 = vmatprep.subr.bf16.mxu0 0
    %6255 = vmatpush1.bf16.msra.mxu0 %v6198
    %6256 = vmatprep.subr.bf16.mxu0 0
    %6257 = vmatpush1.bf16.msra.mxu0 %v6199
    %6258 = vmatprep.subr.bf16.mxu0 0
    %6259 = vmatpush1.bf16.msra.mxu0 %v6200
    %6260 = vmatprep.subr.bf16.mxu0 0
    %6261 = vmatpush1.bf16.msra.mxu0 %v6201
    %6262 = vmatprep.subr.bf16.mxu0 0
    %6263 = vmatpush1.bf16.msra.mxu0 %v6202
    %6264 = vmatprep.subr.bf16.mxu0 0
    %6265 = vmatpush1.bf16.msra.mxu0 %v6203
    %6266 = vmatprep.subr.bf16.mxu0 0
    %6267 = vmatpush1.bf16.msra.mxu0 %v6204
    %6268 = vmatprep.subr.bf16.mxu0 0
    %6269 = vmatpush1.bf16.msra.mxu0 %v6205
    %6270 = vmatprep.mubr.bf16.mxu0 %v6037
    %6271 = vmatmul.mubr.bf16.gmra.mrb[0].mxu0 %v6036
    %v6272 = vpop.f32.mrb[0].mxu0
    %v6273 = vadd.f32 %v6092, %v6272
    %v6274 = vpop.f32.mrb[0].mxu0
    %v6275 = vpop.f32.mrb[0].mxu0
    %v6276 = vpop.f32.mrb[0].mxu0
    %6277 = vdwg.mxu0
    %6278 = vmatprep.subr.bf16.mxu0 0
    %6279 = vmatpush1.bf16.msra.mxu0 %v6206
    %6280 = vmatprep.subr.bf16.mxu0 0
    %6281 = vmatpush1.bf16.msra.mxu0 %v6207
    %6282 = vmatprep.subr.bf16.mxu0 0
    %6283 = vmatpush1.bf16.msra.mxu0 %v6208
    %6284 = vmatprep.subr.bf16.mxu0 0
    %6285 = vmatpush1.bf16.msra.mxu0 %v6209
    %6286 = vmatprep.subr.bf16.mxu0 0
    %6287 = vmatpush1.bf16.msra.mxu0 %v6210
    %6288 = vmatprep.subr.bf16.mxu0 0
    %6289 = vmatpush1.bf16.msra.mxu0 %v6211
    %6290 = vmatprep.subr.bf16.mxu0 0
    %6291 = vmatpush1.bf16.msra.mxu0 %v6212
    %6292 = vmatprep.subr.bf16.mxu0 0
    %6293 = vmatpush1.bf16.msra.mxu0 %v6213
    %6294 = vmatprep.subr.bf16.mxu0 0
    %6295 = vmatpush1.bf16.msra.mxu0 0
    %6296 = vmatprep.subr.bf16.mxu0 0
    %6297 = vmatpush1.bf16.msra.mxu0 0
    %6298 = vmatprep.subr.bf16.mxu0 0
    %6299 = vmatpush1.bf16.msra.mxu0 0
    %6300 = vmatprep.subr.bf16.mxu0 0
    %6301 = vmatpush1.bf16.msra.mxu0 0
    %6302 = vmatprep.subr.bf16.mxu0 0
    %6303 = vmatpush1.bf16.msra.mxu0 0
    %6304 = vmatprep.subr.bf16.mxu0 0
    %6305 = vmatpush1.bf16.msra.mxu0 0
    %6306 = vmatprep.subr.bf16.mxu0 0
    %6307 = vmatpush1.bf16.msra.mxu0 0
    %6308 = vmatprep.subr.bf16.mxu0 0
    %6309 = vmatpush1.bf16.msra.mxu0 0
    %6310 = vmatprep.mubr.bf16.mxu0 0
    %6311 = vmatmul.mubr.bf16.gmra.mrb[0].mxu0 %v6038
    %v6312 = vpop.f32.mrb[0].mxu0
    %v6313 = vadd.f32 %v6273, %v6312
    %v6314 = vpop.f32.mrb[0].mxu0
    %v6315 = vpop.f32.mrb[0].mxu0
    %v6316 = vpop.f32.mrb[0].mxu0
    %6317 = vdwg.mxu0
    %v6318 = vmax.f32 %v6313, -30.0
    %v6319 = vmin.f32 %v6318, 30.0
    %v6320 = vsub.f32 0.0, %v6319
    %v6321 = vmul.f32 %v6320, 1.442695
    %v6322 = vpow.pop %v6321
    %v6323 = vadd.f32 %v6322, 1.0
    %v6324 = vrcp.pop %v6323
    %vm6325 = vcmask 402432
    %6326 = vst.msk [vmem:[#allocation30] sm:$0x3] %vm6325, %v6324
    %v6327 = vpack.c.bf16 %v6324, %v6324
    %v6328 = vld [vmem:[%s16] sm:$0xf]
    %v6329 = vld [vmem:[%s16 + $0x4] sm:$0xf]
    %v6330 = vld [vmem:[%s16 + $0x8] sm:$0xf]
    %v6331 = vld [vmem:[%s16 + $0xc] sm:$0xf]
    %v6332 = vld [vmem:[%s16 + $0x10] sm:$0xf]
    %v6333 = vld [vmem:[%s16 + $0x14] sm:$0xf]
    %v6334 = vld [vmem:[%s16 + $0x18] sm:$0x1]
    %v6335 = vpack.c.bf16 %v4673, %v4673
    %v6336 = vpack.c.bf16 %v4674, %v4674
    %v6337 = vpack.c.bf16 %v4675, %v4675
    %v6338 = vpack.c.bf16 %v4676, %v4676
    %v6339 = vpack.c.bf16 %v4677, %v4677
    %v6340 = vpack.c.bf16 %v4678, %v4678
    %v6341 = vpack.c.bf16 %v4679, %v4679
    %v6342 = vpack.c.bf16 %v4680, %v4680
    %v6343 = vpack.c.bf16 %v4681, %v4681
    %v6344 = vpack.c.bf16 %v4682, %v4682
    %v6345 = vpack.c.bf16 %v4683, %v4683
    %v6346 = vpack.c.bf16 %v4684, %v4684
    %v6347 = vld [vmem:[%s17] sm:$0xf]
    %v6348 = vld [vmem:[%s17 + $0x4] sm:$0xf]
    %v6349 = vld [vmem:[%s17 + $0x8] sm:$0xf]
    %v6350 = vld [vmem:[%s17 + $0xc] sm:$0xf]
    %v6351 = vld [vmem:[%s17 + $0x10] sm:$0xf]
    %v6352 = vld [vmem:[%s17 + $0x14] sm:$0xf]
    %v6353 = vld [vmem:[%s17 + $0x18] sm:$0xf]
    %v6354 = vld [vmem:[%s17 + $0x1c] sm:$0xf]
    %v6355 = vld [vmem:[%s17 + $0x20] sm:$0xf]
    %v6356 = vld [vmem:[%s17 + $0x24] sm:$0xf]
    %v6357 = vld [vmem:[%s17 + $0x28] sm:$0xf]
    %v6358 = vld [vmem:[%s17 + $0x2c] sm:$0xf]
    %v6359 = vld [vmem:[%s17 + $0x30] sm:$0xf]
    %v6360 = vld [vmem:[%s17 + $0x34] sm:$0xf]
    %v6361 = vld [vmem:[%s17 + $0x38] sm:$0xf]
    %v6362 = vld [vmem:[%s17 + $0x3c] sm:$0xf]
    %v6363 = vld [vmem:[%s17 + $0x40] sm:$0xf]
    %v6364 = vld [vmem:[%s17 + $0x44] sm:$0xf]
    %v6365 = vld [vmem:[%s17 + $0x48] sm:$0xf]
    %v6366 = vld [vmem:[%s17 + $0x4c] sm:$0xf]
    %v6367 = vld [vmem:[%s17 + $0x50] sm:$0xf]
    %v6368 = vld [vmem:[%s17 + $0x54] sm:$0xf]
    %v6369 = vld [vmem:[%s17 + $0x58] sm:$0xf]
    %v6370 = vld [vmem:[%s17 + $0x5c] sm:$0xf]
    %v6371 = vld [vmem:[%s17 + $0x60] sm:$0xf]
    %v6372 = vld [vmem:[%s17 + $0x64] sm:$0xf]
    %v6373 = vld [vmem:[%s17 + $0x68] sm:$0xf]
    %v6374 = vld [vmem:[%s17 + $0x6c] sm:$0xf]
    %v6375 = vld [vmem:[%s17 + $0x70] sm:$0xf]
    %v6376 = vld [vmem:[%s17 + $0x74] sm:$0xf]
    %v6377 = vld [vmem:[%s17 + $0x78] sm:$0xf]
    %v6378 = vld [vmem:[%s17 + $0x7c] sm:$0xf]
    %v6379 = vld [vmem:[%s17 + $0x80] sm:$0xf]
    %v6380 = vld [vmem:[%s17 + $0x84] sm:$0xf]
    %v6381 = vld [vmem:[%s17 + $0x88] sm:$0xf]
    %v6382 = vld [vmem:[%s17 + $0x8c] sm:$0xf]
    %v6383 = vld [vmem:[%s17 + $0x90] sm:$0xf]
    %v6384 = vld [vmem:[%s17 + $0x94] sm:$0xf]
    %v6385 = vld [vmem:[%s17 + $0x98] sm:$0xf]
    %v6386 = vld [vmem:[%s17 + $0x9c] sm:$0xf]
    %v6387 = vld [vmem:[%s17 + $0xa0] sm:$0xf]
    %v6388 = vld [vmem:[%s17 + $0xa4] sm:$0xf]
    %v6389 = vld [vmem:[%s17 + $0xa8] sm:$0xf]
    %v6390 = vld [vmem:[%s17 + $0xac] sm:$0xf]
    %v6391 = vld [vmem:[%s17 + $0xb0] sm:$0xf]
    %v6392 = vld [vmem:[%s17 + $0xb4] sm:$0xf]
    %v6393 = vld [vmem:[%s17 + $0xb8] sm:$0xf]
    %v6394 = vld [vmem:[%s17 + $0xbc] sm:$0xf]
    %v6395 = vld [vmem:[%s17 + $0xc0] sm:$0xf]
    %v6396 = vld [vmem:[%s17 + $0xc4] sm:$0xf]
    %v6397 = vld [vmem:[%s17 + $0xc8] sm:$0xf]
    %v6398 = vld [vmem:[%s17 + $0xcc] sm:$0xf]
    %v6399 = vld [vmem:[%s17 + $0xd0] sm:$0xf]
    %v6400 = vld [vmem:[%s17 + $0xd4] sm:$0xf]
    %v6401 = vld [vmem:[%s17 + $0xd8] sm:$0xf]
    %v6402 = vld [vmem:[%s17 + $0xdc] sm:$0xf]
    %v6403 = vld [vmem:[%s17 + $0xe0] sm:$0xf]
    %v6404 = vld [vmem:[%s17 + $0xe4] sm:$0xf]
    %v6405 = vld [vmem:[%s17 + $0xe8] sm:$0xf]
    %v6406 = vld [vmem:[%s17 + $0xec] sm:$0xf]
    %v6407 = vld [vmem:[%s17 + $0xf0] sm:$0xf]
    %v6408 = vld [vmem:[%s17 + $0xf4] sm:$0xf]
    %v6409 = vld [vmem:[%s17 + $0xf8] sm:$0xf]
    %v6410 = vld [vmem:[%s17 + $0xfc] sm:$0xf]
    %v6411 = vld [vmem:[%s17 + $0x100] sm:$0xf]
    %v6412 = vld [vmem:[%s17 + $0x104] sm:$0xf]
    %v6413 = vld [vmem:[%s17 + $0x108] sm:$0xf]
    %v6414 = vld [vmem:[%s17 + $0x10c] sm:$0xf]
    %v6415 = vld [vmem:[%s17 + $0x110] sm:$0xf]
    %v6416 = vld [vmem:[%s17 + $0x114] sm:$0xf]
    %v6417 = vld [vmem:[%s17 + $0x118] sm:$0xf]
    %v6418 = vld [vmem:[%s17 + $0x11c] sm:$0xf]
    %v6419 = vld [vmem:[%s17 + $0x120] sm:$0xf]
    %v6420 = vld [vmem:[%s17 + $0x124] sm:$0xf]
    %v6421 = vld [vmem:[%s17 + $0x128] sm:$0xf]
    %v6422 = vld [vmem:[%s17 + $0x12c] sm:$0xf]
    %v6423 = vld [vmem:[%s17 + $0x130] sm:$0xf]
    %v6424 = vld [vmem:[%s17 + $0x134] sm:$0xf]
    %v6425 = vld [vmem:[%s17 + $0x138] sm:$0xf]
    %v6426 = vld [vmem:[%s17 + $0x13c] sm:$0xf]
    %v6427 = vld [vmem:[%s17 + $0x140] sm:$0xf]
    %v6428 = vld [vmem:[%s17 + $0x144] sm:$0xf]
    %v6429 = vld [vmem:[%s17 + $0x148] sm:$0xf]
    %v6430 = vld [vmem:[%s17 + $0x14c] sm:$0xf]
    %v6431 = vld [vmem:[%s17 + $0x150] sm:$0xf]
    %v6432 = vld [vmem:[%s17 + $0x154] sm:$0xf]
    %v6433 = vld [vmem:[%s17 + $0x158] sm:$0xf]
    %v6434 = vld [vmem:[%s17 + $0x15c] sm:$0xf]
    %v6435 = vld [vmem:[%s17 + $0x160] sm:$0xf]
    %v6436 = vld [vmem:[%s17 + $0x164] sm:$0xf]
    %v6437 = vld [vmem:[%s17 + $0x168] sm:$0xf]
    %v6438 = vld [vmem:[%s17 + $0x16c] sm:$0xf]
    %v6439 = vld [vmem:[%s17 + $0x170] sm:$0xf]
    %v6440 = vld [vmem:[%s17 + $0x174] sm:$0xf]
    %v6441 = vld [vmem:[%s17 + $0x178] sm:$0xf]
    %v6442 = vld [vmem:[%s17 + $0x17c] sm:$0xf]
    %v6455 = vunpack.c.l.b16 %v6335
    %v6456 = vunpack.c.l.b16 %v6336
    %v6457 = vunpack.c.l.b16 %v6337
    %v6458 = vunpack.c.l.b16 %v6338
    %v6459 = vunpack.c.l.b16 %v6339
    %v6460 = vunpack.c.l.b16 %v6340
    %v6461 = vunpack.c.l.b16 %v6341
    %v6462 = vunpack.c.l.b16 %v6342
    %v6463 = vunpack.c.l.b16 %v6343
    %v6464 = vunpack.c.l.b16 %v6344
    %v6465 = vunpack.c.l.b16 %v6345
    %v6466 = vunpack.c.l.b16 %v6346
    %v6467 = vsel %vm4403, %v6461, %v6455
    %v6468 = vsel %vm4403, %v6462, %v6456
    %v6469 = vsel %vm4403, %v6463, %v6457
    %v6470 = vsel %vm4403, %v6464, %v6458
    %v6471 = vsel %vm4403, %v6465, %v6459
    %v6472 = vsel %vm4403, %v6466, %v6460
    %v6473 = vpack.c.b16 %v6467, %v6467
    %v6474 = vpack.c.b16 %v6468, %v6468
    %v6475 = vpack.c.b16 %v6469, %v6469
    %v6476 = vpack.c.b16 %v6470, %v6470
    %v6477 = vpack.c.b16 %v6471, %v6471
    %v6478 = vpack.c.b16 %v6472, %v6472
    %v6581 = vunpack.c.l.b16 %v6347
    %v6582 = vunpack.c.l.b16 %v6348
    %v6583 = vunpack.c.l.b16 %v6349
    %v6584 = vunpack.c.l.b16 %v6350
    %v6585 = vunpack.c.l.b16 %v6351
    %v6586 = vunpack.c.l.b16 %v6352
    %v6587 = vunpack.c.l.b16 %v6353
    %v6588 = vunpack.c.l.b16 %v6354
    %v6589 = vunpack.c.l.b16 %v6355
    %v6590 = vunpack.c.l.b16 %v6356
    %v6591 = vunpack.c.l.b16 %v6357
    %v6592 = vunpack.c.l.b16 %v6358
    %v6593 = vunpack.c.l.b16 %v6359
    %v6594 = vunpack.c.l.b16 %v6360
    %v6595 = vunpack.c.l.b16 %v6361
    %v6596 = vunpack.c.l.b16 %v6362
    %v6597 = vunpack.c.l.b16 %v6363
    %v6598 = vunpack.c.l.b16 %v6364
    %v6599 = vunpack.c.l.b16 %v6365
    %v6600 = vunpack.c.l.b16 %v6366
    %v6601 = vunpack.c.l.b16 %v6367
    %v6602 = vunpack.c.l.b16 %v6368
    %v6603 = vunpack.c.l.b16 %v6369
    %v6604 = vunpack.c.l.b16 %v6370
    %v6605 = vunpack.c.l.b16 %v6371
    %v6606 = vunpack.c.l.b16 %v6372
    %v6607 = vunpack.c.l.b16 %v6373
    %v6608 = vunpack.c.l.b16 %v6374
    %v6609 = vunpack.c.l.b16 %v6375
    %v6610 = vunpack.c.l.b16 %v6376
    %v6611 = vunpack.c.l.b16 %v6377
    %v6612 = vunpack.c.l.b16 %v6378
    %v6613 = vunpack.c.l.b16 %v6379
    %v6614 = vunpack.c.l.b16 %v6380
    %v6615 = vunpack.c.l.b16 %v6381
    %v6616 = vunpack.c.l.b16 %v6382
    %v6617 = vunpack.c.l.b16 %v6383
    %v6618 = vunpack.c.l.b16 %v6384
    %v6619 = vunpack.c.l.b16 %v6385
    %v6620 = vunpack.c.l.b16 %v6386
    %v6621 = vunpack.c.l.b16 %v6387
    %v6622 = vunpack.c.l.b16 %v6388
    %v6623 = vunpack.c.l.b16 %v6389
    %v6624 = vunpack.c.l.b16 %v6390
    %v6625 = vunpack.c.l.b16 %v6391
    %v6626 = vunpack.c.l.b16 %v6392
    %v6627 = vunpack.c.l.b16 %v6393
    %v6628 = vunpack.c.l.b16 %v6394
    %v6629 = vunpack.c.l.b16 %v6395
    %v6630 = vunpack.c.l.b16 %v6396
    %v6631 = vunpack.c.l.b16 %v6397
    %v6632 = vunpack.c.l.b16 %v6398
    %v6633 = vunpack.c.l.b16 %v6399
    %v6634 = vunpack.c.l.b16 %v6400
    %v6635 = vunpack.c.l.b16 %v6401
    %v6636 = vunpack.c.l.b16 %v6402
    %v6637 = vunpack.c.l.b16 %v6403
    %v6638 = vunpack.c.l.b16 %v6404
    %v6639 = vunpack.c.l.b16 %v6405
    %v6640 = vunpack.c.l.b16 %v6406
    %v6641 = vunpack.c.l.b16 %v6407
    %v6642 = vunpack.c.l.b16 %v6408
    %v6643 = vunpack.c.l.b16 %v6409
    %v6644 = vunpack.c.l.b16 %v6410
    %v6645 = vunpack.c.l.b16 %v6411
    %v6646 = vunpack.c.l.b16 %v6412
    %v6647 = vunpack.c.l.b16 %v6413
    %v6648 = vunpack.c.l.b16 %v6414
    %v6649 = vunpack.c.l.b16 %v6415
    %v6650 = vunpack.c.l.b16 %v6416
    %v6651 = vunpack.c.l.b16 %v6417
    %v6652 = vunpack.c.l.b16 %v6418
    %v6653 = vunpack.c.l.b16 %v6419
    %v6654 = vunpack.c.l.b16 %v6420
    %v6655 = vunpack.c.l.b16 %v6421
    %v6656 = vunpack.c.l.b16 %v6422
    %v6657 = vunpack.c.l.b16 %v6423
    %v6658 = vunpack.c.l.b16 %v6424
    %v6659 = vunpack.c.l.b16 %v6425
    %v6660 = vunpack.c.l.b16 %v6426
    %v6661 = vunpack.c.l.b16 %v6427
    %v6662 = vunpack.c.l.b16 %v6428
    %v6663 = vunpack.c.l.b16 %v6429
    %v6664 = vunpack.c.l.b16 %v6430
    %v6665 = vunpack.c.l.b16 %v6431
    %v6666 = vunpack.c.l.b16 %v6432
    %v6667 = vunpack.c.l.b16 %v6433
    %v6668 = vunpack.c.l.b16 %v6434
    %v6669 = vunpack.c.l.b16 %v6435
    %v6670 = vunpack.c.l.b16 %v6436
    %v6671 = vunpack.c.l.b16 %v6437
    %v6672 = vunpack.c.l.b16 %v6438
    %v6673 = vunpack.c.l.b16 %v6439
    %v6674 = vunpack.c.l.b16 %v6440
    %v6675 = vunpack.c.l.b16 %v6441
    %v6676 = vunpack.c.l.b16 %v6442
    %v6677 = vpack.c.b16 %v6582, %v6581
    %v6678 = vpack.c.b16 %v6584, %v6583
    %v6679 = vpack.c.b16 %v6586, %v6585
    %v6680 = vpack.c.b16 %v6588, %v6587
    %v6681 = vpack.c.b16 %v6590, %v6589
    %v6682 = vpack.c.b16 %v6592, %v6591
    %v6683 = vpack.c.b16 %v6594, %v6593
    %v6684 = vpack.c.b16 %v6596, %v6595
    %v6685 = vpack.c.b16 %v6598, %v6597
    %v6686 = vpack.c.b16 %v6600, %v6599
    %v6687 = vpack.c.b16 %v6602, %v6601
    %v6688 = vpack.c.b16 %v6604, %v6603
    %v6689 = vpack.c.b16 %v6606, %v6605
    %v6690 = vpack.c.b16 %v6608, %v6607
    %v6691 = vpack.c.b16 %v6610, %v6609
    %v6692 = vpack.c.b16 %v6612, %v6611
    %v6693 = vpack.c.b16 %v6614, %v6613
    %v6694 = vpack.c.b16 %v6616, %v6615
    %v6695 = vpack.c.b16 %v6618, %v6617
    %v6696 = vpack.c.b16 %v6620, %v6619
    %v6697 = vpack.c.b16 %v6622, %v6621
    %v6698 = vpack.c.b16 %v6624, %v6623
    %v6699 = vpack.c.b16 %v6626, %v6625
    %v6700 = vpack.c.b16 %v6628, %v6627
    %v6701 = vpack.c.b16 %v6630, %v6629
    %v6702 = vpack.c.b16 %v6632, %v6631
    %v6703 = vpack.c.b16 %v6634, %v6633
    %v6704 = vpack.c.b16 %v6636, %v6635
    %v6705 = vpack.c.b16 %v6638, %v6637
    %v6706 = vpack.c.b16 %v6640, %v6639
    %v6707 = vpack.c.b16 %v6642, %v6641
    %v6708 = vpack.c.b16 %v6644, %v6643
    %v6709 = vpack.c.b16 %v6646, %v6645
    %v6710 = vpack.c.b16 %v6648, %v6647
    %v6711 = vpack.c.b16 %v6650, %v6649
    %v6712 = vpack.c.b16 %v6652, %v6651
    %v6713 = vpack.c.b16 %v6654, %v6653
    %v6714 = vpack.c.b16 %v6656, %v6655
    %v6715 = vpack.c.b16 %v6658, %v6657
    %v6716 = vpack.c.b16 %v6660, %v6659
    %v6717 = vpack.c.b16 %v6662, %v6661
    %v6718 = vpack.c.b16 %v6664, %v6663
    %v6719 = vpack.c.b16 %v6666, %v6665
    %v6720 = vpack.c.b16 %v6668, %v6667
    %v6721 = vpack.c.b16 %v6670, %v6669
    %v6722 = vpack.c.b16 %v6672, %v6671
    %v6723 = vpack.c.b16 %v6674, %v6673
    %v6724 = vpack.c.b16 %v6676, %v6675
    %6773 = vmatprep.subr.bf16.mxu0 0
    %6774 = vmatpush1.bf16.msra.mxu0 %v6677
    %6775 = vmatprep.subr.bf16.mxu0 0
    %6776 = vmatpush1.bf16.msra.mxu0 %v6678
    %6777 = vmatprep.subr.bf16.mxu0 0
    %6778 = vmatpush1.bf16.msra.mxu0 %v6679
    %6779 = vmatprep.subr.bf16.mxu0 0
    %6780 = vmatpush1.bf16.msra.mxu0 %v6680
    %6781 = vmatprep.subr.bf16.mxu0 0
    %6782 = vmatpush1.bf16.msra.mxu0 %v6681
    %6783 = vmatprep.subr.bf16.mxu0 0
    %6784 = vmatpush1.bf16.msra.mxu0 %v6682
    %6785 = vmatprep.subr.bf16.mxu0 0
    %6786 = vmatpush1.bf16.msra.mxu0 %v6683
    %6787 = vmatprep.subr.bf16.mxu0 0
    %6788 = vmatpush1.bf16.msra.mxu0 %v6684
    %6789 = vmatprep.subr.bf16.mxu0 0
    %6790 = vmatpush1.bf16.msra.mxu0 %v6685
    %6791 = vmatprep.subr.bf16.mxu0 0
    %6792 = vmatpush1.bf16.msra.mxu0 %v6686
    %6793 = vmatprep.subr.bf16.mxu0 0
    %6794 = vmatpush1.bf16.msra.mxu0 %v6687
    %6795 = vmatprep.subr.bf16.mxu0 0
    %6796 = vmatpush1.bf16.msra.mxu0 %v6688
    %6797 = vmatprep.subr.bf16.mxu0 0
    %6798 = vmatpush1.bf16.msra.mxu0 %v6689
    %6799 = vmatprep.subr.bf16.mxu0 0
    %6800 = vmatpush1.bf16.msra.mxu0 %v6690
    %6801 = vmatprep.subr.bf16.mxu0 0
    %6802 = vmatpush1.bf16.msra.mxu0 %v6691
    %6803 = vmatprep.subr.bf16.mxu0 0
    %6804 = vmatpush1.bf16.msra.mxu0 %v6692
    %6805 = vmatprep.mubr.bf16.mxu0 %v6474
    %6806 = vmatmul.mubr.bf16.gmra.mrb[0].mxu0 %v6473
    %v6807 = vpop.f32.mrb[0].mxu0
    %v6808 = vadd.f32 0.0, %v6807
    %v6809 = vpop.f32.mrb[0].mxu0
    %v6810 = vpop.f32.mrb[0].mxu0
    %v6811 = vpop.f32.mrb[0].mxu0
    %6812 = vdwg.mxu0
    %6813 = vmatprep.subr.bf16.mxu0 0
    %6814 = vmatpush1.bf16.msra.mxu0 %v6693
    %6815 = vmatprep.subr.bf16.mxu0 0
    %6816 = vmatpush1.bf16.msra.mxu0 %v6694
    %6817 = vmatprep.subr.bf16.mxu0 0
    %6818 = vmatpush1.bf16.msra.mxu0 %v6695
    %6819 = vmatprep.subr.bf16.mxu0 0
    %6820 = vmatpush1.bf16.msra.mxu0 %v6696
    %6821 = vmatprep.subr.bf16.mxu0 0
    %6822 = vmatpush1.bf16.msra.mxu0 %v6697
    %6823 = vmatprep.subr.bf16.mxu0 0
    %6824 = vmatpush1.bf16.msra.mxu0 %v6698
    %6825 = vmatprep.subr.bf16.mxu0 0
    %6826 = vmatpush1.bf16.msra.mxu0 %v6699
    %6827 = vmatprep.subr.bf16.mxu0 0
    %6828 = vmatpush1.bf16.msra.mxu0 %v6700
    %6829 = vmatprep.subr.bf16.mxu0 0
    %6830 = vmatpush1.bf16.msra.mxu0 %v6701
    %6831 = vmatprep.subr.bf16.mxu0 0
    %6832 = vmatpush1.bf16.msra.mxu0 %v6702
    %6833 = vmatprep.subr.bf16.mxu0 0
    %6834 = vmatpush1.bf16.msra.mxu0 %v6703
    %6835 = vmatprep.subr.bf16.mxu0 0
    %6836 = vmatpush1.bf16.msra.mxu0 %v6704
    %6837 = vmatprep.subr.bf16.mxu0 0
    %6838 = vmatpush1.bf16.msra.mxu0 %v6705
    %6839 = vmatprep.subr.bf16.mxu0 0
    %6840 = vmatpush1.bf16.msra.mxu0 %v6706
    %6841 = vmatprep.subr.bf16.mxu0 0
    %6842 = vmatpush1.bf16.msra.mxu0 %v6707
    %6843 = vmatprep.subr.bf16.mxu0 0
    %6844 = vmatpush1.bf16.msra.mxu0 %v6708
    %6845 = vmatprep.mubr.bf16.mxu0 %v6476
    %6846 = vmatmul.mubr.bf16.gmra.mrb[0].mxu0 %v6475
    %v6847 = vpop.f32.mrb[0].mxu0
    %v6848 = vadd.f32 %v6808, %v6847
    %v6849 = vpop.f32.mrb[0].mxu0
    %v6850 = vpop.f32.mrb[0].mxu0
    %v6851 = vpop.f32.mrb[0].mxu0
    %6852 = vdwg.mxu0
    %6853 = vmatprep.subr.bf16.mxu0 0
    %6854 = vmatpush1.bf16.msra.mxu0 %v6709
    %6855 = vmatprep.subr.bf16.mxu0 0
    %6856 = vmatpush1.bf16.msra.mxu0 %v6710
    %6857 = vmatprep.subr.bf16.mxu0 0
    %6858 = vmatpush1.bf16.msra.mxu0 %v6711
    %6859 = vmatprep.subr.bf16.mxu0 0
    %6860 = vmatpush1.bf16.msra.mxu0 %v6712
    %6861 = vmatprep.subr.bf16.mxu0 0
    %6862 = vmatpush1.bf16.msra.mxu0 %v6713
    %6863 = vmatprep.subr.bf16.mxu0 0
    %6864 = vmatpush1.bf16.msra.mxu0 %v6714
    %6865 = vmatprep.subr.bf16.mxu0 0
    %6866 = vmatpush1.bf16.msra.mxu0 %v6715
    %6867 = vmatprep.subr.bf16.mxu0 0
    %6868 = vmatpush1.bf16.msra.mxu0 %v6716
    %6869 = vmatprep.subr.bf16.mxu0 0
    %6870 = vmatpush1.bf16.msra.mxu0 %v6717
    %6871 = vmatprep.subr.bf16.mxu0 0
    %6872 = vmatpush1.bf16.msra.mxu0 %v6718
    %6873 = vmatprep.subr.bf16.mxu0 0
    %6874 = vmatpush1.bf16.msra.mxu0 %v6719
    %6875 = vmatprep.subr.bf16.mxu0 0
    %6876 = vmatpush1.bf16.msra.mxu0 %v6720
    %6877 = vmatprep.subr.bf16.mxu0 0
    %6878 = vmatpush1.bf16.msra.mxu0 %v6721
    %6879 = vmatprep.subr.bf16.mxu0 0
    %6880 = vmatpush1.bf16.msra.mxu0 %v6722
    %6881 = vmatprep.subr.bf16.mxu0 0
    %6882 = vmatpush1.bf16.msra.mxu0 %v6723
    %6883 = vmatprep.subr.bf16.mxu0 0
    %6884 = vmatpush1.bf16.msra.mxu0 %v6724
    %6885 = vmatprep.mubr.bf16.mxu0 %v6478
    %6886 = vmatmul.mubr.bf16.gmra.mrb[0].mxu0 %v6477
    %v6887 = vpop.f32.mrb[0].mxu0
    %v6888 = vadd.f32 %v6848, %v6887
    %v6889 = vpop.f32.mrb[0].mxu0
    %v6890 = vpop.f32.mrb[0].mxu0
    %v6891 = vpop.f32.mrb[0].mxu0
    %6892 = vdwg.mxu0
    %v6900 = vunpack.c.l.b16 %v6328
    %v6901 = vunpack.c.l.b16 %v6329
    %v6902 = vunpack.c.l.b16 %v6330
    %v6903 = vunpack.c.l.b16 %v6331
    %v6904 = vunpack.c.l.b16 %v6332
    %v6905 = vunpack.c.l.b16 %v6333
    %v6906 = vunpack.c.l.b16 %v6334
    %v6907 = vpack.c.b16 %v6901, %v6900
    %v6908 = vpack.c.b16 %v6903, %v6902
    %v6909 = vpack.c.b16 %v6905, %v6904
    %v6910 = vpack.c.b16 %v6906, %v6906
    %vm6914 = vcmask 408576
    %v6916 = vsel %vm6914, %v6327, 0
    %vm6918 = vcmask 1040384
    %v6920 = vsel %vm6918, %v6910, 0
    %6922 = vmatprep.subr.bf16.mxu0 0
    %6923 = vmatpush1.bf16.msra.mxu0 %v6907
    %6924 = vmatprep.subr.bf16.mxu0 0
    %6925 = vmatpush1.bf16.msra.mxu0 %v6908
    %6926 = vmatprep.subr.bf16.mxu0 0
    %6927 = vmatpush1.bf16.msra.mxu0 %v6909
    %6928 = vmatprep.subr.bf16.mxu0 0
    %6929 = vmatpush1.bf16.msra.mxu0 %v6920
    %6930 = vmatprep.subr.bf16.mxu0 0
    %6931 = vmatpush1.bf16.msra.mxu0 0
    %6932 = vmatprep.subr.bf16.mxu0 0
    %6933 = vmatpush1.bf16.msra.mxu0 0
    %6934 = vmatprep.subr.bf16.mxu0 0
    %6935 = vmatpush1.bf16.msra.mxu0 0
    %6936 = vmatprep.subr.bf16.mxu0 0
    %6937 = vmatpush1.bf16.msra.mxu0 0
    %6938 = vmatprep.subr.bf16.mxu0 0
    %6939 = vmatpush1.bf16.msra.mxu0 0
    %6940 = vmatprep.subr.bf16.mxu0 0
    %6941 = vmatpush1.bf16.msra.mxu0 0
    %6942 = vmatprep.subr.bf16.mxu0 0
    %6943 = vmatpush1.bf16.msra.mxu0 0
    %6944 = vmatprep.subr.bf16.mxu0 0
    %6945 = vmatpush1.bf16.msra.mxu0 0
    %6946 = vmatprep.subr.bf16.mxu0 0
    %6947 = vmatpush1.bf16.msra.mxu0 0
    %6948 = vmatprep.subr.bf16.mxu0 0
    %6949 = vmatpush1.bf16.msra.mxu0 0
    %6950 = vmatprep.subr.bf16.mxu0 0
    %6951 = vmatpush1.bf16.msra.mxu0 0
    %6952 = vmatprep.subr.bf16.mxu0 0
    %6953 = vmatpush1.bf16.msra.mxu0 0
    %6954 = vmatprep.mubr.bf16.mxu0 0
    %6955 = vmatmul.mubr.bf16.gmra.mrb[0].mxu0 %v6916
    %v6956 = vpop.f32.mrb[0].mxu0
    %v6957 = vadd.f32 %v6888, %v6956
    %v6958 = vpop.f32.mrb[0].mxu0
    %v6959 = vpop.f32.mrb[0].mxu0
    %v6960 = vpop.f32.mrb[0].mxu0
    %6961 = vdwg.mxu0
    %v6962 = vld [vmem:[#allocation26] sm:$0x1]
    %v6964 = vlaneseq
    %v6965 = vshrl.u32 %v6964, 7
    %v6966 = vsub.s32 0, %v6965
    %v6967 = vrot.slane %v6962, %v6966
    %v6969 = vadd.f32 %v6957, %v6967
    %vm6970 = vcmask 9216
    %6971 = vst.msk [vmem:[#allocation27] sm:$0x3] %vm6970, %v6969
    // Predicated region
    $region138: #{tpu_custom_call.1} parent=1 // pred_check
      _
    $region139: #{tpu_custom_call.1} parent=1 // pred_check_branch
      %6973 = sbr.rel (0) target = $region141
    $region140: #{tpu_custom_call.1} parent=1 // pred_region
      %s6975 = ssub.s32 32, 32
      %6976 = vsyncadd [#allocation5], %s6975
      %s6978 = sshll.u32 [#allocation27], 4
      %s6979 = int_to_ptr.vmem [resolvable:$true] %s6978
      %6981 = dma.vmem_to_hbm [thread:$0]  %s6979, 32, %s19, [#allocation5]
    $region141: #{tpu_custom_call.1} parent=1 // pred_fallthru
      _
    // Predicated region
    $region142: #{tpu_custom_call.1} parent=1 // pred_check
      _
    $region143: #{tpu_custom_call.1} parent=1 // pred_check_branch
      %6983 = sbr.rel (0) target = $region145
    $region144: #{tpu_custom_call.1} parent=1 // pred_region
      %s6985 = ssub.s32 32, 32
      %6986 = vsyncadd [#allocation29], %s6985
      %s6988 = sshll.u32 [#allocation28], 4
      %s6989 = int_to_ptr.vmem [resolvable:$true] %s6988
      %6991 = dma.vmem_to_hbm [thread:$0]  %s6989, 32, %s20, [#allocation29]
    $region145: #{tpu_custom_call.1} parent=1 // pred_fallthru
      _
    // Predicated region
    $region146: #{tpu_custom_call.1} parent=1 // pred_check
      _
    $region147: #{tpu_custom_call.1} parent=1 // pred_check_branch
      %6993 = sbr.rel (0) target = $region149
    $region148: #{tpu_custom_call.1} parent=1 // pred_region
      %s6995 = ssub.s32 32, 32
      %6996 = vsyncadd [#allocation29], %s6995
      %s6998 = sshll.u32 [#allocation30], 4
      %s6999 = int_to_ptr.vmem [resolvable:$true] %s6998
      %7001 = dma.vmem_to_hbm [thread:$0]  %s6999, 32, %s21, [#allocation29]
    $region149: #{tpu_custom_call.1} parent=1 // pred_fallthru
      _
    // Predicated region
    $region150: #{tpu_custom_call.1} parent=1 // pred_check
      _
    $region151: #{tpu_custom_call.1} parent=1 // pred_check_branch
      %7003 = sbr.rel (0) target = $region153
    $region152: #{tpu_custom_call.1} parent=1 // pred_region
      %s7005 = ssub.s32 192, 192
      %7006 = vsyncadd [#allocation32], %s7005
      %s7008 = sshll.u32 [#allocation31], 4
      %s7009 = int_to_ptr.vmem [resolvable:$true] %s7008
      %7011 = dma.vmem_to_hbm [thread:$0]  %s7009, 192, %s22, [#allocation32]
    $region153: #{tpu_custom_call.1} parent=1 // pred_fallthru
      _
    // Predicated region
    $region154: #{tpu_custom_call.1} parent=1 // pred_check
      _
    $region155: #{tpu_custom_call.1} parent=1 // pred_check_branch
      %7013 = sbr.rel (0) target = $region157
    $region156: #{tpu_custom_call.1} parent=1 // pred_region
      %7014 = dma.done [#allocation5], 32
    $region157: #{tpu_custom_call.1} parent=1 // pred_fallthru
      _
    // Predicated region
    $region158: #{tpu_custom_call.1} parent=1 // pred_check
      _
    $region159: #{tpu_custom_call.1} parent=1 // pred_check_branch
      %7016 = sbr.rel (0) target = $region161
    $region160: #{tpu_custom_call.1} parent=1 // pred_region
      %7017 = dma.done [#allocation29], 32
    $region161: #{tpu_custom_call.1} parent=1 // pred_fallthru
      _
    // Predicated region
    $region162: #{tpu_custom_call.1} parent=1 // pred_check
      _
    $region163: #{tpu_custom_call.1} parent=1 // pred_check_branch
      %7019 = sbr.rel (0) target = $region165
    $region164: #{tpu_custom_call.1} parent=1 // pred_region
      %7020 = dma.done [#allocation29], 32
    $region165: #{tpu_custom_call.1} parent=1 // pred_fallthru
      _
    // Predicated region
    $region166: #{tpu_custom_call.1} parent=1 // pred_check
      _
    $region167: #{tpu_custom_call.1} parent=1 // pred_check_branch
      %7022 = sbr.rel (0) target = $region169
    $region168: #{tpu_custom_call.1} parent=1 // pred_region
      %7023 = dma.done [#allocation32], 192
    $region169: #{tpu_custom_call.1} parent=1 // pred_fallthru
      _
    %7024 = vsyncpa [#allocation4], 1
    %7025 = vsyncpa [#allocation7], 1
    %7026 = vsyncpa [#allocation10], 1
    %7027 = vsyncpa [#allocation13], 1
    %7028 = vsyncpa [#allocation16], 1
    %7029 = vsyncpa [#allocation19], 1
    %7030 = vsyncpa [#allocation22], 1
    %7031 = vsyncpa [#allocation25], 1
    %7032 = vsyncpa [#allocation5], 1
    %7033 = vsyncpa [#allocation29], 1
    %7034 = vsyncpa [#allocation32], 1

</llo_original>
